<compile_context>
chip_gen: v5e
topology: v5e:2x2
jax: 0.10.0
libtpu: 0.0.40
codegen_flags: <defaults>
</compile_context>

<pallas_src>
import functools

import jax
import jax.numpy as jnp
from jax import lax
from jax.experimental import pallas as pl
from jax.experimental.pallas import tpu as pltpu

IN_FEATURES = 196608   # 3 * 32 * 32 * 64, fixed by the PyTorch module
OUT_FEATURES = 10


def _linear_kernel(x_ref, w_ref, b_ref, o_ref):
    """One grid step computes a partial product over a K-tile.

    x_ref: (B, tk)  VMEM tile of the input        (K on lanes)
    w_ref: (N, tk)  VMEM tile of the torch-layout weight (K on lanes)
    b_ref: (1, N)   bias (same block every step)
    o_ref: (B, N)   f32 output, resident across the K axis -> accumulator
    """
    k = pl.program_id(0)

    @pl.when(k == 0)
    def _():
        o_ref[...] = jnp.zeros_like(o_ref)

    # Contract the last (lane) dim of both tiles: (B, tk) x (N, tk) -> (B, N).
    o_ref[...] += lax.dot_general(
        x_ref[...],
        w_ref[...],
        dimension_numbers=(((1,), (1,)), ((), ())),
        preferred_element_type=jnp.float32,
    )

    @pl.when(k == pl.num_programs(0) - 1)
    def _():
        o_ref[...] += b_ref[...]


@functools.partial(jax.jit, static_argnames=("tk",))
def tudui_forward(x, w, b, *, tk=32768):
    """output = x @ w.T + b  (torch.nn.Linear(196608, 10) forward).

    x: (B, K) f32, w: (N, K) f32 (torch layout), b: (N,) f32.
    """
    B, K = x.shape
    N, Kw = w.shape
    assert K == Kw
    # 196608 = 2^16 * 3; valid tk divisors include 12288, 16384, 24576, 32768.
    assert K % tk == 0, "K must be divisible by the K-tile size"
    b2d = b.reshape(1, N)

    cost = pl.CostEstimate(
        flops=2 * B * K * N,
        bytes_accessed=(B * K + N * K + B * N + N) * 4,
        transcendentals=0,
    )

    return pl.pallas_call(
        _linear_kernel,
        out_shape=jax.ShapeDtypeStruct((B, N), jnp.float32),
        grid_spec=pltpu.PrefetchScalarGridSpec(
            num_scalar_prefetch=0,
            grid=(K // tk,),
            in_specs=[
                pl.BlockSpec((B, tk), lambda k: (0, k)),   # input K-tiles
                pl.BlockSpec((N, tk), lambda k: (0, k)),   # lane-dense weight K-tiles
                pl.BlockSpec((1, N), lambda k: (0, 0)),    # bias, resident
            ],
            out_specs=pl.BlockSpec((B, N), lambda k: (0, 0)),
        ),
        compiler_params=pltpu.CompilerParams(
            dimension_semantics=("arbitrary",),  # K is a reduction axis
        ),
        cost_estimate=cost,
    )(x, w, b2d)


def init_params(key):
    """Deterministic init matching torch.nn.Linear's default scheme:
    U(-1/sqrt(in_features), 1/sqrt(in_features)) for both weight and bias."""
    kw, kb = jax.random.split(key)
    bound = 1.0 / (IN_FEATURES ** 0.5)
    # torch stores weight as (out_features, in_features); kernel keeps this layout.
    w = jax.random.uniform(
        kw, (OUT_FEATURES, IN_FEATURES), jnp.float32, -bound, bound
    )
    b = jax.random.uniform(kb, (OUT_FEATURES,), jnp.float32, -bound, bound)
    return w, b


if __name__ == "__main__":
    key = jax.random.PRNGKey(0)
    kx, kp = jax.random.split(key)

    # Small batch; in_features is fixed at 196608 by the module definition.
    B = 2
    x = jax.random.normal(kx, (B, IN_FEATURES), jnp.float32)

    w, b = init_params(kp)

    out = tudui_forward(x, w, b)
    out = jax.block_until_ready(out)

    # Sanity check against plain-JAX reference.
    ref = x @ w.T + b
    assert out.shape == (B, OUT_FEATURES)
    assert jnp.allclose(out, ref, atol=1e-3, rtol=1e-3)

    print("KERNEL_OK")
</pallas_src>

<mosaic_0001>
module attributes {stable_mosaic.version = 11 : i64} {
  func.func @_linear_kernel(%arg0: i32, %arg1: memref<2x32768xf32, #tpu.memory_space<vmem>>, %arg2: memref<10x32768xf32, #tpu.memory_space<vmem>>, %arg3: memref<1x10xf32, #tpu.memory_space<vmem>>, %arg4: memref<2x10xf32, #tpu.memory_space<vmem>>) attributes {dimension_semantics = [#tpu.dimension_semantics<arbitrary>], iteration_bounds = array<i64: 6>, scalar_prefetch = 0 : i64, scratch_operands = 0 : i64, tpu.core_type = #tpu.core_type<tc>, window_params = [{transform_indices = @transform_0, window_bounds = array<i64: 2, 32768>}, {transform_indices = @transform_1, window_bounds = array<i64: 10, 32768>}, {pipeline_mode = #tpu.pipeline_mode<synchronous>, transform_indices = @transform_2, window_bounds = array<i64: 1, 10>}, {pipeline_mode = #tpu.pipeline_mode<synchronous>, transform_indices = @transform_3, window_bounds = array<i64: 2, 10>}]} {
    %c0_i32 = arith.constant 0 : i32
    %0 = arith.cmpi eq, %arg0, %c0_i32 : i32
    %1 = arith.extui %0 : i1 to i32
    %c0_i32_0 = arith.constant 0 : i32
    %2 = arith.cmpi ne, %1, %c0_i32_0 : i32
    scf.if %2 {
      %cst_9 = arith.constant 0.000000e+00 : f32
      %12 = vector.broadcast %cst_9 : f32 to vector<2x10xf32>
      %c0_10 = arith.constant 0 : index
      %c0_11 = arith.constant 0 : index
      %13 = vector.load %arg4[%c0_10, %c0_11] : memref<2x10xf32, #tpu.memory_space<vmem>>, vector<2x10xf32>
      tpu.vector_store %arg4[%c0_10, %c0_11], %12 {strides = array<i32>} : memref<2x10xf32, #tpu.memory_space<vmem>>, vector<2x10xf32>,
    } else {
    }
    %c0 = arith.constant 0 : index
    %c0_1 = arith.constant 0 : index
    %3 = vector.load %arg4[%c0, %c0_1] : memref<2x10xf32, #tpu.memory_space<vmem>>, vector<2x10xf32>
    %c0_2 = arith.constant 0 : index
    %c0_3 = arith.constant 0 : index
    %4 = vector.load %arg1[%c0_2, %c0_3] : memref<2x32768xf32, #tpu.memory_space<vmem>>, vector<2x32768xf32>
    %c0_4 = arith.constant 0 : index
    %c0_5 = arith.constant 0 : index
    %5 = vector.load %arg2[%c0_4, %c0_5] : memref<10x32768xf32, #tpu.memory_space<vmem>>, vector<10x32768xf32>
    %cst = arith.constant dense<0.000000e+00> : vector<2x10xf32>
    %6 = tpu.matmul %4, %5, %cst {dimension_numbers = #tpu.dot_dimension_numbers<[1], [1], [0], [0], [0, 0, 1, 0], [], []>} : vector<2x32768xf32>, vector<10x32768xf32>, vector<2x10xf32> -> vector<2x10xf32>
    %7 = arith.addf %3, %6 : vector<2x10xf32>
    %c0_6 = arith.constant 0 : index
    %c0_7 = arith.constant 0 : index
    %8 = vector.load %arg4[%c0_6, %c0_7] : memref<2x10xf32, #tpu.memory_space<vmem>>, vector<2x10xf32>
    tpu.vector_store %arg4[%c0_6, %c0_7], %7 {strides = array<i32>} : memref<2x10xf32, #tpu.memory_space<vmem>>, vector<2x10xf32>,
    %c5_i32 = arith.constant 5 : i32
    %9 = arith.cmpi eq, %arg0, %c5_i32 : i32
    %10 = arith.extui %9 : i1 to i32
    %c0_i32_8 = arith.constant 0 : i32
    %11 = arith.cmpi ne, %10, %c0_i32_8 : i32
    scf.if %11 {
      %c0_9 = arith.constant 0 : index
      %c0_10 = arith.constant 0 : index
      %12 = vector.load %arg4[%c0_9, %c0_10] : memref<2x10xf32, #tpu.memory_space<vmem>>, vector<2x10xf32>
      %c0_11 = arith.constant 0 : index
      %c0_12 = arith.constant 0 : index
      %13 = vector.load %arg3[%c0_11, %c0_12] : memref<1x10xf32, #tpu.memory_space<vmem>>, vector<1x10xf32>
      %14 = vector.broadcast %13 : vector<1x10xf32> to vector<2x10xf32>
      %15 = arith.addf %12, %14 : vector<2x10xf32>
      %c0_13 = arith.constant 0 : index
      %c0_14 = arith.constant 0 : index
      %16 = vector.load %arg4[%c0_13, %c0_14] : memref<2x10xf32, #tpu.memory_space<vmem>>, vector<2x10xf32>
      tpu.vector_store %arg4[%c0_13, %c0_14], %15 {strides = array<i32>} : memref<2x10xf32, #tpu.memory_space<vmem>>, vector<2x10xf32>,
    } else {
    }
    return
  }
  func.func @transform_0(%arg0: i32) -> (i32, i32) {
    %c0_i32 = arith.constant 0 : i32
    %c0_i32_0 = arith.constant 0 : i32
    return %c0_i32, %arg0 : i32, i32
  }
  func.func @transform_1(%arg0: i32) -> (i32, i32) {
    %c0_i32 = arith.constant 0 : i32
    %c0_i32_0 = arith.constant 0 : i32
    return %c0_i32, %arg0 : i32, i32
  }
  func.func @transform_2(%arg0: i32) -> (i32, i32) {
    %c0_i32 = arith.constant 0 : i32
    %c0_i32_0 = arith.constant 0 : i32
    %c0_i32_1 = arith.constant 0 : i32
    return %c0_i32, %c0_i32_0 : i32, i32
  }
  func.func @transform_3(%arg0: i32) -> (i32, i32) {
    %c0_i32 = arith.constant 0 : i32
    %c0_i32_0 = arith.constant 0 : i32
    %c0_i32_1 = arith.constant 0 : i32
    return %c0_i32, %c0_i32_0 : i32, i32
  }
}

</mosaic_0001>

<llo_original>
// kernel: tudui_forward.1
$region0: #{tudui_forward.1}
  #allocation0 [shape = 'u32[]', space=smem, size = 0x4, offset = 0x4, fixed_abs, tag = 'smem constant byte address 0x4 - core index']
  #allocation1 [shape = 'u32[72,128]{1,0:T(1,128)}', space=vmem, size = 0x9000, scoped, tag = 'internal scratch']
  %s0 = inlined_call_operand.hbm [shape: f32[2,196608], index: 0, kind: input, shape index: {}]
  %s1 = inlined_call_operand.hbm [shape: f32[10,196608], index: 1, kind: input, shape index: {}]
  %s2 = inlined_call_operand.hbm [shape: f32[1,10], index: 2, kind: input, shape index: {}]
  %s3 = inlined_call_operand.hbm [shape: f32[2,10], index: 3, kind: output, shape index: {}]
  %s4 = sld [smem:[#allocation0]]
  $region65: #{tudui_forward.1} parent=0
    _
  %s6 = ssub.s32 1, %s4
  %s7 = scalar_select 0, %s6, %s4
  $region1: #{tudui_forward.1} parent=0
    #allocation2 [shape = 'u8[524288]{0}', space=vmem, size = 0x80000, scoped, tag = 'input window, operand 0']
    #allocation3 [shape = 's32[2]{0}', space=sflag, size = 0x8, scoped, tag = 'scoped memory for tudui_forward.1']
    #allocation4 [shape = 's32[2]{0}', space=sflag, size = 0x8, scoped, tag = 'scoped memory for tudui_forward.1']
    #allocation5 [shape = 'u8[4194304]{0}', space=vmem, size = 0x400000, scoped, tag = 'input window, operand 1']
    #allocation6 [shape = 's32[2]{0}', space=sflag, size = 0x8, scoped, tag = 'scoped memory for tudui_forward.1']
    #allocation7 [shape = 'u8[512]{0}', space=vmem, size = 0x400, scoped, tag = 'input window, operand 2, single buffered']
    #allocation8 [shape = 'u8[1024]{0}', space=vmem, size = 0x400, scoped, tag = 'output window, operand 0, single buffered']
    %8 = vsyncpa [#allocation3], 0
    %s9 = scalar_lea.sflag [#allocation3], 1
    %10 = vsyncpa %s9, 0
    %11 = vsyncpa [#allocation6], 0
    %s12 = scalar_lea.sflag [#allocation6], 1
    %13 = vsyncpa %s12, 0
    %14 = vsyncpa [#allocation4], 0
    loop: start=0, step=1, limit=8
    $region2: #{tudui_forward.1} parent=1 // loop_pre_header
      _
    $region3: #{tudui_forward.1} parent=1 // loop_header
      %s16 = sphi 0, %s20
      %p17 = scmp.ge.s32.totalorder %s16, 8
      %s26 = sphi 0, %s28
      %s29 = sphi 0, %s26
      %s30 = sphi 0, %s29
      %s46 = sphi 0, %s30
      %s52 = sphi 0, %s54
      %s55 = sphi 0, %s52
      %s56 = sphi 0, %s55
      %s72 = sphi 0, %s56
      %s76 = sphi 0, %s76
      %s78 = sphi 0, %s76
      %s79 = sphi 0, %s78
      %s93 = sphi 0, %s79
      %s97 = sphi 0, %s97
      %s99 = sphi 0, %s97
      %s100 = sphi 0, %s99
      %s114 = sphi 0, %s100
    $region4: #{tudui_forward.1} parent=1 // loop_header_branch
      %19 = sbr.rel (%p17) target = $region8
    $region5: #{tudui_forward.1} parent=1 // loop_body
      %s21 = ssub.s32 %s16, 1
      %s22 = ssub.s32 %s16, 2
      %s23 = sadd.s32 %s16, 1
      %s24 = ssub.s32 %s16, %s23
      %p25 = scmp.eq.s32.totalorder %s24, 0
      %s27 = sadd.s32 %s26, 1
      %s28 = scalar_select %p25, %s26, %s27
      %p31 = pneg %p25
      %p32 = scmp.eq.s32.totalorder %s16, 5
      %p33 = por %p31, %p32
      %p34 = scmp.ne.s32.totalorder %s26, %s29
      %p35 = scmp.eq.s32.totalorder %s16, 0
      %p36 = por %p34, %p35
      %p37 = scmp.ne.s32.totalorder %s26, %s29
      %p38 = scmp.eq.s32.totalorder %s21, 5
      %p39 = por %p37, %p38
      %p40 = scmp.ne.s32.totalorder %s29, %s30
      %p41 = scmp.eq.s32.totalorder %s21, 0
      %p42 = por %p40, %p41
      %p43 = scmp.ne.s32.totalorder %s29, %s30
      %p44 = scmp.eq.s32.totalorder %s22, 5
      %p45 = por %p43, %p44
      %p47 = scmp.ne.s32.totalorder %s30, %s46
      %p48 = scmp.eq.s32.totalorder %s22, 0
      %p49 = por %p47, %p48
      %s50 = ssub.s32 %s16, %s23
      %p51 = scmp.eq.s32.totalorder %s50, 0
      %s53 = sadd.s32 %s52, 1
      %s54 = scalar_select %p51, %s52, %s53
      %p57 = pneg %p51
      %p58 = scmp.eq.s32.totalorder %s16, 5
      %p59 = por %p57, %p58
      %p60 = scmp.ne.s32.totalorder %s52, %s55
      %p61 = scmp.eq.s32.totalorder %s16, 0
      %p62 = por %p60, %p61
      %p63 = scmp.ne.s32.totalorder %s52, %s55
      %p64 = scmp.eq.s32.totalorder %s21, 5
      %p65 = por %p63, %p64
      %p66 = scmp.ne.s32.totalorder %s55, %s56
      %p67 = scmp.eq.s32.totalorder %s21, 0
      %p68 = por %p66, %p67
      %p69 = scmp.ne.s32.totalorder %s55, %s56
      %p70 = scmp.eq.s32.totalorder %s22, 5
      %p71 = por %p69, %p70
      %p73 = scmp.ne.s32.totalorder %s56, %s72
      %p74 = scmp.eq.s32.totalorder %s22, 0
      %p75 = por %p73, %p74
      %s77 = sadd.s32 %s76, 1
      %p80 = scmp.eq.s32.totalorder %s16, 5
      %p81 = scmp.ne.s32.totalorder %s76, %s78
      %p82 = scmp.eq.s32.totalorder %s16, 0
      %p83 = por %p81, %p82
      %p84 = scmp.ne.s32.totalorder %s76, %s78
      %p85 = scmp.eq.s32.totalorder %s21, 5
      %p86 = por %p84, %p85
      %p87 = scmp.ne.s32.totalorder %s78, %s79
      %p88 = scmp.eq.s32.totalorder %s21, 0
      %p89 = por %p87, %p88
      %p90 = scmp.ne.s32.totalorder %s78, %s79
      %p91 = scmp.eq.s32.totalorder %s22, 5
      %p92 = por %p90, %p91
      %p94 = scmp.ne.s32.totalorder %s79, %s93
      %p95 = scmp.eq.s32.totalorder %s22, 0
      %p96 = por %p94, %p95
      %s98 = sadd.s32 %s97, 1
      %p101 = scmp.eq.s32.totalorder %s16, 5
      %p102 = scmp.ne.s32.totalorder %s97, %s99
      %p103 = scmp.eq.s32.totalorder %s16, 0
      %p104 = por %p102, %p103
      %p105 = scmp.ne.s32.totalorder %s97, %s99
      %p106 = scmp.eq.s32.totalorder %s21, 5
      %p107 = por %p105, %p106
      %p108 = scmp.ne.s32.totalorder %s99, %s100
      %p109 = scmp.eq.s32.totalorder %s21, 0
      %p110 = por %p108, %p109
      %p111 = scmp.ne.s32.totalorder %s99, %s100
      %p112 = scmp.eq.s32.totalorder %s22, 5
      %p113 = por %p111, %p112
      %p115 = scmp.ne.s32.totalorder %s100, %s114
      %p116 = scmp.eq.s32.totalorder %s22, 0
      %p117 = por %p115, %p116
      %p118 = scmp.le.s32.totalorder 1, %s16
      %p119 = scmp.lt.s32.totalorder %s16, 7
      %p120 = pnand %p118, %p119
      %p121 = pneg %p120
      // Predicated region
      $region9: #{tudui_forward.1} parent=5 // pred_check
        _
      $region10: #{tudui_forward.1} parent=5 // pred_check_branch
        %123 = sbr.rel (%p120) target = $region12
      $region11: #{tudui_forward.1} parent=5 // pred_region
        %s124 = ssub.s32 %s16, 1
        // Predicated region
        $region13: #{tudui_forward.1} parent=11 // pred_check
          %p125 = pneg %p89
        $region14: #{tudui_forward.1} parent=11 // pred_check_branch
          %127 = sbr.rel (%p125) target = $region16
        $region15: #{tudui_forward.1} parent=11 // pred_region
          %129 = vsyncadd [#allocation6], 0
          %s131 = sshll.u32 %s2, 4
          %s132 = int_to_ptr.hbm [resolvable:$true] %s131
          %s133 = sshll.u32 [#allocation7], 4
          %s134 = int_to_ptr.vmem [resolvable:$true] %s133
          %136 = dma.hbm_to_vmem [thread:$0]  %s132, 16, %s134, [#allocation6]
        $region16: #{tudui_forward.1} parent=11 // pred_fallthru
          _
      $region12: #{tudui_forward.1} parent=5 // pred_fallthru
        _
      %p137 = scmp.lt.s32.totalorder %s16, 6
      // Predicated region
      $region17: #{tudui_forward.1} parent=5 // pred_check
        %p138 = pneg %p137
      $region18: #{tudui_forward.1} parent=5 // pred_check_branch
        %140 = sbr.rel (%p138) target = $region20
      $region19: #{tudui_forward.1} parent=5 // pred_region
        // Predicated region
        $region21: #{tudui_forward.1} parent=19 // pred_check
          %p141 = pneg %p36
        $region22: #{tudui_forward.1} parent=19 // pred_check_branch
          %143 = sbr.rel (%p141) target = $region24
        $region23: #{tudui_forward.1} parent=19 // pred_region
          %s144 = sand.u32 %s26, 1
          %s145 = scalar_lea.sflag [#allocation3], %s144
          %s146 = sand.u32 %s26, 1
          %s147 = smul.addr %s146, 512
          %s148 = scalar_lea.vmem [#allocation2], %s147
          %s149 = smul.u32 256, %s16
          %151 = vsyncadd %s145, 0
          %s152 = smul.addr %s149, 2
          %s153 = scalar_lea.hbm %s0, %s152
          %s155 = sshll.u32 %s153, 4
          %s156 = int_to_ptr.hbm [resolvable:$true] %s155
          %s157 = sshll.u32 %s148, 4
          %s158 = int_to_ptr.vmem [resolvable:$true] %s157
          %160 = dma.hbm_to_vmem [thread:$0]  %s156, 8192, %s158, %s145
        $region24: #{tudui_forward.1} parent=19 // pred_fallthru
          _
        // Predicated region
        $region25: #{tudui_forward.1} parent=19 // pred_check
          %p161 = pneg %p62
        $region26: #{tudui_forward.1} parent=19 // pred_check_branch
          %163 = sbr.rel (%p161) target = $region28
        $region27: #{tudui_forward.1} parent=19 // pred_region
          %s164 = sand.u32 %s16, 1
          %s165 = scalar_lea.sflag [#allocation6], %s164
          %s166 = sand.u32 %s52, 1
          %s167 = smul.addr %s166, 4096
          %s168 = scalar_lea.vmem [#allocation5], %s167
          %s169 = smul.u32 256, %s16
          %171 = vsyncadd %s165, 0
          %s172 = smul.addr %s169, 8
          %s173 = scalar_lea.hbm %s1, %s172
          %s174 = sshll.u32 %s173, 4
          %s175 = int_to_ptr.hbm [resolvable:$true] %s174
          %s176 = sshll.u32 %s168, 4
          %s177 = int_to_ptr.vmem [resolvable:$true] %s176
          %182 = dma.hbm_to_vmem [thread:$0]  %s175, 65536, %s177, %s165, 196608, 32768, 2048
        $region28: #{tudui_forward.1} parent=19 // pred_fallthru
          _
      $region20: #{tudui_forward.1} parent=5 // pred_fallthru
        _
      %p183 = scmp.le.s32.totalorder 1, %s16
      %p184 = scmp.lt.s32.totalorder %s16, 7
      %p185 = pnand %p183, %p184
      %p186 = pneg %p185
      // Predicated region
      $region29: #{tudui_forward.1} parent=5 // pred_check
        _
      $region30: #{tudui_forward.1} parent=5 // pred_check_branch
        %188 = sbr.rel (%p185) target = $region32
      $region31: #{tudui_forward.1} parent=5 // pred_region
        %s189 = ssub.s32 %s16, 1
        %s190 = sand.u32 %s29, 1
        %s191 = scalar_lea.sflag [#allocation3], %s190
        %s192 = sand.u32 %s29, 1
        %s193 = smul.addr %s192, 512
        %s194 = scalar_lea.vmem [#allocation2], %s193
        // Predicated region
        $region33: #{tudui_forward.1} parent=31 // pred_check
          %p195 = pneg %p42
        $region34: #{tudui_forward.1} parent=31 // pred_check_branch
          %197 = sbr.rel (%p195) target = $region36
        $region35: #{tudui_forward.1} parent=31 // pred_region
          %199 = dma.done %s191, 8192
        $region36: #{tudui_forward.1} parent=31 // pred_fallthru
          _
        %s200 = sand.u32 %s21, 1
        %s201 = scalar_lea.sflag [#allocation6], %s200
        %s202 = sand.u32 %s55, 1
        %s203 = smul.addr %s202, 4096
        %s204 = scalar_lea.vmem [#allocation5], %s203
        // Predicated region
        $region37: #{tudui_forward.1} parent=31 // pred_check
          %p205 = pneg %p68
        $region38: #{tudui_forward.1} parent=31 // pred_check_branch
          %207 = sbr.rel (%p205) target = $region40
        $region39: #{tudui_forward.1} parent=31 // pred_region
          %209 = dma.done %s201, 65536
        $region40: #{tudui_forward.1} parent=31 // pred_fallthru
          _
        // Predicated region
        $region41: #{tudui_forward.1} parent=31 // pred_check
          %p210 = pneg %p89
        $region42: #{tudui_forward.1} parent=31 // pred_check_branch
          %212 = sbr.rel (%p210) target = $region44
        $region43: #{tudui_forward.1} parent=31 // pred_region
          %214 = dma.done [#allocation6], 16
        $region44: #{tudui_forward.1} parent=31 // pred_fallthru
          _
        %s215 = sand.u32 %s29, 1
        %s216 = scalar_lea.sflag [#allocation3], %s215
        %s217 = sand.u32 %s29, 1
        %s218 = smul.addr %s217, 512
        %s219 = scalar_lea.vmem [#allocation2], %s218
        %p220 = pneg %p42
        %p221 = pneg %p39
        %s222 = sand.u32 %s21, 1
        %s223 = scalar_lea.sflag [#allocation6], %s222
        %s224 = sand.u32 %s55, 1
        %s225 = smul.addr %s224, 4096
        %s226 = scalar_lea.vmem [#allocation5], %s225
        %p227 = pneg %p68
        %p228 = pneg %p65
        %p229 = pneg %p89
        %p230 = pneg %p86
        %p231 = pneg %p110
        %p232 = pneg %p107
        %s233 = smul.u32 256, %s21
        %s234 = smul.u32 256, %s21
        %p235 = scmp.eq.s32.totalorder %s21, 0
        // Predicated region
        $region45: #{tudui_forward.1} parent=31 // pred_check
          %p236 = pneg %p235
        $region46: #{tudui_forward.1} parent=31 // pred_check_branch
          %238 = sbr.rel (%p236) target = $region48
        $region47: #{tudui_forward.1} parent=31 // pred_region
          %vm239 = vcmask 74752
          %240 = vst.msk [vmem:[#allocation8] sm:$0x3] %vm239, 0.0
        $region48: #{tudui_forward.1} parent=31 // pred_fallthru
          _
        %v241 = vld [vmem:[#allocation8] sm:$0x3]
        %v242 = vld [vmem:[%s194] sm:$0xff]
        %v243 = vld [vmem:[%s194 + $0x8] sm:$0xff]
        %v244 = vld [vmem:[%s194 + $0x10] sm:$0xff]
        %v245 = vld [vmem:[%s194 + $0x18] sm:$0xff]
        %v246 = vld [vmem:[%s194 + $0x20] sm:$0xff]
        %v247 = vld [vmem:[%s194 + $0x28] sm:$0xff]
        %v248 = vld [vmem:[%s194 + $0x30] sm:$0xff]
        %v249 = vld [vmem:[%s194 + $0x38] sm:$0xff]
        %v250 = vld [vmem:[%s194 + $0x40] sm:$0xff]
        %v251 = vld [vmem:[%s194 + $0x48] sm:$0xff]
        %v252 = vld [vmem:[%s194 + $0x50] sm:$0xff]
        %v253 = vld [vmem:[%s194 + $0x58] sm:$0xff]
        %v254 = vld [vmem:[%s194 + $0x60] sm:$0xff]
        %v255 = vld [vmem:[%s194 + $0x68] sm:$0xff]
        %v256 = vld [vmem:[%s194 + $0x70] sm:$0xff]
        %v257 = vld [vmem:[%s194 + $0x78] sm:$0xff]
        %v258 = vld [vmem:[%s194 + $0x80] sm:$0xff]
        %v259 = vld [vmem:[%s194 + $0x88] sm:$0xff]
        %v260 = vld [vmem:[%s194 + $0x90] sm:$0xff]
        %v261 = vld [vmem:[%s194 + $0x98] sm:$0xff]
        %v262 = vld [vmem:[%s194 + $0xa0] sm:$0xff]
        %v263 = vld [vmem:[%s194 + $0xa8] sm:$0xff]
        %v264 = vld [vmem:[%s194 + $0xb0] sm:$0xff]
        %v265 = vld [vmem:[%s194 + $0xb8] sm:$0xff]
        %v266 = vld [vmem:[%s194 + $0xc0] sm:$0xff]
        %v267 = vld [vmem:[%s194 + $0xc8] sm:$0xff]
        %v268 = vld [vmem:[%s194 + $0xd0] sm:$0xff]
        %v269 = vld [vmem:[%s194 + $0xd8] sm:$0xff]
        %v270 = vld [vmem:[%s194 + $0xe0] sm:$0xff]
        %v271 = vld [vmem:[%s194 + $0xe8] sm:$0xff]
        %v272 = vld [vmem:[%s194 + $0xf0] sm:$0xff]
        %v273 = vld [vmem:[%s194 + $0xf8] sm:$0xff]
        %v274 = vld [vmem:[%s194 + $0x100] sm:$0xff]
        %v275 = vld [vmem:[%s194 + $0x108] sm:$0xff]
        %v276 = vld [vmem:[%s194 + $0x110] sm:$0xff]
        %v277 = vld [vmem:[%s194 + $0x118] sm:$0xff]
        %v278 = vld [vmem:[%s194 + $0x120] sm:$0xff]
        %v279 = vld [vmem:[%s194 + $0x128] sm:$0xff]
        %v280 = vld [vmem:[%s194 + $0x130] sm:$0xff]
        %v281 = vld [vmem:[%s194 + $0x138] sm:$0xff]
        %v282 = vld [vmem:[%s194 + $0x140] sm:$0xff]
        %v283 = vld [vmem:[%s194 + $0x148] sm:$0xff]
        %v284 = vld [vmem:[%s194 + $0x150] sm:$0xff]
        %v285 = vld [vmem:[%s194 + $0x158] sm:$0xff]
        %v286 = vld [vmem:[%s194 + $0x160] sm:$0xff]
        %v287 = vld [vmem:[%s194 + $0x168] sm:$0xff]
        %v288 = vld [vmem:[%s194 + $0x170] sm:$0xff]
        %v289 = vld [vmem:[%s194 + $0x178] sm:$0xff]
        %v290 = vld [vmem:[%s194 + $0x180] sm:$0xff]
        %v291 = vld [vmem:[%s194 + $0x188] sm:$0xff]
        %v292 = vld [vmem:[%s194 + $0x190] sm:$0xff]
        %v293 = vld [vmem:[%s194 + $0x198] sm:$0xff]
        %v294 = vld [vmem:[%s194 + $0x1a0] sm:$0xff]
        %v295 = vld [vmem:[%s194 + $0x1a8] sm:$0xff]
        %v296 = vld [vmem:[%s194 + $0x1b0] sm:$0xff]
        %v297 = vld [vmem:[%s194 + $0x1b8] sm:$0xff]
        %v298 = vld [vmem:[%s194 + $0x1c0] sm:$0xff]
        %v299 = vld [vmem:[%s194 + $0x1c8] sm:$0xff]
        %v300 = vld [vmem:[%s194 + $0x1d0] sm:$0xff]
        %v301 = vld [vmem:[%s194 + $0x1d8] sm:$0xff]
        %v302 = vld [vmem:[%s194 + $0x1e0] sm:$0xff]
        %v303 = vld [vmem:[%s194 + $0x1e8] sm:$0xff]
        %v304 = vld [vmem:[%s194 + $0x1f0] sm:$0xff]
        %v305 = vld [vmem:[%s194 + $0x1f8] sm:$0xff]
        %v306 = vld [vmem:[%s204] sm:$0xff]
        %v307 = vld [vmem:[%s204 + $0x8] sm:$0xff]
        %v308 = vld [vmem:[%s204 + $0x10] sm:$0xff]
        %v309 = vld [vmem:[%s204 + $0x18] sm:$0xff]
        %v310 = vld [vmem:[%s204 + $0x20] sm:$0xff]
        %v311 = vld [vmem:[%s204 + $0x28] sm:$0xff]
        %v312 = vld [vmem:[%s204 + $0x30] sm:$0xff]
        %v313 = vld [vmem:[%s204 + $0x38] sm:$0xff]
        %v314 = vld [vmem:[%s204 + $0x40] sm:$0xff]
        %v315 = vld [vmem:[%s204 + $0x48] sm:$0xff]
        %v316 = vld [vmem:[%s204 + $0x50] sm:$0xff]
        %v317 = vld [vmem:[%s204 + $0x58] sm:$0xff]
        %v318 = vld [vmem:[%s204 + $0x60] sm:$0xff]
        %v319 = vld [vmem:[%s204 + $0x68] sm:$0xff]
        %v320 = vld [vmem:[%s204 + $0x70] sm:$0xff]
        %v321 = vld [vmem:[%s204 + $0x78] sm:$0xff]
        %v322 = vld [vmem:[%s204 + $0x80] sm:$0xff]
        %v323 = vld [vmem:[%s204 + $0x88] sm:$0xff]
        %v324 = vld [vmem:[%s204 + $0x90] sm:$0xff]
        %v325 = vld [vmem:[%s204 + $0x98] sm:$0xff]
        %v326 = vld [vmem:[%s204 + $0xa0] sm:$0xff]
        %v327 = vld [vmem:[%s204 + $0xa8] sm:$0xff]
        %v328 = vld [vmem:[%s204 + $0xb0] sm:$0xff]
        %v329 = vld [vmem:[%s204 + $0xb8] sm:$0xff]
        %v330 = vld [vmem:[%s204 + $0xc0] sm:$0xff]
        %v331 = vld [vmem:[%s204 + $0xc8] sm:$0xff]
        %v332 = vld [vmem:[%s204 + $0xd0] sm:$0xff]
        %v333 = vld [vmem:[%s204 + $0xd8] sm:$0xff]
        %v334 = vld [vmem:[%s204 + $0xe0] sm:$0xff]
        %v335 = vld [vmem:[%s204 + $0xe8] sm:$0xff]
        %v336 = vld [vmem:[%s204 + $0xf0] sm:$0xff]
        %v337 = vld [vmem:[%s204 + $0xf8] sm:$0xff]
        %v338 = vld [vmem:[%s204 + $0x100] sm:$0xff]
        %v339 = vld [vmem:[%s204 + $0x108] sm:$0xff]
        %v340 = vld [vmem:[%s204 + $0x110] sm:$0xff]
        %v341 = vld [vmem:[%s204 + $0x118] sm:$0xff]
        %v342 = vld [vmem:[%s204 + $0x120] sm:$0xff]
        %v343 = vld [vmem:[%s204 + $0x128] sm:$0xff]
        %v344 = vld [vmem:[%s204 + $0x130] sm:$0xff]
        %v345 = vld [vmem:[%s204 + $0x138] sm:$0xff]
        %v346 = vld [vmem:[%s204 + $0x140] sm:$0xff]
        %v347 = vld [vmem:[%s204 + $0x148] sm:$0xff]
        %v348 = vld [vmem:[%s204 + $0x150] sm:$0xff]
        %v349 = vld [vmem:[%s204 + $0x158] sm:$0xff]
        %v350 = vld [vmem:[%s204 + $0x160] sm:$0xff]
        %v351 = vld [vmem:[%s204 + $0x168] sm:$0xff]
        %v352 = vld [vmem:[%s204 + $0x170] sm:$0xff]
        %v353 = vld [vmem:[%s204 + $0x178] sm:$0xff]
        %v354 = vld [vmem:[%s204 + $0x180] sm:$0xff]
        %v355 = vld [vmem:[%s204 + $0x188] sm:$0xff]
        %v356 = vld [vmem:[%s204 + $0x190] sm:$0xff]
        %v357 = vld [vmem:[%s204 + $0x198] sm:$0xff]
        %v358 = vld [vmem:[%s204 + $0x1a0] sm:$0xff]
        %v359 = vld [vmem:[%s204 + $0x1a8] sm:$0xff]
        %v360 = vld [vmem:[%s204 + $0x1b0] sm:$0xff]
        %v361 = vld [vmem:[%s204 + $0x1b8] sm:$0xff]
        %v362 = vld [vmem:[%s204 + $0x1c0] sm:$0xff]
        %v363 = vld [vmem:[%s204 + $0x1c8] sm:$0xff]
        %v364 = vld [vmem:[%s204 + $0x1d0] sm:$0xff]
        %v365 = vld [vmem:[%s204 + $0x1d8] sm:$0xff]
        %v366 = vld [vmem:[%s204 + $0x1e0] sm:$0xff]
        %v367 = vld [vmem:[%s204 + $0x1e8] sm:$0xff]
        %v368 = vld [vmem:[%s204 + $0x1f0] sm:$0xff]
        %v369 = vld [vmem:[%s204 + $0x1f8] sm:$0xff]
        %v370 = vld [vmem:[%s204 + $0x200] sm:$0xff]
        %v371 = vld [vmem:[%s204 + $0x208] sm:$0xff]
        %v372 = vld [vmem:[%s204 + $0x210] sm:$0xff]
        %v373 = vld [vmem:[%s204 + $0x218] sm:$0xff]
        %v374 = vld [vmem:[%s204 + $0x220] sm:$0xff]
        %v375 = vld [vmem:[%s204 + $0x228] sm:$0xff]
        %v376 = vld [vmem:[%s204 + $0x230] sm:$0xff]
        %v377 = vld [vmem:[%s204 + $0x238] sm:$0xff]
        %v378 = vld [vmem:[%s204 + $0x240] sm:$0xff]
        %v379 = vld [vmem:[%s204 + $0x248] sm:$0xff]
        %v380 = vld [vmem:[%s204 + $0x250] sm:$0xff]
        %v381 = vld [vmem:[%s204 + $0x258] sm:$0xff]
        %v382 = vld [vmem:[%s204 + $0x260] sm:$0xff]
        %v383 = vld [vmem:[%s204 + $0x268] sm:$0xff]
        %v384 = vld [vmem:[%s204 + $0x270] sm:$0xff]
        %v385 = vld [vmem:[%s204 + $0x278] sm:$0xff]
        %v386 = vld [vmem:[%s204 + $0x280] sm:$0xff]
        %v387 = vld [vmem:[%s204 + $0x288] sm:$0xff]
        %v388 = vld [vmem:[%s204 + $0x290] sm:$0xff]
        %v389 = vld [vmem:[%s204 + $0x298] sm:$0xff]
        %v390 = vld [vmem:[%s204 + $0x2a0] sm:$0xff]
        %v391 = vld [vmem:[%s204 + $0x2a8] sm:$0xff]
        %v392 = vld [vmem:[%s204 + $0x2b0] sm:$0xff]
        %v393 = vld [vmem:[%s204 + $0x2b8] sm:$0xff]
        %v394 = vld [vmem:[%s204 + $0x2c0] sm:$0xff]
        %v395 = vld [vmem:[%s204 + $0x2c8] sm:$0xff]
        %v396 = vld [vmem:[%s204 + $0x2d0] sm:$0xff]
        %v397 = vld [vmem:[%s204 + $0x2d8] sm:$0xff]
        %v398 = vld [vmem:[%s204 + $0x2e0] sm:$0xff]
        %v399 = vld [vmem:[%s204 + $0x2e8] sm:$0xff]
        %v400 = vld [vmem:[%s204 + $0x2f0] sm:$0xff]
        %v401 = vld [vmem:[%s204 + $0x2f8] sm:$0xff]
        %v402 = vld [vmem:[%s204 + $0x300] sm:$0xff]
        %v403 = vld [vmem:[%s204 + $0x308] sm:$0xff]
        %v404 = vld [vmem:[%s204 + $0x310] sm:$0xff]
        %v405 = vld [vmem:[%s204 + $0x318] sm:$0xff]
        %v406 = vld [vmem:[%s204 + $0x320] sm:$0xff]
        %v407 = vld [vmem:[%s204 + $0x328] sm:$0xff]
        %v408 = vld [vmem:[%s204 + $0x330] sm:$0xff]
        %v409 = vld [vmem:[%s204 + $0x338] sm:$0xff]
        %v410 = vld [vmem:[%s204 + $0x340] sm:$0xff]
        %v411 = vld [vmem:[%s204 + $0x348] sm:$0xff]
        %v412 = vld [vmem:[%s204 + $0x350] sm:$0xff]
        %v413 = vld [vmem:[%s204 + $0x358] sm:$0xff]
        %v414 = vld [vmem:[%s204 + $0x360] sm:$0xff]
        %v415 = vld [vmem:[%s204 + $0x368] sm:$0xff]
        %v416 = vld [vmem:[%s204 + $0x370] sm:$0xff]
        %v417 = vld [vmem:[%s204 + $0x378] sm:$0xff]
        %v418 = vld [vmem:[%s204 + $0x380] sm:$0xff]
        %v419 = vld [vmem:[%s204 + $0x388] sm:$0xff]
        %v420 = vld [vmem:[%s204 + $0x390] sm:$0xff]
        %v421 = vld [vmem:[%s204 + $0x398] sm:$0xff]
        %v422 = vld [vmem:[%s204 + $0x3a0] sm:$0xff]
        %v423 = vld [vmem:[%s204 + $0x3a8] sm:$0xff]
        %v424 = vld [vmem:[%s204 + $0x3b0] sm:$0xff]
        %v425 = vld [vmem:[%s204 + $0x3b8] sm:$0xff]
        %v426 = vld [vmem:[%s204 + $0x3c0] sm:$0xff]
        %v427 = vld [vmem:[%s204 + $0x3c8] sm:$0xff]
        %v428 = vld [vmem:[%s204 + $0x3d0] sm:$0xff]
        %v429 = vld [vmem:[%s204 + $0x3d8] sm:$0xff]
        %v430 = vld [vmem:[%s204 + $0x3e0] sm:$0xff]
        %v431 = vld [vmem:[%s204 + $0x3e8] sm:$0xff]
        %v432 = vld [vmem:[%s204 + $0x3f0] sm:$0xff]
        %v433 = vld [vmem:[%s204 + $0x3f8] sm:$0xff]
        %v434 = vld [vmem:[%s204 + $0x400] sm:$0xff]
        %v435 = vld [vmem:[%s204 + $0x408] sm:$0xff]
        %v436 = vld [vmem:[%s204 + $0x410] sm:$0xff]
        %v437 = vld [vmem:[%s204 + $0x418] sm:$0xff]
        %v438 = vld [vmem:[%s204 + $0x420] sm:$0xff]
        %v439 = vld [vmem:[%s204 + $0x428] sm:$0xff]
        %v440 = vld [vmem:[%s204 + $0x430] sm:$0xff]
        %v441 = vld [vmem:[%s204 + $0x438] sm:$0xff]
        %v442 = vld [vmem:[%s204 + $0x440] sm:$0xff]
        %v443 = vld [vmem:[%s204 + $0x448] sm:$0xff]
        %v444 = vld [vmem:[%s204 + $0x450] sm:$0xff]
        %v445 = vld [vmem:[%s204 + $0x458] sm:$0xff]
        %v446 = vld [vmem:[%s204 + $0x460] sm:$0xff]
        %v447 = vld [vmem:[%s204 + $0x468] sm:$0xff]
        %v448 = vld [vmem:[%s204 + $0x470] sm:$0xff]
        %v449 = vld [vmem:[%s204 + $0x478] sm:$0xff]
        %v450 = vld [vmem:[%s204 + $0x480] sm:$0xff]
        %v451 = vld [vmem:[%s204 + $0x488] sm:$0xff]
        %v452 = vld [vmem:[%s204 + $0x490] sm:$0xff]
        %v453 = vld [vmem:[%s204 + $0x498] sm:$0xff]
        %v454 = vld [vmem:[%s204 + $0x4a0] sm:$0xff]
        %v455 = vld [vmem:[%s204 + $0x4a8] sm:$0xff]
        %v456 = vld [vmem:[%s204 + $0x4b0] sm:$0xff]
        %v457 = vld [vmem:[%s204 + $0x4b8] sm:$0xff]
        %v458 = vld [vmem:[%s204 + $0x4c0] sm:$0xff]
        %v459 = vld [vmem:[%s204 + $0x4c8] sm:$0xff]
        %v460 = vld [vmem:[%s204 + $0x4d0] sm:$0xff]
        %v461 = vld [vmem:[%s204 + $0x4d8] sm:$0xff]
        %v462 = vld [vmem:[%s204 + $0x4e0] sm:$0xff]
        %v463 = vld [vmem:[%s204 + $0x4e8] sm:$0xff]
        %v464 = vld [vmem:[%s204 + $0x4f0] sm:$0xff]
        %v465 = vld [vmem:[%s204 + $0x4f8] sm:$0xff]
        %v466 = vld [vmem:[%s204 + $0x500] sm:$0xff]
        %v467 = vld [vmem:[%s204 + $0x508] sm:$0xff]
        %v468 = vld [vmem:[%s204 + $0x510] sm:$0xff]
        %v469 = vld [vmem:[%s204 + $0x518] sm:$0xff]
        %v470 = vld [vmem:[%s204 + $0x520] sm:$0xff]
        %v471 = vld [vmem:[%s204 + $0x528] sm:$0xff]
        %v472 = vld [vmem:[%s204 + $0x530] sm:$0xff]
        %v473 = vld [vmem:[%s204 + $0x538] sm:$0xff]
        %v474 = vld [vmem:[%s204 + $0x540] sm:$0xff]
        %v475 = vld [vmem:[%s204 + $0x548] sm:$0xff]
        %v476 = vld [vmem:[%s204 + $0x550] sm:$0xff]
        %v477 = vld [vmem:[%s204 + $0x558] sm:$0xff]
        %v478 = vld [vmem:[%s204 + $0x560] sm:$0xff]
        %v479 = vld [vmem:[%s204 + $0x568] sm:$0xff]
        %v480 = vld [vmem:[%s204 + $0x570] sm:$0xff]
        %v481 = vld [vmem:[%s204 + $0x578] sm:$0xff]
        %v482 = vld [vmem:[%s204 + $0x580] sm:$0xff]
        %v483 = vld [vmem:[%s204 + $0x588] sm:$0xff]
        %v484 = vld [vmem:[%s204 + $0x590] sm:$0xff]
        %v485 = vld [vmem:[%s204 + $0x598] sm:$0xff]
        %v486 = vld [vmem:[%s204 + $0x5a0] sm:$0xff]
        %v487 = vld [vmem:[%s204 + $0x5a8] sm:$0xff]
        %v488 = vld [vmem:[%s204 + $0x5b0] sm:$0xff]
        %v489 = vld [vmem:[%s204 + $0x5b8] sm:$0xff]
        %v490 = vld [vmem:[%s204 + $0x5c0] sm:$0xff]
        %v491 = vld [vmem:[%s204 + $0x5c8] sm:$0xff]
        %v492 = vld [vmem:[%s204 + $0x5d0] sm:$0xff]
        %v493 = vld [vmem:[%s204 + $0x5d8] sm:$0xff]
        %v494 = vld [vmem:[%s204 + $0x5e0] sm:$0xff]
        %v495 = vld [vmem:[%s204 + $0x5e8] sm:$0xff]
        %v496 = vld [vmem:[%s204 + $0x5f0] sm:$0xff]
        %v497 = vld [vmem:[%s204 + $0x5f8] sm:$0xff]
        %v498 = vld [vmem:[%s204 + $0x600] sm:$0xff]
        %v499 = vld [vmem:[%s204 + $0x608] sm:$0xff]
        %v500 = vld [vmem:[%s204 + $0x610] sm:$0xff]
        %v501 = vld [vmem:[%s204 + $0x618] sm:$0xff]
        %v502 = vld [vmem:[%s204 + $0x620] sm:$0xff]
        %v503 = vld [vmem:[%s204 + $0x628] sm:$0xff]
        %v504 = vld [vmem:[%s204 + $0x630] sm:$0xff]
        %v505 = vld [vmem:[%s204 + $0x638] sm:$0xff]
        %v506 = vld [vmem:[%s204 + $0x640] sm:$0xff]
        %v507 = vld [vmem:[%s204 + $0x648] sm:$0xff]
        %v508 = vld [vmem:[%s204 + $0x650] sm:$0xff]
        %v509 = vld [vmem:[%s204 + $0x658] sm:$0xff]
        %v510 = vld [vmem:[%s204 + $0x660] sm:$0xff]
        %v511 = vld [vmem:[%s204 + $0x668] sm:$0xff]
        %v512 = vld [vmem:[%s204 + $0x670] sm:$0xff]
        %v513 = vld [vmem:[%s204 + $0x678] sm:$0xff]
        %v514 = vld [vmem:[%s204 + $0x680] sm:$0xff]
        %v515 = vld [vmem:[%s204 + $0x688] sm:$0xff]
        %v516 = vld [vmem:[%s204 + $0x690] sm:$0xff]
        %v517 = vld [vmem:[%s204 + $0x698] sm:$0xff]
        %v518 = vld [vmem:[%s204 + $0x6a0] sm:$0xff]
        %v519 = vld [vmem:[%s204 + $0x6a8] sm:$0xff]
        %v520 = vld [vmem:[%s204 + $0x6b0] sm:$0xff]
        %v521 = vld [vmem:[%s204 + $0x6b8] sm:$0xff]
        %v522 = vld [vmem:[%s204 + $0x6c0] sm:$0xff]
        %v523 = vld [vmem:[%s204 + $0x6c8] sm:$0xff]
        %v524 = vld [vmem:[%s204 + $0x6d0] sm:$0xff]
        %v525 = vld [vmem:[%s204 + $0x6d8] sm:$0xff]
        %v526 = vld [vmem:[%s204 + $0x6e0] sm:$0xff]
        %v527 = vld [vmem:[%s204 + $0x6e8] sm:$0xff]
        %v528 = vld [vmem:[%s204 + $0x6f0] sm:$0xff]
        %v529 = vld [vmem:[%s204 + $0x6f8] sm:$0xff]
        %v530 = vld [vmem:[%s204 + $0x700] sm:$0xff]
        %v531 = vld [vmem:[%s204 + $0x708] sm:$0xff]
        %v532 = vld [vmem:[%s204 + $0x710] sm:$0xff]
        %v533 = vld [vmem:[%s204 + $0x718] sm:$0xff]
        %v534 = vld [vmem:[%s204 + $0x720] sm:$0xff]
        %v535 = vld [vmem:[%s204 + $0x728] sm:$0xff]
        %v536 = vld [vmem:[%s204 + $0x730] sm:$0xff]
        %v537 = vld [vmem:[%s204 + $0x738] sm:$0xff]
        %v538 = vld [vmem:[%s204 + $0x740] sm:$0xff]
        %v539 = vld [vmem:[%s204 + $0x748] sm:$0xff]
        %v540 = vld [vmem:[%s204 + $0x750] sm:$0xff]
        %v541 = vld [vmem:[%s204 + $0x758] sm:$0xff]
        %v542 = vld [vmem:[%s204 + $0x760] sm:$0xff]
        %v543 = vld [vmem:[%s204 + $0x768] sm:$0xff]
        %v544 = vld [vmem:[%s204 + $0x770] sm:$0xff]
        %v545 = vld [vmem:[%s204 + $0x778] sm:$0xff]
        %v546 = vld [vmem:[%s204 + $0x780] sm:$0xff]
        %v547 = vld [vmem:[%s204 + $0x788] sm:$0xff]
        %v548 = vld [vmem:[%s204 + $0x790] sm:$0xff]
        %v549 = vld [vmem:[%s204 + $0x798] sm:$0xff]
        %v550 = vld [vmem:[%s204 + $0x7a0] sm:$0xff]
        %v551 = vld [vmem:[%s204 + $0x7a8] sm:$0xff]
        %v552 = vld [vmem:[%s204 + $0x7b0] sm:$0xff]
        %v553 = vld [vmem:[%s204 + $0x7b8] sm:$0xff]
        %v554 = vld [vmem:[%s204 + $0x7c0] sm:$0xff]
        %v555 = vld [vmem:[%s204 + $0x7c8] sm:$0xff]
        %v556 = vld [vmem:[%s204 + $0x7d0] sm:$0xff]
        %v557 = vld [vmem:[%s204 + $0x7d8] sm:$0xff]
        %v558 = vld [vmem:[%s204 + $0x7e0] sm:$0xff]
        %v559 = vld [vmem:[%s204 + $0x7e8] sm:$0xff]
        %v560 = vld [vmem:[%s204 + $0x7f0] sm:$0xff]
        %v561 = vld [vmem:[%s204 + $0x7f8] sm:$0xff]
        %v562 = vld [vmem:[%s204 + $0x800] sm:$0x3]
        %v563 = vld [vmem:[%s204 + $0x808] sm:$0x3]
        %v564 = vld [vmem:[%s204 + $0x810] sm:$0x3]
        %v565 = vld [vmem:[%s204 + $0x818] sm:$0x3]
        %v566 = vld [vmem:[%s204 + $0x820] sm:$0x3]
        %v567 = vld [vmem:[%s204 + $0x828] sm:$0x3]
        %v568 = vld [vmem:[%s204 + $0x830] sm:$0x3]
        %v569 = vld [vmem:[%s204 + $0x838] sm:$0x3]
        %v570 = vld [vmem:[%s204 + $0x840] sm:$0x3]
        %v571 = vld [vmem:[%s204 + $0x848] sm:$0x3]
        %v572 = vld [vmem:[%s204 + $0x850] sm:$0x3]
        %v573 = vld [vmem:[%s204 + $0x858] sm:$0x3]
        %v574 = vld [vmem:[%s204 + $0x860] sm:$0x3]
        %v575 = vld [vmem:[%s204 + $0x868] sm:$0x3]
        %v576 = vld [vmem:[%s204 + $0x870] sm:$0x3]
        %v577 = vld [vmem:[%s204 + $0x878] sm:$0x3]
        %v578 = vld [vmem:[%s204 + $0x880] sm:$0x3]
        %v579 = vld [vmem:[%s204 + $0x888] sm:$0x3]
        %v580 = vld [vmem:[%s204 + $0x890] sm:$0x3]
        %v581 = vld [vmem:[%s204 + $0x898] sm:$0x3]
        %v582 = vld [vmem:[%s204 + $0x8a0] sm:$0x3]
        %v583 = vld [vmem:[%s204 + $0x8a8] sm:$0x3]
        %v584 = vld [vmem:[%s204 + $0x8b0] sm:$0x3]
        %v585 = vld [vmem:[%s204 + $0x8b8] sm:$0x3]
        %v586 = vld [vmem:[%s204 + $0x8c0] sm:$0x3]
        %v587 = vld [vmem:[%s204 + $0x8c8] sm:$0x3]
        %v588 = vld [vmem:[%s204 + $0x8d0] sm:$0x3]
        %v589 = vld [vmem:[%s204 + $0x8d8] sm:$0x3]
        %v590 = vld [vmem:[%s204 + $0x8e0] sm:$0x3]
        %v591 = vld [vmem:[%s204 + $0x8e8] sm:$0x3]
        %v592 = vld [vmem:[%s204 + $0x8f0] sm:$0x3]
        %v593 = vld [vmem:[%s204 + $0x8f8] sm:$0x3]
        %v594 = vld [vmem:[%s204 + $0x900] sm:$0x3]
        %v595 = vld [vmem:[%s204 + $0x908] sm:$0x3]
        %v596 = vld [vmem:[%s204 + $0x910] sm:$0x3]
        %v597 = vld [vmem:[%s204 + $0x918] sm:$0x3]
        %v598 = vld [vmem:[%s204 + $0x920] sm:$0x3]
        %v599 = vld [vmem:[%s204 + $0x928] sm:$0x3]
        %v600 = vld [vmem:[%s204 + $0x930] sm:$0x3]
        %v601 = vld [vmem:[%s204 + $0x938] sm:$0x3]
        %v602 = vld [vmem:[%s204 + $0x940] sm:$0x3]
        %v603 = vld [vmem:[%s204 + $0x948] sm:$0x3]
        %v604 = vld [vmem:[%s204 + $0x950] sm:$0x3]
        %v605 = vld [vmem:[%s204 + $0x958] sm:$0x3]
        %v606 = vld [vmem:[%s204 + $0x960] sm:$0x3]
        %v607 = vld [vmem:[%s204 + $0x968] sm:$0x3]
        %v608 = vld [vmem:[%s204 + $0x970] sm:$0x3]
        %v609 = vld [vmem:[%s204 + $0x978] sm:$0x3]
        %v610 = vld [vmem:[%s204 + $0x980] sm:$0x3]
        %v611 = vld [vmem:[%s204 + $0x988] sm:$0x3]
        %v612 = vld [vmem:[%s204 + $0x990] sm:$0x3]
        %v613 = vld [vmem:[%s204 + $0x998] sm:$0x3]
        %v614 = vld [vmem:[%s204 + $0x9a0] sm:$0x3]
        %v615 = vld [vmem:[%s204 + $0x9a8] sm:$0x3]
        %v616 = vld [vmem:[%s204 + $0x9b0] sm:$0x3]
        %v617 = vld [vmem:[%s204 + $0x9b8] sm:$0x3]
        %v618 = vld [vmem:[%s204 + $0x9c0] sm:$0x3]
        %v619 = vld [vmem:[%s204 + $0x9c8] sm:$0x3]
        %v620 = vld [vmem:[%s204 + $0x9d0] sm:$0x3]
        %v621 = vld [vmem:[%s204 + $0x9d8] sm:$0x3]
        %v622 = vld [vmem:[%s204 + $0x9e0] sm:$0x3]
        %v623 = vld [vmem:[%s204 + $0x9e8] sm:$0x3]
        %v624 = vld [vmem:[%s204 + $0x9f0] sm:$0x3]
        %v625 = vld [vmem:[%s204 + $0x9f8] sm:$0x3]
        %v626 = vld [vmem:[%s204 + $0xa00] sm:$0x3]
        %v627 = vld [vmem:[%s204 + $0xa08] sm:$0x3]
        %v628 = vld [vmem:[%s204 + $0xa10] sm:$0x3]
        %v629 = vld [vmem:[%s204 + $0xa18] sm:$0x3]
        %v630 = vld [vmem:[%s204 + $0xa20] sm:$0x3]
        %v631 = vld [vmem:[%s204 + $0xa28] sm:$0x3]
        %v632 = vld [vmem:[%s204 + $0xa30] sm:$0x3]
        %v633 = vld [vmem:[%s204 + $0xa38] sm:$0x3]
        %v634 = vld [vmem:[%s204 + $0xa40] sm:$0x3]
        %v635 = vld [vmem:[%s204 + $0xa48] sm:$0x3]
        %v636 = vld [vmem:[%s204 + $0xa50] sm:$0x3]
        %v637 = vld [vmem:[%s204 + $0xa58] sm:$0x3]
        %v638 = vld [vmem:[%s204 + $0xa60] sm:$0x3]
        %v639 = vld [vmem:[%s204 + $0xa68] sm:$0x3]
        %v640 = vld [vmem:[%s204 + $0xa70] sm:$0x3]
        %v641 = vld [vmem:[%s204 + $0xa78] sm:$0x3]
        %v642 = vld [vmem:[%s204 + $0xa80] sm:$0x3]
        %v643 = vld [vmem:[%s204 + $0xa88] sm:$0x3]
        %v644 = vld [vmem:[%s204 + $0xa90] sm:$0x3]
        %v645 = vld [vmem:[%s204 + $0xa98] sm:$0x3]
        %v646 = vld [vmem:[%s204 + $0xaa0] sm:$0x3]
        %v647 = vld [vmem:[%s204 + $0xaa8] sm:$0x3]
        %v648 = vld [vmem:[%s204 + $0xab0] sm:$0x3]
        %v649 = vld [vmem:[%s204 + $0xab8] sm:$0x3]
        %v650 = vld [vmem:[%s204 + $0xac0] sm:$0x3]
        %v651 = vld [vmem:[%s204 + $0xac8] sm:$0x3]
        %v652 = vld [vmem:[%s204 + $0xad0] sm:$0x3]
        %v653 = vld [vmem:[%s204 + $0xad8] sm:$0x3]
        %v654 = vld [vmem:[%s204 + $0xae0] sm:$0x3]
        %v655 = vld [vmem:[%s204 + $0xae8] sm:$0x3]
        %v656 = vld [vmem:[%s204 + $0xaf0] sm:$0x3]
        %v657 = vld [vmem:[%s204 + $0xaf8] sm:$0x3]
        %v658 = vld [vmem:[%s204 + $0xb00] sm:$0x3]
        %v659 = vld [vmem:[%s204 + $0xb08] sm:$0x3]
        %v660 = vld [vmem:[%s204 + $0xb10] sm:$0x3]
        %v661 = vld [vmem:[%s204 + $0xb18] sm:$0x3]
        %v662 = vld [vmem:[%s204 + $0xb20] sm:$0x3]
        %v663 = vld [vmem:[%s204 + $0xb28] sm:$0x3]
        %v664 = vld [vmem:[%s204 + $0xb30] sm:$0x3]
        %v665 = vld [vmem:[%s204 + $0xb38] sm:$0x3]
        %v666 = vld [vmem:[%s204 + $0xb40] sm:$0x3]
        %v667 = vld [vmem:[%s204 + $0xb48] sm:$0x3]
        %v668 = vld [vmem:[%s204 + $0xb50] sm:$0x3]
        %v669 = vld [vmem:[%s204 + $0xb58] sm:$0x3]
        %v670 = vld [vmem:[%s204 + $0xb60] sm:$0x3]
        %v671 = vld [vmem:[%s204 + $0xb68] sm:$0x3]
        %v672 = vld [vmem:[%s204 + $0xb70] sm:$0x3]
        %v673 = vld [vmem:[%s204 + $0xb78] sm:$0x3]
        %v674 = vld [vmem:[%s204 + $0xb80] sm:$0x3]
        %v675 = vld [vmem:[%s204 + $0xb88] sm:$0x3]
        %v676 = vld [vmem:[%s204 + $0xb90] sm:$0x3]
        %v677 = vld [vmem:[%s204 + $0xb98] sm:$0x3]
        %v678 = vld [vmem:[%s204 + $0xba0] sm:$0x3]
        %v679 = vld [vmem:[%s204 + $0xba8] sm:$0x3]
        %v680 = vld [vmem:[%s204 + $0xbb0] sm:$0x3]
        %v681 = vld [vmem:[%s204 + $0xbb8] sm:$0x3]
        %v682 = vld [vmem:[%s204 + $0xbc0] sm:$0x3]
        %v683 = vld [vmem:[%s204 + $0xbc8] sm:$0x3]
        %v684 = vld [vmem:[%s204 + $0xbd0] sm:$0x3]
        %v685 = vld [vmem:[%s204 + $0xbd8] sm:$0x3]
        %v686 = vld [vmem:[%s204 + $0xbe0] sm:$0x3]
        %v687 = vld [vmem:[%s204 + $0xbe8] sm:$0x3]
        %v688 = vld [vmem:[%s204 + $0xbf0] sm:$0x3]
        %v689 = vld [vmem:[%s204 + $0xbf8] sm:$0x3]
        %v690 = vld [vmem:[%s204 + $0xc00] sm:$0x3]
        %v691 = vld [vmem:[%s204 + $0xc08] sm:$0x3]
        %v692 = vld [vmem:[%s204 + $0xc10] sm:$0x3]
        %v693 = vld [vmem:[%s204 + $0xc18] sm:$0x3]
        %v694 = vld [vmem:[%s204 + $0xc20] sm:$0x3]
        %v695 = vld [vmem:[%s204 + $0xc28] sm:$0x3]
        %v696 = vld [vmem:[%s204 + $0xc30] sm:$0x3]
        %v697 = vld [vmem:[%s204 + $0xc38] sm:$0x3]
        %v698 = vld [vmem:[%s204 + $0xc40] sm:$0x3]
        %v699 = vld [vmem:[%s204 + $0xc48] sm:$0x3]
        %v700 = vld [vmem:[%s204 + $0xc50] sm:$0x3]
        %v701 = vld [vmem:[%s204 + $0xc58] sm:$0x3]
        %v702 = vld [vmem:[%s204 + $0xc60] sm:$0x3]
        %v703 = vld [vmem:[%s204 + $0xc68] sm:$0x3]
        %v704 = vld [vmem:[%s204 + $0xc70] sm:$0x3]
        %v705 = vld [vmem:[%s204 + $0xc78] sm:$0x3]
        %v706 = vld [vmem:[%s204 + $0xc80] sm:$0x3]
        %v707 = vld [vmem:[%s204 + $0xc88] sm:$0x3]
        %v708 = vld [vmem:[%s204 + $0xc90] sm:$0x3]
        %v709 = vld [vmem:[%s204 + $0xc98] sm:$0x3]
        %v710 = vld [vmem:[%s204 + $0xca0] sm:$0x3]
        %v711 = vld [vmem:[%s204 + $0xca8] sm:$0x3]
        %v712 = vld [vmem:[%s204 + $0xcb0] sm:$0x3]
        %v713 = vld [vmem:[%s204 + $0xcb8] sm:$0x3]
        %v714 = vld [vmem:[%s204 + $0xcc0] sm:$0x3]
        %v715 = vld [vmem:[%s204 + $0xcc8] sm:$0x3]
        %v716 = vld [vmem:[%s204 + $0xcd0] sm:$0x3]
        %v717 = vld [vmem:[%s204 + $0xcd8] sm:$0x3]
        %v718 = vld [vmem:[%s204 + $0xce0] sm:$0x3]
        %v719 = vld [vmem:[%s204 + $0xce8] sm:$0x3]
        %v720 = vld [vmem:[%s204 + $0xcf0] sm:$0x3]
        %v721 = vld [vmem:[%s204 + $0xcf8] sm:$0x3]
        %v722 = vld [vmem:[%s204 + $0xd00] sm:$0x3]
        %v723 = vld [vmem:[%s204 + $0xd08] sm:$0x3]
        %v724 = vld [vmem:[%s204 + $0xd10] sm:$0x3]
        %v725 = vld [vmem:[%s204 + $0xd18] sm:$0x3]
        %v726 = vld [vmem:[%s204 + $0xd20] sm:$0x3]
        %v727 = vld [vmem:[%s204 + $0xd28] sm:$0x3]
        %v728 = vld [vmem:[%s204 + $0xd30] sm:$0x3]
        %v729 = vld [vmem:[%s204 + $0xd38] sm:$0x3]
        %v730 = vld [vmem:[%s204 + $0xd40] sm:$0x3]
        %v731 = vld [vmem:[%s204 + $0xd48] sm:$0x3]
        %v732 = vld [vmem:[%s204 + $0xd50] sm:$0x3]
        %v733 = vld [vmem:[%s204 + $0xd58] sm:$0x3]
        %v734 = vld [vmem:[%s204 + $0xd60] sm:$0x3]
        %v735 = vld [vmem:[%s204 + $0xd68] sm:$0x3]
        %v736 = vld [vmem:[%s204 + $0xd70] sm:$0x3]
        %v737 = vld [vmem:[%s204 + $0xd78] sm:$0x3]
        %v738 = vld [vmem:[%s204 + $0xd80] sm:$0x3]
        %v739 = vld [vmem:[%s204 + $0xd88] sm:$0x3]
        %v740 = vld [vmem:[%s204 + $0xd90] sm:$0x3]
        %v741 = vld [vmem:[%s204 + $0xd98] sm:$0x3]
        %v742 = vld [vmem:[%s204 + $0xda0] sm:$0x3]
        %v743 = vld [vmem:[%s204 + $0xda8] sm:$0x3]
        %v744 = vld [vmem:[%s204 + $0xdb0] sm:$0x3]
        %v745 = vld [vmem:[%s204 + $0xdb8] sm:$0x3]
        %v746 = vld [vmem:[%s204 + $0xdc0] sm:$0x3]
        %v747 = vld [vmem:[%s204 + $0xdc8] sm:$0x3]
        %v748 = vld [vmem:[%s204 + $0xdd0] sm:$0x3]
        %v749 = vld [vmem:[%s204 + $0xdd8] sm:$0x3]
        %v750 = vld [vmem:[%s204 + $0xde0] sm:$0x3]
        %v751 = vld [vmem:[%s204 + $0xde8] sm:$0x3]
        %v752 = vld [vmem:[%s204 + $0xdf0] sm:$0x3]
        %v753 = vld [vmem:[%s204 + $0xdf8] sm:$0x3]
        %v754 = vld [vmem:[%s204 + $0xe00] sm:$0x3]
        %v755 = vld [vmem:[%s204 + $0xe08] sm:$0x3]
        %v756 = vld [vmem:[%s204 + $0xe10] sm:$0x3]
        %v757 = vld [vmem:[%s204 + $0xe18] sm:$0x3]
        %v758 = vld [vmem:[%s204 + $0xe20] sm:$0x3]
        %v759 = vld [vmem:[%s204 + $0xe28] sm:$0x3]
        %v760 = vld [vmem:[%s204 + $0xe30] sm:$0x3]
        %v761 = vld [vmem:[%s204 + $0xe38] sm:$0x3]
        %v762 = vld [vmem:[%s204 + $0xe40] sm:$0x3]
        %v763 = vld [vmem:[%s204 + $0xe48] sm:$0x3]
        %v764 = vld [vmem:[%s204 + $0xe50] sm:$0x3]
        %v765 = vld [vmem:[%s204 + $0xe58] sm:$0x3]
        %v766 = vld [vmem:[%s204 + $0xe60] sm:$0x3]
        %v767 = vld [vmem:[%s204 + $0xe68] sm:$0x3]
        %v768 = vld [vmem:[%s204 + $0xe70] sm:$0x3]
        %v769 = vld [vmem:[%s204 + $0xe78] sm:$0x3]
        %v770 = vld [vmem:[%s204 + $0xe80] sm:$0x3]
        %v771 = vld [vmem:[%s204 + $0xe88] sm:$0x3]
        %v772 = vld [vmem:[%s204 + $0xe90] sm:$0x3]
        %v773 = vld [vmem:[%s204 + $0xe98] sm:$0x3]
        %v774 = vld [vmem:[%s204 + $0xea0] sm:$0x3]
        %v775 = vld [vmem:[%s204 + $0xea8] sm:$0x3]
        %v776 = vld [vmem:[%s204 + $0xeb0] sm:$0x3]
        %v777 = vld [vmem:[%s204 + $0xeb8] sm:$0x3]
        %v778 = vld [vmem:[%s204 + $0xec0] sm:$0x3]
        %v779 = vld [vmem:[%s204 + $0xec8] sm:$0x3]
        %v780 = vld [vmem:[%s204 + $0xed0] sm:$0x3]
        %v781 = vld [vmem:[%s204 + $0xed8] sm:$0x3]
        %v782 = vld [vmem:[%s204 + $0xee0] sm:$0x3]
        %v783 = vld [vmem:[%s204 + $0xee8] sm:$0x3]
        %v784 = vld [vmem:[%s204 + $0xef0] sm:$0x3]
        %v785 = vld [vmem:[%s204 + $0xef8] sm:$0x3]
        %v786 = vld [vmem:[%s204 + $0xf00] sm:$0x3]
        %v787 = vld [vmem:[%s204 + $0xf08] sm:$0x3]
        %v788 = vld [vmem:[%s204 + $0xf10] sm:$0x3]
        %v789 = vld [vmem:[%s204 + $0xf18] sm:$0x3]
        %v790 = vld [vmem:[%s204 + $0xf20] sm:$0x3]
        %v791 = vld [vmem:[%s204 + $0xf28] sm:$0x3]
        %v792 = vld [vmem:[%s204 + $0xf30] sm:$0x3]
        %v793 = vld [vmem:[%s204 + $0xf38] sm:$0x3]
        %v794 = vld [vmem:[%s204 + $0xf40] sm:$0x3]
        %v795 = vld [vmem:[%s204 + $0xf48] sm:$0x3]
        %v796 = vld [vmem:[%s204 + $0xf50] sm:$0x3]
        %v797 = vld [vmem:[%s204 + $0xf58] sm:$0x3]
        %v798 = vld [vmem:[%s204 + $0xf60] sm:$0x3]
        %v799 = vld [vmem:[%s204 + $0xf68] sm:$0x3]
        %v800 = vld [vmem:[%s204 + $0xf70] sm:$0x3]
        %v801 = vld [vmem:[%s204 + $0xf78] sm:$0x3]
        %v802 = vld [vmem:[%s204 + $0xf80] sm:$0x3]
        %v803 = vld [vmem:[%s204 + $0xf88] sm:$0x3]
        %v804 = vld [vmem:[%s204 + $0xf90] sm:$0x3]
        %v805 = vld [vmem:[%s204 + $0xf98] sm:$0x3]
        %v806 = vld [vmem:[%s204 + $0xfa0] sm:$0x3]
        %v807 = vld [vmem:[%s204 + $0xfa8] sm:$0x3]
        %v808 = vld [vmem:[%s204 + $0xfb0] sm:$0x3]
        %v809 = vld [vmem:[%s204 + $0xfb8] sm:$0x3]
        %v810 = vld [vmem:[%s204 + $0xfc0] sm:$0x3]
        %v811 = vld [vmem:[%s204 + $0xfc8] sm:$0x3]
        %v812 = vld [vmem:[%s204 + $0xfd0] sm:$0x3]
        %v813 = vld [vmem:[%s204 + $0xfd8] sm:$0x3]
        %v814 = vld [vmem:[%s204 + $0xfe0] sm:$0x3]
        %v815 = vld [vmem:[%s204 + $0xfe8] sm:$0x3]
        %v816 = vld [vmem:[%s204 + $0xff0] sm:$0x3]
        %v817 = vld [vmem:[%s204 + $0xff8] sm:$0x3]
        %882 = vst [vmem:[#allocation1] ss:$4 sm:$0xff] %v242
        %s883 = scalar_lea.vmem [#allocation1], 32
        %884 = vst [vmem:[%s883] ss:$4 sm:$0xff] %v243
        %v885 = vld.sshfl [vmem:[#allocation1] sm:$0xff pattern:$0x73625140]
        %v886 = vld.sshfl [vmem:[#allocation1 + $0x8] sm:$0xff pattern:$0x73625140]
        %v887 = vld.sshfl [vmem:[#allocation1 + $0x10] sm:$0xff pattern:$0x73625140]
        %v888 = vld.sshfl [vmem:[#allocation1 + $0x18] sm:$0xff pattern:$0x73625140]
        %v889 = vld.sshfl [vmem:[#allocation1 + $0x20] sm:$0xff pattern:$0x73625140]
        %v890 = vld.sshfl [vmem:[#allocation1 + $0x28] sm:$0xff pattern:$0x73625140]
        %v891 = vld.sshfl [vmem:[#allocation1 + $0x30] sm:$0xff pattern:$0x73625140]
        %v892 = vld.sshfl [vmem:[#allocation1 + $0x38] sm:$0xff pattern:$0x73625140]
        %893 = vst [vmem:[#allocation1] ss:$4 sm:$0xff] %v244
        %894 = vst [vmem:[%s883] ss:$4 sm:$0xff] %v245
        %v895 = vld.sshfl [vmem:[#allocation1] sm:$0xff pattern:$0x73625140]
        %v896 = vld.sshfl [vmem:[#allocation1 + $0x8] sm:$0xff pattern:$0x73625140]
        %v897 = vld.sshfl [vmem:[#allocation1 + $0x10] sm:$0xff pattern:$0x73625140]
        %v898 = vld.sshfl [vmem:[#allocation1 + $0x18] sm:$0xff pattern:$0x73625140]
        %v899 = vld.sshfl [vmem:[#allocation1 + $0x20] sm:$0xff pattern:$0x73625140]
        %v900 = vld.sshfl [vmem:[#allocation1 + $0x28] sm:$0xff pattern:$0x73625140]
        %v901 = vld.sshfl [vmem:[#allocation1 + $0x30] sm:$0xff pattern:$0x73625140]
        %v902 = vld.sshfl [vmem:[#allocation1 + $0x38] sm:$0xff pattern:$0x73625140]
        %903 = vst [vmem:[#allocation1] ss:$4 sm:$0xff] %v246
        %904 = vst [vmem:[%s883] ss:$4 sm:$0xff] %v247
        %v905 = vld.sshfl [vmem:[#allocation1] sm:$0xff pattern:$0x73625140]
        %v906 = vld.sshfl [vmem:[#allocation1 + $0x8] sm:$0xff pattern:$0x73625140]
        %v907 = vld.sshfl [vmem:[#allocation1 + $0x10] sm:$0xff pattern:$0x73625140]
        %v908 = vld.sshfl [vmem:[#allocation1 + $0x18] sm:$0xff pattern:$0x73625140]
        %v909 = vld.sshfl [vmem:[#allocation1 + $0x20] sm:$0xff pattern:$0x73625140]
        %v910 = vld.sshfl [vmem:[#allocation1 + $0x28] sm:$0xff pattern:$0x73625140]
        %v911 = vld.sshfl [vmem:[#allocation1 + $0x30] sm:$0xff pattern:$0x73625140]
        %v912 = vld.sshfl [vmem:[#allocation1 + $0x38] sm:$0xff pattern:$0x73625140]
        %913 = vst [vmem:[#allocation1] ss:$4 sm:$0xff] %v248
        %914 = vst [vmem:[%s883] ss:$4 sm:$0xff] %v249
        %v915 = vld.sshfl [vmem:[#allocation1] sm:$0xff pattern:$0x73625140]
        %v916 = vld.sshfl [vmem:[#allocation1 + $0x8] sm:$0xff pattern:$0x73625140]
        %v917 = vld.sshfl [vmem:[#allocation1 + $0x10] sm:$0xff pattern:$0x73625140]
        %v918 = vld.sshfl [vmem:[#allocation1 + $0x18] sm:$0xff pattern:$0x73625140]
        %v919 = vld.sshfl [vmem:[#allocation1 + $0x20] sm:$0xff pattern:$0x73625140]
        %v920 = vld.sshfl [vmem:[#allocation1 + $0x28] sm:$0xff pattern:$0x73625140]
        %v921 = vld.sshfl [vmem:[#allocation1 + $0x30] sm:$0xff pattern:$0x73625140]
        %v922 = vld.sshfl [vmem:[#allocation1 + $0x38] sm:$0xff pattern:$0x73625140]
        %923 = vst [vmem:[#allocation1] ss:$4 sm:$0xff] %v250
        %924 = vst [vmem:[%s883] ss:$4 sm:$0xff] %v251
        %v925 = vld.sshfl [vmem:[#allocation1] sm:$0xff pattern:$0x73625140]
        %v926 = vld.sshfl [vmem:[#allocation1 + $0x8] sm:$0xff pattern:$0x73625140]
        %v927 = vld.sshfl [vmem:[#allocation1 + $0x10] sm:$0xff pattern:$0x73625140]
        %v928 = vld.sshfl [vmem:[#allocation1 + $0x18] sm:$0xff pattern:$0x73625140]
        %v929 = vld.sshfl [vmem:[#allocation1 + $0x20] sm:$0xff pattern:$0x73625140]
        %v930 = vld.sshfl [vmem:[#allocation1 + $0x28] sm:$0xff pattern:$0x73625140]
        %v931 = vld.sshfl [vmem:[#allocation1 + $0x30] sm:$0xff pattern:$0x73625140]
        %v932 = vld.sshfl [vmem:[#allocation1 + $0x38] sm:$0xff pattern:$0x73625140]
        %933 = vst [vmem:[#allocation1] ss:$4 sm:$0xff] %v252
        %934 = vst [vmem:[%s883] ss:$4 sm:$0xff] %v253
        %v935 = vld.sshfl [vmem:[#allocation1] sm:$0xff pattern:$0x73625140]
        %v936 = vld.sshfl [vmem:[#allocation1 + $0x8] sm:$0xff pattern:$0x73625140]
        %v937 = vld.sshfl [vmem:[#allocation1 + $0x10] sm:$0xff pattern:$0x73625140]
        %v938 = vld.sshfl [vmem:[#allocation1 + $0x18] sm:$0xff pattern:$0x73625140]
        %v939 = vld.sshfl [vmem:[#allocation1 + $0x20] sm:$0xff pattern:$0x73625140]
        %v940 = vld.sshfl [vmem:[#allocation1 + $0x28] sm:$0xff pattern:$0x73625140]
        %v941 = vld.sshfl [vmem:[#allocation1 + $0x30] sm:$0xff pattern:$0x73625140]
        %v942 = vld.sshfl [vmem:[#allocation1 + $0x38] sm:$0xff pattern:$0x73625140]
        %943 = vst [vmem:[#allocation1] ss:$4 sm:$0xff] %v254
        %944 = vst [vmem:[%s883] ss:$4 sm:$0xff] %v255
        %v945 = vld.sshfl [vmem:[#allocation1] sm:$0xff pattern:$0x73625140]
        %v946 = vld.sshfl [vmem:[#allocation1 + $0x8] sm:$0xff pattern:$0x73625140]
        %v947 = vld.sshfl [vmem:[#allocation1 + $0x10] sm:$0xff pattern:$0x73625140]
        %v948 = vld.sshfl [vmem:[#allocation1 + $0x18] sm:$0xff pattern:$0x73625140]
        %v949 = vld.sshfl [vmem:[#allocation1 + $0x20] sm:$0xff pattern:$0x73625140]
        %v950 = vld.sshfl [vmem:[#allocation1 + $0x28] sm:$0xff pattern:$0x73625140]
        %v951 = vld.sshfl [vmem:[#allocation1 + $0x30] sm:$0xff pattern:$0x73625140]
        %v952 = vld.sshfl [vmem:[#allocation1 + $0x38] sm:$0xff pattern:$0x73625140]
        %953 = vst [vmem:[#allocation1] ss:$4 sm:$0xff] %v256
        %954 = vst [vmem:[%s883] ss:$4 sm:$0xff] %v257
        %v955 = vld.sshfl [vmem:[#allocation1] sm:$0xff pattern:$0x73625140]
        %v956 = vld.sshfl [vmem:[#allocation1 + $0x8] sm:$0xff pattern:$0x73625140]
        %v957 = vld.sshfl [vmem:[#allocation1 + $0x10] sm:$0xff pattern:$0x73625140]
        %v958 = vld.sshfl [vmem:[#allocation1 + $0x18] sm:$0xff pattern:$0x73625140]
        %v959 = vld.sshfl [vmem:[#allocation1 + $0x20] sm:$0xff pattern:$0x73625140]
        %v960 = vld.sshfl [vmem:[#allocation1 + $0x28] sm:$0xff pattern:$0x73625140]
        %v961 = vld.sshfl [vmem:[#allocation1 + $0x30] sm:$0xff pattern:$0x73625140]
        %v962 = vld.sshfl [vmem:[#allocation1 + $0x38] sm:$0xff pattern:$0x73625140]
        %963 = vst [vmem:[#allocation1] ss:$4 sm:$0xff] %v258
        %964 = vst [vmem:[%s883] ss:$4 sm:$0xff] %v259
        %v965 = vld.sshfl [vmem:[#allocation1] sm:$0xff pattern:$0x73625140]
        %v966 = vld.sshfl [vmem:[#allocation1 + $0x8] sm:$0xff pattern:$0x73625140]
        %v967 = vld.sshfl [vmem:[#allocation1 + $0x10] sm:$0xff pattern:$0x73625140]
        %v968 = vld.sshfl [vmem:[#allocation1 + $0x18] sm:$0xff pattern:$0x73625140]
        %v969 = vld.sshfl [vmem:[#allocation1 + $0x20] sm:$0xff pattern:$0x73625140]
        %v970 = vld.sshfl [vmem:[#allocation1 + $0x28] sm:$0xff pattern:$0x73625140]
        %v971 = vld.sshfl [vmem:[#allocation1 + $0x30] sm:$0xff pattern:$0x73625140]
        %v972 = vld.sshfl [vmem:[#allocation1 + $0x38] sm:$0xff pattern:$0x73625140]
        %973 = vst [vmem:[#allocation1] ss:$4 sm:$0xff] %v260
        %974 = vst [vmem:[%s883] ss:$4 sm:$0xff] %v261
        %v975 = vld.sshfl [vmem:[#allocation1] sm:$0xff pattern:$0x73625140]
        %v976 = vld.sshfl [vmem:[#allocation1 + $0x8] sm:$0xff pattern:$0x73625140]
        %v977 = vld.sshfl [vmem:[#allocation1 + $0x10] sm:$0xff pattern:$0x73625140]
        %v978 = vld.sshfl [vmem:[#allocation1 + $0x18] sm:$0xff pattern:$0x73625140]
        %v979 = vld.sshfl [vmem:[#allocation1 + $0x20] sm:$0xff pattern:$0x73625140]
        %v980 = vld.sshfl [vmem:[#allocation1 + $0x28] sm:$0xff pattern:$0x73625140]
        %v981 = vld.sshfl [vmem:[#allocation1 + $0x30] sm:$0xff pattern:$0x73625140]
        %v982 = vld.sshfl [vmem:[#allocation1 + $0x38] sm:$0xff pattern:$0x73625140]
        %983 = vst [vmem:[#allocation1] ss:$4 sm:$0xff] %v262
        %984 = vst [vmem:[%s883] ss:$4 sm:$0xff] %v263
        %v985 = vld.sshfl [vmem:[#allocation1] sm:$0xff pattern:$0x73625140]
        %v986 = vld.sshfl [vmem:[#allocation1 + $0x8] sm:$0xff pattern:$0x73625140]
        %v987 = vld.sshfl [vmem:[#allocation1 + $0x10] sm:$0xff pattern:$0x73625140]
        %v988 = vld.sshfl [vmem:[#allocation1 + $0x18] sm:$0xff pattern:$0x73625140]
        %v989 = vld.sshfl [vmem:[#allocation1 + $0x20] sm:$0xff pattern:$0x73625140]
        %v990 = vld.sshfl [vmem:[#allocation1 + $0x28] sm:$0xff pattern:$0x73625140]
        %v991 = vld.sshfl [vmem:[#allocation1 + $0x30] sm:$0xff pattern:$0x73625140]
        %v992 = vld.sshfl [vmem:[#allocation1 + $0x38] sm:$0xff pattern:$0x73625140]
        %993 = vst [vmem:[#allocation1] ss:$4 sm:$0xff] %v264
        %994 = vst [vmem:[%s883] ss:$4 sm:$0xff] %v265
        %v995 = vld.sshfl [vmem:[#allocation1] sm:$0xff pattern:$0x73625140]
        %v996 = vld.sshfl [vmem:[#allocation1 + $0x8] sm:$0xff pattern:$0x73625140]
        %v997 = vld.sshfl [vmem:[#allocation1 + $0x10] sm:$0xff pattern:$0x73625140]
        %v998 = vld.sshfl [vmem:[#allocation1 + $0x18] sm:$0xff pattern:$0x73625140]
        %v999 = vld.sshfl [vmem:[#allocation1 + $0x20] sm:$0xff pattern:$0x73625140]
        %v1000 = vld.sshfl [vmem:[#allocation1 + $0x28] sm:$0xff pattern:$0x73625140]
        %v1001 = vld.sshfl [vmem:[#allocation1 + $0x30] sm:$0xff pattern:$0x73625140]
        %v1002 = vld.sshfl [vmem:[#allocation1 + $0x38] sm:$0xff pattern:$0x73625140]
        %1003 = vst [vmem:[#allocation1] ss:$4 sm:$0xff] %v266
        %1004 = vst [vmem:[%s883] ss:$4 sm:$0xff] %v267
        %v1005 = vld.sshfl [vmem:[#allocation1] sm:$0xff pattern:$0x73625140]
        %v1006 = vld.sshfl [vmem:[#allocation1 + $0x8] sm:$0xff pattern:$0x73625140]
        %v1007 = vld.sshfl [vmem:[#allocation1 + $0x10] sm:$0xff pattern:$0x73625140]
        %v1008 = vld.sshfl [vmem:[#allocation1 + $0x18] sm:$0xff pattern:$0x73625140]
        %v1009 = vld.sshfl [vmem:[#allocation1 + $0x20] sm:$0xff pattern:$0x73625140]
        %v1010 = vld.sshfl [vmem:[#allocation1 + $0x28] sm:$0xff pattern:$0x73625140]
        %v1011 = vld.sshfl [vmem:[#allocation1 + $0x30] sm:$0xff pattern:$0x73625140]
        %v1012 = vld.sshfl [vmem:[#allocation1 + $0x38] sm:$0xff pattern:$0x73625140]
        %1013 = vst [vmem:[#allocation1] ss:$4 sm:$0xff] %v268
        %1014 = vst [vmem:[%s883] ss:$4 sm:$0xff] %v269
        %v1015 = vld.sshfl [vmem:[#allocation1] sm:$0xff pattern:$0x73625140]
        %v1016 = vld.sshfl [vmem:[#allocation1 + $0x8] sm:$0xff pattern:$0x73625140]
        %v1017 = vld.sshfl [vmem:[#allocation1 + $0x10] sm:$0xff pattern:$0x73625140]
        %v1018 = vld.sshfl [vmem:[#allocation1 + $0x18] sm:$0xff pattern:$0x73625140]
        %v1019 = vld.sshfl [vmem:[#allocation1 + $0x20] sm:$0xff pattern:$0x73625140]
        %v1020 = vld.sshfl [vmem:[#allocation1 + $0x28] sm:$0xff pattern:$0x73625140]
        %v1021 = vld.sshfl [vmem:[#allocation1 + $0x30] sm:$0xff pattern:$0x73625140]
        %v1022 = vld.sshfl [vmem:[#allocation1 + $0x38] sm:$0xff pattern:$0x73625140]
        %1023 = vst [vmem:[#allocation1] ss:$4 sm:$0xff] %v270
        %1024 = vst [vmem:[%s883] ss:$4 sm:$0xff] %v271
        %v1025 = vld.sshfl [vmem:[#allocation1] sm:$0xff pattern:$0x73625140]
        %v1026 = vld.sshfl [vmem:[#allocation1 + $0x8] sm:$0xff pattern:$0x73625140]
        %v1027 = vld.sshfl [vmem:[#allocation1 + $0x10] sm:$0xff pattern:$0x73625140]
        %v1028 = vld.sshfl [vmem:[#allocation1 + $0x18] sm:$0xff pattern:$0x73625140]
        %v1029 = vld.sshfl [vmem:[#allocation1 + $0x20] sm:$0xff pattern:$0x73625140]
        %v1030 = vld.sshfl [vmem:[#allocation1 + $0x28] sm:$0xff pattern:$0x73625140]
        %v1031 = vld.sshfl [vmem:[#allocation1 + $0x30] sm:$0xff pattern:$0x73625140]
        %v1032 = vld.sshfl [vmem:[#allocation1 + $0x38] sm:$0xff pattern:$0x73625140]
        %1033 = vst [vmem:[#allocation1] ss:$4 sm:$0xff] %v272
        %1034 = vst [vmem:[%s883] ss:$4 sm:$0xff] %v273
        %v1035 = vld.sshfl [vmem:[#allocation1] sm:$0xff pattern:$0x73625140]
        %v1036 = vld.sshfl [vmem:[#allocation1 + $0x8] sm:$0xff pattern:$0x73625140]
        %v1037 = vld.sshfl [vmem:[#allocation1 + $0x10] sm:$0xff pattern:$0x73625140]
        %v1038 = vld.sshfl [vmem:[#allocation1 + $0x18] sm:$0xff pattern:$0x73625140]
        %v1039 = vld.sshfl [vmem:[#allocation1 + $0x20] sm:$0xff pattern:$0x73625140]
        %v1040 = vld.sshfl [vmem:[#allocation1 + $0x28] sm:$0xff pattern:$0x73625140]
        %v1041 = vld.sshfl [vmem:[#allocation1 + $0x30] sm:$0xff pattern:$0x73625140]
        %v1042 = vld.sshfl [vmem:[#allocation1 + $0x38] sm:$0xff pattern:$0x73625140]
        %1043 = vst [vmem:[#allocation1] ss:$4 sm:$0xff] %v274
        %1044 = vst [vmem:[%s883] ss:$4 sm:$0xff] %v275
        %v1045 = vld.sshfl [vmem:[#allocation1] sm:$0xff pattern:$0x73625140]
        %v1046 = vld.sshfl [vmem:[#allocation1 + $0x8] sm:$0xff pattern:$0x73625140]
        %v1047 = vld.sshfl [vmem:[#allocation1 + $0x10] sm:$0xff pattern:$0x73625140]
        %v1048 = vld.sshfl [vmem:[#allocation1 + $0x18] sm:$0xff pattern:$0x73625140]
        %v1049 = vld.sshfl [vmem:[#allocation1 + $0x20] sm:$0xff pattern:$0x73625140]
        %v1050 = vld.sshfl [vmem:[#allocation1 + $0x28] sm:$0xff pattern:$0x73625140]
        %v1051 = vld.sshfl [vmem:[#allocation1 + $0x30] sm:$0xff pattern:$0x73625140]
        %v1052 = vld.sshfl [vmem:[#allocation1 + $0x38] sm:$0xff pattern:$0x73625140]
        %1053 = vst [vmem:[#allocation1] ss:$4 sm:$0xff] %v276
        %1054 = vst [vmem:[%s883] ss:$4 sm:$0xff] %v277
        %v1055 = vld.sshfl [vmem:[#allocation1] sm:$0xff pattern:$0x73625140]
        %v1056 = vld.sshfl [vmem:[#allocation1 + $0x8] sm:$0xff pattern:$0x73625140]
        %v1057 = vld.sshfl [vmem:[#allocation1 + $0x10] sm:$0xff pattern:$0x73625140]
        %v1058 = vld.sshfl [vmem:[#allocation1 + $0x18] sm:$0xff pattern:$0x73625140]
        %v1059 = vld.sshfl [vmem:[#allocation1 + $0x20] sm:$0xff pattern:$0x73625140]
        %v1060 = vld.sshfl [vmem:[#allocation1 + $0x28] sm:$0xff pattern:$0x73625140]
        %v1061 = vld.sshfl [vmem:[#allocation1 + $0x30] sm:$0xff pattern:$0x73625140]
        %v1062 = vld.sshfl [vmem:[#allocation1 + $0x38] sm:$0xff pattern:$0x73625140]
        %1063 = vst [vmem:[#allocation1] ss:$4 sm:$0xff] %v278
        %1064 = vst [vmem:[%s883] ss:$4 sm:$0xff] %v279
        %v1065 = vld.sshfl [vmem:[#allocation1] sm:$0xff pattern:$0x73625140]
        %v1066 = vld.sshfl [vmem:[#allocation1 + $0x8] sm:$0xff pattern:$0x73625140]
        %v1067 = vld.sshfl [vmem:[#allocation1 + $0x10] sm:$0xff pattern:$0x73625140]
        %v1068 = vld.sshfl [vmem:[#allocation1 + $0x18] sm:$0xff pattern:$0x73625140]
        %v1069 = vld.sshfl [vmem:[#allocation1 + $0x20] sm:$0xff pattern:$0x73625140]
        %v1070 = vld.sshfl [vmem:[#allocation1 + $0x28] sm:$0xff pattern:$0x73625140]
        %v1071 = vld.sshfl [vmem:[#allocation1 + $0x30] sm:$0xff pattern:$0x73625140]
        %v1072 = vld.sshfl [vmem:[#allocation1 + $0x38] sm:$0xff pattern:$0x73625140]
        %1073 = vst [vmem:[#allocation1] ss:$4 sm:$0xff] %v280
        %1074 = vst [vmem:[%s883] ss:$4 sm:$0xff] %v281
        %v1075 = vld.sshfl [vmem:[#allocation1] sm:$0xff pattern:$0x73625140]
        %v1076 = vld.sshfl [vmem:[#allocation1 + $0x8] sm:$0xff pattern:$0x73625140]
        %v1077 = vld.sshfl [vmem:[#allocation1 + $0x10] sm:$0xff pattern:$0x73625140]
        %v1078 = vld.sshfl [vmem:[#allocation1 + $0x18] sm:$0xff pattern:$0x73625140]
        %v1079 = vld.sshfl [vmem:[#allocation1 + $0x20] sm:$0xff pattern:$0x73625140]
        %v1080 = vld.sshfl [vmem:[#allocation1 + $0x28] sm:$0xff pattern:$0x73625140]
        %v1081 = vld.sshfl [vmem:[#allocation1 + $0x30] sm:$0xff pattern:$0x73625140]
        %v1082 = vld.sshfl [vmem:[#allocation1 + $0x38] sm:$0xff pattern:$0x73625140]
        %1083 = vst [vmem:[#allocation1] ss:$4 sm:$0xff] %v282
        %1084 = vst [vmem:[%s883] ss:$4 sm:$0xff] %v283
        %v1085 = vld.sshfl [vmem:[#allocation1] sm:$0xff pattern:$0x73625140]
        %v1086 = vld.sshfl [vmem:[#allocation1 + $0x8] sm:$0xff pattern:$0x73625140]
        %v1087 = vld.sshfl [vmem:[#allocation1 + $0x10] sm:$0xff pattern:$0x73625140]
        %v1088 = vld.sshfl [vmem:[#allocation1 + $0x18] sm:$0xff pattern:$0x73625140]
        %v1089 = vld.sshfl [vmem:[#allocation1 + $0x20] sm:$0xff pattern:$0x73625140]
        %v1090 = vld.sshfl [vmem:[#allocation1 + $0x28] sm:$0xff pattern:$0x73625140]
        %v1091 = vld.sshfl [vmem:[#allocation1 + $0x30] sm:$0xff pattern:$0x73625140]
        %v1092 = vld.sshfl [vmem:[#allocation1 + $0x38] sm:$0xff pattern:$0x73625140]
        %1093 = vst [vmem:[#allocation1] ss:$4 sm:$0xff] %v284
        %1094 = vst [vmem:[%s883] ss:$4 sm:$0xff] %v285
        %v1095 = vld.sshfl [vmem:[#allocation1] sm:$0xff pattern:$0x73625140]
        %v1096 = vld.sshfl [vmem:[#allocation1 + $0x8] sm:$0xff pattern:$0x73625140]
        %v1097 = vld.sshfl [vmem:[#allocation1 + $0x10] sm:$0xff pattern:$0x73625140]
        %v1098 = vld.sshfl [vmem:[#allocation1 + $0x18] sm:$0xff pattern:$0x73625140]
        %v1099 = vld.sshfl [vmem:[#allocation1 + $0x20] sm:$0xff pattern:$0x73625140]
        %v1100 = vld.sshfl [vmem:[#allocation1 + $0x28] sm:$0xff pattern:$0x73625140]
        %v1101 = vld.sshfl [vmem:[#allocation1 + $0x30] sm:$0xff pattern:$0x73625140]
        %v1102 = vld.sshfl [vmem:[#allocation1 + $0x38] sm:$0xff pattern:$0x73625140]
        %1103 = vst [vmem:[#allocation1] ss:$4 sm:$0xff] %v286
        %1104 = vst [vmem:[%s883] ss:$4 sm:$0xff] %v287
        %v1105 = vld.sshfl [vmem:[#allocation1] sm:$0xff pattern:$0x73625140]
        %v1106 = vld.sshfl [vmem:[#allocation1 + $0x8] sm:$0xff pattern:$0x73625140]
        %v1107 = vld.sshfl [vmem:[#allocation1 + $0x10] sm:$0xff pattern:$0x73625140]
        %v1108 = vld.sshfl [vmem:[#allocation1 + $0x18] sm:$0xff pattern:$0x73625140]
        %v1109 = vld.sshfl [vmem:[#allocation1 + $0x20] sm:$0xff pattern:$0x73625140]
        %v1110 = vld.sshfl [vmem:[#allocation1 + $0x28] sm:$0xff pattern:$0x73625140]
        %v1111 = vld.sshfl [vmem:[#allocation1 + $0x30] sm:$0xff pattern:$0x73625140]
        %v1112 = vld.sshfl [vmem:[#allocation1 + $0x38] sm:$0xff pattern:$0x73625140]
        %1113 = vst [vmem:[#allocation1] ss:$4 sm:$0xff] %v288
        %1114 = vst [vmem:[%s883] ss:$4 sm:$0xff] %v289
        %v1115 = vld.sshfl [vmem:[#allocation1] sm:$0xff pattern:$0x73625140]
        %v1116 = vld.sshfl [vmem:[#allocation1 + $0x8] sm:$0xff pattern:$0x73625140]
        %v1117 = vld.sshfl [vmem:[#allocation1 + $0x10] sm:$0xff pattern:$0x73625140]
        %v1118 = vld.sshfl [vmem:[#allocation1 + $0x18] sm:$0xff pattern:$0x73625140]
        %v1119 = vld.sshfl [vmem:[#allocation1 + $0x20] sm:$0xff pattern:$0x73625140]
        %v1120 = vld.sshfl [vmem:[#allocation1 + $0x28] sm:$0xff pattern:$0x73625140]
        %v1121 = vld.sshfl [vmem:[#allocation1 + $0x30] sm:$0xff pattern:$0x73625140]
        %v1122 = vld.sshfl [vmem:[#allocation1 + $0x38] sm:$0xff pattern:$0x73625140]
        %1123 = vst [vmem:[#allocation1] ss:$4 sm:$0xff] %v290
        %1124 = vst [vmem:[%s883] ss:$4 sm:$0xff] %v291
        %v1125 = vld.sshfl [vmem:[#allocation1] sm:$0xff pattern:$0x73625140]
        %v1126 = vld.sshfl [vmem:[#allocation1 + $0x8] sm:$0xff pattern:$0x73625140]
        %v1127 = vld.sshfl [vmem:[#allocation1 + $0x10] sm:$0xff pattern:$0x73625140]
        %v1128 = vld.sshfl [vmem:[#allocation1 + $0x18] sm:$0xff pattern:$0x73625140]
        %v1129 = vld.sshfl [vmem:[#allocation1 + $0x20] sm:$0xff pattern:$0x73625140]
        %v1130 = vld.sshfl [vmem:[#allocation1 + $0x28] sm:$0xff pattern:$0x73625140]
        %v1131 = vld.sshfl [vmem:[#allocation1 + $0x30] sm:$0xff pattern:$0x73625140]
        %v1132 = vld.sshfl [vmem:[#allocation1 + $0x38] sm:$0xff pattern:$0x73625140]
        %1133 = vst [vmem:[#allocation1] ss:$4 sm:$0xff] %v292
        %1134 = vst [vmem:[%s883] ss:$4 sm:$0xff] %v293
        %v1135 = vld.sshfl [vmem:[#allocation1] sm:$0xff pattern:$0x73625140]
        %v1136 = vld.sshfl [vmem:[#allocation1 + $0x8] sm:$0xff pattern:$0x73625140]
        %v1137 = vld.sshfl [vmem:[#allocation1 + $0x10] sm:$0xff pattern:$0x73625140]
        %v1138 = vld.sshfl [vmem:[#allocation1 + $0x18] sm:$0xff pattern:$0x73625140]
        %v1139 = vld.sshfl [vmem:[#allocation1 + $0x20] sm:$0xff pattern:$0x73625140]
        %v1140 = vld.sshfl [vmem:[#allocation1 + $0x28] sm:$0xff pattern:$0x73625140]
        %v1141 = vld.sshfl [vmem:[#allocation1 + $0x30] sm:$0xff pattern:$0x73625140]
        %v1142 = vld.sshfl [vmem:[#allocation1 + $0x38] sm:$0xff pattern:$0x73625140]
        %1143 = vst [vmem:[#allocation1] ss:$4 sm:$0xff] %v294
        %1144 = vst [vmem:[%s883] ss:$4 sm:$0xff] %v295
        %v1145 = vld.sshfl [vmem:[#allocation1] sm:$0xff pattern:$0x73625140]
        %v1146 = vld.sshfl [vmem:[#allocation1 + $0x8] sm:$0xff pattern:$0x73625140]
        %v1147 = vld.sshfl [vmem:[#allocation1 + $0x10] sm:$0xff pattern:$0x73625140]
        %v1148 = vld.sshfl [vmem:[#allocation1 + $0x18] sm:$0xff pattern:$0x73625140]
        %v1149 = vld.sshfl [vmem:[#allocation1 + $0x20] sm:$0xff pattern:$0x73625140]
        %v1150 = vld.sshfl [vmem:[#allocation1 + $0x28] sm:$0xff pattern:$0x73625140]
        %v1151 = vld.sshfl [vmem:[#allocation1 + $0x30] sm:$0xff pattern:$0x73625140]
        %v1152 = vld.sshfl [vmem:[#allocation1 + $0x38] sm:$0xff pattern:$0x73625140]
        %1153 = vst [vmem:[#allocation1] ss:$4 sm:$0xff] %v296
        %1154 = vst [vmem:[%s883] ss:$4 sm:$0xff] %v297
        %v1155 = vld.sshfl [vmem:[#allocation1] sm:$0xff pattern:$0x73625140]
        %v1156 = vld.sshfl [vmem:[#allocation1 + $0x8] sm:$0xff pattern:$0x73625140]
        %v1157 = vld.sshfl [vmem:[#allocation1 + $0x10] sm:$0xff pattern:$0x73625140]
        %v1158 = vld.sshfl [vmem:[#allocation1 + $0x18] sm:$0xff pattern:$0x73625140]
        %v1159 = vld.sshfl [vmem:[#allocation1 + $0x20] sm:$0xff pattern:$0x73625140]
        %v1160 = vld.sshfl [vmem:[#allocation1 + $0x28] sm:$0xff pattern:$0x73625140]
        %v1161 = vld.sshfl [vmem:[#allocation1 + $0x30] sm:$0xff pattern:$0x73625140]
        %v1162 = vld.sshfl [vmem:[#allocation1 + $0x38] sm:$0xff pattern:$0x73625140]
        %1163 = vst [vmem:[#allocation1] ss:$4 sm:$0xff] %v298
        %1164 = vst [vmem:[%s883] ss:$4 sm:$0xff] %v299
        %v1165 = vld.sshfl [vmem:[#allocation1] sm:$0xff pattern:$0x73625140]
        %v1166 = vld.sshfl [vmem:[#allocation1 + $0x8] sm:$0xff pattern:$0x73625140]
        %v1167 = vld.sshfl [vmem:[#allocation1 + $0x10] sm:$0xff pattern:$0x73625140]
        %v1168 = vld.sshfl [vmem:[#allocation1 + $0x18] sm:$0xff pattern:$0x73625140]
        %v1169 = vld.sshfl [vmem:[#allocation1 + $0x20] sm:$0xff pattern:$0x73625140]
        %v1170 = vld.sshfl [vmem:[#allocation1 + $0x28] sm:$0xff pattern:$0x73625140]
        %v1171 = vld.sshfl [vmem:[#allocation1 + $0x30] sm:$0xff pattern:$0x73625140]
        %v1172 = vld.sshfl [vmem:[#allocation1 + $0x38] sm:$0xff pattern:$0x73625140]
        %1173 = vst [vmem:[#allocation1] ss:$4 sm:$0xff] %v300
        %1174 = vst [vmem:[%s883] ss:$4 sm:$0xff] %v301
        %v1175 = vld.sshfl [vmem:[#allocation1] sm:$0xff pattern:$0x73625140]
        %v1176 = vld.sshfl [vmem:[#allocation1 + $0x8] sm:$0xff pattern:$0x73625140]
        %v1177 = vld.sshfl [vmem:[#allocation1 + $0x10] sm:$0xff pattern:$0x73625140]
        %v1178 = vld.sshfl [vmem:[#allocation1 + $0x18] sm:$0xff pattern:$0x73625140]
        %v1179 = vld.sshfl [vmem:[#allocation1 + $0x20] sm:$0xff pattern:$0x73625140]
        %v1180 = vld.sshfl [vmem:[#allocation1 + $0x28] sm:$0xff pattern:$0x73625140]
        %v1181 = vld.sshfl [vmem:[#allocation1 + $0x30] sm:$0xff pattern:$0x73625140]
        %v1182 = vld.sshfl [vmem:[#allocation1 + $0x38] sm:$0xff pattern:$0x73625140]
        %1183 = vst [vmem:[#allocation1] ss:$4 sm:$0xff] %v302
        %1184 = vst [vmem:[%s883] ss:$4 sm:$0xff] %v303
        %v1185 = vld.sshfl [vmem:[#allocation1] sm:$0xff pattern:$0x73625140]
        %v1186 = vld.sshfl [vmem:[#allocation1 + $0x8] sm:$0xff pattern:$0x73625140]
        %v1187 = vld.sshfl [vmem:[#allocation1 + $0x10] sm:$0xff pattern:$0x73625140]
        %v1188 = vld.sshfl [vmem:[#allocation1 + $0x18] sm:$0xff pattern:$0x73625140]
        %v1189 = vld.sshfl [vmem:[#allocation1 + $0x20] sm:$0xff pattern:$0x73625140]
        %v1190 = vld.sshfl [vmem:[#allocation1 + $0x28] sm:$0xff pattern:$0x73625140]
        %v1191 = vld.sshfl [vmem:[#allocation1 + $0x30] sm:$0xff pattern:$0x73625140]
        %v1192 = vld.sshfl [vmem:[#allocation1 + $0x38] sm:$0xff pattern:$0x73625140]
        %1193 = vst [vmem:[#allocation1] ss:$4 sm:$0xff] %v304
        %1194 = vst [vmem:[%s883] ss:$4 sm:$0xff] %v305
        %v1195 = vld.sshfl [vmem:[#allocation1] sm:$0xff pattern:$0x73625140]
        %v1196 = vld.sshfl [vmem:[#allocation1 + $0x8] sm:$0xff pattern:$0x73625140]
        %v1197 = vld.sshfl [vmem:[#allocation1 + $0x10] sm:$0xff pattern:$0x73625140]
        %v1198 = vld.sshfl [vmem:[#allocation1 + $0x18] sm:$0xff pattern:$0x73625140]
        %v1199 = vld.sshfl [vmem:[#allocation1 + $0x20] sm:$0xff pattern:$0x73625140]
        %v1200 = vld.sshfl [vmem:[#allocation1 + $0x28] sm:$0xff pattern:$0x73625140]
        %v1201 = vld.sshfl [vmem:[#allocation1 + $0x30] sm:$0xff pattern:$0x73625140]
        %v1202 = vld.sshfl [vmem:[#allocation1 + $0x38] sm:$0xff pattern:$0x73625140]
        %1459 = vmatpush.xpose.msra.mxu0 0.0
        %1460 = vmatpush.xpose.msra.mxu0 0.0
        %1461 = vmatpush.xpose.msra.mxu0 0.0
        %1462 = vmatpush.xpose.msra.mxu0 0.0
        %1463 = vmatpush.xpose.msra.mxu0 0.0
        %1464 = vmatpush.xpose.msra.mxu0 0.0
        %1465 = vmatpush.xpose.msra.mxu0 0.0
        %1466 = vmatpush.xpose.msra.mxu0 0.0
        %1467 = vmatpush.xpose.msra.mxu0 0.0
        %1468 = vmatpush.xpose.msra.mxu0 0.0
        %1469 = vmatpush.xpose.msra.mxu0 0.0
        %1470 = vmatpush.xpose.msra.mxu0 0.0
        %1471 = vmatpush.xpose.msra.mxu0 0.0
        %1472 = vmatpush.xpose.msra.mxu0 0.0
        %1473 = vmatpush.xpose.msra.mxu0 %v562
        %1474 = vmatpush.xpose.msra.mxu0 %v306
        %1475 = vmatmul.f32.gmra.mxu0 %v885
        %v1476 = vpop.f32.mrf.mxu0
        %v1477 = vadd.f32 0.0, %v1476
        %1478 = vdwg.mxu0
        %1479 = vmatpush.xpose.msra.mxu0 0.0
        %1480 = vmatpush.xpose.msra.mxu0 0.0
        %1481 = vmatpush.xpose.msra.mxu0 0.0
        %1482 = vmatpush.xpose.msra.mxu0 0.0
        %1483 = vmatpush.xpose.msra.mxu0 0.0
        %1484 = vmatpush.xpose.msra.mxu0 0.0
        %1485 = vmatpush.xpose.msra.mxu0 0.0
        %1486 = vmatpush.xpose.msra.mxu0 0.0
        %1487 = vmatpush.xpose.msra.mxu0 0.0
        %1488 = vmatpush.xpose.msra.mxu0 0.0
        %1489 = vmatpush.xpose.msra.mxu0 0.0
        %1490 = vmatpush.xpose.msra.mxu0 0.0
        %1491 = vmatpush.xpose.msra.mxu0 0.0
        %1492 = vmatpush.xpose.msra.mxu0 0.0
        %1493 = vmatpush.xpose.msra.mxu0 %v563
        %1494 = vmatpush.xpose.msra.mxu0 %v307
        %1495 = vmatmul.f32.gmra.mxu0 %v886
        %v1496 = vpop.f32.mrf.mxu0
        %v1497 = vadd.f32 %v1477, %v1496
        %1498 = vdwg.mxu0
        %1499 = vmatpush.xpose.msra.mxu0 0.0
        %1500 = vmatpush.xpose.msra.mxu0 0.0
        %1501 = vmatpush.xpose.msra.mxu0 0.0
        %1502 = vmatpush.xpose.msra.mxu0 0.0
        %1503 = vmatpush.xpose.msra.mxu0 0.0
        %1504 = vmatpush.xpose.msra.mxu0 0.0
        %1505 = vmatpush.xpose.msra.mxu0 0.0
        %1506 = vmatpush.xpose.msra.mxu0 0.0
        %1507 = vmatpush.xpose.msra.mxu0 0.0
        %1508 = vmatpush.xpose.msra.mxu0 0.0
        %1509 = vmatpush.xpose.msra.mxu0 0.0
        %1510 = vmatpush.xpose.msra.mxu0 0.0
        %1511 = vmatpush.xpose.msra.mxu0 0.0
        %1512 = vmatpush.xpose.msra.mxu0 0.0
        %1513 = vmatpush.xpose.msra.mxu0 %v564
        %1514 = vmatpush.xpose.msra.mxu0 %v308
        %1515 = vmatmul.f32.gmra.mxu0 %v887
        %v1516 = vpop.f32.mrf.mxu0
        %v1517 = vadd.f32 %v1497, %v1516
        %1518 = vdwg.mxu0
        %1519 = vmatpush.xpose.msra.mxu0 0.0
        %1520 = vmatpush.xpose.msra.mxu0 0.0
        %1521 = vmatpush.xpose.msra.mxu0 0.0
        %1522 = vmatpush.xpose.msra.mxu0 0.0
        %1523 = vmatpush.xpose.msra.mxu0 0.0
        %1524 = vmatpush.xpose.msra.mxu0 0.0
        %1525 = vmatpush.xpose.msra.mxu0 0.0
        %1526 = vmatpush.xpose.msra.mxu0 0.0
        %1527 = vmatpush.xpose.msra.mxu0 0.0
        %1528 = vmatpush.xpose.msra.mxu0 0.0
        %1529 = vmatpush.xpose.msra.mxu0 0.0
        %1530 = vmatpush.xpose.msra.mxu0 0.0
        %1531 = vmatpush.xpose.msra.mxu0 0.0
        %1532 = vmatpush.xpose.msra.mxu0 0.0
        %1533 = vmatpush.xpose.msra.mxu0 %v565
        %1534 = vmatpush.xpose.msra.mxu0 %v309
        %1535 = vmatmul.f32.gmra.mxu0 %v888
        %v1536 = vpop.f32.mrf.mxu0
        %v1537 = vadd.f32 %v1517, %v1536
        %1538 = vdwg.mxu0
        %1539 = vmatpush.xpose.msra.mxu0 0.0
        %1540 = vmatpush.xpose.msra.mxu0 0.0
        %1541 = vmatpush.xpose.msra.mxu0 0.0
        %1542 = vmatpush.xpose.msra.mxu0 0.0
        %1543 = vmatpush.xpose.msra.mxu0 0.0
        %1544 = vmatpush.xpose.msra.mxu0 0.0
        %1545 = vmatpush.xpose.msra.mxu0 0.0
        %1546 = vmatpush.xpose.msra.mxu0 0.0
        %1547 = vmatpush.xpose.msra.mxu0 0.0
        %1548 = vmatpush.xpose.msra.mxu0 0.0
        %1549 = vmatpush.xpose.msra.mxu0 0.0
        %1550 = vmatpush.xpose.msra.mxu0 0.0
        %1551 = vmatpush.xpose.msra.mxu0 0.0
        %1552 = vmatpush.xpose.msra.mxu0 0.0
        %1553 = vmatpush.xpose.msra.mxu0 %v566
        %1554 = vmatpush.xpose.msra.mxu0 %v310
        %1555 = vmatmul.f32.gmra.mxu0 %v889
        %v1556 = vpop.f32.mrf.mxu0
        %v1557 = vadd.f32 %v1537, %v1556
        %1558 = vdwg.mxu0
        %1559 = vmatpush.xpose.msra.mxu0 0.0
        %1560 = vmatpush.xpose.msra.mxu0 0.0
        %1561 = vmatpush.xpose.msra.mxu0 0.0
        %1562 = vmatpush.xpose.msra.mxu0 0.0
        %1563 = vmatpush.xpose.msra.mxu0 0.0
        %1564 = vmatpush.xpose.msra.mxu0 0.0
        %1565 = vmatpush.xpose.msra.mxu0 0.0
        %1566 = vmatpush.xpose.msra.mxu0 0.0
        %1567 = vmatpush.xpose.msra.mxu0 0.0
        %1568 = vmatpush.xpose.msra.mxu0 0.0
        %1569 = vmatpush.xpose.msra.mxu0 0.0
        %1570 = vmatpush.xpose.msra.mxu0 0.0
        %1571 = vmatpush.xpose.msra.mxu0 0.0
        %1572 = vmatpush.xpose.msra.mxu0 0.0
        %1573 = vmatpush.xpose.msra.mxu0 %v567
        %1574 = vmatpush.xpose.msra.mxu0 %v311
        %1575 = vmatmul.f32.gmra.mxu0 %v890
        %v1576 = vpop.f32.mrf.mxu0
        %v1577 = vadd.f32 %v1557, %v1576
        %1578 = vdwg.mxu0
        %1579 = vmatpush.xpose.msra.mxu0 0.0
        %1580 = vmatpush.xpose.msra.mxu0 0.0
        %1581 = vmatpush.xpose.msra.mxu0 0.0
        %1582 = vmatpush.xpose.msra.mxu0 0.0
        %1583 = vmatpush.xpose.msra.mxu0 0.0
        %1584 = vmatpush.xpose.msra.mxu0 0.0
        %1585 = vmatpush.xpose.msra.mxu0 0.0
        %1586 = vmatpush.xpose.msra.mxu0 0.0
        %1587 = vmatpush.xpose.msra.mxu0 0.0
        %1588 = vmatpush.xpose.msra.mxu0 0.0
        %1589 = vmatpush.xpose.msra.mxu0 0.0
        %1590 = vmatpush.xpose.msra.mxu0 0.0
        %1591 = vmatpush.xpose.msra.mxu0 0.0
        %1592 = vmatpush.xpose.msra.mxu0 0.0
        %1593 = vmatpush.xpose.msra.mxu0 %v568
        %1594 = vmatpush.xpose.msra.mxu0 %v312
        %1595 = vmatmul.f32.gmra.mxu0 %v891
        %v1596 = vpop.f32.mrf.mxu0
        %v1597 = vadd.f32 %v1577, %v1596
        %1598 = vdwg.mxu0
        %1599 = vmatpush.xpose.msra.mxu0 0.0
        %1600 = vmatpush.xpose.msra.mxu0 0.0
        %1601 = vmatpush.xpose.msra.mxu0 0.0
        %1602 = vmatpush.xpose.msra.mxu0 0.0
        %1603 = vmatpush.xpose.msra.mxu0 0.0
        %1604 = vmatpush.xpose.msra.mxu0 0.0
        %1605 = vmatpush.xpose.msra.mxu0 0.0
        %1606 = vmatpush.xpose.msra.mxu0 0.0
        %1607 = vmatpush.xpose.msra.mxu0 0.0
        %1608 = vmatpush.xpose.msra.mxu0 0.0
        %1609 = vmatpush.xpose.msra.mxu0 0.0
        %1610 = vmatpush.xpose.msra.mxu0 0.0
        %1611 = vmatpush.xpose.msra.mxu0 0.0
        %1612 = vmatpush.xpose.msra.mxu0 0.0
        %1613 = vmatpush.xpose.msra.mxu0 %v569
        %1614 = vmatpush.xpose.msra.mxu0 %v313
        %1615 = vmatmul.f32.gmra.mxu0 %v892
        %v1616 = vpop.f32.mrf.mxu0
        %v1617 = vadd.f32 %v1597, %v1616
        %1618 = vdwg.mxu0
        %1619 = vmatpush.xpose.msra.mxu0 0.0
        %1620 = vmatpush.xpose.msra.mxu0 0.0
        %1621 = vmatpush.xpose.msra.mxu0 0.0
        %1622 = vmatpush.xpose.msra.mxu0 0.0
        %1623 = vmatpush.xpose.msra.mxu0 0.0
        %1624 = vmatpush.xpose.msra.mxu0 0.0
        %1625 = vmatpush.xpose.msra.mxu0 0.0
        %1626 = vmatpush.xpose.msra.mxu0 0.0
        %1627 = vmatpush.xpose.msra.mxu0 0.0
        %1628 = vmatpush.xpose.msra.mxu0 0.0
        %1629 = vmatpush.xpose.msra.mxu0 0.0
        %1630 = vmatpush.xpose.msra.mxu0 0.0
        %1631 = vmatpush.xpose.msra.mxu0 0.0
        %1632 = vmatpush.xpose.msra.mxu0 0.0
        %1633 = vmatpush.xpose.msra.mxu0 %v570
        %1634 = vmatpush.xpose.msra.mxu0 %v314
        %1635 = vmatmul.f32.gmra.mxu0 %v895
        %v1636 = vpop.f32.mrf.mxu0
        %v1637 = vadd.f32 %v1617, %v1636
        %1638 = vdwg.mxu0
        %1639 = vmatpush.xpose.msra.mxu0 0.0
        %1640 = vmatpush.xpose.msra.mxu0 0.0
        %1641 = vmatpush.xpose.msra.mxu0 0.0
        %1642 = vmatpush.xpose.msra.mxu0 0.0
        %1643 = vmatpush.xpose.msra.mxu0 0.0
        %1644 = vmatpush.xpose.msra.mxu0 0.0
        %1645 = vmatpush.xpose.msra.mxu0 0.0
        %1646 = vmatpush.xpose.msra.mxu0 0.0
        %1647 = vmatpush.xpose.msra.mxu0 0.0
        %1648 = vmatpush.xpose.msra.mxu0 0.0
        %1649 = vmatpush.xpose.msra.mxu0 0.0
        %1650 = vmatpush.xpose.msra.mxu0 0.0
        %1651 = vmatpush.xpose.msra.mxu0 0.0
        %1652 = vmatpush.xpose.msra.mxu0 0.0
        %1653 = vmatpush.xpose.msra.mxu0 %v571
        %1654 = vmatpush.xpose.msra.mxu0 %v315
        %1655 = vmatmul.f32.gmra.mxu0 %v896
        %v1656 = vpop.f32.mrf.mxu0
        %v1657 = vadd.f32 %v1637, %v1656
        %1658 = vdwg.mxu0
        %1659 = vmatpush.xpose.msra.mxu0 0.0
        %1660 = vmatpush.xpose.msra.mxu0 0.0
        %1661 = vmatpush.xpose.msra.mxu0 0.0
        %1662 = vmatpush.xpose.msra.mxu0 0.0
        %1663 = vmatpush.xpose.msra.mxu0 0.0
        %1664 = vmatpush.xpose.msra.mxu0 0.0
        %1665 = vmatpush.xpose.msra.mxu0 0.0
        %1666 = vmatpush.xpose.msra.mxu0 0.0
        %1667 = vmatpush.xpose.msra.mxu0 0.0
        %1668 = vmatpush.xpose.msra.mxu0 0.0
        %1669 = vmatpush.xpose.msra.mxu0 0.0
        %1670 = vmatpush.xpose.msra.mxu0 0.0
        %1671 = vmatpush.xpose.msra.mxu0 0.0
        %1672 = vmatpush.xpose.msra.mxu0 0.0
        %1673 = vmatpush.xpose.msra.mxu0 %v572
        %1674 = vmatpush.xpose.msra.mxu0 %v316
        %1675 = vmatmul.f32.gmra.mxu0 %v897
        %v1676 = vpop.f32.mrf.mxu0
        %v1677 = vadd.f32 %v1657, %v1676
        %1678 = vdwg.mxu0
        %1679 = vmatpush.xpose.msra.mxu0 0.0
        %1680 = vmatpush.xpose.msra.mxu0 0.0
        %1681 = vmatpush.xpose.msra.mxu0 0.0
        %1682 = vmatpush.xpose.msra.mxu0 0.0
        %1683 = vmatpush.xpose.msra.mxu0 0.0
        %1684 = vmatpush.xpose.msra.mxu0 0.0
        %1685 = vmatpush.xpose.msra.mxu0 0.0
        %1686 = vmatpush.xpose.msra.mxu0 0.0
        %1687 = vmatpush.xpose.msra.mxu0 0.0
        %1688 = vmatpush.xpose.msra.mxu0 0.0
        %1689 = vmatpush.xpose.msra.mxu0 0.0
        %1690 = vmatpush.xpose.msra.mxu0 0.0
        %1691 = vmatpush.xpose.msra.mxu0 0.0
        %1692 = vmatpush.xpose.msra.mxu0 0.0
        %1693 = vmatpush.xpose.msra.mxu0 %v573
        %1694 = vmatpush.xpose.msra.mxu0 %v317
        %1695 = vmatmul.f32.gmra.mxu0 %v898
        %v1696 = vpop.f32.mrf.mxu0
        %v1697 = vadd.f32 %v1677, %v1696
        %1698 = vdwg.mxu0
        %1699 = vmatpush.xpose.msra.mxu0 0.0
        %1700 = vmatpush.xpose.msra.mxu0 0.0
        %1701 = vmatpush.xpose.msra.mxu0 0.0
        %1702 = vmatpush.xpose.msra.mxu0 0.0
        %1703 = vmatpush.xpose.msra.mxu0 0.0
        %1704 = vmatpush.xpose.msra.mxu0 0.0
        %1705 = vmatpush.xpose.msra.mxu0 0.0
        %1706 = vmatpush.xpose.msra.mxu0 0.0
        %1707 = vmatpush.xpose.msra.mxu0 0.0
        %1708 = vmatpush.xpose.msra.mxu0 0.0
        %1709 = vmatpush.xpose.msra.mxu0 0.0
        %1710 = vmatpush.xpose.msra.mxu0 0.0
        %1711 = vmatpush.xpose.msra.mxu0 0.0
        %1712 = vmatpush.xpose.msra.mxu0 0.0
        %1713 = vmatpush.xpose.msra.mxu0 %v574
        %1714 = vmatpush.xpose.msra.mxu0 %v318
        %1715 = vmatmul.f32.gmra.mxu0 %v899
        %v1716 = vpop.f32.mrf.mxu0
        %v1717 = vadd.f32 %v1697, %v1716
        %1718 = vdwg.mxu0
        %1719 = vmatpush.xpose.msra.mxu0 0.0
        %1720 = vmatpush.xpose.msra.mxu0 0.0
        %1721 = vmatpush.xpose.msra.mxu0 0.0
        %1722 = vmatpush.xpose.msra.mxu0 0.0
        %1723 = vmatpush.xpose.msra.mxu0 0.0
        %1724 = vmatpush.xpose.msra.mxu0 0.0
        %1725 = vmatpush.xpose.msra.mxu0 0.0
        %1726 = vmatpush.xpose.msra.mxu0 0.0
        %1727 = vmatpush.xpose.msra.mxu0 0.0
        %1728 = vmatpush.xpose.msra.mxu0 0.0
        %1729 = vmatpush.xpose.msra.mxu0 0.0
        %1730 = vmatpush.xpose.msra.mxu0 0.0
        %1731 = vmatpush.xpose.msra.mxu0 0.0
        %1732 = vmatpush.xpose.msra.mxu0 0.0
        %1733 = vmatpush.xpose.msra.mxu0 %v575
        %1734 = vmatpush.xpose.msra.mxu0 %v319
        %1735 = vmatmul.f32.gmra.mxu0 %v900
        %v1736 = vpop.f32.mrf.mxu0
        %v1737 = vadd.f32 %v1717, %v1736
        %1738 = vdwg.mxu0
        %1739 = vmatpush.xpose.msra.mxu0 0.0
        %1740 = vmatpush.xpose.msra.mxu0 0.0
        %1741 = vmatpush.xpose.msra.mxu0 0.0
        %1742 = vmatpush.xpose.msra.mxu0 0.0
        %1743 = vmatpush.xpose.msra.mxu0 0.0
        %1744 = vmatpush.xpose.msra.mxu0 0.0
        %1745 = vmatpush.xpose.msra.mxu0 0.0
        %1746 = vmatpush.xpose.msra.mxu0 0.0
        %1747 = vmatpush.xpose.msra.mxu0 0.0
        %1748 = vmatpush.xpose.msra.mxu0 0.0
        %1749 = vmatpush.xpose.msra.mxu0 0.0
        %1750 = vmatpush.xpose.msra.mxu0 0.0
        %1751 = vmatpush.xpose.msra.mxu0 0.0
        %1752 = vmatpush.xpose.msra.mxu0 0.0
        %1753 = vmatpush.xpose.msra.mxu0 %v576
        %1754 = vmatpush.xpose.msra.mxu0 %v320
        %1755 = vmatmul.f32.gmra.mxu0 %v901
        %v1756 = vpop.f32.mrf.mxu0
        %v1757 = vadd.f32 %v1737, %v1756
        %1758 = vdwg.mxu0
        %1759 = vmatpush.xpose.msra.mxu0 0.0
        %1760 = vmatpush.xpose.msra.mxu0 0.0
        %1761 = vmatpush.xpose.msra.mxu0 0.0
        %1762 = vmatpush.xpose.msra.mxu0 0.0
        %1763 = vmatpush.xpose.msra.mxu0 0.0
        %1764 = vmatpush.xpose.msra.mxu0 0.0
        %1765 = vmatpush.xpose.msra.mxu0 0.0
        %1766 = vmatpush.xpose.msra.mxu0 0.0
        %1767 = vmatpush.xpose.msra.mxu0 0.0
        %1768 = vmatpush.xpose.msra.mxu0 0.0
        %1769 = vmatpush.xpose.msra.mxu0 0.0
        %1770 = vmatpush.xpose.msra.mxu0 0.0
        %1771 = vmatpush.xpose.msra.mxu0 0.0
        %1772 = vmatpush.xpose.msra.mxu0 0.0
        %1773 = vmatpush.xpose.msra.mxu0 %v577
        %1774 = vmatpush.xpose.msra.mxu0 %v321
        %1775 = vmatmul.f32.gmra.mxu0 %v902
        %v1776 = vpop.f32.mrf.mxu0
        %v1777 = vadd.f32 %v1757, %v1776
        %1778 = vdwg.mxu0
        %1779 = vmatpush.xpose.msra.mxu0 0.0
        %1780 = vmatpush.xpose.msra.mxu0 0.0
        %1781 = vmatpush.xpose.msra.mxu0 0.0
        %1782 = vmatpush.xpose.msra.mxu0 0.0
        %1783 = vmatpush.xpose.msra.mxu0 0.0
        %1784 = vmatpush.xpose.msra.mxu0 0.0
        %1785 = vmatpush.xpose.msra.mxu0 0.0
        %1786 = vmatpush.xpose.msra.mxu0 0.0
        %1787 = vmatpush.xpose.msra.mxu0 0.0
        %1788 = vmatpush.xpose.msra.mxu0 0.0
        %1789 = vmatpush.xpose.msra.mxu0 0.0
        %1790 = vmatpush.xpose.msra.mxu0 0.0
        %1791 = vmatpush.xpose.msra.mxu0 0.0
        %1792 = vmatpush.xpose.msra.mxu0 0.0
        %1793 = vmatpush.xpose.msra.mxu0 %v578
        %1794 = vmatpush.xpose.msra.mxu0 %v322
        %1795 = vmatmul.f32.gmra.mxu0 %v905
        %v1796 = vpop.f32.mrf.mxu0
        %v1797 = vadd.f32 %v1777, %v1796
        %1798 = vdwg.mxu0
        %1799 = vmatpush.xpose.msra.mxu0 0.0
        %1800 = vmatpush.xpose.msra.mxu0 0.0
        %1801 = vmatpush.xpose.msra.mxu0 0.0
        %1802 = vmatpush.xpose.msra.mxu0 0.0
        %1803 = vmatpush.xpose.msra.mxu0 0.0
        %1804 = vmatpush.xpose.msra.mxu0 0.0
        %1805 = vmatpush.xpose.msra.mxu0 0.0
        %1806 = vmatpush.xpose.msra.mxu0 0.0
        %1807 = vmatpush.xpose.msra.mxu0 0.0
        %1808 = vmatpush.xpose.msra.mxu0 0.0
        %1809 = vmatpush.xpose.msra.mxu0 0.0
        %1810 = vmatpush.xpose.msra.mxu0 0.0
        %1811 = vmatpush.xpose.msra.mxu0 0.0
        %1812 = vmatpush.xpose.msra.mxu0 0.0
        %1813 = vmatpush.xpose.msra.mxu0 %v579
        %1814 = vmatpush.xpose.msra.mxu0 %v323
        %1815 = vmatmul.f32.gmra.mxu0 %v906
        %v1816 = vpop.f32.mrf.mxu0
        %v1817 = vadd.f32 %v1797, %v1816
        %1818 = vdwg.mxu0
        %1819 = vmatpush.xpose.msra.mxu0 0.0
        %1820 = vmatpush.xpose.msra.mxu0 0.0
        %1821 = vmatpush.xpose.msra.mxu0 0.0
        %1822 = vmatpush.xpose.msra.mxu0 0.0
        %1823 = vmatpush.xpose.msra.mxu0 0.0
        %1824 = vmatpush.xpose.msra.mxu0 0.0
        %1825 = vmatpush.xpose.msra.mxu0 0.0
        %1826 = vmatpush.xpose.msra.mxu0 0.0
        %1827 = vmatpush.xpose.msra.mxu0 0.0
        %1828 = vmatpush.xpose.msra.mxu0 0.0
        %1829 = vmatpush.xpose.msra.mxu0 0.0
        %1830 = vmatpush.xpose.msra.mxu0 0.0
        %1831 = vmatpush.xpose.msra.mxu0 0.0
        %1832 = vmatpush.xpose.msra.mxu0 0.0
        %1833 = vmatpush.xpose.msra.mxu0 %v580
        %1834 = vmatpush.xpose.msra.mxu0 %v324
        %1835 = vmatmul.f32.gmra.mxu0 %v907
        %v1836 = vpop.f32.mrf.mxu0
        %v1837 = vadd.f32 %v1817, %v1836
        %1838 = vdwg.mxu0
        %1839 = vmatpush.xpose.msra.mxu0 0.0
        %1840 = vmatpush.xpose.msra.mxu0 0.0
        %1841 = vmatpush.xpose.msra.mxu0 0.0
        %1842 = vmatpush.xpose.msra.mxu0 0.0
        %1843 = vmatpush.xpose.msra.mxu0 0.0
        %1844 = vmatpush.xpose.msra.mxu0 0.0
        %1845 = vmatpush.xpose.msra.mxu0 0.0
        %1846 = vmatpush.xpose.msra.mxu0 0.0
        %1847 = vmatpush.xpose.msra.mxu0 0.0
        %1848 = vmatpush.xpose.msra.mxu0 0.0
        %1849 = vmatpush.xpose.msra.mxu0 0.0
        %1850 = vmatpush.xpose.msra.mxu0 0.0
        %1851 = vmatpush.xpose.msra.mxu0 0.0
        %1852 = vmatpush.xpose.msra.mxu0 0.0
        %1853 = vmatpush.xpose.msra.mxu0 %v581
        %1854 = vmatpush.xpose.msra.mxu0 %v325
        %1855 = vmatmul.f32.gmra.mxu0 %v908
        %v1856 = vpop.f32.mrf.mxu0
        %v1857 = vadd.f32 %v1837, %v1856
        %1858 = vdwg.mxu0
        %1859 = vmatpush.xpose.msra.mxu0 0.0
        %1860 = vmatpush.xpose.msra.mxu0 0.0
        %1861 = vmatpush.xpose.msra.mxu0 0.0
        %1862 = vmatpush.xpose.msra.mxu0 0.0
        %1863 = vmatpush.xpose.msra.mxu0 0.0
        %1864 = vmatpush.xpose.msra.mxu0 0.0
        %1865 = vmatpush.xpose.msra.mxu0 0.0
        %1866 = vmatpush.xpose.msra.mxu0 0.0
        %1867 = vmatpush.xpose.msra.mxu0 0.0
        %1868 = vmatpush.xpose.msra.mxu0 0.0
        %1869 = vmatpush.xpose.msra.mxu0 0.0
        %1870 = vmatpush.xpose.msra.mxu0 0.0
        %1871 = vmatpush.xpose.msra.mxu0 0.0
        %1872 = vmatpush.xpose.msra.mxu0 0.0
        %1873 = vmatpush.xpose.msra.mxu0 %v582
        %1874 = vmatpush.xpose.msra.mxu0 %v326
        %1875 = vmatmul.f32.gmra.mxu0 %v909
        %v1876 = vpop.f32.mrf.mxu0
        %v1877 = vadd.f32 %v1857, %v1876
        %1878 = vdwg.mxu0
        %1879 = vmatpush.xpose.msra.mxu0 0.0
        %1880 = vmatpush.xpose.msra.mxu0 0.0
        %1881 = vmatpush.xpose.msra.mxu0 0.0
        %1882 = vmatpush.xpose.msra.mxu0 0.0
        %1883 = vmatpush.xpose.msra.mxu0 0.0
        %1884 = vmatpush.xpose.msra.mxu0 0.0
        %1885 = vmatpush.xpose.msra.mxu0 0.0
        %1886 = vmatpush.xpose.msra.mxu0 0.0
        %1887 = vmatpush.xpose.msra.mxu0 0.0
        %1888 = vmatpush.xpose.msra.mxu0 0.0
        %1889 = vmatpush.xpose.msra.mxu0 0.0
        %1890 = vmatpush.xpose.msra.mxu0 0.0
        %1891 = vmatpush.xpose.msra.mxu0 0.0
        %1892 = vmatpush.xpose.msra.mxu0 0.0
        %1893 = vmatpush.xpose.msra.mxu0 %v583
        %1894 = vmatpush.xpose.msra.mxu0 %v327
        %1895 = vmatmul.f32.gmra.mxu0 %v910
        %v1896 = vpop.f32.mrf.mxu0
        %v1897 = vadd.f32 %v1877, %v1896
        %1898 = vdwg.mxu0
        %1899 = vmatpush.xpose.msra.mxu0 0.0
        %1900 = vmatpush.xpose.msra.mxu0 0.0
        %1901 = vmatpush.xpose.msra.mxu0 0.0
        %1902 = vmatpush.xpose.msra.mxu0 0.0
        %1903 = vmatpush.xpose.msra.mxu0 0.0
        %1904 = vmatpush.xpose.msra.mxu0 0.0
        %1905 = vmatpush.xpose.msra.mxu0 0.0
        %1906 = vmatpush.xpose.msra.mxu0 0.0
        %1907 = vmatpush.xpose.msra.mxu0 0.0
        %1908 = vmatpush.xpose.msra.mxu0 0.0
        %1909 = vmatpush.xpose.msra.mxu0 0.0
        %1910 = vmatpush.xpose.msra.mxu0 0.0
        %1911 = vmatpush.xpose.msra.mxu0 0.0
        %1912 = vmatpush.xpose.msra.mxu0 0.0
        %1913 = vmatpush.xpose.msra.mxu0 %v584
        %1914 = vmatpush.xpose.msra.mxu0 %v328
        %1915 = vmatmul.f32.gmra.mxu0 %v911
        %v1916 = vpop.f32.mrf.mxu0
        %v1917 = vadd.f32 %v1897, %v1916
        %1918 = vdwg.mxu0
        %1919 = vmatpush.xpose.msra.mxu0 0.0
        %1920 = vmatpush.xpose.msra.mxu0 0.0
        %1921 = vmatpush.xpose.msra.mxu0 0.0
        %1922 = vmatpush.xpose.msra.mxu0 0.0
        %1923 = vmatpush.xpose.msra.mxu0 0.0
        %1924 = vmatpush.xpose.msra.mxu0 0.0
        %1925 = vmatpush.xpose.msra.mxu0 0.0
        %1926 = vmatpush.xpose.msra.mxu0 0.0
        %1927 = vmatpush.xpose.msra.mxu0 0.0
        %1928 = vmatpush.xpose.msra.mxu0 0.0
        %1929 = vmatpush.xpose.msra.mxu0 0.0
        %1930 = vmatpush.xpose.msra.mxu0 0.0
        %1931 = vmatpush.xpose.msra.mxu0 0.0
        %1932 = vmatpush.xpose.msra.mxu0 0.0
        %1933 = vmatpush.xpose.msra.mxu0 %v585
        %1934 = vmatpush.xpose.msra.mxu0 %v329
        %1935 = vmatmul.f32.gmra.mxu0 %v912
        %v1936 = vpop.f32.mrf.mxu0
        %v1937 = vadd.f32 %v1917, %v1936
        %1938 = vdwg.mxu0
        %1939 = vmatpush.xpose.msra.mxu0 0.0
        %1940 = vmatpush.xpose.msra.mxu0 0.0
        %1941 = vmatpush.xpose.msra.mxu0 0.0
        %1942 = vmatpush.xpose.msra.mxu0 0.0
        %1943 = vmatpush.xpose.msra.mxu0 0.0
        %1944 = vmatpush.xpose.msra.mxu0 0.0
        %1945 = vmatpush.xpose.msra.mxu0 0.0
        %1946 = vmatpush.xpose.msra.mxu0 0.0
        %1947 = vmatpush.xpose.msra.mxu0 0.0
        %1948 = vmatpush.xpose.msra.mxu0 0.0
        %1949 = vmatpush.xpose.msra.mxu0 0.0
        %1950 = vmatpush.xpose.msra.mxu0 0.0
        %1951 = vmatpush.xpose.msra.mxu0 0.0
        %1952 = vmatpush.xpose.msra.mxu0 0.0
        %1953 = vmatpush.xpose.msra.mxu0 %v586
        %1954 = vmatpush.xpose.msra.mxu0 %v330
        %1955 = vmatmul.f32.gmra.mxu0 %v915
        %v1956 = vpop.f32.mrf.mxu0
        %v1957 = vadd.f32 %v1937, %v1956
        %1958 = vdwg.mxu0
        %1959 = vmatpush.xpose.msra.mxu0 0.0
        %1960 = vmatpush.xpose.msra.mxu0 0.0
        %1961 = vmatpush.xpose.msra.mxu0 0.0
        %1962 = vmatpush.xpose.msra.mxu0 0.0
        %1963 = vmatpush.xpose.msra.mxu0 0.0
        %1964 = vmatpush.xpose.msra.mxu0 0.0
        %1965 = vmatpush.xpose.msra.mxu0 0.0
        %1966 = vmatpush.xpose.msra.mxu0 0.0
        %1967 = vmatpush.xpose.msra.mxu0 0.0
        %1968 = vmatpush.xpose.msra.mxu0 0.0
        %1969 = vmatpush.xpose.msra.mxu0 0.0
        %1970 = vmatpush.xpose.msra.mxu0 0.0
        %1971 = vmatpush.xpose.msra.mxu0 0.0
        %1972 = vmatpush.xpose.msra.mxu0 0.0
        %1973 = vmatpush.xpose.msra.mxu0 %v587
        %1974 = vmatpush.xpose.msra.mxu0 %v331
        %1975 = vmatmul.f32.gmra.mxu0 %v916
        %v1976 = vpop.f32.mrf.mxu0
        %v1977 = vadd.f32 %v1957, %v1976
        %1978 = vdwg.mxu0
        %1979 = vmatpush.xpose.msra.mxu0 0.0
        %1980 = vmatpush.xpose.msra.mxu0 0.0
        %1981 = vmatpush.xpose.msra.mxu0 0.0
        %1982 = vmatpush.xpose.msra.mxu0 0.0
        %1983 = vmatpush.xpose.msra.mxu0 0.0
        %1984 = vmatpush.xpose.msra.mxu0 0.0
        %1985 = vmatpush.xpose.msra.mxu0 0.0
        %1986 = vmatpush.xpose.msra.mxu0 0.0
        %1987 = vmatpush.xpose.msra.mxu0 0.0
        %1988 = vmatpush.xpose.msra.mxu0 0.0
        %1989 = vmatpush.xpose.msra.mxu0 0.0
        %1990 = vmatpush.xpose.msra.mxu0 0.0
        %1991 = vmatpush.xpose.msra.mxu0 0.0
        %1992 = vmatpush.xpose.msra.mxu0 0.0
        %1993 = vmatpush.xpose.msra.mxu0 %v588
        %1994 = vmatpush.xpose.msra.mxu0 %v332
        %1995 = vmatmul.f32.gmra.mxu0 %v917
        %v1996 = vpop.f32.mrf.mxu0
        %v1997 = vadd.f32 %v1977, %v1996
        %1998 = vdwg.mxu0
        %1999 = vmatpush.xpose.msra.mxu0 0.0
        %2000 = vmatpush.xpose.msra.mxu0 0.0
        %2001 = vmatpush.xpose.msra.mxu0 0.0
        %2002 = vmatpush.xpose.msra.mxu0 0.0
        %2003 = vmatpush.xpose.msra.mxu0 0.0
        %2004 = vmatpush.xpose.msra.mxu0 0.0
        %2005 = vmatpush.xpose.msra.mxu0 0.0
        %2006 = vmatpush.xpose.msra.mxu0 0.0
        %2007 = vmatpush.xpose.msra.mxu0 0.0
        %2008 = vmatpush.xpose.msra.mxu0 0.0
        %2009 = vmatpush.xpose.msra.mxu0 0.0
        %2010 = vmatpush.xpose.msra.mxu0 0.0
        %2011 = vmatpush.xpose.msra.mxu0 0.0
        %2012 = vmatpush.xpose.msra.mxu0 0.0
        %2013 = vmatpush.xpose.msra.mxu0 %v589
        %2014 = vmatpush.xpose.msra.mxu0 %v333
        %2015 = vmatmul.f32.gmra.mxu0 %v918
        %v2016 = vpop.f32.mrf.mxu0
        %v2017 = vadd.f32 %v1997, %v2016
        %2018 = vdwg.mxu0
        %2019 = vmatpush.xpose.msra.mxu0 0.0
        %2020 = vmatpush.xpose.msra.mxu0 0.0
        %2021 = vmatpush.xpose.msra.mxu0 0.0
        %2022 = vmatpush.xpose.msra.mxu0 0.0
        %2023 = vmatpush.xpose.msra.mxu0 0.0
        %2024 = vmatpush.xpose.msra.mxu0 0.0
        %2025 = vmatpush.xpose.msra.mxu0 0.0
        %2026 = vmatpush.xpose.msra.mxu0 0.0
        %2027 = vmatpush.xpose.msra.mxu0 0.0
        %2028 = vmatpush.xpose.msra.mxu0 0.0
        %2029 = vmatpush.xpose.msra.mxu0 0.0
        %2030 = vmatpush.xpose.msra.mxu0 0.0
        %2031 = vmatpush.xpose.msra.mxu0 0.0
        %2032 = vmatpush.xpose.msra.mxu0 0.0
        %2033 = vmatpush.xpose.msra.mxu0 %v590
        %2034 = vmatpush.xpose.msra.mxu0 %v334
        %2035 = vmatmul.f32.gmra.mxu0 %v919
        %v2036 = vpop.f32.mrf.mxu0
        %v2037 = vadd.f32 %v2017, %v2036
        %2038 = vdwg.mxu0
        %2039 = vmatpush.xpose.msra.mxu0 0.0
        %2040 = vmatpush.xpose.msra.mxu0 0.0
        %2041 = vmatpush.xpose.msra.mxu0 0.0
        %2042 = vmatpush.xpose.msra.mxu0 0.0
        %2043 = vmatpush.xpose.msra.mxu0 0.0
        %2044 = vmatpush.xpose.msra.mxu0 0.0
        %2045 = vmatpush.xpose.msra.mxu0 0.0
        %2046 = vmatpush.xpose.msra.mxu0 0.0
        %2047 = vmatpush.xpose.msra.mxu0 0.0
        %2048 = vmatpush.xpose.msra.mxu0 0.0
        %2049 = vmatpush.xpose.msra.mxu0 0.0
        %2050 = vmatpush.xpose.msra.mxu0 0.0
        %2051 = vmatpush.xpose.msra.mxu0 0.0
        %2052 = vmatpush.xpose.msra.mxu0 0.0
        %2053 = vmatpush.xpose.msra.mxu0 %v591
        %2054 = vmatpush.xpose.msra.mxu0 %v335
        %2055 = vmatmul.f32.gmra.mxu0 %v920
        %v2056 = vpop.f32.mrf.mxu0
        %v2057 = vadd.f32 %v2037, %v2056
        %2058 = vdwg.mxu0
        %2059 = vmatpush.xpose.msra.mxu0 0.0
        %2060 = vmatpush.xpose.msra.mxu0 0.0
        %2061 = vmatpush.xpose.msra.mxu0 0.0
        %2062 = vmatpush.xpose.msra.mxu0 0.0
        %2063 = vmatpush.xpose.msra.mxu0 0.0
        %2064 = vmatpush.xpose.msra.mxu0 0.0
        %2065 = vmatpush.xpose.msra.mxu0 0.0
        %2066 = vmatpush.xpose.msra.mxu0 0.0
        %2067 = vmatpush.xpose.msra.mxu0 0.0
        %2068 = vmatpush.xpose.msra.mxu0 0.0
        %2069 = vmatpush.xpose.msra.mxu0 0.0
        %2070 = vmatpush.xpose.msra.mxu0 0.0
        %2071 = vmatpush.xpose.msra.mxu0 0.0
        %2072 = vmatpush.xpose.msra.mxu0 0.0
        %2073 = vmatpush.xpose.msra.mxu0 %v592
        %2074 = vmatpush.xpose.msra.mxu0 %v336
        %2075 = vmatmul.f32.gmra.mxu0 %v921
        %v2076 = vpop.f32.mrf.mxu0
        %v2077 = vadd.f32 %v2057, %v2076
        %2078 = vdwg.mxu0
        %2079 = vmatpush.xpose.msra.mxu0 0.0
        %2080 = vmatpush.xpose.msra.mxu0 0.0
        %2081 = vmatpush.xpose.msra.mxu0 0.0
        %2082 = vmatpush.xpose.msra.mxu0 0.0
        %2083 = vmatpush.xpose.msra.mxu0 0.0
        %2084 = vmatpush.xpose.msra.mxu0 0.0
        %2085 = vmatpush.xpose.msra.mxu0 0.0
        %2086 = vmatpush.xpose.msra.mxu0 0.0
        %2087 = vmatpush.xpose.msra.mxu0 0.0
        %2088 = vmatpush.xpose.msra.mxu0 0.0
        %2089 = vmatpush.xpose.msra.mxu0 0.0
        %2090 = vmatpush.xpose.msra.mxu0 0.0
        %2091 = vmatpush.xpose.msra.mxu0 0.0
        %2092 = vmatpush.xpose.msra.mxu0 0.0
        %2093 = vmatpush.xpose.msra.mxu0 %v593
        %2094 = vmatpush.xpose.msra.mxu0 %v337
        %2095 = vmatmul.f32.gmra.mxu0 %v922
        %v2096 = vpop.f32.mrf.mxu0
        %v2097 = vadd.f32 %v2077, %v2096
        %2098 = vdwg.mxu0
        %2099 = vmatpush.xpose.msra.mxu0 0.0
        %2100 = vmatpush.xpose.msra.mxu0 0.0
        %2101 = vmatpush.xpose.msra.mxu0 0.0
        %2102 = vmatpush.xpose.msra.mxu0 0.0
        %2103 = vmatpush.xpose.msra.mxu0 0.0
        %2104 = vmatpush.xpose.msra.mxu0 0.0
        %2105 = vmatpush.xpose.msra.mxu0 0.0
        %2106 = vmatpush.xpose.msra.mxu0 0.0
        %2107 = vmatpush.xpose.msra.mxu0 0.0
        %2108 = vmatpush.xpose.msra.mxu0 0.0
        %2109 = vmatpush.xpose.msra.mxu0 0.0
        %2110 = vmatpush.xpose.msra.mxu0 0.0
        %2111 = vmatpush.xpose.msra.mxu0 0.0
        %2112 = vmatpush.xpose.msra.mxu0 0.0
        %2113 = vmatpush.xpose.msra.mxu0 %v594
        %2114 = vmatpush.xpose.msra.mxu0 %v338
        %2115 = vmatmul.f32.gmra.mxu0 %v925
        %v2116 = vpop.f32.mrf.mxu0
        %v2117 = vadd.f32 %v2097, %v2116
        %2118 = vdwg.mxu0
        %2119 = vmatpush.xpose.msra.mxu0 0.0
        %2120 = vmatpush.xpose.msra.mxu0 0.0
        %2121 = vmatpush.xpose.msra.mxu0 0.0
        %2122 = vmatpush.xpose.msra.mxu0 0.0
        %2123 = vmatpush.xpose.msra.mxu0 0.0
        %2124 = vmatpush.xpose.msra.mxu0 0.0
        %2125 = vmatpush.xpose.msra.mxu0 0.0
        %2126 = vmatpush.xpose.msra.mxu0 0.0
        %2127 = vmatpush.xpose.msra.mxu0 0.0
        %2128 = vmatpush.xpose.msra.mxu0 0.0
        %2129 = vmatpush.xpose.msra.mxu0 0.0
        %2130 = vmatpush.xpose.msra.mxu0 0.0
        %2131 = vmatpush.xpose.msra.mxu0 0.0
        %2132 = vmatpush.xpose.msra.mxu0 0.0
        %2133 = vmatpush.xpose.msra.mxu0 %v595
        %2134 = vmatpush.xpose.msra.mxu0 %v339
        %2135 = vmatmul.f32.gmra.mxu0 %v926
        %v2136 = vpop.f32.mrf.mxu0
        %v2137 = vadd.f32 %v2117, %v2136
        %2138 = vdwg.mxu0
        %2139 = vmatpush.xpose.msra.mxu0 0.0
        %2140 = vmatpush.xpose.msra.mxu0 0.0
        %2141 = vmatpush.xpose.msra.mxu0 0.0
        %2142 = vmatpush.xpose.msra.mxu0 0.0
        %2143 = vmatpush.xpose.msra.mxu0 0.0
        %2144 = vmatpush.xpose.msra.mxu0 0.0
        %2145 = vmatpush.xpose.msra.mxu0 0.0
        %2146 = vmatpush.xpose.msra.mxu0 0.0
        %2147 = vmatpush.xpose.msra.mxu0 0.0
        %2148 = vmatpush.xpose.msra.mxu0 0.0
        %2149 = vmatpush.xpose.msra.mxu0 0.0
        %2150 = vmatpush.xpose.msra.mxu0 0.0
        %2151 = vmatpush.xpose.msra.mxu0 0.0
        %2152 = vmatpush.xpose.msra.mxu0 0.0
        %2153 = vmatpush.xpose.msra.mxu0 %v596
        %2154 = vmatpush.xpose.msra.mxu0 %v340
        %2155 = vmatmul.f32.gmra.mxu0 %v927
        %v2156 = vpop.f32.mrf.mxu0
        %v2157 = vadd.f32 %v2137, %v2156
        %2158 = vdwg.mxu0
        %2159 = vmatpush.xpose.msra.mxu0 0.0
        %2160 = vmatpush.xpose.msra.mxu0 0.0
        %2161 = vmatpush.xpose.msra.mxu0 0.0
        %2162 = vmatpush.xpose.msra.mxu0 0.0
        %2163 = vmatpush.xpose.msra.mxu0 0.0
        %2164 = vmatpush.xpose.msra.mxu0 0.0
        %2165 = vmatpush.xpose.msra.mxu0 0.0
        %2166 = vmatpush.xpose.msra.mxu0 0.0
        %2167 = vmatpush.xpose.msra.mxu0 0.0
        %2168 = vmatpush.xpose.msra.mxu0 0.0
        %2169 = vmatpush.xpose.msra.mxu0 0.0
        %2170 = vmatpush.xpose.msra.mxu0 0.0
        %2171 = vmatpush.xpose.msra.mxu0 0.0
        %2172 = vmatpush.xpose.msra.mxu0 0.0
        %2173 = vmatpush.xpose.msra.mxu0 %v597
        %2174 = vmatpush.xpose.msra.mxu0 %v341
        %2175 = vmatmul.f32.gmra.mxu0 %v928
        %v2176 = vpop.f32.mrf.mxu0
        %v2177 = vadd.f32 %v2157, %v2176
        %2178 = vdwg.mxu0
        %2179 = vmatpush.xpose.msra.mxu0 0.0
        %2180 = vmatpush.xpose.msra.mxu0 0.0
        %2181 = vmatpush.xpose.msra.mxu0 0.0
        %2182 = vmatpush.xpose.msra.mxu0 0.0
        %2183 = vmatpush.xpose.msra.mxu0 0.0
        %2184 = vmatpush.xpose.msra.mxu0 0.0
        %2185 = vmatpush.xpose.msra.mxu0 0.0
        %2186 = vmatpush.xpose.msra.mxu0 0.0
        %2187 = vmatpush.xpose.msra.mxu0 0.0
        %2188 = vmatpush.xpose.msra.mxu0 0.0
        %2189 = vmatpush.xpose.msra.mxu0 0.0
        %2190 = vmatpush.xpose.msra.mxu0 0.0
        %2191 = vmatpush.xpose.msra.mxu0 0.0
        %2192 = vmatpush.xpose.msra.mxu0 0.0
        %2193 = vmatpush.xpose.msra.mxu0 %v598
        %2194 = vmatpush.xpose.msra.mxu0 %v342
        %2195 = vmatmul.f32.gmra.mxu0 %v929
        %v2196 = vpop.f32.mrf.mxu0
        %v2197 = vadd.f32 %v2177, %v2196
        %2198 = vdwg.mxu0
        %2199 = vmatpush.xpose.msra.mxu0 0.0
        %2200 = vmatpush.xpose.msra.mxu0 0.0
        %2201 = vmatpush.xpose.msra.mxu0 0.0
        %2202 = vmatpush.xpose.msra.mxu0 0.0
        %2203 = vmatpush.xpose.msra.mxu0 0.0
        %2204 = vmatpush.xpose.msra.mxu0 0.0
        %2205 = vmatpush.xpose.msra.mxu0 0.0
        %2206 = vmatpush.xpose.msra.mxu0 0.0
        %2207 = vmatpush.xpose.msra.mxu0 0.0
        %2208 = vmatpush.xpose.msra.mxu0 0.0
        %2209 = vmatpush.xpose.msra.mxu0 0.0
        %2210 = vmatpush.xpose.msra.mxu0 0.0
        %2211 = vmatpush.xpose.msra.mxu0 0.0
        %2212 = vmatpush.xpose.msra.mxu0 0.0
        %2213 = vmatpush.xpose.msra.mxu0 %v599
        %2214 = vmatpush.xpose.msra.mxu0 %v343
        %2215 = vmatmul.f32.gmra.mxu0 %v930
        %v2216 = vpop.f32.mrf.mxu0
        %v2217 = vadd.f32 %v2197, %v2216
        %2218 = vdwg.mxu0
        %2219 = vmatpush.xpose.msra.mxu0 0.0
        %2220 = vmatpush.xpose.msra.mxu0 0.0
        %2221 = vmatpush.xpose.msra.mxu0 0.0
        %2222 = vmatpush.xpose.msra.mxu0 0.0
        %2223 = vmatpush.xpose.msra.mxu0 0.0
        %2224 = vmatpush.xpose.msra.mxu0 0.0
        %2225 = vmatpush.xpose.msra.mxu0 0.0
        %2226 = vmatpush.xpose.msra.mxu0 0.0
        %2227 = vmatpush.xpose.msra.mxu0 0.0
        %2228 = vmatpush.xpose.msra.mxu0 0.0
        %2229 = vmatpush.xpose.msra.mxu0 0.0
        %2230 = vmatpush.xpose.msra.mxu0 0.0
        %2231 = vmatpush.xpose.msra.mxu0 0.0
        %2232 = vmatpush.xpose.msra.mxu0 0.0
        %2233 = vmatpush.xpose.msra.mxu0 %v600
        %2234 = vmatpush.xpose.msra.mxu0 %v344
        %2235 = vmatmul.f32.gmra.mxu0 %v931
        %v2236 = vpop.f32.mrf.mxu0
        %v2237 = vadd.f32 %v2217, %v2236
        %2238 = vdwg.mxu0
        %2239 = vmatpush.xpose.msra.mxu0 0.0
        %2240 = vmatpush.xpose.msra.mxu0 0.0
        %2241 = vmatpush.xpose.msra.mxu0 0.0
        %2242 = vmatpush.xpose.msra.mxu0 0.0
        %2243 = vmatpush.xpose.msra.mxu0 0.0
        %2244 = vmatpush.xpose.msra.mxu0 0.0
        %2245 = vmatpush.xpose.msra.mxu0 0.0
        %2246 = vmatpush.xpose.msra.mxu0 0.0
        %2247 = vmatpush.xpose.msra.mxu0 0.0
        %2248 = vmatpush.xpose.msra.mxu0 0.0
        %2249 = vmatpush.xpose.msra.mxu0 0.0
        %2250 = vmatpush.xpose.msra.mxu0 0.0
        %2251 = vmatpush.xpose.msra.mxu0 0.0
        %2252 = vmatpush.xpose.msra.mxu0 0.0
        %2253 = vmatpush.xpose.msra.mxu0 %v601
        %2254 = vmatpush.xpose.msra.mxu0 %v345
        %2255 = vmatmul.f32.gmra.mxu0 %v932
        %v2256 = vpop.f32.mrf.mxu0
        %v2257 = vadd.f32 %v2237, %v2256
        %2258 = vdwg.mxu0
        %2259 = vmatpush.xpose.msra.mxu0 0.0
        %2260 = vmatpush.xpose.msra.mxu0 0.0
        %2261 = vmatpush.xpose.msra.mxu0 0.0
        %2262 = vmatpush.xpose.msra.mxu0 0.0
        %2263 = vmatpush.xpose.msra.mxu0 0.0
        %2264 = vmatpush.xpose.msra.mxu0 0.0
        %2265 = vmatpush.xpose.msra.mxu0 0.0
        %2266 = vmatpush.xpose.msra.mxu0 0.0
        %2267 = vmatpush.xpose.msra.mxu0 0.0
        %2268 = vmatpush.xpose.msra.mxu0 0.0
        %2269 = vmatpush.xpose.msra.mxu0 0.0
        %2270 = vmatpush.xpose.msra.mxu0 0.0
        %2271 = vmatpush.xpose.msra.mxu0 0.0
        %2272 = vmatpush.xpose.msra.mxu0 0.0
        %2273 = vmatpush.xpose.msra.mxu0 %v602
        %2274 = vmatpush.xpose.msra.mxu0 %v346
        %2275 = vmatmul.f32.gmra.mxu0 %v935
        %v2276 = vpop.f32.mrf.mxu0
        %v2277 = vadd.f32 %v2257, %v2276
        %2278 = vdwg.mxu0
        %2279 = vmatpush.xpose.msra.mxu0 0.0
        %2280 = vmatpush.xpose.msra.mxu0 0.0
        %2281 = vmatpush.xpose.msra.mxu0 0.0
        %2282 = vmatpush.xpose.msra.mxu0 0.0
        %2283 = vmatpush.xpose.msra.mxu0 0.0
        %2284 = vmatpush.xpose.msra.mxu0 0.0
        %2285 = vmatpush.xpose.msra.mxu0 0.0
        %2286 = vmatpush.xpose.msra.mxu0 0.0
        %2287 = vmatpush.xpose.msra.mxu0 0.0
        %2288 = vmatpush.xpose.msra.mxu0 0.0
        %2289 = vmatpush.xpose.msra.mxu0 0.0
        %2290 = vmatpush.xpose.msra.mxu0 0.0
        %2291 = vmatpush.xpose.msra.mxu0 0.0
        %2292 = vmatpush.xpose.msra.mxu0 0.0
        %2293 = vmatpush.xpose.msra.mxu0 %v603
        %2294 = vmatpush.xpose.msra.mxu0 %v347
        %2295 = vmatmul.f32.gmra.mxu0 %v936
        %v2296 = vpop.f32.mrf.mxu0
        %v2297 = vadd.f32 %v2277, %v2296
        %2298 = vdwg.mxu0
        %2299 = vmatpush.xpose.msra.mxu0 0.0
        %2300 = vmatpush.xpose.msra.mxu0 0.0
        %2301 = vmatpush.xpose.msra.mxu0 0.0
        %2302 = vmatpush.xpose.msra.mxu0 0.0
        %2303 = vmatpush.xpose.msra.mxu0 0.0
        %2304 = vmatpush.xpose.msra.mxu0 0.0
        %2305 = vmatpush.xpose.msra.mxu0 0.0
        %2306 = vmatpush.xpose.msra.mxu0 0.0
        %2307 = vmatpush.xpose.msra.mxu0 0.0
        %2308 = vmatpush.xpose.msra.mxu0 0.0
        %2309 = vmatpush.xpose.msra.mxu0 0.0
        %2310 = vmatpush.xpose.msra.mxu0 0.0
        %2311 = vmatpush.xpose.msra.mxu0 0.0
        %2312 = vmatpush.xpose.msra.mxu0 0.0
        %2313 = vmatpush.xpose.msra.mxu0 %v604
        %2314 = vmatpush.xpose.msra.mxu0 %v348
        %2315 = vmatmul.f32.gmra.mxu0 %v937
        %v2316 = vpop.f32.mrf.mxu0
        %v2317 = vadd.f32 %v2297, %v2316
        %2318 = vdwg.mxu0
        %2319 = vmatpush.xpose.msra.mxu0 0.0
        %2320 = vmatpush.xpose.msra.mxu0 0.0
        %2321 = vmatpush.xpose.msra.mxu0 0.0
        %2322 = vmatpush.xpose.msra.mxu0 0.0
        %2323 = vmatpush.xpose.msra.mxu0 0.0
        %2324 = vmatpush.xpose.msra.mxu0 0.0
        %2325 = vmatpush.xpose.msra.mxu0 0.0
        %2326 = vmatpush.xpose.msra.mxu0 0.0
        %2327 = vmatpush.xpose.msra.mxu0 0.0
        %2328 = vmatpush.xpose.msra.mxu0 0.0
        %2329 = vmatpush.xpose.msra.mxu0 0.0
        %2330 = vmatpush.xpose.msra.mxu0 0.0
        %2331 = vmatpush.xpose.msra.mxu0 0.0
        %2332 = vmatpush.xpose.msra.mxu0 0.0
        %2333 = vmatpush.xpose.msra.mxu0 %v605
        %2334 = vmatpush.xpose.msra.mxu0 %v349
        %2335 = vmatmul.f32.gmra.mxu0 %v938
        %v2336 = vpop.f32.mrf.mxu0
        %v2337 = vadd.f32 %v2317, %v2336
        %2338 = vdwg.mxu0
        %2339 = vmatpush.xpose.msra.mxu0 0.0
        %2340 = vmatpush.xpose.msra.mxu0 0.0
        %2341 = vmatpush.xpose.msra.mxu0 0.0
        %2342 = vmatpush.xpose.msra.mxu0 0.0
        %2343 = vmatpush.xpose.msra.mxu0 0.0
        %2344 = vmatpush.xpose.msra.mxu0 0.0
        %2345 = vmatpush.xpose.msra.mxu0 0.0
        %2346 = vmatpush.xpose.msra.mxu0 0.0
        %2347 = vmatpush.xpose.msra.mxu0 0.0
        %2348 = vmatpush.xpose.msra.mxu0 0.0
        %2349 = vmatpush.xpose.msra.mxu0 0.0
        %2350 = vmatpush.xpose.msra.mxu0 0.0
        %2351 = vmatpush.xpose.msra.mxu0 0.0
        %2352 = vmatpush.xpose.msra.mxu0 0.0
        %2353 = vmatpush.xpose.msra.mxu0 %v606
        %2354 = vmatpush.xpose.msra.mxu0 %v350
        %2355 = vmatmul.f32.gmra.mxu0 %v939
        %v2356 = vpop.f32.mrf.mxu0
        %v2357 = vadd.f32 %v2337, %v2356
        %2358 = vdwg.mxu0
        %2359 = vmatpush.xpose.msra.mxu0 0.0
        %2360 = vmatpush.xpose.msra.mxu0 0.0
        %2361 = vmatpush.xpose.msra.mxu0 0.0
        %2362 = vmatpush.xpose.msra.mxu0 0.0
        %2363 = vmatpush.xpose.msra.mxu0 0.0
        %2364 = vmatpush.xpose.msra.mxu0 0.0
        %2365 = vmatpush.xpose.msra.mxu0 0.0
        %2366 = vmatpush.xpose.msra.mxu0 0.0
        %2367 = vmatpush.xpose.msra.mxu0 0.0
        %2368 = vmatpush.xpose.msra.mxu0 0.0
        %2369 = vmatpush.xpose.msra.mxu0 0.0
        %2370 = vmatpush.xpose.msra.mxu0 0.0
        %2371 = vmatpush.xpose.msra.mxu0 0.0
        %2372 = vmatpush.xpose.msra.mxu0 0.0
        %2373 = vmatpush.xpose.msra.mxu0 %v607
        %2374 = vmatpush.xpose.msra.mxu0 %v351
        %2375 = vmatmul.f32.gmra.mxu0 %v940
        %v2376 = vpop.f32.mrf.mxu0
        %v2377 = vadd.f32 %v2357, %v2376
        %2378 = vdwg.mxu0
        %2379 = vmatpush.xpose.msra.mxu0 0.0
        %2380 = vmatpush.xpose.msra.mxu0 0.0
        %2381 = vmatpush.xpose.msra.mxu0 0.0
        %2382 = vmatpush.xpose.msra.mxu0 0.0
        %2383 = vmatpush.xpose.msra.mxu0 0.0
        %2384 = vmatpush.xpose.msra.mxu0 0.0
        %2385 = vmatpush.xpose.msra.mxu0 0.0
        %2386 = vmatpush.xpose.msra.mxu0 0.0
        %2387 = vmatpush.xpose.msra.mxu0 0.0
        %2388 = vmatpush.xpose.msra.mxu0 0.0
        %2389 = vmatpush.xpose.msra.mxu0 0.0
        %2390 = vmatpush.xpose.msra.mxu0 0.0
        %2391 = vmatpush.xpose.msra.mxu0 0.0
        %2392 = vmatpush.xpose.msra.mxu0 0.0
        %2393 = vmatpush.xpose.msra.mxu0 %v608
        %2394 = vmatpush.xpose.msra.mxu0 %v352
        %2395 = vmatmul.f32.gmra.mxu0 %v941
        %v2396 = vpop.f32.mrf.mxu0
        %v2397 = vadd.f32 %v2377, %v2396
        %2398 = vdwg.mxu0
        %2399 = vmatpush.xpose.msra.mxu0 0.0
        %2400 = vmatpush.xpose.msra.mxu0 0.0
        %2401 = vmatpush.xpose.msra.mxu0 0.0
        %2402 = vmatpush.xpose.msra.mxu0 0.0
        %2403 = vmatpush.xpose.msra.mxu0 0.0
        %2404 = vmatpush.xpose.msra.mxu0 0.0
        %2405 = vmatpush.xpose.msra.mxu0 0.0
        %2406 = vmatpush.xpose.msra.mxu0 0.0
        %2407 = vmatpush.xpose.msra.mxu0 0.0
        %2408 = vmatpush.xpose.msra.mxu0 0.0
        %2409 = vmatpush.xpose.msra.mxu0 0.0
        %2410 = vmatpush.xpose.msra.mxu0 0.0
        %2411 = vmatpush.xpose.msra.mxu0 0.0
        %2412 = vmatpush.xpose.msra.mxu0 0.0
        %2413 = vmatpush.xpose.msra.mxu0 %v609
        %2414 = vmatpush.xpose.msra.mxu0 %v353
        %2415 = vmatmul.f32.gmra.mxu0 %v942
        %v2416 = vpop.f32.mrf.mxu0
        %v2417 = vadd.f32 %v2397, %v2416
        %2418 = vdwg.mxu0
        %2419 = vmatpush.xpose.msra.mxu0 0.0
        %2420 = vmatpush.xpose.msra.mxu0 0.0
        %2421 = vmatpush.xpose.msra.mxu0 0.0
        %2422 = vmatpush.xpose.msra.mxu0 0.0
        %2423 = vmatpush.xpose.msra.mxu0 0.0
        %2424 = vmatpush.xpose.msra.mxu0 0.0
        %2425 = vmatpush.xpose.msra.mxu0 0.0
        %2426 = vmatpush.xpose.msra.mxu0 0.0
        %2427 = vmatpush.xpose.msra.mxu0 0.0
        %2428 = vmatpush.xpose.msra.mxu0 0.0
        %2429 = vmatpush.xpose.msra.mxu0 0.0
        %2430 = vmatpush.xpose.msra.mxu0 0.0
        %2431 = vmatpush.xpose.msra.mxu0 0.0
        %2432 = vmatpush.xpose.msra.mxu0 0.0
        %2433 = vmatpush.xpose.msra.mxu0 %v610
        %2434 = vmatpush.xpose.msra.mxu0 %v354
        %2435 = vmatmul.f32.gmra.mxu0 %v945
        %v2436 = vpop.f32.mrf.mxu0
        %v2437 = vadd.f32 %v2417, %v2436
        %2438 = vdwg.mxu0
        %2439 = vmatpush.xpose.msra.mxu0 0.0
        %2440 = vmatpush.xpose.msra.mxu0 0.0
        %2441 = vmatpush.xpose.msra.mxu0 0.0
        %2442 = vmatpush.xpose.msra.mxu0 0.0
        %2443 = vmatpush.xpose.msra.mxu0 0.0
        %2444 = vmatpush.xpose.msra.mxu0 0.0
        %2445 = vmatpush.xpose.msra.mxu0 0.0
        %2446 = vmatpush.xpose.msra.mxu0 0.0
        %2447 = vmatpush.xpose.msra.mxu0 0.0
        %2448 = vmatpush.xpose.msra.mxu0 0.0
        %2449 = vmatpush.xpose.msra.mxu0 0.0
        %2450 = vmatpush.xpose.msra.mxu0 0.0
        %2451 = vmatpush.xpose.msra.mxu0 0.0
        %2452 = vmatpush.xpose.msra.mxu0 0.0
        %2453 = vmatpush.xpose.msra.mxu0 %v611
        %2454 = vmatpush.xpose.msra.mxu0 %v355
        %2455 = vmatmul.f32.gmra.mxu0 %v946
        %v2456 = vpop.f32.mrf.mxu0
        %v2457 = vadd.f32 %v2437, %v2456
        %2458 = vdwg.mxu0
        %2459 = vmatpush.xpose.msra.mxu0 0.0
        %2460 = vmatpush.xpose.msra.mxu0 0.0
        %2461 = vmatpush.xpose.msra.mxu0 0.0
        %2462 = vmatpush.xpose.msra.mxu0 0.0
        %2463 = vmatpush.xpose.msra.mxu0 0.0
        %2464 = vmatpush.xpose.msra.mxu0 0.0
        %2465 = vmatpush.xpose.msra.mxu0 0.0
        %2466 = vmatpush.xpose.msra.mxu0 0.0
        %2467 = vmatpush.xpose.msra.mxu0 0.0
        %2468 = vmatpush.xpose.msra.mxu0 0.0
        %2469 = vmatpush.xpose.msra.mxu0 0.0
        %2470 = vmatpush.xpose.msra.mxu0 0.0
        %2471 = vmatpush.xpose.msra.mxu0 0.0
        %2472 = vmatpush.xpose.msra.mxu0 0.0
        %2473 = vmatpush.xpose.msra.mxu0 %v612
        %2474 = vmatpush.xpose.msra.mxu0 %v356
        %2475 = vmatmul.f32.gmra.mxu0 %v947
        %v2476 = vpop.f32.mrf.mxu0
        %v2477 = vadd.f32 %v2457, %v2476
        %2478 = vdwg.mxu0
        %2479 = vmatpush.xpose.msra.mxu0 0.0
        %2480 = vmatpush.xpose.msra.mxu0 0.0
        %2481 = vmatpush.xpose.msra.mxu0 0.0
        %2482 = vmatpush.xpose.msra.mxu0 0.0
        %2483 = vmatpush.xpose.msra.mxu0 0.0
        %2484 = vmatpush.xpose.msra.mxu0 0.0
        %2485 = vmatpush.xpose.msra.mxu0 0.0
        %2486 = vmatpush.xpose.msra.mxu0 0.0
        %2487 = vmatpush.xpose.msra.mxu0 0.0
        %2488 = vmatpush.xpose.msra.mxu0 0.0
        %2489 = vmatpush.xpose.msra.mxu0 0.0
        %2490 = vmatpush.xpose.msra.mxu0 0.0
        %2491 = vmatpush.xpose.msra.mxu0 0.0
        %2492 = vmatpush.xpose.msra.mxu0 0.0
        %2493 = vmatpush.xpose.msra.mxu0 %v613
        %2494 = vmatpush.xpose.msra.mxu0 %v357
        %2495 = vmatmul.f32.gmra.mxu0 %v948
        %v2496 = vpop.f32.mrf.mxu0
        %v2497 = vadd.f32 %v2477, %v2496
        %2498 = vdwg.mxu0
        %2499 = vmatpush.xpose.msra.mxu0 0.0
        %2500 = vmatpush.xpose.msra.mxu0 0.0
        %2501 = vmatpush.xpose.msra.mxu0 0.0
        %2502 = vmatpush.xpose.msra.mxu0 0.0
        %2503 = vmatpush.xpose.msra.mxu0 0.0
        %2504 = vmatpush.xpose.msra.mxu0 0.0
        %2505 = vmatpush.xpose.msra.mxu0 0.0
        %2506 = vmatpush.xpose.msra.mxu0 0.0
        %2507 = vmatpush.xpose.msra.mxu0 0.0
        %2508 = vmatpush.xpose.msra.mxu0 0.0
        %2509 = vmatpush.xpose.msra.mxu0 0.0
        %2510 = vmatpush.xpose.msra.mxu0 0.0
        %2511 = vmatpush.xpose.msra.mxu0 0.0
        %2512 = vmatpush.xpose.msra.mxu0 0.0
        %2513 = vmatpush.xpose.msra.mxu0 %v614
        %2514 = vmatpush.xpose.msra.mxu0 %v358
        %2515 = vmatmul.f32.gmra.mxu0 %v949
        %v2516 = vpop.f32.mrf.mxu0
        %v2517 = vadd.f32 %v2497, %v2516
        %2518 = vdwg.mxu0
        %2519 = vmatpush.xpose.msra.mxu0 0.0
        %2520 = vmatpush.xpose.msra.mxu0 0.0
        %2521 = vmatpush.xpose.msra.mxu0 0.0
        %2522 = vmatpush.xpose.msra.mxu0 0.0
        %2523 = vmatpush.xpose.msra.mxu0 0.0
        %2524 = vmatpush.xpose.msra.mxu0 0.0
        %2525 = vmatpush.xpose.msra.mxu0 0.0
        %2526 = vmatpush.xpose.msra.mxu0 0.0
        %2527 = vmatpush.xpose.msra.mxu0 0.0
        %2528 = vmatpush.xpose.msra.mxu0 0.0
        %2529 = vmatpush.xpose.msra.mxu0 0.0
        %2530 = vmatpush.xpose.msra.mxu0 0.0
        %2531 = vmatpush.xpose.msra.mxu0 0.0
        %2532 = vmatpush.xpose.msra.mxu0 0.0
        %2533 = vmatpush.xpose.msra.mxu0 %v615
        %2534 = vmatpush.xpose.msra.mxu0 %v359
        %2535 = vmatmul.f32.gmra.mxu0 %v950
        %v2536 = vpop.f32.mrf.mxu0
        %v2537 = vadd.f32 %v2517, %v2536
        %2538 = vdwg.mxu0
        %2539 = vmatpush.xpose.msra.mxu0 0.0
        %2540 = vmatpush.xpose.msra.mxu0 0.0
        %2541 = vmatpush.xpose.msra.mxu0 0.0
        %2542 = vmatpush.xpose.msra.mxu0 0.0
        %2543 = vmatpush.xpose.msra.mxu0 0.0
        %2544 = vmatpush.xpose.msra.mxu0 0.0
        %2545 = vmatpush.xpose.msra.mxu0 0.0
        %2546 = vmatpush.xpose.msra.mxu0 0.0
        %2547 = vmatpush.xpose.msra.mxu0 0.0
        %2548 = vmatpush.xpose.msra.mxu0 0.0
        %2549 = vmatpush.xpose.msra.mxu0 0.0
        %2550 = vmatpush.xpose.msra.mxu0 0.0
        %2551 = vmatpush.xpose.msra.mxu0 0.0
        %2552 = vmatpush.xpose.msra.mxu0 0.0
        %2553 = vmatpush.xpose.msra.mxu0 %v616
        %2554 = vmatpush.xpose.msra.mxu0 %v360
        %2555 = vmatmul.f32.gmra.mxu0 %v951
        %v2556 = vpop.f32.mrf.mxu0
        %v2557 = vadd.f32 %v2537, %v2556
        %2558 = vdwg.mxu0
        %2559 = vmatpush.xpose.msra.mxu0 0.0
        %2560 = vmatpush.xpose.msra.mxu0 0.0
        %2561 = vmatpush.xpose.msra.mxu0 0.0
        %2562 = vmatpush.xpose.msra.mxu0 0.0
        %2563 = vmatpush.xpose.msra.mxu0 0.0
        %2564 = vmatpush.xpose.msra.mxu0 0.0
        %2565 = vmatpush.xpose.msra.mxu0 0.0
        %2566 = vmatpush.xpose.msra.mxu0 0.0
        %2567 = vmatpush.xpose.msra.mxu0 0.0
        %2568 = vmatpush.xpose.msra.mxu0 0.0
        %2569 = vmatpush.xpose.msra.mxu0 0.0
        %2570 = vmatpush.xpose.msra.mxu0 0.0
        %2571 = vmatpush.xpose.msra.mxu0 0.0
        %2572 = vmatpush.xpose.msra.mxu0 0.0
        %2573 = vmatpush.xpose.msra.mxu0 %v617
        %2574 = vmatpush.xpose.msra.mxu0 %v361
        %2575 = vmatmul.f32.gmra.mxu0 %v952
        %v2576 = vpop.f32.mrf.mxu0
        %v2577 = vadd.f32 %v2557, %v2576
        %2578 = vdwg.mxu0
        %2579 = vmatpush.xpose.msra.mxu0 0.0
        %2580 = vmatpush.xpose.msra.mxu0 0.0
        %2581 = vmatpush.xpose.msra.mxu0 0.0
        %2582 = vmatpush.xpose.msra.mxu0 0.0
        %2583 = vmatpush.xpose.msra.mxu0 0.0
        %2584 = vmatpush.xpose.msra.mxu0 0.0
        %2585 = vmatpush.xpose.msra.mxu0 0.0
        %2586 = vmatpush.xpose.msra.mxu0 0.0
        %2587 = vmatpush.xpose.msra.mxu0 0.0
        %2588 = vmatpush.xpose.msra.mxu0 0.0
        %2589 = vmatpush.xpose.msra.mxu0 0.0
        %2590 = vmatpush.xpose.msra.mxu0 0.0
        %2591 = vmatpush.xpose.msra.mxu0 0.0
        %2592 = vmatpush.xpose.msra.mxu0 0.0
        %2593 = vmatpush.xpose.msra.mxu0 %v618
        %2594 = vmatpush.xpose.msra.mxu0 %v362
        %2595 = vmatmul.f32.gmra.mxu0 %v955
        %v2596 = vpop.f32.mrf.mxu0
        %v2597 = vadd.f32 %v2577, %v2596
        %2598 = vdwg.mxu0
        %2599 = vmatpush.xpose.msra.mxu0 0.0
        %2600 = vmatpush.xpose.msra.mxu0 0.0
        %2601 = vmatpush.xpose.msra.mxu0 0.0
        %2602 = vmatpush.xpose.msra.mxu0 0.0
        %2603 = vmatpush.xpose.msra.mxu0 0.0
        %2604 = vmatpush.xpose.msra.mxu0 0.0
        %2605 = vmatpush.xpose.msra.mxu0 0.0
        %2606 = vmatpush.xpose.msra.mxu0 0.0
        %2607 = vmatpush.xpose.msra.mxu0 0.0
        %2608 = vmatpush.xpose.msra.mxu0 0.0
        %2609 = vmatpush.xpose.msra.mxu0 0.0
        %2610 = vmatpush.xpose.msra.mxu0 0.0
        %2611 = vmatpush.xpose.msra.mxu0 0.0
        %2612 = vmatpush.xpose.msra.mxu0 0.0
        %2613 = vmatpush.xpose.msra.mxu0 %v619
        %2614 = vmatpush.xpose.msra.mxu0 %v363
        %2615 = vmatmul.f32.gmra.mxu0 %v956
        %v2616 = vpop.f32.mrf.mxu0
        %v2617 = vadd.f32 %v2597, %v2616
        %2618 = vdwg.mxu0
        %2619 = vmatpush.xpose.msra.mxu0 0.0
        %2620 = vmatpush.xpose.msra.mxu0 0.0
        %2621 = vmatpush.xpose.msra.mxu0 0.0
        %2622 = vmatpush.xpose.msra.mxu0 0.0
        %2623 = vmatpush.xpose.msra.mxu0 0.0
        %2624 = vmatpush.xpose.msra.mxu0 0.0
        %2625 = vmatpush.xpose.msra.mxu0 0.0
        %2626 = vmatpush.xpose.msra.mxu0 0.0
        %2627 = vmatpush.xpose.msra.mxu0 0.0
        %2628 = vmatpush.xpose.msra.mxu0 0.0
        %2629 = vmatpush.xpose.msra.mxu0 0.0
        %2630 = vmatpush.xpose.msra.mxu0 0.0
        %2631 = vmatpush.xpose.msra.mxu0 0.0
        %2632 = vmatpush.xpose.msra.mxu0 0.0
        %2633 = vmatpush.xpose.msra.mxu0 %v620
        %2634 = vmatpush.xpose.msra.mxu0 %v364
        %2635 = vmatmul.f32.gmra.mxu0 %v957
        %v2636 = vpop.f32.mrf.mxu0
        %v2637 = vadd.f32 %v2617, %v2636
        %2638 = vdwg.mxu0
        %2639 = vmatpush.xpose.msra.mxu0 0.0
        %2640 = vmatpush.xpose.msra.mxu0 0.0
        %2641 = vmatpush.xpose.msra.mxu0 0.0
        %2642 = vmatpush.xpose.msra.mxu0 0.0
        %2643 = vmatpush.xpose.msra.mxu0 0.0
        %2644 = vmatpush.xpose.msra.mxu0 0.0
        %2645 = vmatpush.xpose.msra.mxu0 0.0
        %2646 = vmatpush.xpose.msra.mxu0 0.0
        %2647 = vmatpush.xpose.msra.mxu0 0.0
        %2648 = vmatpush.xpose.msra.mxu0 0.0
        %2649 = vmatpush.xpose.msra.mxu0 0.0
        %2650 = vmatpush.xpose.msra.mxu0 0.0
        %2651 = vmatpush.xpose.msra.mxu0 0.0
        %2652 = vmatpush.xpose.msra.mxu0 0.0
        %2653 = vmatpush.xpose.msra.mxu0 %v621
        %2654 = vmatpush.xpose.msra.mxu0 %v365
        %2655 = vmatmul.f32.gmra.mxu0 %v958
        %v2656 = vpop.f32.mrf.mxu0
        %v2657 = vadd.f32 %v2637, %v2656
        %2658 = vdwg.mxu0
        %2659 = vmatpush.xpose.msra.mxu0 0.0
        %2660 = vmatpush.xpose.msra.mxu0 0.0
        %2661 = vmatpush.xpose.msra.mxu0 0.0
        %2662 = vmatpush.xpose.msra.mxu0 0.0
        %2663 = vmatpush.xpose.msra.mxu0 0.0
        %2664 = vmatpush.xpose.msra.mxu0 0.0
        %2665 = vmatpush.xpose.msra.mxu0 0.0
        %2666 = vmatpush.xpose.msra.mxu0 0.0
        %2667 = vmatpush.xpose.msra.mxu0 0.0
        %2668 = vmatpush.xpose.msra.mxu0 0.0
        %2669 = vmatpush.xpose.msra.mxu0 0.0
        %2670 = vmatpush.xpose.msra.mxu0 0.0
        %2671 = vmatpush.xpose.msra.mxu0 0.0
        %2672 = vmatpush.xpose.msra.mxu0 0.0
        %2673 = vmatpush.xpose.msra.mxu0 %v622
        %2674 = vmatpush.xpose.msra.mxu0 %v366
        %2675 = vmatmul.f32.gmra.mxu0 %v959
        %v2676 = vpop.f32.mrf.mxu0
        %v2677 = vadd.f32 %v2657, %v2676
        %2678 = vdwg.mxu0
        %2679 = vmatpush.xpose.msra.mxu0 0.0
        %2680 = vmatpush.xpose.msra.mxu0 0.0
        %2681 = vmatpush.xpose.msra.mxu0 0.0
        %2682 = vmatpush.xpose.msra.mxu0 0.0
        %2683 = vmatpush.xpose.msra.mxu0 0.0
        %2684 = vmatpush.xpose.msra.mxu0 0.0
        %2685 = vmatpush.xpose.msra.mxu0 0.0
        %2686 = vmatpush.xpose.msra.mxu0 0.0
        %2687 = vmatpush.xpose.msra.mxu0 0.0
        %2688 = vmatpush.xpose.msra.mxu0 0.0
        %2689 = vmatpush.xpose.msra.mxu0 0.0
        %2690 = vmatpush.xpose.msra.mxu0 0.0
        %2691 = vmatpush.xpose.msra.mxu0 0.0
        %2692 = vmatpush.xpose.msra.mxu0 0.0
        %2693 = vmatpush.xpose.msra.mxu0 %v623
        %2694 = vmatpush.xpose.msra.mxu0 %v367
        %2695 = vmatmul.f32.gmra.mxu0 %v960
        %v2696 = vpop.f32.mrf.mxu0
        %v2697 = vadd.f32 %v2677, %v2696
        %2698 = vdwg.mxu0
        %2699 = vmatpush.xpose.msra.mxu0 0.0
        %2700 = vmatpush.xpose.msra.mxu0 0.0
        %2701 = vmatpush.xpose.msra.mxu0 0.0
        %2702 = vmatpush.xpose.msra.mxu0 0.0
        %2703 = vmatpush.xpose.msra.mxu0 0.0
        %2704 = vmatpush.xpose.msra.mxu0 0.0
        %2705 = vmatpush.xpose.msra.mxu0 0.0
        %2706 = vmatpush.xpose.msra.mxu0 0.0
        %2707 = vmatpush.xpose.msra.mxu0 0.0
        %2708 = vmatpush.xpose.msra.mxu0 0.0
        %2709 = vmatpush.xpose.msra.mxu0 0.0
        %2710 = vmatpush.xpose.msra.mxu0 0.0
        %2711 = vmatpush.xpose.msra.mxu0 0.0
        %2712 = vmatpush.xpose.msra.mxu0 0.0
        %2713 = vmatpush.xpose.msra.mxu0 %v624
        %2714 = vmatpush.xpose.msra.mxu0 %v368
        %2715 = vmatmul.f32.gmra.mxu0 %v961
        %v2716 = vpop.f32.mrf.mxu0
        %v2717 = vadd.f32 %v2697, %v2716
        %2718 = vdwg.mxu0
        %2719 = vmatpush.xpose.msra.mxu0 0.0
        %2720 = vmatpush.xpose.msra.mxu0 0.0
        %2721 = vmatpush.xpose.msra.mxu0 0.0
        %2722 = vmatpush.xpose.msra.mxu0 0.0
        %2723 = vmatpush.xpose.msra.mxu0 0.0
        %2724 = vmatpush.xpose.msra.mxu0 0.0
        %2725 = vmatpush.xpose.msra.mxu0 0.0
        %2726 = vmatpush.xpose.msra.mxu0 0.0
        %2727 = vmatpush.xpose.msra.mxu0 0.0
        %2728 = vmatpush.xpose.msra.mxu0 0.0
        %2729 = vmatpush.xpose.msra.mxu0 0.0
        %2730 = vmatpush.xpose.msra.mxu0 0.0
        %2731 = vmatpush.xpose.msra.mxu0 0.0
        %2732 = vmatpush.xpose.msra.mxu0 0.0
        %2733 = vmatpush.xpose.msra.mxu0 %v625
        %2734 = vmatpush.xpose.msra.mxu0 %v369
        %2735 = vmatmul.f32.gmra.mxu0 %v962
        %v2736 = vpop.f32.mrf.mxu0
        %v2737 = vadd.f32 %v2717, %v2736
        %2738 = vdwg.mxu0
        %2739 = vmatpush.xpose.msra.mxu0 0.0
        %2740 = vmatpush.xpose.msra.mxu0 0.0
        %2741 = vmatpush.xpose.msra.mxu0 0.0
        %2742 = vmatpush.xpose.msra.mxu0 0.0
        %2743 = vmatpush.xpose.msra.mxu0 0.0
        %2744 = vmatpush.xpose.msra.mxu0 0.0
        %2745 = vmatpush.xpose.msra.mxu0 0.0
        %2746 = vmatpush.xpose.msra.mxu0 0.0
        %2747 = vmatpush.xpose.msra.mxu0 0.0
        %2748 = vmatpush.xpose.msra.mxu0 0.0
        %2749 = vmatpush.xpose.msra.mxu0 0.0
        %2750 = vmatpush.xpose.msra.mxu0 0.0
        %2751 = vmatpush.xpose.msra.mxu0 0.0
        %2752 = vmatpush.xpose.msra.mxu0 0.0
        %2753 = vmatpush.xpose.msra.mxu0 %v626
        %2754 = vmatpush.xpose.msra.mxu0 %v370
        %2755 = vmatmul.f32.gmra.mxu0 %v965
        %v2756 = vpop.f32.mrf.mxu0
        %v2757 = vadd.f32 %v2737, %v2756
        %2758 = vdwg.mxu0
        %2759 = vmatpush.xpose.msra.mxu0 0.0
        %2760 = vmatpush.xpose.msra.mxu0 0.0
        %2761 = vmatpush.xpose.msra.mxu0 0.0
        %2762 = vmatpush.xpose.msra.mxu0 0.0
        %2763 = vmatpush.xpose.msra.mxu0 0.0
        %2764 = vmatpush.xpose.msra.mxu0 0.0
        %2765 = vmatpush.xpose.msra.mxu0 0.0
        %2766 = vmatpush.xpose.msra.mxu0 0.0
        %2767 = vmatpush.xpose.msra.mxu0 0.0
        %2768 = vmatpush.xpose.msra.mxu0 0.0
        %2769 = vmatpush.xpose.msra.mxu0 0.0
        %2770 = vmatpush.xpose.msra.mxu0 0.0
        %2771 = vmatpush.xpose.msra.mxu0 0.0
        %2772 = vmatpush.xpose.msra.mxu0 0.0
        %2773 = vmatpush.xpose.msra.mxu0 %v627
        %2774 = vmatpush.xpose.msra.mxu0 %v371
        %2775 = vmatmul.f32.gmra.mxu0 %v966
        %v2776 = vpop.f32.mrf.mxu0
        %v2777 = vadd.f32 %v2757, %v2776
        %2778 = vdwg.mxu0
        %2779 = vmatpush.xpose.msra.mxu0 0.0
        %2780 = vmatpush.xpose.msra.mxu0 0.0
        %2781 = vmatpush.xpose.msra.mxu0 0.0
        %2782 = vmatpush.xpose.msra.mxu0 0.0
        %2783 = vmatpush.xpose.msra.mxu0 0.0
        %2784 = vmatpush.xpose.msra.mxu0 0.0
        %2785 = vmatpush.xpose.msra.mxu0 0.0
        %2786 = vmatpush.xpose.msra.mxu0 0.0
        %2787 = vmatpush.xpose.msra.mxu0 0.0
        %2788 = vmatpush.xpose.msra.mxu0 0.0
        %2789 = vmatpush.xpose.msra.mxu0 0.0
        %2790 = vmatpush.xpose.msra.mxu0 0.0
        %2791 = vmatpush.xpose.msra.mxu0 0.0
        %2792 = vmatpush.xpose.msra.mxu0 0.0
        %2793 = vmatpush.xpose.msra.mxu0 %v628
        %2794 = vmatpush.xpose.msra.mxu0 %v372
        %2795 = vmatmul.f32.gmra.mxu0 %v967
        %v2796 = vpop.f32.mrf.mxu0
        %v2797 = vadd.f32 %v2777, %v2796
        %2798 = vdwg.mxu0
        %2799 = vmatpush.xpose.msra.mxu0 0.0
        %2800 = vmatpush.xpose.msra.mxu0 0.0
        %2801 = vmatpush.xpose.msra.mxu0 0.0
        %2802 = vmatpush.xpose.msra.mxu0 0.0
        %2803 = vmatpush.xpose.msra.mxu0 0.0
        %2804 = vmatpush.xpose.msra.mxu0 0.0
        %2805 = vmatpush.xpose.msra.mxu0 0.0
        %2806 = vmatpush.xpose.msra.mxu0 0.0
        %2807 = vmatpush.xpose.msra.mxu0 0.0
        %2808 = vmatpush.xpose.msra.mxu0 0.0
        %2809 = vmatpush.xpose.msra.mxu0 0.0
        %2810 = vmatpush.xpose.msra.mxu0 0.0
        %2811 = vmatpush.xpose.msra.mxu0 0.0
        %2812 = vmatpush.xpose.msra.mxu0 0.0
        %2813 = vmatpush.xpose.msra.mxu0 %v629
        %2814 = vmatpush.xpose.msra.mxu0 %v373
        %2815 = vmatmul.f32.gmra.mxu0 %v968
        %v2816 = vpop.f32.mrf.mxu0
        %v2817 = vadd.f32 %v2797, %v2816
        %2818 = vdwg.mxu0
        %2819 = vmatpush.xpose.msra.mxu0 0.0
        %2820 = vmatpush.xpose.msra.mxu0 0.0
        %2821 = vmatpush.xpose.msra.mxu0 0.0
        %2822 = vmatpush.xpose.msra.mxu0 0.0
        %2823 = vmatpush.xpose.msra.mxu0 0.0
        %2824 = vmatpush.xpose.msra.mxu0 0.0
        %2825 = vmatpush.xpose.msra.mxu0 0.0
        %2826 = vmatpush.xpose.msra.mxu0 0.0
        %2827 = vmatpush.xpose.msra.mxu0 0.0
        %2828 = vmatpush.xpose.msra.mxu0 0.0
        %2829 = vmatpush.xpose.msra.mxu0 0.0
        %2830 = vmatpush.xpose.msra.mxu0 0.0
        %2831 = vmatpush.xpose.msra.mxu0 0.0
        %2832 = vmatpush.xpose.msra.mxu0 0.0
        %2833 = vmatpush.xpose.msra.mxu0 %v630
        %2834 = vmatpush.xpose.msra.mxu0 %v374
        %2835 = vmatmul.f32.gmra.mxu0 %v969
        %v2836 = vpop.f32.mrf.mxu0
        %v2837 = vadd.f32 %v2817, %v2836
        %2838 = vdwg.mxu0
        %2839 = vmatpush.xpose.msra.mxu0 0.0
        %2840 = vmatpush.xpose.msra.mxu0 0.0
        %2841 = vmatpush.xpose.msra.mxu0 0.0
        %2842 = vmatpush.xpose.msra.mxu0 0.0
        %2843 = vmatpush.xpose.msra.mxu0 0.0
        %2844 = vmatpush.xpose.msra.mxu0 0.0
        %2845 = vmatpush.xpose.msra.mxu0 0.0
        %2846 = vmatpush.xpose.msra.mxu0 0.0
        %2847 = vmatpush.xpose.msra.mxu0 0.0
        %2848 = vmatpush.xpose.msra.mxu0 0.0
        %2849 = vmatpush.xpose.msra.mxu0 0.0
        %2850 = vmatpush.xpose.msra.mxu0 0.0
        %2851 = vmatpush.xpose.msra.mxu0 0.0
        %2852 = vmatpush.xpose.msra.mxu0 0.0
        %2853 = vmatpush.xpose.msra.mxu0 %v631
        %2854 = vmatpush.xpose.msra.mxu0 %v375
        %2855 = vmatmul.f32.gmra.mxu0 %v970
        %v2856 = vpop.f32.mrf.mxu0
        %v2857 = vadd.f32 %v2837, %v2856
        %2858 = vdwg.mxu0
        %2859 = vmatpush.xpose.msra.mxu0 0.0
        %2860 = vmatpush.xpose.msra.mxu0 0.0
        %2861 = vmatpush.xpose.msra.mxu0 0.0
        %2862 = vmatpush.xpose.msra.mxu0 0.0
        %2863 = vmatpush.xpose.msra.mxu0 0.0
        %2864 = vmatpush.xpose.msra.mxu0 0.0
        %2865 = vmatpush.xpose.msra.mxu0 0.0
        %2866 = vmatpush.xpose.msra.mxu0 0.0
        %2867 = vmatpush.xpose.msra.mxu0 0.0
        %2868 = vmatpush.xpose.msra.mxu0 0.0
        %2869 = vmatpush.xpose.msra.mxu0 0.0
        %2870 = vmatpush.xpose.msra.mxu0 0.0
        %2871 = vmatpush.xpose.msra.mxu0 0.0
        %2872 = vmatpush.xpose.msra.mxu0 0.0
        %2873 = vmatpush.xpose.msra.mxu0 %v632
        %2874 = vmatpush.xpose.msra.mxu0 %v376
        %2875 = vmatmul.f32.gmra.mxu0 %v971
        %v2876 = vpop.f32.mrf.mxu0
        %v2877 = vadd.f32 %v2857, %v2876
        %2878 = vdwg.mxu0
        %2879 = vmatpush.xpose.msra.mxu0 0.0
        %2880 = vmatpush.xpose.msra.mxu0 0.0
        %2881 = vmatpush.xpose.msra.mxu0 0.0
        %2882 = vmatpush.xpose.msra.mxu0 0.0
        %2883 = vmatpush.xpose.msra.mxu0 0.0
        %2884 = vmatpush.xpose.msra.mxu0 0.0
        %2885 = vmatpush.xpose.msra.mxu0 0.0
        %2886 = vmatpush.xpose.msra.mxu0 0.0
        %2887 = vmatpush.xpose.msra.mxu0 0.0
        %2888 = vmatpush.xpose.msra.mxu0 0.0
        %2889 = vmatpush.xpose.msra.mxu0 0.0
        %2890 = vmatpush.xpose.msra.mxu0 0.0
        %2891 = vmatpush.xpose.msra.mxu0 0.0
        %2892 = vmatpush.xpose.msra.mxu0 0.0
        %2893 = vmatpush.xpose.msra.mxu0 %v633
        %2894 = vmatpush.xpose.msra.mxu0 %v377
        %2895 = vmatmul.f32.gmra.mxu0 %v972
        %v2896 = vpop.f32.mrf.mxu0
        %v2897 = vadd.f32 %v2877, %v2896
        %2898 = vdwg.mxu0
        %2899 = vmatpush.xpose.msra.mxu0 0.0
        %2900 = vmatpush.xpose.msra.mxu0 0.0
        %2901 = vmatpush.xpose.msra.mxu0 0.0
        %2902 = vmatpush.xpose.msra.mxu0 0.0
        %2903 = vmatpush.xpose.msra.mxu0 0.0
        %2904 = vmatpush.xpose.msra.mxu0 0.0
        %2905 = vmatpush.xpose.msra.mxu0 0.0
        %2906 = vmatpush.xpose.msra.mxu0 0.0
        %2907 = vmatpush.xpose.msra.mxu0 0.0
        %2908 = vmatpush.xpose.msra.mxu0 0.0
        %2909 = vmatpush.xpose.msra.mxu0 0.0
        %2910 = vmatpush.xpose.msra.mxu0 0.0
        %2911 = vmatpush.xpose.msra.mxu0 0.0
        %2912 = vmatpush.xpose.msra.mxu0 0.0
        %2913 = vmatpush.xpose.msra.mxu0 %v634
        %2914 = vmatpush.xpose.msra.mxu0 %v378
        %2915 = vmatmul.f32.gmra.mxu0 %v975
        %v2916 = vpop.f32.mrf.mxu0
        %v2917 = vadd.f32 %v2897, %v2916
        %2918 = vdwg.mxu0
        %2919 = vmatpush.xpose.msra.mxu0 0.0
        %2920 = vmatpush.xpose.msra.mxu0 0.0
        %2921 = vmatpush.xpose.msra.mxu0 0.0
        %2922 = vmatpush.xpose.msra.mxu0 0.0
        %2923 = vmatpush.xpose.msra.mxu0 0.0
        %2924 = vmatpush.xpose.msra.mxu0 0.0
        %2925 = vmatpush.xpose.msra.mxu0 0.0
        %2926 = vmatpush.xpose.msra.mxu0 0.0
        %2927 = vmatpush.xpose.msra.mxu0 0.0
        %2928 = vmatpush.xpose.msra.mxu0 0.0
        %2929 = vmatpush.xpose.msra.mxu0 0.0
        %2930 = vmatpush.xpose.msra.mxu0 0.0
        %2931 = vmatpush.xpose.msra.mxu0 0.0
        %2932 = vmatpush.xpose.msra.mxu0 0.0
        %2933 = vmatpush.xpose.msra.mxu0 %v635
        %2934 = vmatpush.xpose.msra.mxu0 %v379
        %2935 = vmatmul.f32.gmra.mxu0 %v976
        %v2936 = vpop.f32.mrf.mxu0
        %v2937 = vadd.f32 %v2917, %v2936
        %2938 = vdwg.mxu0
        %2939 = vmatpush.xpose.msra.mxu0 0.0
        %2940 = vmatpush.xpose.msra.mxu0 0.0
        %2941 = vmatpush.xpose.msra.mxu0 0.0
        %2942 = vmatpush.xpose.msra.mxu0 0.0
        %2943 = vmatpush.xpose.msra.mxu0 0.0
        %2944 = vmatpush.xpose.msra.mxu0 0.0
        %2945 = vmatpush.xpose.msra.mxu0 0.0
        %2946 = vmatpush.xpose.msra.mxu0 0.0
        %2947 = vmatpush.xpose.msra.mxu0 0.0
        %2948 = vmatpush.xpose.msra.mxu0 0.0
        %2949 = vmatpush.xpose.msra.mxu0 0.0
        %2950 = vmatpush.xpose.msra.mxu0 0.0
        %2951 = vmatpush.xpose.msra.mxu0 0.0
        %2952 = vmatpush.xpose.msra.mxu0 0.0
        %2953 = vmatpush.xpose.msra.mxu0 %v636
        %2954 = vmatpush.xpose.msra.mxu0 %v380
        %2955 = vmatmul.f32.gmra.mxu0 %v977
        %v2956 = vpop.f32.mrf.mxu0
        %v2957 = vadd.f32 %v2937, %v2956
        %2958 = vdwg.mxu0
        %2959 = vmatpush.xpose.msra.mxu0 0.0
        %2960 = vmatpush.xpose.msra.mxu0 0.0
        %2961 = vmatpush.xpose.msra.mxu0 0.0
        %2962 = vmatpush.xpose.msra.mxu0 0.0
        %2963 = vmatpush.xpose.msra.mxu0 0.0
        %2964 = vmatpush.xpose.msra.mxu0 0.0
        %2965 = vmatpush.xpose.msra.mxu0 0.0
        %2966 = vmatpush.xpose.msra.mxu0 0.0
        %2967 = vmatpush.xpose.msra.mxu0 0.0
        %2968 = vmatpush.xpose.msra.mxu0 0.0
        %2969 = vmatpush.xpose.msra.mxu0 0.0
        %2970 = vmatpush.xpose.msra.mxu0 0.0
        %2971 = vmatpush.xpose.msra.mxu0 0.0
        %2972 = vmatpush.xpose.msra.mxu0 0.0
        %2973 = vmatpush.xpose.msra.mxu0 %v637
        %2974 = vmatpush.xpose.msra.mxu0 %v381
        %2975 = vmatmul.f32.gmra.mxu0 %v978
        %v2976 = vpop.f32.mrf.mxu0
        %v2977 = vadd.f32 %v2957, %v2976
        %2978 = vdwg.mxu0
        %2979 = vmatpush.xpose.msra.mxu0 0.0
        %2980 = vmatpush.xpose.msra.mxu0 0.0
        %2981 = vmatpush.xpose.msra.mxu0 0.0
        %2982 = vmatpush.xpose.msra.mxu0 0.0
        %2983 = vmatpush.xpose.msra.mxu0 0.0
        %2984 = vmatpush.xpose.msra.mxu0 0.0
        %2985 = vmatpush.xpose.msra.mxu0 0.0
        %2986 = vmatpush.xpose.msra.mxu0 0.0
        %2987 = vmatpush.xpose.msra.mxu0 0.0
        %2988 = vmatpush.xpose.msra.mxu0 0.0
        %2989 = vmatpush.xpose.msra.mxu0 0.0
        %2990 = vmatpush.xpose.msra.mxu0 0.0
        %2991 = vmatpush.xpose.msra.mxu0 0.0
        %2992 = vmatpush.xpose.msra.mxu0 0.0
        %2993 = vmatpush.xpose.msra.mxu0 %v638
        %2994 = vmatpush.xpose.msra.mxu0 %v382
        %2995 = vmatmul.f32.gmra.mxu0 %v979
        %v2996 = vpop.f32.mrf.mxu0
        %v2997 = vadd.f32 %v2977, %v2996
        %2998 = vdwg.mxu0
        %2999 = vmatpush.xpose.msra.mxu0 0.0
        %3000 = vmatpush.xpose.msra.mxu0 0.0
        %3001 = vmatpush.xpose.msra.mxu0 0.0
        %3002 = vmatpush.xpose.msra.mxu0 0.0
        %3003 = vmatpush.xpose.msra.mxu0 0.0
        %3004 = vmatpush.xpose.msra.mxu0 0.0
        %3005 = vmatpush.xpose.msra.mxu0 0.0
        %3006 = vmatpush.xpose.msra.mxu0 0.0
        %3007 = vmatpush.xpose.msra.mxu0 0.0
        %3008 = vmatpush.xpose.msra.mxu0 0.0
        %3009 = vmatpush.xpose.msra.mxu0 0.0
        %3010 = vmatpush.xpose.msra.mxu0 0.0
        %3011 = vmatpush.xpose.msra.mxu0 0.0
        %3012 = vmatpush.xpose.msra.mxu0 0.0
        %3013 = vmatpush.xpose.msra.mxu0 %v639
        %3014 = vmatpush.xpose.msra.mxu0 %v383
        %3015 = vmatmul.f32.gmra.mxu0 %v980
        %v3016 = vpop.f32.mrf.mxu0
        %v3017 = vadd.f32 %v2997, %v3016
        %3018 = vdwg.mxu0
        %3019 = vmatpush.xpose.msra.mxu0 0.0
        %3020 = vmatpush.xpose.msra.mxu0 0.0
        %3021 = vmatpush.xpose.msra.mxu0 0.0
        %3022 = vmatpush.xpose.msra.mxu0 0.0
        %3023 = vmatpush.xpose.msra.mxu0 0.0
        %3024 = vmatpush.xpose.msra.mxu0 0.0
        %3025 = vmatpush.xpose.msra.mxu0 0.0
        %3026 = vmatpush.xpose.msra.mxu0 0.0
        %3027 = vmatpush.xpose.msra.mxu0 0.0
        %3028 = vmatpush.xpose.msra.mxu0 0.0
        %3029 = vmatpush.xpose.msra.mxu0 0.0
        %3030 = vmatpush.xpose.msra.mxu0 0.0
        %3031 = vmatpush.xpose.msra.mxu0 0.0
        %3032 = vmatpush.xpose.msra.mxu0 0.0
        %3033 = vmatpush.xpose.msra.mxu0 %v640
        %3034 = vmatpush.xpose.msra.mxu0 %v384
        %3035 = vmatmul.f32.gmra.mxu0 %v981
        %v3036 = vpop.f32.mrf.mxu0
        %v3037 = vadd.f32 %v3017, %v3036
        %3038 = vdwg.mxu0
        %3039 = vmatpush.xpose.msra.mxu0 0.0
        %3040 = vmatpush.xpose.msra.mxu0 0.0
        %3041 = vmatpush.xpose.msra.mxu0 0.0
        %3042 = vmatpush.xpose.msra.mxu0 0.0
        %3043 = vmatpush.xpose.msra.mxu0 0.0
        %3044 = vmatpush.xpose.msra.mxu0 0.0
        %3045 = vmatpush.xpose.msra.mxu0 0.0
        %3046 = vmatpush.xpose.msra.mxu0 0.0
        %3047 = vmatpush.xpose.msra.mxu0 0.0
        %3048 = vmatpush.xpose.msra.mxu0 0.0
        %3049 = vmatpush.xpose.msra.mxu0 0.0
        %3050 = vmatpush.xpose.msra.mxu0 0.0
        %3051 = vmatpush.xpose.msra.mxu0 0.0
        %3052 = vmatpush.xpose.msra.mxu0 0.0
        %3053 = vmatpush.xpose.msra.mxu0 %v641
        %3054 = vmatpush.xpose.msra.mxu0 %v385
        %3055 = vmatmul.f32.gmra.mxu0 %v982
        %v3056 = vpop.f32.mrf.mxu0
        %v3057 = vadd.f32 %v3037, %v3056
        %3058 = vdwg.mxu0
        %3059 = vmatpush.xpose.msra.mxu0 0.0
        %3060 = vmatpush.xpose.msra.mxu0 0.0
        %3061 = vmatpush.xpose.msra.mxu0 0.0
        %3062 = vmatpush.xpose.msra.mxu0 0.0
        %3063 = vmatpush.xpose.msra.mxu0 0.0
        %3064 = vmatpush.xpose.msra.mxu0 0.0
        %3065 = vmatpush.xpose.msra.mxu0 0.0
        %3066 = vmatpush.xpose.msra.mxu0 0.0
        %3067 = vmatpush.xpose.msra.mxu0 0.0
        %3068 = vmatpush.xpose.msra.mxu0 0.0
        %3069 = vmatpush.xpose.msra.mxu0 0.0
        %3070 = vmatpush.xpose.msra.mxu0 0.0
        %3071 = vmatpush.xpose.msra.mxu0 0.0
        %3072 = vmatpush.xpose.msra.mxu0 0.0
        %3073 = vmatpush.xpose.msra.mxu0 %v642
        %3074 = vmatpush.xpose.msra.mxu0 %v386
        %3075 = vmatmul.f32.gmra.mxu0 %v985
        %v3076 = vpop.f32.mrf.mxu0
        %v3077 = vadd.f32 %v3057, %v3076
        %3078 = vdwg.mxu0
        %3079 = vmatpush.xpose.msra.mxu0 0.0
        %3080 = vmatpush.xpose.msra.mxu0 0.0
        %3081 = vmatpush.xpose.msra.mxu0 0.0
        %3082 = vmatpush.xpose.msra.mxu0 0.0
        %3083 = vmatpush.xpose.msra.mxu0 0.0
        %3084 = vmatpush.xpose.msra.mxu0 0.0
        %3085 = vmatpush.xpose.msra.mxu0 0.0
        %3086 = vmatpush.xpose.msra.mxu0 0.0
        %3087 = vmatpush.xpose.msra.mxu0 0.0
        %3088 = vmatpush.xpose.msra.mxu0 0.0
        %3089 = vmatpush.xpose.msra.mxu0 0.0
        %3090 = vmatpush.xpose.msra.mxu0 0.0
        %3091 = vmatpush.xpose.msra.mxu0 0.0
        %3092 = vmatpush.xpose.msra.mxu0 0.0
        %3093 = vmatpush.xpose.msra.mxu0 %v643
        %3094 = vmatpush.xpose.msra.mxu0 %v387
        %3095 = vmatmul.f32.gmra.mxu0 %v986
        %v3096 = vpop.f32.mrf.mxu0
        %v3097 = vadd.f32 %v3077, %v3096
        %3098 = vdwg.mxu0
        %3099 = vmatpush.xpose.msra.mxu0 0.0
        %3100 = vmatpush.xpose.msra.mxu0 0.0
        %3101 = vmatpush.xpose.msra.mxu0 0.0
        %3102 = vmatpush.xpose.msra.mxu0 0.0
        %3103 = vmatpush.xpose.msra.mxu0 0.0
        %3104 = vmatpush.xpose.msra.mxu0 0.0
        %3105 = vmatpush.xpose.msra.mxu0 0.0
        %3106 = vmatpush.xpose.msra.mxu0 0.0
        %3107 = vmatpush.xpose.msra.mxu0 0.0
        %3108 = vmatpush.xpose.msra.mxu0 0.0
        %3109 = vmatpush.xpose.msra.mxu0 0.0
        %3110 = vmatpush.xpose.msra.mxu0 0.0
        %3111 = vmatpush.xpose.msra.mxu0 0.0
        %3112 = vmatpush.xpose.msra.mxu0 0.0
        %3113 = vmatpush.xpose.msra.mxu0 %v644
        %3114 = vmatpush.xpose.msra.mxu0 %v388
        %3115 = vmatmul.f32.gmra.mxu0 %v987
        %v3116 = vpop.f32.mrf.mxu0
        %v3117 = vadd.f32 %v3097, %v3116
        %3118 = vdwg.mxu0
        %3119 = vmatpush.xpose.msra.mxu0 0.0
        %3120 = vmatpush.xpose.msra.mxu0 0.0
        %3121 = vmatpush.xpose.msra.mxu0 0.0
        %3122 = vmatpush.xpose.msra.mxu0 0.0
        %3123 = vmatpush.xpose.msra.mxu0 0.0
        %3124 = vmatpush.xpose.msra.mxu0 0.0
        %3125 = vmatpush.xpose.msra.mxu0 0.0
        %3126 = vmatpush.xpose.msra.mxu0 0.0
        %3127 = vmatpush.xpose.msra.mxu0 0.0
        %3128 = vmatpush.xpose.msra.mxu0 0.0
        %3129 = vmatpush.xpose.msra.mxu0 0.0
        %3130 = vmatpush.xpose.msra.mxu0 0.0
        %3131 = vmatpush.xpose.msra.mxu0 0.0
        %3132 = vmatpush.xpose.msra.mxu0 0.0
        %3133 = vmatpush.xpose.msra.mxu0 %v645
        %3134 = vmatpush.xpose.msra.mxu0 %v389
        %3135 = vmatmul.f32.gmra.mxu0 %v988
        %v3136 = vpop.f32.mrf.mxu0
        %v3137 = vadd.f32 %v3117, %v3136
        %3138 = vdwg.mxu0
        %3139 = vmatpush.xpose.msra.mxu0 0.0
        %3140 = vmatpush.xpose.msra.mxu0 0.0
        %3141 = vmatpush.xpose.msra.mxu0 0.0
        %3142 = vmatpush.xpose.msra.mxu0 0.0
        %3143 = vmatpush.xpose.msra.mxu0 0.0
        %3144 = vmatpush.xpose.msra.mxu0 0.0
        %3145 = vmatpush.xpose.msra.mxu0 0.0
        %3146 = vmatpush.xpose.msra.mxu0 0.0
        %3147 = vmatpush.xpose.msra.mxu0 0.0
        %3148 = vmatpush.xpose.msra.mxu0 0.0
        %3149 = vmatpush.xpose.msra.mxu0 0.0
        %3150 = vmatpush.xpose.msra.mxu0 0.0
        %3151 = vmatpush.xpose.msra.mxu0 0.0
        %3152 = vmatpush.xpose.msra.mxu0 0.0
        %3153 = vmatpush.xpose.msra.mxu0 %v646
        %3154 = vmatpush.xpose.msra.mxu0 %v390
        %3155 = vmatmul.f32.gmra.mxu0 %v989
        %v3156 = vpop.f32.mrf.mxu0
        %v3157 = vadd.f32 %v3137, %v3156
        %3158 = vdwg.mxu0
        %3159 = vmatpush.xpose.msra.mxu0 0.0
        %3160 = vmatpush.xpose.msra.mxu0 0.0
        %3161 = vmatpush.xpose.msra.mxu0 0.0
        %3162 = vmatpush.xpose.msra.mxu0 0.0
        %3163 = vmatpush.xpose.msra.mxu0 0.0
        %3164 = vmatpush.xpose.msra.mxu0 0.0
        %3165 = vmatpush.xpose.msra.mxu0 0.0
        %3166 = vmatpush.xpose.msra.mxu0 0.0
        %3167 = vmatpush.xpose.msra.mxu0 0.0
        %3168 = vmatpush.xpose.msra.mxu0 0.0
        %3169 = vmatpush.xpose.msra.mxu0 0.0
        %3170 = vmatpush.xpose.msra.mxu0 0.0
        %3171 = vmatpush.xpose.msra.mxu0 0.0
        %3172 = vmatpush.xpose.msra.mxu0 0.0
        %3173 = vmatpush.xpose.msra.mxu0 %v647
        %3174 = vmatpush.xpose.msra.mxu0 %v391
        %3175 = vmatmul.f32.gmra.mxu0 %v990
        %v3176 = vpop.f32.mrf.mxu0
        %v3177 = vadd.f32 %v3157, %v3176
        %3178 = vdwg.mxu0
        %3179 = vmatpush.xpose.msra.mxu0 0.0
        %3180 = vmatpush.xpose.msra.mxu0 0.0
        %3181 = vmatpush.xpose.msra.mxu0 0.0
        %3182 = vmatpush.xpose.msra.mxu0 0.0
        %3183 = vmatpush.xpose.msra.mxu0 0.0
        %3184 = vmatpush.xpose.msra.mxu0 0.0
        %3185 = vmatpush.xpose.msra.mxu0 0.0
        %3186 = vmatpush.xpose.msra.mxu0 0.0
        %3187 = vmatpush.xpose.msra.mxu0 0.0
        %3188 = vmatpush.xpose.msra.mxu0 0.0
        %3189 = vmatpush.xpose.msra.mxu0 0.0
        %3190 = vmatpush.xpose.msra.mxu0 0.0
        %3191 = vmatpush.xpose.msra.mxu0 0.0
        %3192 = vmatpush.xpose.msra.mxu0 0.0
        %3193 = vmatpush.xpose.msra.mxu0 %v648
        %3194 = vmatpush.xpose.msra.mxu0 %v392
        %3195 = vmatmul.f32.gmra.mxu0 %v991
        %v3196 = vpop.f32.mrf.mxu0
        %v3197 = vadd.f32 %v3177, %v3196
        %3198 = vdwg.mxu0
        %3199 = vmatpush.xpose.msra.mxu0 0.0
        %3200 = vmatpush.xpose.msra.mxu0 0.0
        %3201 = vmatpush.xpose.msra.mxu0 0.0
        %3202 = vmatpush.xpose.msra.mxu0 0.0
        %3203 = vmatpush.xpose.msra.mxu0 0.0
        %3204 = vmatpush.xpose.msra.mxu0 0.0
        %3205 = vmatpush.xpose.msra.mxu0 0.0
        %3206 = vmatpush.xpose.msra.mxu0 0.0
        %3207 = vmatpush.xpose.msra.mxu0 0.0
        %3208 = vmatpush.xpose.msra.mxu0 0.0
        %3209 = vmatpush.xpose.msra.mxu0 0.0
        %3210 = vmatpush.xpose.msra.mxu0 0.0
        %3211 = vmatpush.xpose.msra.mxu0 0.0
        %3212 = vmatpush.xpose.msra.mxu0 0.0
        %3213 = vmatpush.xpose.msra.mxu0 %v649
        %3214 = vmatpush.xpose.msra.mxu0 %v393
        %3215 = vmatmul.f32.gmra.mxu0 %v992
        %v3216 = vpop.f32.mrf.mxu0
        %v3217 = vadd.f32 %v3197, %v3216
        %3218 = vdwg.mxu0
        %3219 = vmatpush.xpose.msra.mxu0 0.0
        %3220 = vmatpush.xpose.msra.mxu0 0.0
        %3221 = vmatpush.xpose.msra.mxu0 0.0
        %3222 = vmatpush.xpose.msra.mxu0 0.0
        %3223 = vmatpush.xpose.msra.mxu0 0.0
        %3224 = vmatpush.xpose.msra.mxu0 0.0
        %3225 = vmatpush.xpose.msra.mxu0 0.0
        %3226 = vmatpush.xpose.msra.mxu0 0.0
        %3227 = vmatpush.xpose.msra.mxu0 0.0
        %3228 = vmatpush.xpose.msra.mxu0 0.0
        %3229 = vmatpush.xpose.msra.mxu0 0.0
        %3230 = vmatpush.xpose.msra.mxu0 0.0
        %3231 = vmatpush.xpose.msra.mxu0 0.0
        %3232 = vmatpush.xpose.msra.mxu0 0.0
        %3233 = vmatpush.xpose.msra.mxu0 %v650
        %3234 = vmatpush.xpose.msra.mxu0 %v394
        %3235 = vmatmul.f32.gmra.mxu0 %v995
        %v3236 = vpop.f32.mrf.mxu0
        %v3237 = vadd.f32 %v3217, %v3236
        %3238 = vdwg.mxu0
        %3239 = vmatpush.xpose.msra.mxu0 0.0
        %3240 = vmatpush.xpose.msra.mxu0 0.0
        %3241 = vmatpush.xpose.msra.mxu0 0.0
        %3242 = vmatpush.xpose.msra.mxu0 0.0
        %3243 = vmatpush.xpose.msra.mxu0 0.0
        %3244 = vmatpush.xpose.msra.mxu0 0.0
        %3245 = vmatpush.xpose.msra.mxu0 0.0
        %3246 = vmatpush.xpose.msra.mxu0 0.0
        %3247 = vmatpush.xpose.msra.mxu0 0.0
        %3248 = vmatpush.xpose.msra.mxu0 0.0
        %3249 = vmatpush.xpose.msra.mxu0 0.0
        %3250 = vmatpush.xpose.msra.mxu0 0.0
        %3251 = vmatpush.xpose.msra.mxu0 0.0
        %3252 = vmatpush.xpose.msra.mxu0 0.0
        %3253 = vmatpush.xpose.msra.mxu0 %v651
        %3254 = vmatpush.xpose.msra.mxu0 %v395
        %3255 = vmatmul.f32.gmra.mxu0 %v996
        %v3256 = vpop.f32.mrf.mxu0
        %v3257 = vadd.f32 %v3237, %v3256
        %3258 = vdwg.mxu0
        %3259 = vmatpush.xpose.msra.mxu0 0.0
        %3260 = vmatpush.xpose.msra.mxu0 0.0
        %3261 = vmatpush.xpose.msra.mxu0 0.0
        %3262 = vmatpush.xpose.msra.mxu0 0.0
        %3263 = vmatpush.xpose.msra.mxu0 0.0
        %3264 = vmatpush.xpose.msra.mxu0 0.0
        %3265 = vmatpush.xpose.msra.mxu0 0.0
        %3266 = vmatpush.xpose.msra.mxu0 0.0
        %3267 = vmatpush.xpose.msra.mxu0 0.0
        %3268 = vmatpush.xpose.msra.mxu0 0.0
        %3269 = vmatpush.xpose.msra.mxu0 0.0
        %3270 = vmatpush.xpose.msra.mxu0 0.0
        %3271 = vmatpush.xpose.msra.mxu0 0.0
        %3272 = vmatpush.xpose.msra.mxu0 0.0
        %3273 = vmatpush.xpose.msra.mxu0 %v652
        %3274 = vmatpush.xpose.msra.mxu0 %v396
        %3275 = vmatmul.f32.gmra.mxu0 %v997
        %v3276 = vpop.f32.mrf.mxu0
        %v3277 = vadd.f32 %v3257, %v3276
        %3278 = vdwg.mxu0
        %3279 = vmatpush.xpose.msra.mxu0 0.0
        %3280 = vmatpush.xpose.msra.mxu0 0.0
        %3281 = vmatpush.xpose.msra.mxu0 0.0
        %3282 = vmatpush.xpose.msra.mxu0 0.0
        %3283 = vmatpush.xpose.msra.mxu0 0.0
        %3284 = vmatpush.xpose.msra.mxu0 0.0
        %3285 = vmatpush.xpose.msra.mxu0 0.0
        %3286 = vmatpush.xpose.msra.mxu0 0.0
        %3287 = vmatpush.xpose.msra.mxu0 0.0
        %3288 = vmatpush.xpose.msra.mxu0 0.0
        %3289 = vmatpush.xpose.msra.mxu0 0.0
        %3290 = vmatpush.xpose.msra.mxu0 0.0
        %3291 = vmatpush.xpose.msra.mxu0 0.0
        %3292 = vmatpush.xpose.msra.mxu0 0.0
        %3293 = vmatpush.xpose.msra.mxu0 %v653
        %3294 = vmatpush.xpose.msra.mxu0 %v397
        %3295 = vmatmul.f32.gmra.mxu0 %v998
        %v3296 = vpop.f32.mrf.mxu0
        %v3297 = vadd.f32 %v3277, %v3296
        %3298 = vdwg.mxu0
        %3299 = vmatpush.xpose.msra.mxu0 0.0
        %3300 = vmatpush.xpose.msra.mxu0 0.0
        %3301 = vmatpush.xpose.msra.mxu0 0.0
        %3302 = vmatpush.xpose.msra.mxu0 0.0
        %3303 = vmatpush.xpose.msra.mxu0 0.0
        %3304 = vmatpush.xpose.msra.mxu0 0.0
        %3305 = vmatpush.xpose.msra.mxu0 0.0
        %3306 = vmatpush.xpose.msra.mxu0 0.0
        %3307 = vmatpush.xpose.msra.mxu0 0.0
        %3308 = vmatpush.xpose.msra.mxu0 0.0
        %3309 = vmatpush.xpose.msra.mxu0 0.0
        %3310 = vmatpush.xpose.msra.mxu0 0.0
        %3311 = vmatpush.xpose.msra.mxu0 0.0
        %3312 = vmatpush.xpose.msra.mxu0 0.0
        %3313 = vmatpush.xpose.msra.mxu0 %v654
        %3314 = vmatpush.xpose.msra.mxu0 %v398
        %3315 = vmatmul.f32.gmra.mxu0 %v999
        %v3316 = vpop.f32.mrf.mxu0
        %v3317 = vadd.f32 %v3297, %v3316
        %3318 = vdwg.mxu0
        %3319 = vmatpush.xpose.msra.mxu0 0.0
        %3320 = vmatpush.xpose.msra.mxu0 0.0
        %3321 = vmatpush.xpose.msra.mxu0 0.0
        %3322 = vmatpush.xpose.msra.mxu0 0.0
        %3323 = vmatpush.xpose.msra.mxu0 0.0
        %3324 = vmatpush.xpose.msra.mxu0 0.0
        %3325 = vmatpush.xpose.msra.mxu0 0.0
        %3326 = vmatpush.xpose.msra.mxu0 0.0
        %3327 = vmatpush.xpose.msra.mxu0 0.0
        %3328 = vmatpush.xpose.msra.mxu0 0.0
        %3329 = vmatpush.xpose.msra.mxu0 0.0
        %3330 = vmatpush.xpose.msra.mxu0 0.0
        %3331 = vmatpush.xpose.msra.mxu0 0.0
        %3332 = vmatpush.xpose.msra.mxu0 0.0
        %3333 = vmatpush.xpose.msra.mxu0 %v655
        %3334 = vmatpush.xpose.msra.mxu0 %v399
        %3335 = vmatmul.f32.gmra.mxu0 %v1000
        %v3336 = vpop.f32.mrf.mxu0
        %v3337 = vadd.f32 %v3317, %v3336
        %3338 = vdwg.mxu0
        %3339 = vmatpush.xpose.msra.mxu0 0.0
        %3340 = vmatpush.xpose.msra.mxu0 0.0
        %3341 = vmatpush.xpose.msra.mxu0 0.0
        %3342 = vmatpush.xpose.msra.mxu0 0.0
        %3343 = vmatpush.xpose.msra.mxu0 0.0
        %3344 = vmatpush.xpose.msra.mxu0 0.0
        %3345 = vmatpush.xpose.msra.mxu0 0.0
        %3346 = vmatpush.xpose.msra.mxu0 0.0
        %3347 = vmatpush.xpose.msra.mxu0 0.0
        %3348 = vmatpush.xpose.msra.mxu0 0.0
        %3349 = vmatpush.xpose.msra.mxu0 0.0
        %3350 = vmatpush.xpose.msra.mxu0 0.0
        %3351 = vmatpush.xpose.msra.mxu0 0.0
        %3352 = vmatpush.xpose.msra.mxu0 0.0
        %3353 = vmatpush.xpose.msra.mxu0 %v656
        %3354 = vmatpush.xpose.msra.mxu0 %v400
        %3355 = vmatmul.f32.gmra.mxu0 %v1001
        %v3356 = vpop.f32.mrf.mxu0
        %v3357 = vadd.f32 %v3337, %v3356
        %3358 = vdwg.mxu0
        %3359 = vmatpush.xpose.msra.mxu0 0.0
        %3360 = vmatpush.xpose.msra.mxu0 0.0
        %3361 = vmatpush.xpose.msra.mxu0 0.0
        %3362 = vmatpush.xpose.msra.mxu0 0.0
        %3363 = vmatpush.xpose.msra.mxu0 0.0
        %3364 = vmatpush.xpose.msra.mxu0 0.0
        %3365 = vmatpush.xpose.msra.mxu0 0.0
        %3366 = vmatpush.xpose.msra.mxu0 0.0
        %3367 = vmatpush.xpose.msra.mxu0 0.0
        %3368 = vmatpush.xpose.msra.mxu0 0.0
        %3369 = vmatpush.xpose.msra.mxu0 0.0
        %3370 = vmatpush.xpose.msra.mxu0 0.0
        %3371 = vmatpush.xpose.msra.mxu0 0.0
        %3372 = vmatpush.xpose.msra.mxu0 0.0
        %3373 = vmatpush.xpose.msra.mxu0 %v657
        %3374 = vmatpush.xpose.msra.mxu0 %v401
        %3375 = vmatmul.f32.gmra.mxu0 %v1002
        %v3376 = vpop.f32.mrf.mxu0
        %v3377 = vadd.f32 %v3357, %v3376
        %3378 = vdwg.mxu0
        %3379 = vmatpush.xpose.msra.mxu0 0.0
        %3380 = vmatpush.xpose.msra.mxu0 0.0
        %3381 = vmatpush.xpose.msra.mxu0 0.0
        %3382 = vmatpush.xpose.msra.mxu0 0.0
        %3383 = vmatpush.xpose.msra.mxu0 0.0
        %3384 = vmatpush.xpose.msra.mxu0 0.0
        %3385 = vmatpush.xpose.msra.mxu0 0.0
        %3386 = vmatpush.xpose.msra.mxu0 0.0
        %3387 = vmatpush.xpose.msra.mxu0 0.0
        %3388 = vmatpush.xpose.msra.mxu0 0.0
        %3389 = vmatpush.xpose.msra.mxu0 0.0
        %3390 = vmatpush.xpose.msra.mxu0 0.0
        %3391 = vmatpush.xpose.msra.mxu0 0.0
        %3392 = vmatpush.xpose.msra.mxu0 0.0
        %3393 = vmatpush.xpose.msra.mxu0 %v658
        %3394 = vmatpush.xpose.msra.mxu0 %v402
        %3395 = vmatmul.f32.gmra.mxu0 %v1005
        %v3396 = vpop.f32.mrf.mxu0
        %v3397 = vadd.f32 %v3377, %v3396
        %3398 = vdwg.mxu0
        %3399 = vmatpush.xpose.msra.mxu0 0.0
        %3400 = vmatpush.xpose.msra.mxu0 0.0
        %3401 = vmatpush.xpose.msra.mxu0 0.0
        %3402 = vmatpush.xpose.msra.mxu0 0.0
        %3403 = vmatpush.xpose.msra.mxu0 0.0
        %3404 = vmatpush.xpose.msra.mxu0 0.0
        %3405 = vmatpush.xpose.msra.mxu0 0.0
        %3406 = vmatpush.xpose.msra.mxu0 0.0
        %3407 = vmatpush.xpose.msra.mxu0 0.0
        %3408 = vmatpush.xpose.msra.mxu0 0.0
        %3409 = vmatpush.xpose.msra.mxu0 0.0
        %3410 = vmatpush.xpose.msra.mxu0 0.0
        %3411 = vmatpush.xpose.msra.mxu0 0.0
        %3412 = vmatpush.xpose.msra.mxu0 0.0
        %3413 = vmatpush.xpose.msra.mxu0 %v659
        %3414 = vmatpush.xpose.msra.mxu0 %v403
        %3415 = vmatmul.f32.gmra.mxu0 %v1006
        %v3416 = vpop.f32.mrf.mxu0
        %v3417 = vadd.f32 %v3397, %v3416
        %3418 = vdwg.mxu0
        %3419 = vmatpush.xpose.msra.mxu0 0.0
        %3420 = vmatpush.xpose.msra.mxu0 0.0
        %3421 = vmatpush.xpose.msra.mxu0 0.0
        %3422 = vmatpush.xpose.msra.mxu0 0.0
        %3423 = vmatpush.xpose.msra.mxu0 0.0
        %3424 = vmatpush.xpose.msra.mxu0 0.0
        %3425 = vmatpush.xpose.msra.mxu0 0.0
        %3426 = vmatpush.xpose.msra.mxu0 0.0
        %3427 = vmatpush.xpose.msra.mxu0 0.0
        %3428 = vmatpush.xpose.msra.mxu0 0.0
        %3429 = vmatpush.xpose.msra.mxu0 0.0
        %3430 = vmatpush.xpose.msra.mxu0 0.0
        %3431 = vmatpush.xpose.msra.mxu0 0.0
        %3432 = vmatpush.xpose.msra.mxu0 0.0
        %3433 = vmatpush.xpose.msra.mxu0 %v660
        %3434 = vmatpush.xpose.msra.mxu0 %v404
        %3435 = vmatmul.f32.gmra.mxu0 %v1007
        %v3436 = vpop.f32.mrf.mxu0
        %v3437 = vadd.f32 %v3417, %v3436
        %3438 = vdwg.mxu0
        %3439 = vmatpush.xpose.msra.mxu0 0.0
        %3440 = vmatpush.xpose.msra.mxu0 0.0
        %3441 = vmatpush.xpose.msra.mxu0 0.0
        %3442 = vmatpush.xpose.msra.mxu0 0.0
        %3443 = vmatpush.xpose.msra.mxu0 0.0
        %3444 = vmatpush.xpose.msra.mxu0 0.0
        %3445 = vmatpush.xpose.msra.mxu0 0.0
        %3446 = vmatpush.xpose.msra.mxu0 0.0
        %3447 = vmatpush.xpose.msra.mxu0 0.0
        %3448 = vmatpush.xpose.msra.mxu0 0.0
        %3449 = vmatpush.xpose.msra.mxu0 0.0
        %3450 = vmatpush.xpose.msra.mxu0 0.0
        %3451 = vmatpush.xpose.msra.mxu0 0.0
        %3452 = vmatpush.xpose.msra.mxu0 0.0
        %3453 = vmatpush.xpose.msra.mxu0 %v661
        %3454 = vmatpush.xpose.msra.mxu0 %v405
        %3455 = vmatmul.f32.gmra.mxu0 %v1008
        %v3456 = vpop.f32.mrf.mxu0
        %v3457 = vadd.f32 %v3437, %v3456
        %3458 = vdwg.mxu0
        %3459 = vmatpush.xpose.msra.mxu0 0.0
        %3460 = vmatpush.xpose.msra.mxu0 0.0
        %3461 = vmatpush.xpose.msra.mxu0 0.0
        %3462 = vmatpush.xpose.msra.mxu0 0.0
        %3463 = vmatpush.xpose.msra.mxu0 0.0
        %3464 = vmatpush.xpose.msra.mxu0 0.0
        %3465 = vmatpush.xpose.msra.mxu0 0.0
        %3466 = vmatpush.xpose.msra.mxu0 0.0
        %3467 = vmatpush.xpose.msra.mxu0 0.0
        %3468 = vmatpush.xpose.msra.mxu0 0.0
        %3469 = vmatpush.xpose.msra.mxu0 0.0
        %3470 = vmatpush.xpose.msra.mxu0 0.0
        %3471 = vmatpush.xpose.msra.mxu0 0.0
        %3472 = vmatpush.xpose.msra.mxu0 0.0
        %3473 = vmatpush.xpose.msra.mxu0 %v662
        %3474 = vmatpush.xpose.msra.mxu0 %v406
        %3475 = vmatmul.f32.gmra.mxu0 %v1009
        %v3476 = vpop.f32.mrf.mxu0
        %v3477 = vadd.f32 %v3457, %v3476
        %3478 = vdwg.mxu0
        %3479 = vmatpush.xpose.msra.mxu0 0.0
        %3480 = vmatpush.xpose.msra.mxu0 0.0
        %3481 = vmatpush.xpose.msra.mxu0 0.0
        %3482 = vmatpush.xpose.msra.mxu0 0.0
        %3483 = vmatpush.xpose.msra.mxu0 0.0
        %3484 = vmatpush.xpose.msra.mxu0 0.0
        %3485 = vmatpush.xpose.msra.mxu0 0.0
        %3486 = vmatpush.xpose.msra.mxu0 0.0
        %3487 = vmatpush.xpose.msra.mxu0 0.0
        %3488 = vmatpush.xpose.msra.mxu0 0.0
        %3489 = vmatpush.xpose.msra.mxu0 0.0
        %3490 = vmatpush.xpose.msra.mxu0 0.0
        %3491 = vmatpush.xpose.msra.mxu0 0.0
        %3492 = vmatpush.xpose.msra.mxu0 0.0
        %3493 = vmatpush.xpose.msra.mxu0 %v663
        %3494 = vmatpush.xpose.msra.mxu0 %v407
        %3495 = vmatmul.f32.gmra.mxu0 %v1010
        %v3496 = vpop.f32.mrf.mxu0
        %v3497 = vadd.f32 %v3477, %v3496
        %3498 = vdwg.mxu0
        %3499 = vmatpush.xpose.msra.mxu0 0.0
        %3500 = vmatpush.xpose.msra.mxu0 0.0
        %3501 = vmatpush.xpose.msra.mxu0 0.0
        %3502 = vmatpush.xpose.msra.mxu0 0.0
        %3503 = vmatpush.xpose.msra.mxu0 0.0
        %3504 = vmatpush.xpose.msra.mxu0 0.0
        %3505 = vmatpush.xpose.msra.mxu0 0.0
        %3506 = vmatpush.xpose.msra.mxu0 0.0
        %3507 = vmatpush.xpose.msra.mxu0 0.0
        %3508 = vmatpush.xpose.msra.mxu0 0.0
        %3509 = vmatpush.xpose.msra.mxu0 0.0
        %3510 = vmatpush.xpose.msra.mxu0 0.0
        %3511 = vmatpush.xpose.msra.mxu0 0.0
        %3512 = vmatpush.xpose.msra.mxu0 0.0
        %3513 = vmatpush.xpose.msra.mxu0 %v664
        %3514 = vmatpush.xpose.msra.mxu0 %v408
        %3515 = vmatmul.f32.gmra.mxu0 %v1011
        %v3516 = vpop.f32.mrf.mxu0
        %v3517 = vadd.f32 %v3497, %v3516
        %3518 = vdwg.mxu0
        %3519 = vmatpush.xpose.msra.mxu0 0.0
        %3520 = vmatpush.xpose.msra.mxu0 0.0
        %3521 = vmatpush.xpose.msra.mxu0 0.0
        %3522 = vmatpush.xpose.msra.mxu0 0.0
        %3523 = vmatpush.xpose.msra.mxu0 0.0
        %3524 = vmatpush.xpose.msra.mxu0 0.0
        %3525 = vmatpush.xpose.msra.mxu0 0.0
        %3526 = vmatpush.xpose.msra.mxu0 0.0
        %3527 = vmatpush.xpose.msra.mxu0 0.0
        %3528 = vmatpush.xpose.msra.mxu0 0.0
        %3529 = vmatpush.xpose.msra.mxu0 0.0
        %3530 = vmatpush.xpose.msra.mxu0 0.0
        %3531 = vmatpush.xpose.msra.mxu0 0.0
        %3532 = vmatpush.xpose.msra.mxu0 0.0
        %3533 = vmatpush.xpose.msra.mxu0 %v665
        %3534 = vmatpush.xpose.msra.mxu0 %v409
        %3535 = vmatmul.f32.gmra.mxu0 %v1012
        %v3536 = vpop.f32.mrf.mxu0
        %v3537 = vadd.f32 %v3517, %v3536
        %3538 = vdwg.mxu0
        %3539 = vmatpush.xpose.msra.mxu0 0.0
        %3540 = vmatpush.xpose.msra.mxu0 0.0
        %3541 = vmatpush.xpose.msra.mxu0 0.0
        %3542 = vmatpush.xpose.msra.mxu0 0.0
        %3543 = vmatpush.xpose.msra.mxu0 0.0
        %3544 = vmatpush.xpose.msra.mxu0 0.0
        %3545 = vmatpush.xpose.msra.mxu0 0.0
        %3546 = vmatpush.xpose.msra.mxu0 0.0
        %3547 = vmatpush.xpose.msra.mxu0 0.0
        %3548 = vmatpush.xpose.msra.mxu0 0.0
        %3549 = vmatpush.xpose.msra.mxu0 0.0
        %3550 = vmatpush.xpose.msra.mxu0 0.0
        %3551 = vmatpush.xpose.msra.mxu0 0.0
        %3552 = vmatpush.xpose.msra.mxu0 0.0
        %3553 = vmatpush.xpose.msra.mxu0 %v666
        %3554 = vmatpush.xpose.msra.mxu0 %v410
        %3555 = vmatmul.f32.gmra.mxu0 %v1015
        %v3556 = vpop.f32.mrf.mxu0
        %v3557 = vadd.f32 %v3537, %v3556
        %3558 = vdwg.mxu0
        %3559 = vmatpush.xpose.msra.mxu0 0.0
        %3560 = vmatpush.xpose.msra.mxu0 0.0
        %3561 = vmatpush.xpose.msra.mxu0 0.0
        %3562 = vmatpush.xpose.msra.mxu0 0.0
        %3563 = vmatpush.xpose.msra.mxu0 0.0
        %3564 = vmatpush.xpose.msra.mxu0 0.0
        %3565 = vmatpush.xpose.msra.mxu0 0.0
        %3566 = vmatpush.xpose.msra.mxu0 0.0
        %3567 = vmatpush.xpose.msra.mxu0 0.0
        %3568 = vmatpush.xpose.msra.mxu0 0.0
        %3569 = vmatpush.xpose.msra.mxu0 0.0
        %3570 = vmatpush.xpose.msra.mxu0 0.0
        %3571 = vmatpush.xpose.msra.mxu0 0.0
        %3572 = vmatpush.xpose.msra.mxu0 0.0
        %3573 = vmatpush.xpose.msra.mxu0 %v667
        %3574 = vmatpush.xpose.msra.mxu0 %v411
        %3575 = vmatmul.f32.gmra.mxu0 %v1016
        %v3576 = vpop.f32.mrf.mxu0
        %v3577 = vadd.f32 %v3557, %v3576
        %3578 = vdwg.mxu0
        %3579 = vmatpush.xpose.msra.mxu0 0.0
        %3580 = vmatpush.xpose.msra.mxu0 0.0
        %3581 = vmatpush.xpose.msra.mxu0 0.0
        %3582 = vmatpush.xpose.msra.mxu0 0.0
        %3583 = vmatpush.xpose.msra.mxu0 0.0
        %3584 = vmatpush.xpose.msra.mxu0 0.0
        %3585 = vmatpush.xpose.msra.mxu0 0.0
        %3586 = vmatpush.xpose.msra.mxu0 0.0
        %3587 = vmatpush.xpose.msra.mxu0 0.0
        %3588 = vmatpush.xpose.msra.mxu0 0.0
        %3589 = vmatpush.xpose.msra.mxu0 0.0
        %3590 = vmatpush.xpose.msra.mxu0 0.0
        %3591 = vmatpush.xpose.msra.mxu0 0.0
        %3592 = vmatpush.xpose.msra.mxu0 0.0
        %3593 = vmatpush.xpose.msra.mxu0 %v668
        %3594 = vmatpush.xpose.msra.mxu0 %v412
        %3595 = vmatmul.f32.gmra.mxu0 %v1017
        %v3596 = vpop.f32.mrf.mxu0
        %v3597 = vadd.f32 %v3577, %v3596
        %3598 = vdwg.mxu0
        %3599 = vmatpush.xpose.msra.mxu0 0.0
        %3600 = vmatpush.xpose.msra.mxu0 0.0
        %3601 = vmatpush.xpose.msra.mxu0 0.0
        %3602 = vmatpush.xpose.msra.mxu0 0.0
        %3603 = vmatpush.xpose.msra.mxu0 0.0
        %3604 = vmatpush.xpose.msra.mxu0 0.0
        %3605 = vmatpush.xpose.msra.mxu0 0.0
        %3606 = vmatpush.xpose.msra.mxu0 0.0
        %3607 = vmatpush.xpose.msra.mxu0 0.0
        %3608 = vmatpush.xpose.msra.mxu0 0.0
        %3609 = vmatpush.xpose.msra.mxu0 0.0
        %3610 = vmatpush.xpose.msra.mxu0 0.0
        %3611 = vmatpush.xpose.msra.mxu0 0.0
        %3612 = vmatpush.xpose.msra.mxu0 0.0
        %3613 = vmatpush.xpose.msra.mxu0 %v669
        %3614 = vmatpush.xpose.msra.mxu0 %v413
        %3615 = vmatmul.f32.gmra.mxu0 %v1018
        %v3616 = vpop.f32.mrf.mxu0
        %v3617 = vadd.f32 %v3597, %v3616
        %3618 = vdwg.mxu0
        %3619 = vmatpush.xpose.msra.mxu0 0.0
        %3620 = vmatpush.xpose.msra.mxu0 0.0
        %3621 = vmatpush.xpose.msra.mxu0 0.0
        %3622 = vmatpush.xpose.msra.mxu0 0.0
        %3623 = vmatpush.xpose.msra.mxu0 0.0
        %3624 = vmatpush.xpose.msra.mxu0 0.0
        %3625 = vmatpush.xpose.msra.mxu0 0.0
        %3626 = vmatpush.xpose.msra.mxu0 0.0
        %3627 = vmatpush.xpose.msra.mxu0 0.0
        %3628 = vmatpush.xpose.msra.mxu0 0.0
        %3629 = vmatpush.xpose.msra.mxu0 0.0
        %3630 = vmatpush.xpose.msra.mxu0 0.0
        %3631 = vmatpush.xpose.msra.mxu0 0.0
        %3632 = vmatpush.xpose.msra.mxu0 0.0
        %3633 = vmatpush.xpose.msra.mxu0 %v670
        %3634 = vmatpush.xpose.msra.mxu0 %v414
        %3635 = vmatmul.f32.gmra.mxu0 %v1019
        %v3636 = vpop.f32.mrf.mxu0
        %v3637 = vadd.f32 %v3617, %v3636
        %3638 = vdwg.mxu0
        %3639 = vmatpush.xpose.msra.mxu0 0.0
        %3640 = vmatpush.xpose.msra.mxu0 0.0
        %3641 = vmatpush.xpose.msra.mxu0 0.0
        %3642 = vmatpush.xpose.msra.mxu0 0.0
        %3643 = vmatpush.xpose.msra.mxu0 0.0
        %3644 = vmatpush.xpose.msra.mxu0 0.0
        %3645 = vmatpush.xpose.msra.mxu0 0.0
        %3646 = vmatpush.xpose.msra.mxu0 0.0
        %3647 = vmatpush.xpose.msra.mxu0 0.0
        %3648 = vmatpush.xpose.msra.mxu0 0.0
        %3649 = vmatpush.xpose.msra.mxu0 0.0
        %3650 = vmatpush.xpose.msra.mxu0 0.0
        %3651 = vmatpush.xpose.msra.mxu0 0.0
        %3652 = vmatpush.xpose.msra.mxu0 0.0
        %3653 = vmatpush.xpose.msra.mxu0 %v671
        %3654 = vmatpush.xpose.msra.mxu0 %v415
        %3655 = vmatmul.f32.gmra.mxu0 %v1020
        %v3656 = vpop.f32.mrf.mxu0
        %v3657 = vadd.f32 %v3637, %v3656
        %3658 = vdwg.mxu0
        %3659 = vmatpush.xpose.msra.mxu0 0.0
        %3660 = vmatpush.xpose.msra.mxu0 0.0
        %3661 = vmatpush.xpose.msra.mxu0 0.0
        %3662 = vmatpush.xpose.msra.mxu0 0.0
        %3663 = vmatpush.xpose.msra.mxu0 0.0
        %3664 = vmatpush.xpose.msra.mxu0 0.0
        %3665 = vmatpush.xpose.msra.mxu0 0.0
        %3666 = vmatpush.xpose.msra.mxu0 0.0
        %3667 = vmatpush.xpose.msra.mxu0 0.0
        %3668 = vmatpush.xpose.msra.mxu0 0.0
        %3669 = vmatpush.xpose.msra.mxu0 0.0
        %3670 = vmatpush.xpose.msra.mxu0 0.0
        %3671 = vmatpush.xpose.msra.mxu0 0.0
        %3672 = vmatpush.xpose.msra.mxu0 0.0
        %3673 = vmatpush.xpose.msra.mxu0 %v672
        %3674 = vmatpush.xpose.msra.mxu0 %v416
        %3675 = vmatmul.f32.gmra.mxu0 %v1021
        %v3676 = vpop.f32.mrf.mxu0
        %v3677 = vadd.f32 %v3657, %v3676
        %3678 = vdwg.mxu0
        %3679 = vmatpush.xpose.msra.mxu0 0.0
        %3680 = vmatpush.xpose.msra.mxu0 0.0
        %3681 = vmatpush.xpose.msra.mxu0 0.0
        %3682 = vmatpush.xpose.msra.mxu0 0.0
        %3683 = vmatpush.xpose.msra.mxu0 0.0
        %3684 = vmatpush.xpose.msra.mxu0 0.0
        %3685 = vmatpush.xpose.msra.mxu0 0.0
        %3686 = vmatpush.xpose.msra.mxu0 0.0
        %3687 = vmatpush.xpose.msra.mxu0 0.0
        %3688 = vmatpush.xpose.msra.mxu0 0.0
        %3689 = vmatpush.xpose.msra.mxu0 0.0
        %3690 = vmatpush.xpose.msra.mxu0 0.0
        %3691 = vmatpush.xpose.msra.mxu0 0.0
        %3692 = vmatpush.xpose.msra.mxu0 0.0
        %3693 = vmatpush.xpose.msra.mxu0 %v673
        %3694 = vmatpush.xpose.msra.mxu0 %v417
        %3695 = vmatmul.f32.gmra.mxu0 %v1022
        %v3696 = vpop.f32.mrf.mxu0
        %v3697 = vadd.f32 %v3677, %v3696
        %3698 = vdwg.mxu0
        %3699 = vmatpush.xpose.msra.mxu0 0.0
        %3700 = vmatpush.xpose.msra.mxu0 0.0
        %3701 = vmatpush.xpose.msra.mxu0 0.0
        %3702 = vmatpush.xpose.msra.mxu0 0.0
        %3703 = vmatpush.xpose.msra.mxu0 0.0
        %3704 = vmatpush.xpose.msra.mxu0 0.0
        %3705 = vmatpush.xpose.msra.mxu0 0.0
        %3706 = vmatpush.xpose.msra.mxu0 0.0
        %3707 = vmatpush.xpose.msra.mxu0 0.0
        %3708 = vmatpush.xpose.msra.mxu0 0.0
        %3709 = vmatpush.xpose.msra.mxu0 0.0
        %3710 = vmatpush.xpose.msra.mxu0 0.0
        %3711 = vmatpush.xpose.msra.mxu0 0.0
        %3712 = vmatpush.xpose.msra.mxu0 0.0
        %3713 = vmatpush.xpose.msra.mxu0 %v674
        %3714 = vmatpush.xpose.msra.mxu0 %v418
        %3715 = vmatmul.f32.gmra.mxu0 %v1025
        %v3716 = vpop.f32.mrf.mxu0
        %v3717 = vadd.f32 %v3697, %v3716
        %3718 = vdwg.mxu0
        %3719 = vmatpush.xpose.msra.mxu0 0.0
        %3720 = vmatpush.xpose.msra.mxu0 0.0
        %3721 = vmatpush.xpose.msra.mxu0 0.0
        %3722 = vmatpush.xpose.msra.mxu0 0.0
        %3723 = vmatpush.xpose.msra.mxu0 0.0
        %3724 = vmatpush.xpose.msra.mxu0 0.0
        %3725 = vmatpush.xpose.msra.mxu0 0.0
        %3726 = vmatpush.xpose.msra.mxu0 0.0
        %3727 = vmatpush.xpose.msra.mxu0 0.0
        %3728 = vmatpush.xpose.msra.mxu0 0.0
        %3729 = vmatpush.xpose.msra.mxu0 0.0
        %3730 = vmatpush.xpose.msra.mxu0 0.0
        %3731 = vmatpush.xpose.msra.mxu0 0.0
        %3732 = vmatpush.xpose.msra.mxu0 0.0
        %3733 = vmatpush.xpose.msra.mxu0 %v675
        %3734 = vmatpush.xpose.msra.mxu0 %v419
        %3735 = vmatmul.f32.gmra.mxu0 %v1026
        %v3736 = vpop.f32.mrf.mxu0
        %v3737 = vadd.f32 %v3717, %v3736
        %3738 = vdwg.mxu0
        %3739 = vmatpush.xpose.msra.mxu0 0.0
        %3740 = vmatpush.xpose.msra.mxu0 0.0
        %3741 = vmatpush.xpose.msra.mxu0 0.0
        %3742 = vmatpush.xpose.msra.mxu0 0.0
        %3743 = vmatpush.xpose.msra.mxu0 0.0
        %3744 = vmatpush.xpose.msra.mxu0 0.0
        %3745 = vmatpush.xpose.msra.mxu0 0.0
        %3746 = vmatpush.xpose.msra.mxu0 0.0
        %3747 = vmatpush.xpose.msra.mxu0 0.0
        %3748 = vmatpush.xpose.msra.mxu0 0.0
        %3749 = vmatpush.xpose.msra.mxu0 0.0
        %3750 = vmatpush.xpose.msra.mxu0 0.0
        %3751 = vmatpush.xpose.msra.mxu0 0.0
        %3752 = vmatpush.xpose.msra.mxu0 0.0
        %3753 = vmatpush.xpose.msra.mxu0 %v676
        %3754 = vmatpush.xpose.msra.mxu0 %v420
        %3755 = vmatmul.f32.gmra.mxu0 %v1027
        %v3756 = vpop.f32.mrf.mxu0
        %v3757 = vadd.f32 %v3737, %v3756
        %3758 = vdwg.mxu0
        %3759 = vmatpush.xpose.msra.mxu0 0.0
        %3760 = vmatpush.xpose.msra.mxu0 0.0
        %3761 = vmatpush.xpose.msra.mxu0 0.0
        %3762 = vmatpush.xpose.msra.mxu0 0.0
        %3763 = vmatpush.xpose.msra.mxu0 0.0
        %3764 = vmatpush.xpose.msra.mxu0 0.0
        %3765 = vmatpush.xpose.msra.mxu0 0.0
        %3766 = vmatpush.xpose.msra.mxu0 0.0
        %3767 = vmatpush.xpose.msra.mxu0 0.0
        %3768 = vmatpush.xpose.msra.mxu0 0.0
        %3769 = vmatpush.xpose.msra.mxu0 0.0
        %3770 = vmatpush.xpose.msra.mxu0 0.0
        %3771 = vmatpush.xpose.msra.mxu0 0.0
        %3772 = vmatpush.xpose.msra.mxu0 0.0
        %3773 = vmatpush.xpose.msra.mxu0 %v677
        %3774 = vmatpush.xpose.msra.mxu0 %v421
        %3775 = vmatmul.f32.gmra.mxu0 %v1028
        %v3776 = vpop.f32.mrf.mxu0
        %v3777 = vadd.f32 %v3757, %v3776
        %3778 = vdwg.mxu0
        %3779 = vmatpush.xpose.msra.mxu0 0.0
        %3780 = vmatpush.xpose.msra.mxu0 0.0
        %3781 = vmatpush.xpose.msra.mxu0 0.0
        %3782 = vmatpush.xpose.msra.mxu0 0.0
        %3783 = vmatpush.xpose.msra.mxu0 0.0
        %3784 = vmatpush.xpose.msra.mxu0 0.0
        %3785 = vmatpush.xpose.msra.mxu0 0.0
        %3786 = vmatpush.xpose.msra.mxu0 0.0
        %3787 = vmatpush.xpose.msra.mxu0 0.0
        %3788 = vmatpush.xpose.msra.mxu0 0.0
        %3789 = vmatpush.xpose.msra.mxu0 0.0
        %3790 = vmatpush.xpose.msra.mxu0 0.0
        %3791 = vmatpush.xpose.msra.mxu0 0.0
        %3792 = vmatpush.xpose.msra.mxu0 0.0
        %3793 = vmatpush.xpose.msra.mxu0 %v678
        %3794 = vmatpush.xpose.msra.mxu0 %v422
        %3795 = vmatmul.f32.gmra.mxu0 %v1029
        %v3796 = vpop.f32.mrf.mxu0
        %v3797 = vadd.f32 %v3777, %v3796
        %3798 = vdwg.mxu0
        %3799 = vmatpush.xpose.msra.mxu0 0.0
        %3800 = vmatpush.xpose.msra.mxu0 0.0
        %3801 = vmatpush.xpose.msra.mxu0 0.0
        %3802 = vmatpush.xpose.msra.mxu0 0.0
        %3803 = vmatpush.xpose.msra.mxu0 0.0
        %3804 = vmatpush.xpose.msra.mxu0 0.0
        %3805 = vmatpush.xpose.msra.mxu0 0.0
        %3806 = vmatpush.xpose.msra.mxu0 0.0
        %3807 = vmatpush.xpose.msra.mxu0 0.0
        %3808 = vmatpush.xpose.msra.mxu0 0.0
        %3809 = vmatpush.xpose.msra.mxu0 0.0
        %3810 = vmatpush.xpose.msra.mxu0 0.0
        %3811 = vmatpush.xpose.msra.mxu0 0.0
        %3812 = vmatpush.xpose.msra.mxu0 0.0
        %3813 = vmatpush.xpose.msra.mxu0 %v679
        %3814 = vmatpush.xpose.msra.mxu0 %v423
        %3815 = vmatmul.f32.gmra.mxu0 %v1030
        %v3816 = vpop.f32.mrf.mxu0
        %v3817 = vadd.f32 %v3797, %v3816
        %3818 = vdwg.mxu0
        %3819 = vmatpush.xpose.msra.mxu0 0.0
        %3820 = vmatpush.xpose.msra.mxu0 0.0
        %3821 = vmatpush.xpose.msra.mxu0 0.0
        %3822 = vmatpush.xpose.msra.mxu0 0.0
        %3823 = vmatpush.xpose.msra.mxu0 0.0
        %3824 = vmatpush.xpose.msra.mxu0 0.0
        %3825 = vmatpush.xpose.msra.mxu0 0.0
        %3826 = vmatpush.xpose.msra.mxu0 0.0
        %3827 = vmatpush.xpose.msra.mxu0 0.0
        %3828 = vmatpush.xpose.msra.mxu0 0.0
        %3829 = vmatpush.xpose.msra.mxu0 0.0
        %3830 = vmatpush.xpose.msra.mxu0 0.0
        %3831 = vmatpush.xpose.msra.mxu0 0.0
        %3832 = vmatpush.xpose.msra.mxu0 0.0
        %3833 = vmatpush.xpose.msra.mxu0 %v680
        %3834 = vmatpush.xpose.msra.mxu0 %v424
        %3835 = vmatmul.f32.gmra.mxu0 %v1031
        %v3836 = vpop.f32.mrf.mxu0
        %v3837 = vadd.f32 %v3817, %v3836
        %3838 = vdwg.mxu0
        %3839 = vmatpush.xpose.msra.mxu0 0.0
        %3840 = vmatpush.xpose.msra.mxu0 0.0
        %3841 = vmatpush.xpose.msra.mxu0 0.0
        %3842 = vmatpush.xpose.msra.mxu0 0.0
        %3843 = vmatpush.xpose.msra.mxu0 0.0
        %3844 = vmatpush.xpose.msra.mxu0 0.0
        %3845 = vmatpush.xpose.msra.mxu0 0.0
        %3846 = vmatpush.xpose.msra.mxu0 0.0
        %3847 = vmatpush.xpose.msra.mxu0 0.0
        %3848 = vmatpush.xpose.msra.mxu0 0.0
        %3849 = vmatpush.xpose.msra.mxu0 0.0
        %3850 = vmatpush.xpose.msra.mxu0 0.0
        %3851 = vmatpush.xpose.msra.mxu0 0.0
        %3852 = vmatpush.xpose.msra.mxu0 0.0
        %3853 = vmatpush.xpose.msra.mxu0 %v681
        %3854 = vmatpush.xpose.msra.mxu0 %v425
        %3855 = vmatmul.f32.gmra.mxu0 %v1032
        %v3856 = vpop.f32.mrf.mxu0
        %v3857 = vadd.f32 %v3837, %v3856
        %3858 = vdwg.mxu0
        %3859 = vmatpush.xpose.msra.mxu0 0.0
        %3860 = vmatpush.xpose.msra.mxu0 0.0
        %3861 = vmatpush.xpose.msra.mxu0 0.0
        %3862 = vmatpush.xpose.msra.mxu0 0.0
        %3863 = vmatpush.xpose.msra.mxu0 0.0
        %3864 = vmatpush.xpose.msra.mxu0 0.0
        %3865 = vmatpush.xpose.msra.mxu0 0.0
        %3866 = vmatpush.xpose.msra.mxu0 0.0
        %3867 = vmatpush.xpose.msra.mxu0 0.0
        %3868 = vmatpush.xpose.msra.mxu0 0.0
        %3869 = vmatpush.xpose.msra.mxu0 0.0
        %3870 = vmatpush.xpose.msra.mxu0 0.0
        %3871 = vmatpush.xpose.msra.mxu0 0.0
        %3872 = vmatpush.xpose.msra.mxu0 0.0
        %3873 = vmatpush.xpose.msra.mxu0 %v682
        %3874 = vmatpush.xpose.msra.mxu0 %v426
        %3875 = vmatmul.f32.gmra.mxu0 %v1035
        %v3876 = vpop.f32.mrf.mxu0
        %v3877 = vadd.f32 %v3857, %v3876
        %3878 = vdwg.mxu0
        %3879 = vmatpush.xpose.msra.mxu0 0.0
        %3880 = vmatpush.xpose.msra.mxu0 0.0
        %3881 = vmatpush.xpose.msra.mxu0 0.0
        %3882 = vmatpush.xpose.msra.mxu0 0.0
        %3883 = vmatpush.xpose.msra.mxu0 0.0
        %3884 = vmatpush.xpose.msra.mxu0 0.0
        %3885 = vmatpush.xpose.msra.mxu0 0.0
        %3886 = vmatpush.xpose.msra.mxu0 0.0
        %3887 = vmatpush.xpose.msra.mxu0 0.0
        %3888 = vmatpush.xpose.msra.mxu0 0.0
        %3889 = vmatpush.xpose.msra.mxu0 0.0
        %3890 = vmatpush.xpose.msra.mxu0 0.0
        %3891 = vmatpush.xpose.msra.mxu0 0.0
        %3892 = vmatpush.xpose.msra.mxu0 0.0
        %3893 = vmatpush.xpose.msra.mxu0 %v683
        %3894 = vmatpush.xpose.msra.mxu0 %v427
        %3895 = vmatmul.f32.gmra.mxu0 %v1036
        %v3896 = vpop.f32.mrf.mxu0
        %v3897 = vadd.f32 %v3877, %v3896
        %3898 = vdwg.mxu0
        %3899 = vmatpush.xpose.msra.mxu0 0.0
        %3900 = vmatpush.xpose.msra.mxu0 0.0
        %3901 = vmatpush.xpose.msra.mxu0 0.0
        %3902 = vmatpush.xpose.msra.mxu0 0.0
        %3903 = vmatpush.xpose.msra.mxu0 0.0
        %3904 = vmatpush.xpose.msra.mxu0 0.0
        %3905 = vmatpush.xpose.msra.mxu0 0.0
        %3906 = vmatpush.xpose.msra.mxu0 0.0
        %3907 = vmatpush.xpose.msra.mxu0 0.0
        %3908 = vmatpush.xpose.msra.mxu0 0.0
        %3909 = vmatpush.xpose.msra.mxu0 0.0
        %3910 = vmatpush.xpose.msra.mxu0 0.0
        %3911 = vmatpush.xpose.msra.mxu0 0.0
        %3912 = vmatpush.xpose.msra.mxu0 0.0
        %3913 = vmatpush.xpose.msra.mxu0 %v684
        %3914 = vmatpush.xpose.msra.mxu0 %v428
        %3915 = vmatmul.f32.gmra.mxu0 %v1037
        %v3916 = vpop.f32.mrf.mxu0
        %v3917 = vadd.f32 %v3897, %v3916
        %3918 = vdwg.mxu0
        %3919 = vmatpush.xpose.msra.mxu0 0.0
        %3920 = vmatpush.xpose.msra.mxu0 0.0
        %3921 = vmatpush.xpose.msra.mxu0 0.0
        %3922 = vmatpush.xpose.msra.mxu0 0.0
        %3923 = vmatpush.xpose.msra.mxu0 0.0
        %3924 = vmatpush.xpose.msra.mxu0 0.0
        %3925 = vmatpush.xpose.msra.mxu0 0.0
        %3926 = vmatpush.xpose.msra.mxu0 0.0
        %3927 = vmatpush.xpose.msra.mxu0 0.0
        %3928 = vmatpush.xpose.msra.mxu0 0.0
        %3929 = vmatpush.xpose.msra.mxu0 0.0
        %3930 = vmatpush.xpose.msra.mxu0 0.0
        %3931 = vmatpush.xpose.msra.mxu0 0.0
        %3932 = vmatpush.xpose.msra.mxu0 0.0
        %3933 = vmatpush.xpose.msra.mxu0 %v685
        %3934 = vmatpush.xpose.msra.mxu0 %v429
        %3935 = vmatmul.f32.gmra.mxu0 %v1038
        %v3936 = vpop.f32.mrf.mxu0
        %v3937 = vadd.f32 %v3917, %v3936
        %3938 = vdwg.mxu0
        %3939 = vmatpush.xpose.msra.mxu0 0.0
        %3940 = vmatpush.xpose.msra.mxu0 0.0
        %3941 = vmatpush.xpose.msra.mxu0 0.0
        %3942 = vmatpush.xpose.msra.mxu0 0.0
        %3943 = vmatpush.xpose.msra.mxu0 0.0
        %3944 = vmatpush.xpose.msra.mxu0 0.0
        %3945 = vmatpush.xpose.msra.mxu0 0.0
        %3946 = vmatpush.xpose.msra.mxu0 0.0
        %3947 = vmatpush.xpose.msra.mxu0 0.0
        %3948 = vmatpush.xpose.msra.mxu0 0.0
        %3949 = vmatpush.xpose.msra.mxu0 0.0
        %3950 = vmatpush.xpose.msra.mxu0 0.0
        %3951 = vmatpush.xpose.msra.mxu0 0.0
        %3952 = vmatpush.xpose.msra.mxu0 0.0
        %3953 = vmatpush.xpose.msra.mxu0 %v686
        %3954 = vmatpush.xpose.msra.mxu0 %v430
        %3955 = vmatmul.f32.gmra.mxu0 %v1039
        %v3956 = vpop.f32.mrf.mxu0
        %v3957 = vadd.f32 %v3937, %v3956
        %3958 = vdwg.mxu0
        %3959 = vmatpush.xpose.msra.mxu0 0.0
        %3960 = vmatpush.xpose.msra.mxu0 0.0
        %3961 = vmatpush.xpose.msra.mxu0 0.0
        %3962 = vmatpush.xpose.msra.mxu0 0.0
        %3963 = vmatpush.xpose.msra.mxu0 0.0
        %3964 = vmatpush.xpose.msra.mxu0 0.0
        %3965 = vmatpush.xpose.msra.mxu0 0.0
        %3966 = vmatpush.xpose.msra.mxu0 0.0
        %3967 = vmatpush.xpose.msra.mxu0 0.0
        %3968 = vmatpush.xpose.msra.mxu0 0.0
        %3969 = vmatpush.xpose.msra.mxu0 0.0
        %3970 = vmatpush.xpose.msra.mxu0 0.0
        %3971 = vmatpush.xpose.msra.mxu0 0.0
        %3972 = vmatpush.xpose.msra.mxu0 0.0
        %3973 = vmatpush.xpose.msra.mxu0 %v687
        %3974 = vmatpush.xpose.msra.mxu0 %v431
        %3975 = vmatmul.f32.gmra.mxu0 %v1040
        %v3976 = vpop.f32.mrf.mxu0
        %v3977 = vadd.f32 %v3957, %v3976
        %3978 = vdwg.mxu0
        %3979 = vmatpush.xpose.msra.mxu0 0.0
        %3980 = vmatpush.xpose.msra.mxu0 0.0
        %3981 = vmatpush.xpose.msra.mxu0 0.0
        %3982 = vmatpush.xpose.msra.mxu0 0.0
        %3983 = vmatpush.xpose.msra.mxu0 0.0
        %3984 = vmatpush.xpose.msra.mxu0 0.0
        %3985 = vmatpush.xpose.msra.mxu0 0.0
        %3986 = vmatpush.xpose.msra.mxu0 0.0
        %3987 = vmatpush.xpose.msra.mxu0 0.0
        %3988 = vmatpush.xpose.msra.mxu0 0.0
        %3989 = vmatpush.xpose.msra.mxu0 0.0
        %3990 = vmatpush.xpose.msra.mxu0 0.0
        %3991 = vmatpush.xpose.msra.mxu0 0.0
        %3992 = vmatpush.xpose.msra.mxu0 0.0
        %3993 = vmatpush.xpose.msra.mxu0 %v688
        %3994 = vmatpush.xpose.msra.mxu0 %v432
        %3995 = vmatmul.f32.gmra.mxu0 %v1041
        %v3996 = vpop.f32.mrf.mxu0
        %v3997 = vadd.f32 %v3977, %v3996
        %3998 = vdwg.mxu0
        %3999 = vmatpush.xpose.msra.mxu0 0.0
        %4000 = vmatpush.xpose.msra.mxu0 0.0
        %4001 = vmatpush.xpose.msra.mxu0 0.0
        %4002 = vmatpush.xpose.msra.mxu0 0.0
        %4003 = vmatpush.xpose.msra.mxu0 0.0
        %4004 = vmatpush.xpose.msra.mxu0 0.0
        %4005 = vmatpush.xpose.msra.mxu0 0.0
        %4006 = vmatpush.xpose.msra.mxu0 0.0
        %4007 = vmatpush.xpose.msra.mxu0 0.0
        %4008 = vmatpush.xpose.msra.mxu0 0.0
        %4009 = vmatpush.xpose.msra.mxu0 0.0
        %4010 = vmatpush.xpose.msra.mxu0 0.0
        %4011 = vmatpush.xpose.msra.mxu0 0.0
        %4012 = vmatpush.xpose.msra.mxu0 0.0
        %4013 = vmatpush.xpose.msra.mxu0 %v689
        %4014 = vmatpush.xpose.msra.mxu0 %v433
        %4015 = vmatmul.f32.gmra.mxu0 %v1042
        %v4016 = vpop.f32.mrf.mxu0
        %v4017 = vadd.f32 %v3997, %v4016
        %4018 = vdwg.mxu0
        %4019 = vmatpush.xpose.msra.mxu0 0.0
        %4020 = vmatpush.xpose.msra.mxu0 0.0
        %4021 = vmatpush.xpose.msra.mxu0 0.0
        %4022 = vmatpush.xpose.msra.mxu0 0.0
        %4023 = vmatpush.xpose.msra.mxu0 0.0
        %4024 = vmatpush.xpose.msra.mxu0 0.0
        %4025 = vmatpush.xpose.msra.mxu0 0.0
        %4026 = vmatpush.xpose.msra.mxu0 0.0
        %4027 = vmatpush.xpose.msra.mxu0 0.0
        %4028 = vmatpush.xpose.msra.mxu0 0.0
        %4029 = vmatpush.xpose.msra.mxu0 0.0
        %4030 = vmatpush.xpose.msra.mxu0 0.0
        %4031 = vmatpush.xpose.msra.mxu0 0.0
        %4032 = vmatpush.xpose.msra.mxu0 0.0
        %4033 = vmatpush.xpose.msra.mxu0 %v690
        %4034 = vmatpush.xpose.msra.mxu0 %v434
        %4035 = vmatmul.f32.gmra.mxu0 %v1045
        %v4036 = vpop.f32.mrf.mxu0
        %v4037 = vadd.f32 %v4017, %v4036
        %4038 = vdwg.mxu0
        %4039 = vmatpush.xpose.msra.mxu0 0.0
        %4040 = vmatpush.xpose.msra.mxu0 0.0
        %4041 = vmatpush.xpose.msra.mxu0 0.0
        %4042 = vmatpush.xpose.msra.mxu0 0.0
        %4043 = vmatpush.xpose.msra.mxu0 0.0
        %4044 = vmatpush.xpose.msra.mxu0 0.0
        %4045 = vmatpush.xpose.msra.mxu0 0.0
        %4046 = vmatpush.xpose.msra.mxu0 0.0
        %4047 = vmatpush.xpose.msra.mxu0 0.0
        %4048 = vmatpush.xpose.msra.mxu0 0.0
        %4049 = vmatpush.xpose.msra.mxu0 0.0
        %4050 = vmatpush.xpose.msra.mxu0 0.0
        %4051 = vmatpush.xpose.msra.mxu0 0.0
        %4052 = vmatpush.xpose.msra.mxu0 0.0
        %4053 = vmatpush.xpose.msra.mxu0 %v691
        %4054 = vmatpush.xpose.msra.mxu0 %v435
        %4055 = vmatmul.f32.gmra.mxu0 %v1046
        %v4056 = vpop.f32.mrf.mxu0
        %v4057 = vadd.f32 %v4037, %v4056
        %4058 = vdwg.mxu0
        %4059 = vmatpush.xpose.msra.mxu0 0.0
        %4060 = vmatpush.xpose.msra.mxu0 0.0
        %4061 = vmatpush.xpose.msra.mxu0 0.0
        %4062 = vmatpush.xpose.msra.mxu0 0.0
        %4063 = vmatpush.xpose.msra.mxu0 0.0
        %4064 = vmatpush.xpose.msra.mxu0 0.0
        %4065 = vmatpush.xpose.msra.mxu0 0.0
        %4066 = vmatpush.xpose.msra.mxu0 0.0
        %4067 = vmatpush.xpose.msra.mxu0 0.0
        %4068 = vmatpush.xpose.msra.mxu0 0.0
        %4069 = vmatpush.xpose.msra.mxu0 0.0
        %4070 = vmatpush.xpose.msra.mxu0 0.0
        %4071 = vmatpush.xpose.msra.mxu0 0.0
        %4072 = vmatpush.xpose.msra.mxu0 0.0
        %4073 = vmatpush.xpose.msra.mxu0 %v692
        %4074 = vmatpush.xpose.msra.mxu0 %v436
        %4075 = vmatmul.f32.gmra.mxu0 %v1047
        %v4076 = vpop.f32.mrf.mxu0
        %v4077 = vadd.f32 %v4057, %v4076
        %4078 = vdwg.mxu0
        %4079 = vmatpush.xpose.msra.mxu0 0.0
        %4080 = vmatpush.xpose.msra.mxu0 0.0
        %4081 = vmatpush.xpose.msra.mxu0 0.0
        %4082 = vmatpush.xpose.msra.mxu0 0.0
        %4083 = vmatpush.xpose.msra.mxu0 0.0
        %4084 = vmatpush.xpose.msra.mxu0 0.0
        %4085 = vmatpush.xpose.msra.mxu0 0.0
        %4086 = vmatpush.xpose.msra.mxu0 0.0
        %4087 = vmatpush.xpose.msra.mxu0 0.0
        %4088 = vmatpush.xpose.msra.mxu0 0.0
        %4089 = vmatpush.xpose.msra.mxu0 0.0
        %4090 = vmatpush.xpose.msra.mxu0 0.0
        %4091 = vmatpush.xpose.msra.mxu0 0.0
        %4092 = vmatpush.xpose.msra.mxu0 0.0
        %4093 = vmatpush.xpose.msra.mxu0 %v693
        %4094 = vmatpush.xpose.msra.mxu0 %v437
        %4095 = vmatmul.f32.gmra.mxu0 %v1048
        %v4096 = vpop.f32.mrf.mxu0
        %v4097 = vadd.f32 %v4077, %v4096
        %4098 = vdwg.mxu0
        %4099 = vmatpush.xpose.msra.mxu0 0.0
        %4100 = vmatpush.xpose.msra.mxu0 0.0
        %4101 = vmatpush.xpose.msra.mxu0 0.0
        %4102 = vmatpush.xpose.msra.mxu0 0.0
        %4103 = vmatpush.xpose.msra.mxu0 0.0
        %4104 = vmatpush.xpose.msra.mxu0 0.0
        %4105 = vmatpush.xpose.msra.mxu0 0.0
        %4106 = vmatpush.xpose.msra.mxu0 0.0
        %4107 = vmatpush.xpose.msra.mxu0 0.0
        %4108 = vmatpush.xpose.msra.mxu0 0.0
        %4109 = vmatpush.xpose.msra.mxu0 0.0
        %4110 = vmatpush.xpose.msra.mxu0 0.0
        %4111 = vmatpush.xpose.msra.mxu0 0.0
        %4112 = vmatpush.xpose.msra.mxu0 0.0
        %4113 = vmatpush.xpose.msra.mxu0 %v694
        %4114 = vmatpush.xpose.msra.mxu0 %v438
        %4115 = vmatmul.f32.gmra.mxu0 %v1049
        %v4116 = vpop.f32.mrf.mxu0
        %v4117 = vadd.f32 %v4097, %v4116
        %4118 = vdwg.mxu0
        %4119 = vmatpush.xpose.msra.mxu0 0.0
        %4120 = vmatpush.xpose.msra.mxu0 0.0
        %4121 = vmatpush.xpose.msra.mxu0 0.0
        %4122 = vmatpush.xpose.msra.mxu0 0.0
        %4123 = vmatpush.xpose.msra.mxu0 0.0
        %4124 = vmatpush.xpose.msra.mxu0 0.0
        %4125 = vmatpush.xpose.msra.mxu0 0.0
        %4126 = vmatpush.xpose.msra.mxu0 0.0
        %4127 = vmatpush.xpose.msra.mxu0 0.0
        %4128 = vmatpush.xpose.msra.mxu0 0.0
        %4129 = vmatpush.xpose.msra.mxu0 0.0
        %4130 = vmatpush.xpose.msra.mxu0 0.0
        %4131 = vmatpush.xpose.msra.mxu0 0.0
        %4132 = vmatpush.xpose.msra.mxu0 0.0
        %4133 = vmatpush.xpose.msra.mxu0 %v695
        %4134 = vmatpush.xpose.msra.mxu0 %v439
        %4135 = vmatmul.f32.gmra.mxu0 %v1050
        %v4136 = vpop.f32.mrf.mxu0
        %v4137 = vadd.f32 %v4117, %v4136
        %4138 = vdwg.mxu0
        %4139 = vmatpush.xpose.msra.mxu0 0.0
        %4140 = vmatpush.xpose.msra.mxu0 0.0
        %4141 = vmatpush.xpose.msra.mxu0 0.0
        %4142 = vmatpush.xpose.msra.mxu0 0.0
        %4143 = vmatpush.xpose.msra.mxu0 0.0
        %4144 = vmatpush.xpose.msra.mxu0 0.0
        %4145 = vmatpush.xpose.msra.mxu0 0.0
        %4146 = vmatpush.xpose.msra.mxu0 0.0
        %4147 = vmatpush.xpose.msra.mxu0 0.0
        %4148 = vmatpush.xpose.msra.mxu0 0.0
        %4149 = vmatpush.xpose.msra.mxu0 0.0
        %4150 = vmatpush.xpose.msra.mxu0 0.0
        %4151 = vmatpush.xpose.msra.mxu0 0.0
        %4152 = vmatpush.xpose.msra.mxu0 0.0
        %4153 = vmatpush.xpose.msra.mxu0 %v696
        %4154 = vmatpush.xpose.msra.mxu0 %v440
        %4155 = vmatmul.f32.gmra.mxu0 %v1051
        %v4156 = vpop.f32.mrf.mxu0
        %v4157 = vadd.f32 %v4137, %v4156
        %4158 = vdwg.mxu0
        %4159 = vmatpush.xpose.msra.mxu0 0.0
        %4160 = vmatpush.xpose.msra.mxu0 0.0
        %4161 = vmatpush.xpose.msra.mxu0 0.0
        %4162 = vmatpush.xpose.msra.mxu0 0.0
        %4163 = vmatpush.xpose.msra.mxu0 0.0
        %4164 = vmatpush.xpose.msra.mxu0 0.0
        %4165 = vmatpush.xpose.msra.mxu0 0.0
        %4166 = vmatpush.xpose.msra.mxu0 0.0
        %4167 = vmatpush.xpose.msra.mxu0 0.0
        %4168 = vmatpush.xpose.msra.mxu0 0.0
        %4169 = vmatpush.xpose.msra.mxu0 0.0
        %4170 = vmatpush.xpose.msra.mxu0 0.0
        %4171 = vmatpush.xpose.msra.mxu0 0.0
        %4172 = vmatpush.xpose.msra.mxu0 0.0
        %4173 = vmatpush.xpose.msra.mxu0 %v697
        %4174 = vmatpush.xpose.msra.mxu0 %v441
        %4175 = vmatmul.f32.gmra.mxu0 %v1052
        %v4176 = vpop.f32.mrf.mxu0
        %v4177 = vadd.f32 %v4157, %v4176
        %4178 = vdwg.mxu0
        %4179 = vmatpush.xpose.msra.mxu0 0.0
        %4180 = vmatpush.xpose.msra.mxu0 0.0
        %4181 = vmatpush.xpose.msra.mxu0 0.0
        %4182 = vmatpush.xpose.msra.mxu0 0.0
        %4183 = vmatpush.xpose.msra.mxu0 0.0
        %4184 = vmatpush.xpose.msra.mxu0 0.0
        %4185 = vmatpush.xpose.msra.mxu0 0.0
        %4186 = vmatpush.xpose.msra.mxu0 0.0
        %4187 = vmatpush.xpose.msra.mxu0 0.0
        %4188 = vmatpush.xpose.msra.mxu0 0.0
        %4189 = vmatpush.xpose.msra.mxu0 0.0
        %4190 = vmatpush.xpose.msra.mxu0 0.0
        %4191 = vmatpush.xpose.msra.mxu0 0.0
        %4192 = vmatpush.xpose.msra.mxu0 0.0
        %4193 = vmatpush.xpose.msra.mxu0 %v698
        %4194 = vmatpush.xpose.msra.mxu0 %v442
        %4195 = vmatmul.f32.gmra.mxu0 %v1055
        %v4196 = vpop.f32.mrf.mxu0
        %v4197 = vadd.f32 %v4177, %v4196
        %4198 = vdwg.mxu0
        %4199 = vmatpush.xpose.msra.mxu0 0.0
        %4200 = vmatpush.xpose.msra.mxu0 0.0
        %4201 = vmatpush.xpose.msra.mxu0 0.0
        %4202 = vmatpush.xpose.msra.mxu0 0.0
        %4203 = vmatpush.xpose.msra.mxu0 0.0
        %4204 = vmatpush.xpose.msra.mxu0 0.0
        %4205 = vmatpush.xpose.msra.mxu0 0.0
        %4206 = vmatpush.xpose.msra.mxu0 0.0
        %4207 = vmatpush.xpose.msra.mxu0 0.0
        %4208 = vmatpush.xpose.msra.mxu0 0.0
        %4209 = vmatpush.xpose.msra.mxu0 0.0
        %4210 = vmatpush.xpose.msra.mxu0 0.0
        %4211 = vmatpush.xpose.msra.mxu0 0.0
        %4212 = vmatpush.xpose.msra.mxu0 0.0
        %4213 = vmatpush.xpose.msra.mxu0 %v699
        %4214 = vmatpush.xpose.msra.mxu0 %v443
        %4215 = vmatmul.f32.gmra.mxu0 %v1056
        %v4216 = vpop.f32.mrf.mxu0
        %v4217 = vadd.f32 %v4197, %v4216
        %4218 = vdwg.mxu0
        %4219 = vmatpush.xpose.msra.mxu0 0.0
        %4220 = vmatpush.xpose.msra.mxu0 0.0
        %4221 = vmatpush.xpose.msra.mxu0 0.0
        %4222 = vmatpush.xpose.msra.mxu0 0.0
        %4223 = vmatpush.xpose.msra.mxu0 0.0
        %4224 = vmatpush.xpose.msra.mxu0 0.0
        %4225 = vmatpush.xpose.msra.mxu0 0.0
        %4226 = vmatpush.xpose.msra.mxu0 0.0
        %4227 = vmatpush.xpose.msra.mxu0 0.0
        %4228 = vmatpush.xpose.msra.mxu0 0.0
        %4229 = vmatpush.xpose.msra.mxu0 0.0
        %4230 = vmatpush.xpose.msra.mxu0 0.0
        %4231 = vmatpush.xpose.msra.mxu0 0.0
        %4232 = vmatpush.xpose.msra.mxu0 0.0
        %4233 = vmatpush.xpose.msra.mxu0 %v700
        %4234 = vmatpush.xpose.msra.mxu0 %v444
        %4235 = vmatmul.f32.gmra.mxu0 %v1057
        %v4236 = vpop.f32.mrf.mxu0
        %v4237 = vadd.f32 %v4217, %v4236
        %4238 = vdwg.mxu0
        %4239 = vmatpush.xpose.msra.mxu0 0.0
        %4240 = vmatpush.xpose.msra.mxu0 0.0
        %4241 = vmatpush.xpose.msra.mxu0 0.0
        %4242 = vmatpush.xpose.msra.mxu0 0.0
        %4243 = vmatpush.xpose.msra.mxu0 0.0
        %4244 = vmatpush.xpose.msra.mxu0 0.0
        %4245 = vmatpush.xpose.msra.mxu0 0.0
        %4246 = vmatpush.xpose.msra.mxu0 0.0
        %4247 = vmatpush.xpose.msra.mxu0 0.0
        %4248 = vmatpush.xpose.msra.mxu0 0.0
        %4249 = vmatpush.xpose.msra.mxu0 0.0
        %4250 = vmatpush.xpose.msra.mxu0 0.0
        %4251 = vmatpush.xpose.msra.mxu0 0.0
        %4252 = vmatpush.xpose.msra.mxu0 0.0
        %4253 = vmatpush.xpose.msra.mxu0 %v701
        %4254 = vmatpush.xpose.msra.mxu0 %v445
        %4255 = vmatmul.f32.gmra.mxu0 %v1058
        %v4256 = vpop.f32.mrf.mxu0
        %v4257 = vadd.f32 %v4237, %v4256
        %4258 = vdwg.mxu0
        %4259 = vmatpush.xpose.msra.mxu0 0.0
        %4260 = vmatpush.xpose.msra.mxu0 0.0
        %4261 = vmatpush.xpose.msra.mxu0 0.0
        %4262 = vmatpush.xpose.msra.mxu0 0.0
        %4263 = vmatpush.xpose.msra.mxu0 0.0
        %4264 = vmatpush.xpose.msra.mxu0 0.0
        %4265 = vmatpush.xpose.msra.mxu0 0.0
        %4266 = vmatpush.xpose.msra.mxu0 0.0
        %4267 = vmatpush.xpose.msra.mxu0 0.0
        %4268 = vmatpush.xpose.msra.mxu0 0.0
        %4269 = vmatpush.xpose.msra.mxu0 0.0
        %4270 = vmatpush.xpose.msra.mxu0 0.0
        %4271 = vmatpush.xpose.msra.mxu0 0.0
        %4272 = vmatpush.xpose.msra.mxu0 0.0
        %4273 = vmatpush.xpose.msra.mxu0 %v702
        %4274 = vmatpush.xpose.msra.mxu0 %v446
        %4275 = vmatmul.f32.gmra.mxu0 %v1059
        %v4276 = vpop.f32.mrf.mxu0
        %v4277 = vadd.f32 %v4257, %v4276
        %4278 = vdwg.mxu0
        %4279 = vmatpush.xpose.msra.mxu0 0.0
        %4280 = vmatpush.xpose.msra.mxu0 0.0
        %4281 = vmatpush.xpose.msra.mxu0 0.0
        %4282 = vmatpush.xpose.msra.mxu0 0.0
        %4283 = vmatpush.xpose.msra.mxu0 0.0
        %4284 = vmatpush.xpose.msra.mxu0 0.0
        %4285 = vmatpush.xpose.msra.mxu0 0.0
        %4286 = vmatpush.xpose.msra.mxu0 0.0
        %4287 = vmatpush.xpose.msra.mxu0 0.0
        %4288 = vmatpush.xpose.msra.mxu0 0.0
        %4289 = vmatpush.xpose.msra.mxu0 0.0
        %4290 = vmatpush.xpose.msra.mxu0 0.0
        %4291 = vmatpush.xpose.msra.mxu0 0.0
        %4292 = vmatpush.xpose.msra.mxu0 0.0
        %4293 = vmatpush.xpose.msra.mxu0 %v703
        %4294 = vmatpush.xpose.msra.mxu0 %v447
        %4295 = vmatmul.f32.gmra.mxu0 %v1060
        %v4296 = vpop.f32.mrf.mxu0
        %v4297 = vadd.f32 %v4277, %v4296
        %4298 = vdwg.mxu0
        %4299 = vmatpush.xpose.msra.mxu0 0.0
        %4300 = vmatpush.xpose.msra.mxu0 0.0
        %4301 = vmatpush.xpose.msra.mxu0 0.0
        %4302 = vmatpush.xpose.msra.mxu0 0.0
        %4303 = vmatpush.xpose.msra.mxu0 0.0
        %4304 = vmatpush.xpose.msra.mxu0 0.0
        %4305 = vmatpush.xpose.msra.mxu0 0.0
        %4306 = vmatpush.xpose.msra.mxu0 0.0
        %4307 = vmatpush.xpose.msra.mxu0 0.0
        %4308 = vmatpush.xpose.msra.mxu0 0.0
        %4309 = vmatpush.xpose.msra.mxu0 0.0
        %4310 = vmatpush.xpose.msra.mxu0 0.0
        %4311 = vmatpush.xpose.msra.mxu0 0.0
        %4312 = vmatpush.xpose.msra.mxu0 0.0
        %4313 = vmatpush.xpose.msra.mxu0 %v704
        %4314 = vmatpush.xpose.msra.mxu0 %v448
        %4315 = vmatmul.f32.gmra.mxu0 %v1061
        %v4316 = vpop.f32.mrf.mxu0
        %v4317 = vadd.f32 %v4297, %v4316
        %4318 = vdwg.mxu0
        %4319 = vmatpush.xpose.msra.mxu0 0.0
        %4320 = vmatpush.xpose.msra.mxu0 0.0
        %4321 = vmatpush.xpose.msra.mxu0 0.0
        %4322 = vmatpush.xpose.msra.mxu0 0.0
        %4323 = vmatpush.xpose.msra.mxu0 0.0
        %4324 = vmatpush.xpose.msra.mxu0 0.0
        %4325 = vmatpush.xpose.msra.mxu0 0.0
        %4326 = vmatpush.xpose.msra.mxu0 0.0
        %4327 = vmatpush.xpose.msra.mxu0 0.0
        %4328 = vmatpush.xpose.msra.mxu0 0.0
        %4329 = vmatpush.xpose.msra.mxu0 0.0
        %4330 = vmatpush.xpose.msra.mxu0 0.0
        %4331 = vmatpush.xpose.msra.mxu0 0.0
        %4332 = vmatpush.xpose.msra.mxu0 0.0
        %4333 = vmatpush.xpose.msra.mxu0 %v705
        %4334 = vmatpush.xpose.msra.mxu0 %v449
        %4335 = vmatmul.f32.gmra.mxu0 %v1062
        %v4336 = vpop.f32.mrf.mxu0
        %v4337 = vadd.f32 %v4317, %v4336
        %4338 = vdwg.mxu0
        %4339 = vmatpush.xpose.msra.mxu0 0.0
        %4340 = vmatpush.xpose.msra.mxu0 0.0
        %4341 = vmatpush.xpose.msra.mxu0 0.0
        %4342 = vmatpush.xpose.msra.mxu0 0.0
        %4343 = vmatpush.xpose.msra.mxu0 0.0
        %4344 = vmatpush.xpose.msra.mxu0 0.0
        %4345 = vmatpush.xpose.msra.mxu0 0.0
        %4346 = vmatpush.xpose.msra.mxu0 0.0
        %4347 = vmatpush.xpose.msra.mxu0 0.0
        %4348 = vmatpush.xpose.msra.mxu0 0.0
        %4349 = vmatpush.xpose.msra.mxu0 0.0
        %4350 = vmatpush.xpose.msra.mxu0 0.0
        %4351 = vmatpush.xpose.msra.mxu0 0.0
        %4352 = vmatpush.xpose.msra.mxu0 0.0
        %4353 = vmatpush.xpose.msra.mxu0 %v706
        %4354 = vmatpush.xpose.msra.mxu0 %v450
        %4355 = vmatmul.f32.gmra.mxu0 %v1065
        %v4356 = vpop.f32.mrf.mxu0
        %v4357 = vadd.f32 %v4337, %v4356
        %4358 = vdwg.mxu0
        %4359 = vmatpush.xpose.msra.mxu0 0.0
        %4360 = vmatpush.xpose.msra.mxu0 0.0
        %4361 = vmatpush.xpose.msra.mxu0 0.0
        %4362 = vmatpush.xpose.msra.mxu0 0.0
        %4363 = vmatpush.xpose.msra.mxu0 0.0
        %4364 = vmatpush.xpose.msra.mxu0 0.0
        %4365 = vmatpush.xpose.msra.mxu0 0.0
        %4366 = vmatpush.xpose.msra.mxu0 0.0
        %4367 = vmatpush.xpose.msra.mxu0 0.0
        %4368 = vmatpush.xpose.msra.mxu0 0.0
        %4369 = vmatpush.xpose.msra.mxu0 0.0
        %4370 = vmatpush.xpose.msra.mxu0 0.0
        %4371 = vmatpush.xpose.msra.mxu0 0.0
        %4372 = vmatpush.xpose.msra.mxu0 0.0
        %4373 = vmatpush.xpose.msra.mxu0 %v707
        %4374 = vmatpush.xpose.msra.mxu0 %v451
        %4375 = vmatmul.f32.gmra.mxu0 %v1066
        %v4376 = vpop.f32.mrf.mxu0
        %v4377 = vadd.f32 %v4357, %v4376
        %4378 = vdwg.mxu0
        %4379 = vmatpush.xpose.msra.mxu0 0.0
        %4380 = vmatpush.xpose.msra.mxu0 0.0
        %4381 = vmatpush.xpose.msra.mxu0 0.0
        %4382 = vmatpush.xpose.msra.mxu0 0.0
        %4383 = vmatpush.xpose.msra.mxu0 0.0
        %4384 = vmatpush.xpose.msra.mxu0 0.0
        %4385 = vmatpush.xpose.msra.mxu0 0.0
        %4386 = vmatpush.xpose.msra.mxu0 0.0
        %4387 = vmatpush.xpose.msra.mxu0 0.0
        %4388 = vmatpush.xpose.msra.mxu0 0.0
        %4389 = vmatpush.xpose.msra.mxu0 0.0
        %4390 = vmatpush.xpose.msra.mxu0 0.0
        %4391 = vmatpush.xpose.msra.mxu0 0.0
        %4392 = vmatpush.xpose.msra.mxu0 0.0
        %4393 = vmatpush.xpose.msra.mxu0 %v708
        %4394 = vmatpush.xpose.msra.mxu0 %v452
        %4395 = vmatmul.f32.gmra.mxu0 %v1067
        %v4396 = vpop.f32.mrf.mxu0
        %v4397 = vadd.f32 %v4377, %v4396
        %4398 = vdwg.mxu0
        %4399 = vmatpush.xpose.msra.mxu0 0.0
        %4400 = vmatpush.xpose.msra.mxu0 0.0
        %4401 = vmatpush.xpose.msra.mxu0 0.0
        %4402 = vmatpush.xpose.msra.mxu0 0.0
        %4403 = vmatpush.xpose.msra.mxu0 0.0
        %4404 = vmatpush.xpose.msra.mxu0 0.0
        %4405 = vmatpush.xpose.msra.mxu0 0.0
        %4406 = vmatpush.xpose.msra.mxu0 0.0
        %4407 = vmatpush.xpose.msra.mxu0 0.0
        %4408 = vmatpush.xpose.msra.mxu0 0.0
        %4409 = vmatpush.xpose.msra.mxu0 0.0
        %4410 = vmatpush.xpose.msra.mxu0 0.0
        %4411 = vmatpush.xpose.msra.mxu0 0.0
        %4412 = vmatpush.xpose.msra.mxu0 0.0
        %4413 = vmatpush.xpose.msra.mxu0 %v709
        %4414 = vmatpush.xpose.msra.mxu0 %v453
        %4415 = vmatmul.f32.gmra.mxu0 %v1068
        %v4416 = vpop.f32.mrf.mxu0
        %v4417 = vadd.f32 %v4397, %v4416
        %4418 = vdwg.mxu0
        %4419 = vmatpush.xpose.msra.mxu0 0.0
        %4420 = vmatpush.xpose.msra.mxu0 0.0
        %4421 = vmatpush.xpose.msra.mxu0 0.0
        %4422 = vmatpush.xpose.msra.mxu0 0.0
        %4423 = vmatpush.xpose.msra.mxu0 0.0
        %4424 = vmatpush.xpose.msra.mxu0 0.0
        %4425 = vmatpush.xpose.msra.mxu0 0.0
        %4426 = vmatpush.xpose.msra.mxu0 0.0
        %4427 = vmatpush.xpose.msra.mxu0 0.0
        %4428 = vmatpush.xpose.msra.mxu0 0.0
        %4429 = vmatpush.xpose.msra.mxu0 0.0
        %4430 = vmatpush.xpose.msra.mxu0 0.0
        %4431 = vmatpush.xpose.msra.mxu0 0.0
        %4432 = vmatpush.xpose.msra.mxu0 0.0
        %4433 = vmatpush.xpose.msra.mxu0 %v710
        %4434 = vmatpush.xpose.msra.mxu0 %v454
        %4435 = vmatmul.f32.gmra.mxu0 %v1069
        %v4436 = vpop.f32.mrf.mxu0
        %v4437 = vadd.f32 %v4417, %v4436
        %4438 = vdwg.mxu0
        %4439 = vmatpush.xpose.msra.mxu0 0.0
        %4440 = vmatpush.xpose.msra.mxu0 0.0
        %4441 = vmatpush.xpose.msra.mxu0 0.0
        %4442 = vmatpush.xpose.msra.mxu0 0.0
        %4443 = vmatpush.xpose.msra.mxu0 0.0
        %4444 = vmatpush.xpose.msra.mxu0 0.0
        %4445 = vmatpush.xpose.msra.mxu0 0.0
        %4446 = vmatpush.xpose.msra.mxu0 0.0
        %4447 = vmatpush.xpose.msra.mxu0 0.0
        %4448 = vmatpush.xpose.msra.mxu0 0.0
        %4449 = vmatpush.xpose.msra.mxu0 0.0
        %4450 = vmatpush.xpose.msra.mxu0 0.0
        %4451 = vmatpush.xpose.msra.mxu0 0.0
        %4452 = vmatpush.xpose.msra.mxu0 0.0
        %4453 = vmatpush.xpose.msra.mxu0 %v711
        %4454 = vmatpush.xpose.msra.mxu0 %v455
        %4455 = vmatmul.f32.gmra.mxu0 %v1070
        %v4456 = vpop.f32.mrf.mxu0
        %v4457 = vadd.f32 %v4437, %v4456
        %4458 = vdwg.mxu0
        %4459 = vmatpush.xpose.msra.mxu0 0.0
        %4460 = vmatpush.xpose.msra.mxu0 0.0
        %4461 = vmatpush.xpose.msra.mxu0 0.0
        %4462 = vmatpush.xpose.msra.mxu0 0.0
        %4463 = vmatpush.xpose.msra.mxu0 0.0
        %4464 = vmatpush.xpose.msra.mxu0 0.0
        %4465 = vmatpush.xpose.msra.mxu0 0.0
        %4466 = vmatpush.xpose.msra.mxu0 0.0
        %4467 = vmatpush.xpose.msra.mxu0 0.0
        %4468 = vmatpush.xpose.msra.mxu0 0.0
        %4469 = vmatpush.xpose.msra.mxu0 0.0
        %4470 = vmatpush.xpose.msra.mxu0 0.0
        %4471 = vmatpush.xpose.msra.mxu0 0.0
        %4472 = vmatpush.xpose.msra.mxu0 0.0
        %4473 = vmatpush.xpose.msra.mxu0 %v712
        %4474 = vmatpush.xpose.msra.mxu0 %v456
        %4475 = vmatmul.f32.gmra.mxu0 %v1071
        %v4476 = vpop.f32.mrf.mxu0
        %v4477 = vadd.f32 %v4457, %v4476
        %4478 = vdwg.mxu0
        %4479 = vmatpush.xpose.msra.mxu0 0.0
        %4480 = vmatpush.xpose.msra.mxu0 0.0
        %4481 = vmatpush.xpose.msra.mxu0 0.0
        %4482 = vmatpush.xpose.msra.mxu0 0.0
        %4483 = vmatpush.xpose.msra.mxu0 0.0
        %4484 = vmatpush.xpose.msra.mxu0 0.0
        %4485 = vmatpush.xpose.msra.mxu0 0.0
        %4486 = vmatpush.xpose.msra.mxu0 0.0
        %4487 = vmatpush.xpose.msra.mxu0 0.0
        %4488 = vmatpush.xpose.msra.mxu0 0.0
        %4489 = vmatpush.xpose.msra.mxu0 0.0
        %4490 = vmatpush.xpose.msra.mxu0 0.0
        %4491 = vmatpush.xpose.msra.mxu0 0.0
        %4492 = vmatpush.xpose.msra.mxu0 0.0
        %4493 = vmatpush.xpose.msra.mxu0 %v713
        %4494 = vmatpush.xpose.msra.mxu0 %v457
        %4495 = vmatmul.f32.gmra.mxu0 %v1072
        %v4496 = vpop.f32.mrf.mxu0
        %v4497 = vadd.f32 %v4477, %v4496
        %4498 = vdwg.mxu0
        %4499 = vmatpush.xpose.msra.mxu0 0.0
        %4500 = vmatpush.xpose.msra.mxu0 0.0
        %4501 = vmatpush.xpose.msra.mxu0 0.0
        %4502 = vmatpush.xpose.msra.mxu0 0.0
        %4503 = vmatpush.xpose.msra.mxu0 0.0
        %4504 = vmatpush.xpose.msra.mxu0 0.0
        %4505 = vmatpush.xpose.msra.mxu0 0.0
        %4506 = vmatpush.xpose.msra.mxu0 0.0
        %4507 = vmatpush.xpose.msra.mxu0 0.0
        %4508 = vmatpush.xpose.msra.mxu0 0.0
        %4509 = vmatpush.xpose.msra.mxu0 0.0
        %4510 = vmatpush.xpose.msra.mxu0 0.0
        %4511 = vmatpush.xpose.msra.mxu0 0.0
        %4512 = vmatpush.xpose.msra.mxu0 0.0
        %4513 = vmatpush.xpose.msra.mxu0 %v714
        %4514 = vmatpush.xpose.msra.mxu0 %v458
        %4515 = vmatmul.f32.gmra.mxu0 %v1075
        %v4516 = vpop.f32.mrf.mxu0
        %v4517 = vadd.f32 %v4497, %v4516
        %4518 = vdwg.mxu0
        %4519 = vmatpush.xpose.msra.mxu0 0.0
        %4520 = vmatpush.xpose.msra.mxu0 0.0
        %4521 = vmatpush.xpose.msra.mxu0 0.0
        %4522 = vmatpush.xpose.msra.mxu0 0.0
        %4523 = vmatpush.xpose.msra.mxu0 0.0
        %4524 = vmatpush.xpose.msra.mxu0 0.0
        %4525 = vmatpush.xpose.msra.mxu0 0.0
        %4526 = vmatpush.xpose.msra.mxu0 0.0
        %4527 = vmatpush.xpose.msra.mxu0 0.0
        %4528 = vmatpush.xpose.msra.mxu0 0.0
        %4529 = vmatpush.xpose.msra.mxu0 0.0
        %4530 = vmatpush.xpose.msra.mxu0 0.0
        %4531 = vmatpush.xpose.msra.mxu0 0.0
        %4532 = vmatpush.xpose.msra.mxu0 0.0
        %4533 = vmatpush.xpose.msra.mxu0 %v715
        %4534 = vmatpush.xpose.msra.mxu0 %v459
        %4535 = vmatmul.f32.gmra.mxu0 %v1076
        %v4536 = vpop.f32.mrf.mxu0
        %v4537 = vadd.f32 %v4517, %v4536
        %4538 = vdwg.mxu0
        %4539 = vmatpush.xpose.msra.mxu0 0.0
        %4540 = vmatpush.xpose.msra.mxu0 0.0
        %4541 = vmatpush.xpose.msra.mxu0 0.0
        %4542 = vmatpush.xpose.msra.mxu0 0.0
        %4543 = vmatpush.xpose.msra.mxu0 0.0
        %4544 = vmatpush.xpose.msra.mxu0 0.0
        %4545 = vmatpush.xpose.msra.mxu0 0.0
        %4546 = vmatpush.xpose.msra.mxu0 0.0
        %4547 = vmatpush.xpose.msra.mxu0 0.0
        %4548 = vmatpush.xpose.msra.mxu0 0.0
        %4549 = vmatpush.xpose.msra.mxu0 0.0
        %4550 = vmatpush.xpose.msra.mxu0 0.0
        %4551 = vmatpush.xpose.msra.mxu0 0.0
        %4552 = vmatpush.xpose.msra.mxu0 0.0
        %4553 = vmatpush.xpose.msra.mxu0 %v716
        %4554 = vmatpush.xpose.msra.mxu0 %v460
        %4555 = vmatmul.f32.gmra.mxu0 %v1077
        %v4556 = vpop.f32.mrf.mxu0
        %v4557 = vadd.f32 %v4537, %v4556
        %4558 = vdwg.mxu0
        %4559 = vmatpush.xpose.msra.mxu0 0.0
        %4560 = vmatpush.xpose.msra.mxu0 0.0
        %4561 = vmatpush.xpose.msra.mxu0 0.0
        %4562 = vmatpush.xpose.msra.mxu0 0.0
        %4563 = vmatpush.xpose.msra.mxu0 0.0
        %4564 = vmatpush.xpose.msra.mxu0 0.0
        %4565 = vmatpush.xpose.msra.mxu0 0.0
        %4566 = vmatpush.xpose.msra.mxu0 0.0
        %4567 = vmatpush.xpose.msra.mxu0 0.0
        %4568 = vmatpush.xpose.msra.mxu0 0.0
        %4569 = vmatpush.xpose.msra.mxu0 0.0
        %4570 = vmatpush.xpose.msra.mxu0 0.0
        %4571 = vmatpush.xpose.msra.mxu0 0.0
        %4572 = vmatpush.xpose.msra.mxu0 0.0
        %4573 = vmatpush.xpose.msra.mxu0 %v717
        %4574 = vmatpush.xpose.msra.mxu0 %v461
        %4575 = vmatmul.f32.gmra.mxu0 %v1078
        %v4576 = vpop.f32.mrf.mxu0
        %v4577 = vadd.f32 %v4557, %v4576
        %4578 = vdwg.mxu0
        %4579 = vmatpush.xpose.msra.mxu0 0.0
        %4580 = vmatpush.xpose.msra.mxu0 0.0
        %4581 = vmatpush.xpose.msra.mxu0 0.0
        %4582 = vmatpush.xpose.msra.mxu0 0.0
        %4583 = vmatpush.xpose.msra.mxu0 0.0
        %4584 = vmatpush.xpose.msra.mxu0 0.0
        %4585 = vmatpush.xpose.msra.mxu0 0.0
        %4586 = vmatpush.xpose.msra.mxu0 0.0
        %4587 = vmatpush.xpose.msra.mxu0 0.0
        %4588 = vmatpush.xpose.msra.mxu0 0.0
        %4589 = vmatpush.xpose.msra.mxu0 0.0
        %4590 = vmatpush.xpose.msra.mxu0 0.0
        %4591 = vmatpush.xpose.msra.mxu0 0.0
        %4592 = vmatpush.xpose.msra.mxu0 0.0
        %4593 = vmatpush.xpose.msra.mxu0 %v718
        %4594 = vmatpush.xpose.msra.mxu0 %v462
        %4595 = vmatmul.f32.gmra.mxu0 %v1079
        %v4596 = vpop.f32.mrf.mxu0
        %v4597 = vadd.f32 %v4577, %v4596
        %4598 = vdwg.mxu0
        %4599 = vmatpush.xpose.msra.mxu0 0.0
        %4600 = vmatpush.xpose.msra.mxu0 0.0
        %4601 = vmatpush.xpose.msra.mxu0 0.0
        %4602 = vmatpush.xpose.msra.mxu0 0.0
        %4603 = vmatpush.xpose.msra.mxu0 0.0
        %4604 = vmatpush.xpose.msra.mxu0 0.0
        %4605 = vmatpush.xpose.msra.mxu0 0.0
        %4606 = vmatpush.xpose.msra.mxu0 0.0
        %4607 = vmatpush.xpose.msra.mxu0 0.0
        %4608 = vmatpush.xpose.msra.mxu0 0.0
        %4609 = vmatpush.xpose.msra.mxu0 0.0
        %4610 = vmatpush.xpose.msra.mxu0 0.0
        %4611 = vmatpush.xpose.msra.mxu0 0.0
        %4612 = vmatpush.xpose.msra.mxu0 0.0
        %4613 = vmatpush.xpose.msra.mxu0 %v719
        %4614 = vmatpush.xpose.msra.mxu0 %v463
        %4615 = vmatmul.f32.gmra.mxu0 %v1080
        %v4616 = vpop.f32.mrf.mxu0
        %v4617 = vadd.f32 %v4597, %v4616
        %4618 = vdwg.mxu0
        %4619 = vmatpush.xpose.msra.mxu0 0.0
        %4620 = vmatpush.xpose.msra.mxu0 0.0
        %4621 = vmatpush.xpose.msra.mxu0 0.0
        %4622 = vmatpush.xpose.msra.mxu0 0.0
        %4623 = vmatpush.xpose.msra.mxu0 0.0
        %4624 = vmatpush.xpose.msra.mxu0 0.0
        %4625 = vmatpush.xpose.msra.mxu0 0.0
        %4626 = vmatpush.xpose.msra.mxu0 0.0
        %4627 = vmatpush.xpose.msra.mxu0 0.0
        %4628 = vmatpush.xpose.msra.mxu0 0.0
        %4629 = vmatpush.xpose.msra.mxu0 0.0
        %4630 = vmatpush.xpose.msra.mxu0 0.0
        %4631 = vmatpush.xpose.msra.mxu0 0.0
        %4632 = vmatpush.xpose.msra.mxu0 0.0
        %4633 = vmatpush.xpose.msra.mxu0 %v720
        %4634 = vmatpush.xpose.msra.mxu0 %v464
        %4635 = vmatmul.f32.gmra.mxu0 %v1081
        %v4636 = vpop.f32.mrf.mxu0
        %v4637 = vadd.f32 %v4617, %v4636
        %4638 = vdwg.mxu0
        %4639 = vmatpush.xpose.msra.mxu0 0.0
        %4640 = vmatpush.xpose.msra.mxu0 0.0
        %4641 = vmatpush.xpose.msra.mxu0 0.0
        %4642 = vmatpush.xpose.msra.mxu0 0.0
        %4643 = vmatpush.xpose.msra.mxu0 0.0
        %4644 = vmatpush.xpose.msra.mxu0 0.0
        %4645 = vmatpush.xpose.msra.mxu0 0.0
        %4646 = vmatpush.xpose.msra.mxu0 0.0
        %4647 = vmatpush.xpose.msra.mxu0 0.0
        %4648 = vmatpush.xpose.msra.mxu0 0.0
        %4649 = vmatpush.xpose.msra.mxu0 0.0
        %4650 = vmatpush.xpose.msra.mxu0 0.0
        %4651 = vmatpush.xpose.msra.mxu0 0.0
        %4652 = vmatpush.xpose.msra.mxu0 0.0
        %4653 = vmatpush.xpose.msra.mxu0 %v721
        %4654 = vmatpush.xpose.msra.mxu0 %v465
        %4655 = vmatmul.f32.gmra.mxu0 %v1082
        %v4656 = vpop.f32.mrf.mxu0
        %v4657 = vadd.f32 %v4637, %v4656
        %4658 = vdwg.mxu0
        %4659 = vmatpush.xpose.msra.mxu0 0.0
        %4660 = vmatpush.xpose.msra.mxu0 0.0
        %4661 = vmatpush.xpose.msra.mxu0 0.0
        %4662 = vmatpush.xpose.msra.mxu0 0.0
        %4663 = vmatpush.xpose.msra.mxu0 0.0
        %4664 = vmatpush.xpose.msra.mxu0 0.0
        %4665 = vmatpush.xpose.msra.mxu0 0.0
        %4666 = vmatpush.xpose.msra.mxu0 0.0
        %4667 = vmatpush.xpose.msra.mxu0 0.0
        %4668 = vmatpush.xpose.msra.mxu0 0.0
        %4669 = vmatpush.xpose.msra.mxu0 0.0
        %4670 = vmatpush.xpose.msra.mxu0 0.0
        %4671 = vmatpush.xpose.msra.mxu0 0.0
        %4672 = vmatpush.xpose.msra.mxu0 0.0
        %4673 = vmatpush.xpose.msra.mxu0 %v722
        %4674 = vmatpush.xpose.msra.mxu0 %v466
        %4675 = vmatmul.f32.gmra.mxu0 %v1085
        %v4676 = vpop.f32.mrf.mxu0
        %v4677 = vadd.f32 %v4657, %v4676
        %4678 = vdwg.mxu0
        %4679 = vmatpush.xpose.msra.mxu0 0.0
        %4680 = vmatpush.xpose.msra.mxu0 0.0
        %4681 = vmatpush.xpose.msra.mxu0 0.0
        %4682 = vmatpush.xpose.msra.mxu0 0.0
        %4683 = vmatpush.xpose.msra.mxu0 0.0
        %4684 = vmatpush.xpose.msra.mxu0 0.0
        %4685 = vmatpush.xpose.msra.mxu0 0.0
        %4686 = vmatpush.xpose.msra.mxu0 0.0
        %4687 = vmatpush.xpose.msra.mxu0 0.0
        %4688 = vmatpush.xpose.msra.mxu0 0.0
        %4689 = vmatpush.xpose.msra.mxu0 0.0
        %4690 = vmatpush.xpose.msra.mxu0 0.0
        %4691 = vmatpush.xpose.msra.mxu0 0.0
        %4692 = vmatpush.xpose.msra.mxu0 0.0
        %4693 = vmatpush.xpose.msra.mxu0 %v723
        %4694 = vmatpush.xpose.msra.mxu0 %v467
        %4695 = vmatmul.f32.gmra.mxu0 %v1086
        %v4696 = vpop.f32.mrf.mxu0
        %v4697 = vadd.f32 %v4677, %v4696
        %4698 = vdwg.mxu0
        %4699 = vmatpush.xpose.msra.mxu0 0.0
        %4700 = vmatpush.xpose.msra.mxu0 0.0
        %4701 = vmatpush.xpose.msra.mxu0 0.0
        %4702 = vmatpush.xpose.msra.mxu0 0.0
        %4703 = vmatpush.xpose.msra.mxu0 0.0
        %4704 = vmatpush.xpose.msra.mxu0 0.0
        %4705 = vmatpush.xpose.msra.mxu0 0.0
        %4706 = vmatpush.xpose.msra.mxu0 0.0
        %4707 = vmatpush.xpose.msra.mxu0 0.0
        %4708 = vmatpush.xpose.msra.mxu0 0.0
        %4709 = vmatpush.xpose.msra.mxu0 0.0
        %4710 = vmatpush.xpose.msra.mxu0 0.0
        %4711 = vmatpush.xpose.msra.mxu0 0.0
        %4712 = vmatpush.xpose.msra.mxu0 0.0
        %4713 = vmatpush.xpose.msra.mxu0 %v724
        %4714 = vmatpush.xpose.msra.mxu0 %v468
        %4715 = vmatmul.f32.gmra.mxu0 %v1087
        %v4716 = vpop.f32.mrf.mxu0
        %v4717 = vadd.f32 %v4697, %v4716
        %4718 = vdwg.mxu0
        %4719 = vmatpush.xpose.msra.mxu0 0.0
        %4720 = vmatpush.xpose.msra.mxu0 0.0
        %4721 = vmatpush.xpose.msra.mxu0 0.0
        %4722 = vmatpush.xpose.msra.mxu0 0.0
        %4723 = vmatpush.xpose.msra.mxu0 0.0
        %4724 = vmatpush.xpose.msra.mxu0 0.0
        %4725 = vmatpush.xpose.msra.mxu0 0.0
        %4726 = vmatpush.xpose.msra.mxu0 0.0
        %4727 = vmatpush.xpose.msra.mxu0 0.0
        %4728 = vmatpush.xpose.msra.mxu0 0.0
        %4729 = vmatpush.xpose.msra.mxu0 0.0
        %4730 = vmatpush.xpose.msra.mxu0 0.0
        %4731 = vmatpush.xpose.msra.mxu0 0.0
        %4732 = vmatpush.xpose.msra.mxu0 0.0
        %4733 = vmatpush.xpose.msra.mxu0 %v725
        %4734 = vmatpush.xpose.msra.mxu0 %v469
        %4735 = vmatmul.f32.gmra.mxu0 %v1088
        %v4736 = vpop.f32.mrf.mxu0
        %v4737 = vadd.f32 %v4717, %v4736
        %4738 = vdwg.mxu0
        %4739 = vmatpush.xpose.msra.mxu0 0.0
        %4740 = vmatpush.xpose.msra.mxu0 0.0
        %4741 = vmatpush.xpose.msra.mxu0 0.0
        %4742 = vmatpush.xpose.msra.mxu0 0.0
        %4743 = vmatpush.xpose.msra.mxu0 0.0
        %4744 = vmatpush.xpose.msra.mxu0 0.0
        %4745 = vmatpush.xpose.msra.mxu0 0.0
        %4746 = vmatpush.xpose.msra.mxu0 0.0
        %4747 = vmatpush.xpose.msra.mxu0 0.0
        %4748 = vmatpush.xpose.msra.mxu0 0.0
        %4749 = vmatpush.xpose.msra.mxu0 0.0
        %4750 = vmatpush.xpose.msra.mxu0 0.0
        %4751 = vmatpush.xpose.msra.mxu0 0.0
        %4752 = vmatpush.xpose.msra.mxu0 0.0
        %4753 = vmatpush.xpose.msra.mxu0 %v726
        %4754 = vmatpush.xpose.msra.mxu0 %v470
        %4755 = vmatmul.f32.gmra.mxu0 %v1089
        %v4756 = vpop.f32.mrf.mxu0
        %v4757 = vadd.f32 %v4737, %v4756
        %4758 = vdwg.mxu0
        %4759 = vmatpush.xpose.msra.mxu0 0.0
        %4760 = vmatpush.xpose.msra.mxu0 0.0
        %4761 = vmatpush.xpose.msra.mxu0 0.0
        %4762 = vmatpush.xpose.msra.mxu0 0.0
        %4763 = vmatpush.xpose.msra.mxu0 0.0
        %4764 = vmatpush.xpose.msra.mxu0 0.0
        %4765 = vmatpush.xpose.msra.mxu0 0.0
        %4766 = vmatpush.xpose.msra.mxu0 0.0
        %4767 = vmatpush.xpose.msra.mxu0 0.0
        %4768 = vmatpush.xpose.msra.mxu0 0.0
        %4769 = vmatpush.xpose.msra.mxu0 0.0
        %4770 = vmatpush.xpose.msra.mxu0 0.0
        %4771 = vmatpush.xpose.msra.mxu0 0.0
        %4772 = vmatpush.xpose.msra.mxu0 0.0
        %4773 = vmatpush.xpose.msra.mxu0 %v727
        %4774 = vmatpush.xpose.msra.mxu0 %v471
        %4775 = vmatmul.f32.gmra.mxu0 %v1090
        %v4776 = vpop.f32.mrf.mxu0
        %v4777 = vadd.f32 %v4757, %v4776
        %4778 = vdwg.mxu0
        %4779 = vmatpush.xpose.msra.mxu0 0.0
        %4780 = vmatpush.xpose.msra.mxu0 0.0
        %4781 = vmatpush.xpose.msra.mxu0 0.0
        %4782 = vmatpush.xpose.msra.mxu0 0.0
        %4783 = vmatpush.xpose.msra.mxu0 0.0
        %4784 = vmatpush.xpose.msra.mxu0 0.0
        %4785 = vmatpush.xpose.msra.mxu0 0.0
        %4786 = vmatpush.xpose.msra.mxu0 0.0
        %4787 = vmatpush.xpose.msra.mxu0 0.0
        %4788 = vmatpush.xpose.msra.mxu0 0.0
        %4789 = vmatpush.xpose.msra.mxu0 0.0
        %4790 = vmatpush.xpose.msra.mxu0 0.0
        %4791 = vmatpush.xpose.msra.mxu0 0.0
        %4792 = vmatpush.xpose.msra.mxu0 0.0
        %4793 = vmatpush.xpose.msra.mxu0 %v728
        %4794 = vmatpush.xpose.msra.mxu0 %v472
        %4795 = vmatmul.f32.gmra.mxu0 %v1091
        %v4796 = vpop.f32.mrf.mxu0
        %v4797 = vadd.f32 %v4777, %v4796
        %4798 = vdwg.mxu0
        %4799 = vmatpush.xpose.msra.mxu0 0.0
        %4800 = vmatpush.xpose.msra.mxu0 0.0
        %4801 = vmatpush.xpose.msra.mxu0 0.0
        %4802 = vmatpush.xpose.msra.mxu0 0.0
        %4803 = vmatpush.xpose.msra.mxu0 0.0
        %4804 = vmatpush.xpose.msra.mxu0 0.0
        %4805 = vmatpush.xpose.msra.mxu0 0.0
        %4806 = vmatpush.xpose.msra.mxu0 0.0
        %4807 = vmatpush.xpose.msra.mxu0 0.0
        %4808 = vmatpush.xpose.msra.mxu0 0.0
        %4809 = vmatpush.xpose.msra.mxu0 0.0
        %4810 = vmatpush.xpose.msra.mxu0 0.0
        %4811 = vmatpush.xpose.msra.mxu0 0.0
        %4812 = vmatpush.xpose.msra.mxu0 0.0
        %4813 = vmatpush.xpose.msra.mxu0 %v729
        %4814 = vmatpush.xpose.msra.mxu0 %v473
        %4815 = vmatmul.f32.gmra.mxu0 %v1092
        %v4816 = vpop.f32.mrf.mxu0
        %v4817 = vadd.f32 %v4797, %v4816
        %4818 = vdwg.mxu0
        %4819 = vmatpush.xpose.msra.mxu0 0.0
        %4820 = vmatpush.xpose.msra.mxu0 0.0
        %4821 = vmatpush.xpose.msra.mxu0 0.0
        %4822 = vmatpush.xpose.msra.mxu0 0.0
        %4823 = vmatpush.xpose.msra.mxu0 0.0
        %4824 = vmatpush.xpose.msra.mxu0 0.0
        %4825 = vmatpush.xpose.msra.mxu0 0.0
        %4826 = vmatpush.xpose.msra.mxu0 0.0
        %4827 = vmatpush.xpose.msra.mxu0 0.0
        %4828 = vmatpush.xpose.msra.mxu0 0.0
        %4829 = vmatpush.xpose.msra.mxu0 0.0
        %4830 = vmatpush.xpose.msra.mxu0 0.0
        %4831 = vmatpush.xpose.msra.mxu0 0.0
        %4832 = vmatpush.xpose.msra.mxu0 0.0
        %4833 = vmatpush.xpose.msra.mxu0 %v730
        %4834 = vmatpush.xpose.msra.mxu0 %v474
        %4835 = vmatmul.f32.gmra.mxu0 %v1095
        %v4836 = vpop.f32.mrf.mxu0
        %v4837 = vadd.f32 %v4817, %v4836
        %4838 = vdwg.mxu0
        %4839 = vmatpush.xpose.msra.mxu0 0.0
        %4840 = vmatpush.xpose.msra.mxu0 0.0
        %4841 = vmatpush.xpose.msra.mxu0 0.0
        %4842 = vmatpush.xpose.msra.mxu0 0.0
        %4843 = vmatpush.xpose.msra.mxu0 0.0
        %4844 = vmatpush.xpose.msra.mxu0 0.0
        %4845 = vmatpush.xpose.msra.mxu0 0.0
        %4846 = vmatpush.xpose.msra.mxu0 0.0
        %4847 = vmatpush.xpose.msra.mxu0 0.0
        %4848 = vmatpush.xpose.msra.mxu0 0.0
        %4849 = vmatpush.xpose.msra.mxu0 0.0
        %4850 = vmatpush.xpose.msra.mxu0 0.0
        %4851 = vmatpush.xpose.msra.mxu0 0.0
        %4852 = vmatpush.xpose.msra.mxu0 0.0
        %4853 = vmatpush.xpose.msra.mxu0 %v731
        %4854 = vmatpush.xpose.msra.mxu0 %v475
        %4855 = vmatmul.f32.gmra.mxu0 %v1096
        %v4856 = vpop.f32.mrf.mxu0
        %v4857 = vadd.f32 %v4837, %v4856
        %4858 = vdwg.mxu0
        %4859 = vmatpush.xpose.msra.mxu0 0.0
        %4860 = vmatpush.xpose.msra.mxu0 0.0
        %4861 = vmatpush.xpose.msra.mxu0 0.0
        %4862 = vmatpush.xpose.msra.mxu0 0.0
        %4863 = vmatpush.xpose.msra.mxu0 0.0
        %4864 = vmatpush.xpose.msra.mxu0 0.0
        %4865 = vmatpush.xpose.msra.mxu0 0.0
        %4866 = vmatpush.xpose.msra.mxu0 0.0
        %4867 = vmatpush.xpose.msra.mxu0 0.0
        %4868 = vmatpush.xpose.msra.mxu0 0.0
        %4869 = vmatpush.xpose.msra.mxu0 0.0
        %4870 = vmatpush.xpose.msra.mxu0 0.0
        %4871 = vmatpush.xpose.msra.mxu0 0.0
        %4872 = vmatpush.xpose.msra.mxu0 0.0
        %4873 = vmatpush.xpose.msra.mxu0 %v732
        %4874 = vmatpush.xpose.msra.mxu0 %v476
        %4875 = vmatmul.f32.gmra.mxu0 %v1097
        %v4876 = vpop.f32.mrf.mxu0
        %v4877 = vadd.f32 %v4857, %v4876
        %4878 = vdwg.mxu0
        %4879 = vmatpush.xpose.msra.mxu0 0.0
        %4880 = vmatpush.xpose.msra.mxu0 0.0
        %4881 = vmatpush.xpose.msra.mxu0 0.0
        %4882 = vmatpush.xpose.msra.mxu0 0.0
        %4883 = vmatpush.xpose.msra.mxu0 0.0
        %4884 = vmatpush.xpose.msra.mxu0 0.0
        %4885 = vmatpush.xpose.msra.mxu0 0.0
        %4886 = vmatpush.xpose.msra.mxu0 0.0
        %4887 = vmatpush.xpose.msra.mxu0 0.0
        %4888 = vmatpush.xpose.msra.mxu0 0.0
        %4889 = vmatpush.xpose.msra.mxu0 0.0
        %4890 = vmatpush.xpose.msra.mxu0 0.0
        %4891 = vmatpush.xpose.msra.mxu0 0.0
        %4892 = vmatpush.xpose.msra.mxu0 0.0
        %4893 = vmatpush.xpose.msra.mxu0 %v733
        %4894 = vmatpush.xpose.msra.mxu0 %v477
        %4895 = vmatmul.f32.gmra.mxu0 %v1098
        %v4896 = vpop.f32.mrf.mxu0
        %v4897 = vadd.f32 %v4877, %v4896
        %4898 = vdwg.mxu0
        %4899 = vmatpush.xpose.msra.mxu0 0.0
        %4900 = vmatpush.xpose.msra.mxu0 0.0
        %4901 = vmatpush.xpose.msra.mxu0 0.0
        %4902 = vmatpush.xpose.msra.mxu0 0.0
        %4903 = vmatpush.xpose.msra.mxu0 0.0
        %4904 = vmatpush.xpose.msra.mxu0 0.0
        %4905 = vmatpush.xpose.msra.mxu0 0.0
        %4906 = vmatpush.xpose.msra.mxu0 0.0
        %4907 = vmatpush.xpose.msra.mxu0 0.0
        %4908 = vmatpush.xpose.msra.mxu0 0.0
        %4909 = vmatpush.xpose.msra.mxu0 0.0
        %4910 = vmatpush.xpose.msra.mxu0 0.0
        %4911 = vmatpush.xpose.msra.mxu0 0.0
        %4912 = vmatpush.xpose.msra.mxu0 0.0
        %4913 = vmatpush.xpose.msra.mxu0 %v734
        %4914 = vmatpush.xpose.msra.mxu0 %v478
        %4915 = vmatmul.f32.gmra.mxu0 %v1099
        %v4916 = vpop.f32.mrf.mxu0
        %v4917 = vadd.f32 %v4897, %v4916
        %4918 = vdwg.mxu0
        %4919 = vmatpush.xpose.msra.mxu0 0.0
        %4920 = vmatpush.xpose.msra.mxu0 0.0
        %4921 = vmatpush.xpose.msra.mxu0 0.0
        %4922 = vmatpush.xpose.msra.mxu0 0.0
        %4923 = vmatpush.xpose.msra.mxu0 0.0
        %4924 = vmatpush.xpose.msra.mxu0 0.0
        %4925 = vmatpush.xpose.msra.mxu0 0.0
        %4926 = vmatpush.xpose.msra.mxu0 0.0
        %4927 = vmatpush.xpose.msra.mxu0 0.0
        %4928 = vmatpush.xpose.msra.mxu0 0.0
        %4929 = vmatpush.xpose.msra.mxu0 0.0
        %4930 = vmatpush.xpose.msra.mxu0 0.0
        %4931 = vmatpush.xpose.msra.mxu0 0.0
        %4932 = vmatpush.xpose.msra.mxu0 0.0
        %4933 = vmatpush.xpose.msra.mxu0 %v735
        %4934 = vmatpush.xpose.msra.mxu0 %v479
        %4935 = vmatmul.f32.gmra.mxu0 %v1100
        %v4936 = vpop.f32.mrf.mxu0
        %v4937 = vadd.f32 %v4917, %v4936
        %4938 = vdwg.mxu0
        %4939 = vmatpush.xpose.msra.mxu0 0.0
        %4940 = vmatpush.xpose.msra.mxu0 0.0
        %4941 = vmatpush.xpose.msra.mxu0 0.0
        %4942 = vmatpush.xpose.msra.mxu0 0.0
        %4943 = vmatpush.xpose.msra.mxu0 0.0
        %4944 = vmatpush.xpose.msra.mxu0 0.0
        %4945 = vmatpush.xpose.msra.mxu0 0.0
        %4946 = vmatpush.xpose.msra.mxu0 0.0
        %4947 = vmatpush.xpose.msra.mxu0 0.0
        %4948 = vmatpush.xpose.msra.mxu0 0.0
        %4949 = vmatpush.xpose.msra.mxu0 0.0
        %4950 = vmatpush.xpose.msra.mxu0 0.0
        %4951 = vmatpush.xpose.msra.mxu0 0.0
        %4952 = vmatpush.xpose.msra.mxu0 0.0
        %4953 = vmatpush.xpose.msra.mxu0 %v736
        %4954 = vmatpush.xpose.msra.mxu0 %v480
        %4955 = vmatmul.f32.gmra.mxu0 %v1101
        %v4956 = vpop.f32.mrf.mxu0
        %v4957 = vadd.f32 %v4937, %v4956
        %4958 = vdwg.mxu0
        %4959 = vmatpush.xpose.msra.mxu0 0.0
        %4960 = vmatpush.xpose.msra.mxu0 0.0
        %4961 = vmatpush.xpose.msra.mxu0 0.0
        %4962 = vmatpush.xpose.msra.mxu0 0.0
        %4963 = vmatpush.xpose.msra.mxu0 0.0
        %4964 = vmatpush.xpose.msra.mxu0 0.0
        %4965 = vmatpush.xpose.msra.mxu0 0.0
        %4966 = vmatpush.xpose.msra.mxu0 0.0
        %4967 = vmatpush.xpose.msra.mxu0 0.0
        %4968 = vmatpush.xpose.msra.mxu0 0.0
        %4969 = vmatpush.xpose.msra.mxu0 0.0
        %4970 = vmatpush.xpose.msra.mxu0 0.0
        %4971 = vmatpush.xpose.msra.mxu0 0.0
        %4972 = vmatpush.xpose.msra.mxu0 0.0
        %4973 = vmatpush.xpose.msra.mxu0 %v737
        %4974 = vmatpush.xpose.msra.mxu0 %v481
        %4975 = vmatmul.f32.gmra.mxu0 %v1102
        %v4976 = vpop.f32.mrf.mxu0
        %v4977 = vadd.f32 %v4957, %v4976
        %4978 = vdwg.mxu0
        %4979 = vmatpush.xpose.msra.mxu0 0.0
        %4980 = vmatpush.xpose.msra.mxu0 0.0
        %4981 = vmatpush.xpose.msra.mxu0 0.0
        %4982 = vmatpush.xpose.msra.mxu0 0.0
        %4983 = vmatpush.xpose.msra.mxu0 0.0
        %4984 = vmatpush.xpose.msra.mxu0 0.0
        %4985 = vmatpush.xpose.msra.mxu0 0.0
        %4986 = vmatpush.xpose.msra.mxu0 0.0
        %4987 = vmatpush.xpose.msra.mxu0 0.0
        %4988 = vmatpush.xpose.msra.mxu0 0.0
        %4989 = vmatpush.xpose.msra.mxu0 0.0
        %4990 = vmatpush.xpose.msra.mxu0 0.0
        %4991 = vmatpush.xpose.msra.mxu0 0.0
        %4992 = vmatpush.xpose.msra.mxu0 0.0
        %4993 = vmatpush.xpose.msra.mxu0 %v738
        %4994 = vmatpush.xpose.msra.mxu0 %v482
        %4995 = vmatmul.f32.gmra.mxu0 %v1105
        %v4996 = vpop.f32.mrf.mxu0
        %v4997 = vadd.f32 %v4977, %v4996
        %4998 = vdwg.mxu0
        %4999 = vmatpush.xpose.msra.mxu0 0.0
        %5000 = vmatpush.xpose.msra.mxu0 0.0
        %5001 = vmatpush.xpose.msra.mxu0 0.0
        %5002 = vmatpush.xpose.msra.mxu0 0.0
        %5003 = vmatpush.xpose.msra.mxu0 0.0
        %5004 = vmatpush.xpose.msra.mxu0 0.0
        %5005 = vmatpush.xpose.msra.mxu0 0.0
        %5006 = vmatpush.xpose.msra.mxu0 0.0
        %5007 = vmatpush.xpose.msra.mxu0 0.0
        %5008 = vmatpush.xpose.msra.mxu0 0.0
        %5009 = vmatpush.xpose.msra.mxu0 0.0
        %5010 = vmatpush.xpose.msra.mxu0 0.0
        %5011 = vmatpush.xpose.msra.mxu0 0.0
        %5012 = vmatpush.xpose.msra.mxu0 0.0
        %5013 = vmatpush.xpose.msra.mxu0 %v739
        %5014 = vmatpush.xpose.msra.mxu0 %v483
        %5015 = vmatmul.f32.gmra.mxu0 %v1106
        %v5016 = vpop.f32.mrf.mxu0
        %v5017 = vadd.f32 %v4997, %v5016
        %5018 = vdwg.mxu0
        %5019 = vmatpush.xpose.msra.mxu0 0.0
        %5020 = vmatpush.xpose.msra.mxu0 0.0
        %5021 = vmatpush.xpose.msra.mxu0 0.0
        %5022 = vmatpush.xpose.msra.mxu0 0.0
        %5023 = vmatpush.xpose.msra.mxu0 0.0
        %5024 = vmatpush.xpose.msra.mxu0 0.0
        %5025 = vmatpush.xpose.msra.mxu0 0.0
        %5026 = vmatpush.xpose.msra.mxu0 0.0
        %5027 = vmatpush.xpose.msra.mxu0 0.0
        %5028 = vmatpush.xpose.msra.mxu0 0.0
        %5029 = vmatpush.xpose.msra.mxu0 0.0
        %5030 = vmatpush.xpose.msra.mxu0 0.0
        %5031 = vmatpush.xpose.msra.mxu0 0.0
        %5032 = vmatpush.xpose.msra.mxu0 0.0
        %5033 = vmatpush.xpose.msra.mxu0 %v740
        %5034 = vmatpush.xpose.msra.mxu0 %v484
        %5035 = vmatmul.f32.gmra.mxu0 %v1107
        %v5036 = vpop.f32.mrf.mxu0
        %v5037 = vadd.f32 %v5017, %v5036
        %5038 = vdwg.mxu0
        %5039 = vmatpush.xpose.msra.mxu0 0.0
        %5040 = vmatpush.xpose.msra.mxu0 0.0
        %5041 = vmatpush.xpose.msra.mxu0 0.0
        %5042 = vmatpush.xpose.msra.mxu0 0.0
        %5043 = vmatpush.xpose.msra.mxu0 0.0
        %5044 = vmatpush.xpose.msra.mxu0 0.0
        %5045 = vmatpush.xpose.msra.mxu0 0.0
        %5046 = vmatpush.xpose.msra.mxu0 0.0
        %5047 = vmatpush.xpose.msra.mxu0 0.0
        %5048 = vmatpush.xpose.msra.mxu0 0.0
        %5049 = vmatpush.xpose.msra.mxu0 0.0
        %5050 = vmatpush.xpose.msra.mxu0 0.0
        %5051 = vmatpush.xpose.msra.mxu0 0.0
        %5052 = vmatpush.xpose.msra.mxu0 0.0
        %5053 = vmatpush.xpose.msra.mxu0 %v741
        %5054 = vmatpush.xpose.msra.mxu0 %v485
        %5055 = vmatmul.f32.gmra.mxu0 %v1108
        %v5056 = vpop.f32.mrf.mxu0
        %v5057 = vadd.f32 %v5037, %v5056
        %5058 = vdwg.mxu0
        %5059 = vmatpush.xpose.msra.mxu0 0.0
        %5060 = vmatpush.xpose.msra.mxu0 0.0
        %5061 = vmatpush.xpose.msra.mxu0 0.0
        %5062 = vmatpush.xpose.msra.mxu0 0.0
        %5063 = vmatpush.xpose.msra.mxu0 0.0
        %5064 = vmatpush.xpose.msra.mxu0 0.0
        %5065 = vmatpush.xpose.msra.mxu0 0.0
        %5066 = vmatpush.xpose.msra.mxu0 0.0
        %5067 = vmatpush.xpose.msra.mxu0 0.0
        %5068 = vmatpush.xpose.msra.mxu0 0.0
        %5069 = vmatpush.xpose.msra.mxu0 0.0
        %5070 = vmatpush.xpose.msra.mxu0 0.0
        %5071 = vmatpush.xpose.msra.mxu0 0.0
        %5072 = vmatpush.xpose.msra.mxu0 0.0
        %5073 = vmatpush.xpose.msra.mxu0 %v742
        %5074 = vmatpush.xpose.msra.mxu0 %v486
        %5075 = vmatmul.f32.gmra.mxu0 %v1109
        %v5076 = vpop.f32.mrf.mxu0
        %v5077 = vadd.f32 %v5057, %v5076
        %5078 = vdwg.mxu0
        %5079 = vmatpush.xpose.msra.mxu0 0.0
        %5080 = vmatpush.xpose.msra.mxu0 0.0
        %5081 = vmatpush.xpose.msra.mxu0 0.0
        %5082 = vmatpush.xpose.msra.mxu0 0.0
        %5083 = vmatpush.xpose.msra.mxu0 0.0
        %5084 = vmatpush.xpose.msra.mxu0 0.0
        %5085 = vmatpush.xpose.msra.mxu0 0.0
        %5086 = vmatpush.xpose.msra.mxu0 0.0
        %5087 = vmatpush.xpose.msra.mxu0 0.0
        %5088 = vmatpush.xpose.msra.mxu0 0.0
        %5089 = vmatpush.xpose.msra.mxu0 0.0
        %5090 = vmatpush.xpose.msra.mxu0 0.0
        %5091 = vmatpush.xpose.msra.mxu0 0.0
        %5092 = vmatpush.xpose.msra.mxu0 0.0
        %5093 = vmatpush.xpose.msra.mxu0 %v743
        %5094 = vmatpush.xpose.msra.mxu0 %v487
        %5095 = vmatmul.f32.gmra.mxu0 %v1110
        %v5096 = vpop.f32.mrf.mxu0
        %v5097 = vadd.f32 %v5077, %v5096
        %5098 = vdwg.mxu0
        %5099 = vmatpush.xpose.msra.mxu0 0.0
        %5100 = vmatpush.xpose.msra.mxu0 0.0
        %5101 = vmatpush.xpose.msra.mxu0 0.0
        %5102 = vmatpush.xpose.msra.mxu0 0.0
        %5103 = vmatpush.xpose.msra.mxu0 0.0
        %5104 = vmatpush.xpose.msra.mxu0 0.0
        %5105 = vmatpush.xpose.msra.mxu0 0.0
        %5106 = vmatpush.xpose.msra.mxu0 0.0
        %5107 = vmatpush.xpose.msra.mxu0 0.0
        %5108 = vmatpush.xpose.msra.mxu0 0.0
        %5109 = vmatpush.xpose.msra.mxu0 0.0
        %5110 = vmatpush.xpose.msra.mxu0 0.0
        %5111 = vmatpush.xpose.msra.mxu0 0.0
        %5112 = vmatpush.xpose.msra.mxu0 0.0
        %5113 = vmatpush.xpose.msra.mxu0 %v744
        %5114 = vmatpush.xpose.msra.mxu0 %v488
        %5115 = vmatmul.f32.gmra.mxu0 %v1111
        %v5116 = vpop.f32.mrf.mxu0
        %v5117 = vadd.f32 %v5097, %v5116
        %5118 = vdwg.mxu0
        %5119 = vmatpush.xpose.msra.mxu0 0.0
        %5120 = vmatpush.xpose.msra.mxu0 0.0
        %5121 = vmatpush.xpose.msra.mxu0 0.0
        %5122 = vmatpush.xpose.msra.mxu0 0.0
        %5123 = vmatpush.xpose.msra.mxu0 0.0
        %5124 = vmatpush.xpose.msra.mxu0 0.0
        %5125 = vmatpush.xpose.msra.mxu0 0.0
        %5126 = vmatpush.xpose.msra.mxu0 0.0
        %5127 = vmatpush.xpose.msra.mxu0 0.0
        %5128 = vmatpush.xpose.msra.mxu0 0.0
        %5129 = vmatpush.xpose.msra.mxu0 0.0
        %5130 = vmatpush.xpose.msra.mxu0 0.0
        %5131 = vmatpush.xpose.msra.mxu0 0.0
        %5132 = vmatpush.xpose.msra.mxu0 0.0
        %5133 = vmatpush.xpose.msra.mxu0 %v745
        %5134 = vmatpush.xpose.msra.mxu0 %v489
        %5135 = vmatmul.f32.gmra.mxu0 %v1112
        %v5136 = vpop.f32.mrf.mxu0
        %v5137 = vadd.f32 %v5117, %v5136
        %5138 = vdwg.mxu0
        %5139 = vmatpush.xpose.msra.mxu0 0.0
        %5140 = vmatpush.xpose.msra.mxu0 0.0
        %5141 = vmatpush.xpose.msra.mxu0 0.0
        %5142 = vmatpush.xpose.msra.mxu0 0.0
        %5143 = vmatpush.xpose.msra.mxu0 0.0
        %5144 = vmatpush.xpose.msra.mxu0 0.0
        %5145 = vmatpush.xpose.msra.mxu0 0.0
        %5146 = vmatpush.xpose.msra.mxu0 0.0
        %5147 = vmatpush.xpose.msra.mxu0 0.0
        %5148 = vmatpush.xpose.msra.mxu0 0.0
        %5149 = vmatpush.xpose.msra.mxu0 0.0
        %5150 = vmatpush.xpose.msra.mxu0 0.0
        %5151 = vmatpush.xpose.msra.mxu0 0.0
        %5152 = vmatpush.xpose.msra.mxu0 0.0
        %5153 = vmatpush.xpose.msra.mxu0 %v746
        %5154 = vmatpush.xpose.msra.mxu0 %v490
        %5155 = vmatmul.f32.gmra.mxu0 %v1115
        %v5156 = vpop.f32.mrf.mxu0
        %v5157 = vadd.f32 %v5137, %v5156
        %5158 = vdwg.mxu0
        %5159 = vmatpush.xpose.msra.mxu0 0.0
        %5160 = vmatpush.xpose.msra.mxu0 0.0
        %5161 = vmatpush.xpose.msra.mxu0 0.0
        %5162 = vmatpush.xpose.msra.mxu0 0.0
        %5163 = vmatpush.xpose.msra.mxu0 0.0
        %5164 = vmatpush.xpose.msra.mxu0 0.0
        %5165 = vmatpush.xpose.msra.mxu0 0.0
        %5166 = vmatpush.xpose.msra.mxu0 0.0
        %5167 = vmatpush.xpose.msra.mxu0 0.0
        %5168 = vmatpush.xpose.msra.mxu0 0.0
        %5169 = vmatpush.xpose.msra.mxu0 0.0
        %5170 = vmatpush.xpose.msra.mxu0 0.0
        %5171 = vmatpush.xpose.msra.mxu0 0.0
        %5172 = vmatpush.xpose.msra.mxu0 0.0
        %5173 = vmatpush.xpose.msra.mxu0 %v747
        %5174 = vmatpush.xpose.msra.mxu0 %v491
        %5175 = vmatmul.f32.gmra.mxu0 %v1116
        %v5176 = vpop.f32.mrf.mxu0
        %v5177 = vadd.f32 %v5157, %v5176
        %5178 = vdwg.mxu0
        %5179 = vmatpush.xpose.msra.mxu0 0.0
        %5180 = vmatpush.xpose.msra.mxu0 0.0
        %5181 = vmatpush.xpose.msra.mxu0 0.0
        %5182 = vmatpush.xpose.msra.mxu0 0.0
        %5183 = vmatpush.xpose.msra.mxu0 0.0
        %5184 = vmatpush.xpose.msra.mxu0 0.0
        %5185 = vmatpush.xpose.msra.mxu0 0.0
        %5186 = vmatpush.xpose.msra.mxu0 0.0
        %5187 = vmatpush.xpose.msra.mxu0 0.0
        %5188 = vmatpush.xpose.msra.mxu0 0.0
        %5189 = vmatpush.xpose.msra.mxu0 0.0
        %5190 = vmatpush.xpose.msra.mxu0 0.0
        %5191 = vmatpush.xpose.msra.mxu0 0.0
        %5192 = vmatpush.xpose.msra.mxu0 0.0
        %5193 = vmatpush.xpose.msra.mxu0 %v748
        %5194 = vmatpush.xpose.msra.mxu0 %v492
        %5195 = vmatmul.f32.gmra.mxu0 %v1117
        %v5196 = vpop.f32.mrf.mxu0
        %v5197 = vadd.f32 %v5177, %v5196
        %5198 = vdwg.mxu0
        %5199 = vmatpush.xpose.msra.mxu0 0.0
        %5200 = vmatpush.xpose.msra.mxu0 0.0
        %5201 = vmatpush.xpose.msra.mxu0 0.0
        %5202 = vmatpush.xpose.msra.mxu0 0.0
        %5203 = vmatpush.xpose.msra.mxu0 0.0
        %5204 = vmatpush.xpose.msra.mxu0 0.0
        %5205 = vmatpush.xpose.msra.mxu0 0.0
        %5206 = vmatpush.xpose.msra.mxu0 0.0
        %5207 = vmatpush.xpose.msra.mxu0 0.0
        %5208 = vmatpush.xpose.msra.mxu0 0.0
        %5209 = vmatpush.xpose.msra.mxu0 0.0
        %5210 = vmatpush.xpose.msra.mxu0 0.0
        %5211 = vmatpush.xpose.msra.mxu0 0.0
        %5212 = vmatpush.xpose.msra.mxu0 0.0
        %5213 = vmatpush.xpose.msra.mxu0 %v749
        %5214 = vmatpush.xpose.msra.mxu0 %v493
        %5215 = vmatmul.f32.gmra.mxu0 %v1118
        %v5216 = vpop.f32.mrf.mxu0
        %v5217 = vadd.f32 %v5197, %v5216
        %5218 = vdwg.mxu0
        %5219 = vmatpush.xpose.msra.mxu0 0.0
        %5220 = vmatpush.xpose.msra.mxu0 0.0
        %5221 = vmatpush.xpose.msra.mxu0 0.0
        %5222 = vmatpush.xpose.msra.mxu0 0.0
        %5223 = vmatpush.xpose.msra.mxu0 0.0
        %5224 = vmatpush.xpose.msra.mxu0 0.0
        %5225 = vmatpush.xpose.msra.mxu0 0.0
        %5226 = vmatpush.xpose.msra.mxu0 0.0
        %5227 = vmatpush.xpose.msra.mxu0 0.0
        %5228 = vmatpush.xpose.msra.mxu0 0.0
        %5229 = vmatpush.xpose.msra.mxu0 0.0
        %5230 = vmatpush.xpose.msra.mxu0 0.0
        %5231 = vmatpush.xpose.msra.mxu0 0.0
        %5232 = vmatpush.xpose.msra.mxu0 0.0
        %5233 = vmatpush.xpose.msra.mxu0 %v750
        %5234 = vmatpush.xpose.msra.mxu0 %v494
        %5235 = vmatmul.f32.gmra.mxu0 %v1119
        %v5236 = vpop.f32.mrf.mxu0
        %v5237 = vadd.f32 %v5217, %v5236
        %5238 = vdwg.mxu0
        %5239 = vmatpush.xpose.msra.mxu0 0.0
        %5240 = vmatpush.xpose.msra.mxu0 0.0
        %5241 = vmatpush.xpose.msra.mxu0 0.0
        %5242 = vmatpush.xpose.msra.mxu0 0.0
        %5243 = vmatpush.xpose.msra.mxu0 0.0
        %5244 = vmatpush.xpose.msra.mxu0 0.0
        %5245 = vmatpush.xpose.msra.mxu0 0.0
        %5246 = vmatpush.xpose.msra.mxu0 0.0
        %5247 = vmatpush.xpose.msra.mxu0 0.0
        %5248 = vmatpush.xpose.msra.mxu0 0.0
        %5249 = vmatpush.xpose.msra.mxu0 0.0
        %5250 = vmatpush.xpose.msra.mxu0 0.0
        %5251 = vmatpush.xpose.msra.mxu0 0.0
        %5252 = vmatpush.xpose.msra.mxu0 0.0
        %5253 = vmatpush.xpose.msra.mxu0 %v751
        %5254 = vmatpush.xpose.msra.mxu0 %v495
        %5255 = vmatmul.f32.gmra.mxu0 %v1120
        %v5256 = vpop.f32.mrf.mxu0
        %v5257 = vadd.f32 %v5237, %v5256
        %5258 = vdwg.mxu0
        %5259 = vmatpush.xpose.msra.mxu0 0.0
        %5260 = vmatpush.xpose.msra.mxu0 0.0
        %5261 = vmatpush.xpose.msra.mxu0 0.0
        %5262 = vmatpush.xpose.msra.mxu0 0.0
        %5263 = vmatpush.xpose.msra.mxu0 0.0
        %5264 = vmatpush.xpose.msra.mxu0 0.0
        %5265 = vmatpush.xpose.msra.mxu0 0.0
        %5266 = vmatpush.xpose.msra.mxu0 0.0
        %5267 = vmatpush.xpose.msra.mxu0 0.0
        %5268 = vmatpush.xpose.msra.mxu0 0.0
        %5269 = vmatpush.xpose.msra.mxu0 0.0
        %5270 = vmatpush.xpose.msra.mxu0 0.0
        %5271 = vmatpush.xpose.msra.mxu0 0.0
        %5272 = vmatpush.xpose.msra.mxu0 0.0
        %5273 = vmatpush.xpose.msra.mxu0 %v752
        %5274 = vmatpush.xpose.msra.mxu0 %v496
        %5275 = vmatmul.f32.gmra.mxu0 %v1121
        %v5276 = vpop.f32.mrf.mxu0
        %v5277 = vadd.f32 %v5257, %v5276
        %5278 = vdwg.mxu0
        %5279 = vmatpush.xpose.msra.mxu0 0.0
        %5280 = vmatpush.xpose.msra.mxu0 0.0
        %5281 = vmatpush.xpose.msra.mxu0 0.0
        %5282 = vmatpush.xpose.msra.mxu0 0.0
        %5283 = vmatpush.xpose.msra.mxu0 0.0
        %5284 = vmatpush.xpose.msra.mxu0 0.0
        %5285 = vmatpush.xpose.msra.mxu0 0.0
        %5286 = vmatpush.xpose.msra.mxu0 0.0
        %5287 = vmatpush.xpose.msra.mxu0 0.0
        %5288 = vmatpush.xpose.msra.mxu0 0.0
        %5289 = vmatpush.xpose.msra.mxu0 0.0
        %5290 = vmatpush.xpose.msra.mxu0 0.0
        %5291 = vmatpush.xpose.msra.mxu0 0.0
        %5292 = vmatpush.xpose.msra.mxu0 0.0
        %5293 = vmatpush.xpose.msra.mxu0 %v753
        %5294 = vmatpush.xpose.msra.mxu0 %v497
        %5295 = vmatmul.f32.gmra.mxu0 %v1122
        %v5296 = vpop.f32.mrf.mxu0
        %v5297 = vadd.f32 %v5277, %v5296
        %5298 = vdwg.mxu0
        %5299 = vmatpush.xpose.msra.mxu0 0.0
        %5300 = vmatpush.xpose.msra.mxu0 0.0
        %5301 = vmatpush.xpose.msra.mxu0 0.0
        %5302 = vmatpush.xpose.msra.mxu0 0.0
        %5303 = vmatpush.xpose.msra.mxu0 0.0
        %5304 = vmatpush.xpose.msra.mxu0 0.0
        %5305 = vmatpush.xpose.msra.mxu0 0.0
        %5306 = vmatpush.xpose.msra.mxu0 0.0
        %5307 = vmatpush.xpose.msra.mxu0 0.0
        %5308 = vmatpush.xpose.msra.mxu0 0.0
        %5309 = vmatpush.xpose.msra.mxu0 0.0
        %5310 = vmatpush.xpose.msra.mxu0 0.0
        %5311 = vmatpush.xpose.msra.mxu0 0.0
        %5312 = vmatpush.xpose.msra.mxu0 0.0
        %5313 = vmatpush.xpose.msra.mxu0 %v754
        %5314 = vmatpush.xpose.msra.mxu0 %v498
        %5315 = vmatmul.f32.gmra.mxu0 %v1125
        %v5316 = vpop.f32.mrf.mxu0
        %v5317 = vadd.f32 %v5297, %v5316
        %5318 = vdwg.mxu0
        %5319 = vmatpush.xpose.msra.mxu0 0.0
        %5320 = vmatpush.xpose.msra.mxu0 0.0
        %5321 = vmatpush.xpose.msra.mxu0 0.0
        %5322 = vmatpush.xpose.msra.mxu0 0.0
        %5323 = vmatpush.xpose.msra.mxu0 0.0
        %5324 = vmatpush.xpose.msra.mxu0 0.0
        %5325 = vmatpush.xpose.msra.mxu0 0.0
        %5326 = vmatpush.xpose.msra.mxu0 0.0
        %5327 = vmatpush.xpose.msra.mxu0 0.0
        %5328 = vmatpush.xpose.msra.mxu0 0.0
        %5329 = vmatpush.xpose.msra.mxu0 0.0
        %5330 = vmatpush.xpose.msra.mxu0 0.0
        %5331 = vmatpush.xpose.msra.mxu0 0.0
        %5332 = vmatpush.xpose.msra.mxu0 0.0
        %5333 = vmatpush.xpose.msra.mxu0 %v755
        %5334 = vmatpush.xpose.msra.mxu0 %v499
        %5335 = vmatmul.f32.gmra.mxu0 %v1126
        %v5336 = vpop.f32.mrf.mxu0
        %v5337 = vadd.f32 %v5317, %v5336
        %5338 = vdwg.mxu0
        %5339 = vmatpush.xpose.msra.mxu0 0.0
        %5340 = vmatpush.xpose.msra.mxu0 0.0
        %5341 = vmatpush.xpose.msra.mxu0 0.0
        %5342 = vmatpush.xpose.msra.mxu0 0.0
        %5343 = vmatpush.xpose.msra.mxu0 0.0
        %5344 = vmatpush.xpose.msra.mxu0 0.0
        %5345 = vmatpush.xpose.msra.mxu0 0.0
        %5346 = vmatpush.xpose.msra.mxu0 0.0
        %5347 = vmatpush.xpose.msra.mxu0 0.0
        %5348 = vmatpush.xpose.msra.mxu0 0.0
        %5349 = vmatpush.xpose.msra.mxu0 0.0
        %5350 = vmatpush.xpose.msra.mxu0 0.0
        %5351 = vmatpush.xpose.msra.mxu0 0.0
        %5352 = vmatpush.xpose.msra.mxu0 0.0
        %5353 = vmatpush.xpose.msra.mxu0 %v756
        %5354 = vmatpush.xpose.msra.mxu0 %v500
        %5355 = vmatmul.f32.gmra.mxu0 %v1127
        %v5356 = vpop.f32.mrf.mxu0
        %v5357 = vadd.f32 %v5337, %v5356
        %5358 = vdwg.mxu0
        %5359 = vmatpush.xpose.msra.mxu0 0.0
        %5360 = vmatpush.xpose.msra.mxu0 0.0
        %5361 = vmatpush.xpose.msra.mxu0 0.0
        %5362 = vmatpush.xpose.msra.mxu0 0.0
        %5363 = vmatpush.xpose.msra.mxu0 0.0
        %5364 = vmatpush.xpose.msra.mxu0 0.0
        %5365 = vmatpush.xpose.msra.mxu0 0.0
        %5366 = vmatpush.xpose.msra.mxu0 0.0
        %5367 = vmatpush.xpose.msra.mxu0 0.0
        %5368 = vmatpush.xpose.msra.mxu0 0.0
        %5369 = vmatpush.xpose.msra.mxu0 0.0
        %5370 = vmatpush.xpose.msra.mxu0 0.0
        %5371 = vmatpush.xpose.msra.mxu0 0.0
        %5372 = vmatpush.xpose.msra.mxu0 0.0
        %5373 = vmatpush.xpose.msra.mxu0 %v757
        %5374 = vmatpush.xpose.msra.mxu0 %v501
        %5375 = vmatmul.f32.gmra.mxu0 %v1128
        %v5376 = vpop.f32.mrf.mxu0
        %v5377 = vadd.f32 %v5357, %v5376
        %5378 = vdwg.mxu0
        %5379 = vmatpush.xpose.msra.mxu0 0.0
        %5380 = vmatpush.xpose.msra.mxu0 0.0
        %5381 = vmatpush.xpose.msra.mxu0 0.0
        %5382 = vmatpush.xpose.msra.mxu0 0.0
        %5383 = vmatpush.xpose.msra.mxu0 0.0
        %5384 = vmatpush.xpose.msra.mxu0 0.0
        %5385 = vmatpush.xpose.msra.mxu0 0.0
        %5386 = vmatpush.xpose.msra.mxu0 0.0
        %5387 = vmatpush.xpose.msra.mxu0 0.0
        %5388 = vmatpush.xpose.msra.mxu0 0.0
        %5389 = vmatpush.xpose.msra.mxu0 0.0
        %5390 = vmatpush.xpose.msra.mxu0 0.0
        %5391 = vmatpush.xpose.msra.mxu0 0.0
        %5392 = vmatpush.xpose.msra.mxu0 0.0
        %5393 = vmatpush.xpose.msra.mxu0 %v758
        %5394 = vmatpush.xpose.msra.mxu0 %v502
        %5395 = vmatmul.f32.gmra.mxu0 %v1129
        %v5396 = vpop.f32.mrf.mxu0
        %v5397 = vadd.f32 %v5377, %v5396
        %5398 = vdwg.mxu0
        %5399 = vmatpush.xpose.msra.mxu0 0.0
        %5400 = vmatpush.xpose.msra.mxu0 0.0
        %5401 = vmatpush.xpose.msra.mxu0 0.0
        %5402 = vmatpush.xpose.msra.mxu0 0.0
        %5403 = vmatpush.xpose.msra.mxu0 0.0
        %5404 = vmatpush.xpose.msra.mxu0 0.0
        %5405 = vmatpush.xpose.msra.mxu0 0.0
        %5406 = vmatpush.xpose.msra.mxu0 0.0
        %5407 = vmatpush.xpose.msra.mxu0 0.0
        %5408 = vmatpush.xpose.msra.mxu0 0.0
        %5409 = vmatpush.xpose.msra.mxu0 0.0
        %5410 = vmatpush.xpose.msra.mxu0 0.0
        %5411 = vmatpush.xpose.msra.mxu0 0.0
        %5412 = vmatpush.xpose.msra.mxu0 0.0
        %5413 = vmatpush.xpose.msra.mxu0 %v759
        %5414 = vmatpush.xpose.msra.mxu0 %v503
        %5415 = vmatmul.f32.gmra.mxu0 %v1130
        %v5416 = vpop.f32.mrf.mxu0
        %v5417 = vadd.f32 %v5397, %v5416
        %5418 = vdwg.mxu0
        %5419 = vmatpush.xpose.msra.mxu0 0.0
        %5420 = vmatpush.xpose.msra.mxu0 0.0
        %5421 = vmatpush.xpose.msra.mxu0 0.0
        %5422 = vmatpush.xpose.msra.mxu0 0.0
        %5423 = vmatpush.xpose.msra.mxu0 0.0
        %5424 = vmatpush.xpose.msra.mxu0 0.0
        %5425 = vmatpush.xpose.msra.mxu0 0.0
        %5426 = vmatpush.xpose.msra.mxu0 0.0
        %5427 = vmatpush.xpose.msra.mxu0 0.0
        %5428 = vmatpush.xpose.msra.mxu0 0.0
        %5429 = vmatpush.xpose.msra.mxu0 0.0
        %5430 = vmatpush.xpose.msra.mxu0 0.0
        %5431 = vmatpush.xpose.msra.mxu0 0.0
        %5432 = vmatpush.xpose.msra.mxu0 0.0
        %5433 = vmatpush.xpose.msra.mxu0 %v760
        %5434 = vmatpush.xpose.msra.mxu0 %v504
        %5435 = vmatmul.f32.gmra.mxu0 %v1131
        %v5436 = vpop.f32.mrf.mxu0
        %v5437 = vadd.f32 %v5417, %v5436
        %5438 = vdwg.mxu0
        %5439 = vmatpush.xpose.msra.mxu0 0.0
        %5440 = vmatpush.xpose.msra.mxu0 0.0
        %5441 = vmatpush.xpose.msra.mxu0 0.0
        %5442 = vmatpush.xpose.msra.mxu0 0.0
        %5443 = vmatpush.xpose.msra.mxu0 0.0
        %5444 = vmatpush.xpose.msra.mxu0 0.0
        %5445 = vmatpush.xpose.msra.mxu0 0.0
        %5446 = vmatpush.xpose.msra.mxu0 0.0
        %5447 = vmatpush.xpose.msra.mxu0 0.0
        %5448 = vmatpush.xpose.msra.mxu0 0.0
        %5449 = vmatpush.xpose.msra.mxu0 0.0
        %5450 = vmatpush.xpose.msra.mxu0 0.0
        %5451 = vmatpush.xpose.msra.mxu0 0.0
        %5452 = vmatpush.xpose.msra.mxu0 0.0
        %5453 = vmatpush.xpose.msra.mxu0 %v761
        %5454 = vmatpush.xpose.msra.mxu0 %v505
        %5455 = vmatmul.f32.gmra.mxu0 %v1132
        %v5456 = vpop.f32.mrf.mxu0
        %v5457 = vadd.f32 %v5437, %v5456
        %5458 = vdwg.mxu0
        %5459 = vmatpush.xpose.msra.mxu0 0.0
        %5460 = vmatpush.xpose.msra.mxu0 0.0
        %5461 = vmatpush.xpose.msra.mxu0 0.0
        %5462 = vmatpush.xpose.msra.mxu0 0.0
        %5463 = vmatpush.xpose.msra.mxu0 0.0
        %5464 = vmatpush.xpose.msra.mxu0 0.0
        %5465 = vmatpush.xpose.msra.mxu0 0.0
        %5466 = vmatpush.xpose.msra.mxu0 0.0
        %5467 = vmatpush.xpose.msra.mxu0 0.0
        %5468 = vmatpush.xpose.msra.mxu0 0.0
        %5469 = vmatpush.xpose.msra.mxu0 0.0
        %5470 = vmatpush.xpose.msra.mxu0 0.0
        %5471 = vmatpush.xpose.msra.mxu0 0.0
        %5472 = vmatpush.xpose.msra.mxu0 0.0
        %5473 = vmatpush.xpose.msra.mxu0 %v762
        %5474 = vmatpush.xpose.msra.mxu0 %v506
        %5475 = vmatmul.f32.gmra.mxu0 %v1135
        %v5476 = vpop.f32.mrf.mxu0
        %v5477 = vadd.f32 %v5457, %v5476
        %5478 = vdwg.mxu0
        %5479 = vmatpush.xpose.msra.mxu0 0.0
        %5480 = vmatpush.xpose.msra.mxu0 0.0
        %5481 = vmatpush.xpose.msra.mxu0 0.0
        %5482 = vmatpush.xpose.msra.mxu0 0.0
        %5483 = vmatpush.xpose.msra.mxu0 0.0
        %5484 = vmatpush.xpose.msra.mxu0 0.0
        %5485 = vmatpush.xpose.msra.mxu0 0.0
        %5486 = vmatpush.xpose.msra.mxu0 0.0
        %5487 = vmatpush.xpose.msra.mxu0 0.0
        %5488 = vmatpush.xpose.msra.mxu0 0.0
        %5489 = vmatpush.xpose.msra.mxu0 0.0
        %5490 = vmatpush.xpose.msra.mxu0 0.0
        %5491 = vmatpush.xpose.msra.mxu0 0.0
        %5492 = vmatpush.xpose.msra.mxu0 0.0
        %5493 = vmatpush.xpose.msra.mxu0 %v763
        %5494 = vmatpush.xpose.msra.mxu0 %v507
        %5495 = vmatmul.f32.gmra.mxu0 %v1136
        %v5496 = vpop.f32.mrf.mxu0
        %v5497 = vadd.f32 %v5477, %v5496
        %5498 = vdwg.mxu0
        %5499 = vmatpush.xpose.msra.mxu0 0.0
        %5500 = vmatpush.xpose.msra.mxu0 0.0
        %5501 = vmatpush.xpose.msra.mxu0 0.0
        %5502 = vmatpush.xpose.msra.mxu0 0.0
        %5503 = vmatpush.xpose.msra.mxu0 0.0
        %5504 = vmatpush.xpose.msra.mxu0 0.0
        %5505 = vmatpush.xpose.msra.mxu0 0.0
        %5506 = vmatpush.xpose.msra.mxu0 0.0
        %5507 = vmatpush.xpose.msra.mxu0 0.0
        %5508 = vmatpush.xpose.msra.mxu0 0.0
        %5509 = vmatpush.xpose.msra.mxu0 0.0
        %5510 = vmatpush.xpose.msra.mxu0 0.0
        %5511 = vmatpush.xpose.msra.mxu0 0.0
        %5512 = vmatpush.xpose.msra.mxu0 0.0
        %5513 = vmatpush.xpose.msra.mxu0 %v764
        %5514 = vmatpush.xpose.msra.mxu0 %v508
        %5515 = vmatmul.f32.gmra.mxu0 %v1137
        %v5516 = vpop.f32.mrf.mxu0
        %v5517 = vadd.f32 %v5497, %v5516
        %5518 = vdwg.mxu0
        %5519 = vmatpush.xpose.msra.mxu0 0.0
        %5520 = vmatpush.xpose.msra.mxu0 0.0
        %5521 = vmatpush.xpose.msra.mxu0 0.0
        %5522 = vmatpush.xpose.msra.mxu0 0.0
        %5523 = vmatpush.xpose.msra.mxu0 0.0
        %5524 = vmatpush.xpose.msra.mxu0 0.0
        %5525 = vmatpush.xpose.msra.mxu0 0.0
        %5526 = vmatpush.xpose.msra.mxu0 0.0
        %5527 = vmatpush.xpose.msra.mxu0 0.0
        %5528 = vmatpush.xpose.msra.mxu0 0.0
        %5529 = vmatpush.xpose.msra.mxu0 0.0
        %5530 = vmatpush.xpose.msra.mxu0 0.0
        %5531 = vmatpush.xpose.msra.mxu0 0.0
        %5532 = vmatpush.xpose.msra.mxu0 0.0
        %5533 = vmatpush.xpose.msra.mxu0 %v765
        %5534 = vmatpush.xpose.msra.mxu0 %v509
        %5535 = vmatmul.f32.gmra.mxu0 %v1138
        %v5536 = vpop.f32.mrf.mxu0
        %v5537 = vadd.f32 %v5517, %v5536
        %5538 = vdwg.mxu0
        %5539 = vmatpush.xpose.msra.mxu0 0.0
        %5540 = vmatpush.xpose.msra.mxu0 0.0
        %5541 = vmatpush.xpose.msra.mxu0 0.0
        %5542 = vmatpush.xpose.msra.mxu0 0.0
        %5543 = vmatpush.xpose.msra.mxu0 0.0
        %5544 = vmatpush.xpose.msra.mxu0 0.0
        %5545 = vmatpush.xpose.msra.mxu0 0.0
        %5546 = vmatpush.xpose.msra.mxu0 0.0
        %5547 = vmatpush.xpose.msra.mxu0 0.0
        %5548 = vmatpush.xpose.msra.mxu0 0.0
        %5549 = vmatpush.xpose.msra.mxu0 0.0
        %5550 = vmatpush.xpose.msra.mxu0 0.0
        %5551 = vmatpush.xpose.msra.mxu0 0.0
        %5552 = vmatpush.xpose.msra.mxu0 0.0
        %5553 = vmatpush.xpose.msra.mxu0 %v766
        %5554 = vmatpush.xpose.msra.mxu0 %v510
        %5555 = vmatmul.f32.gmra.mxu0 %v1139
        %v5556 = vpop.f32.mrf.mxu0
        %v5557 = vadd.f32 %v5537, %v5556
        %5558 = vdwg.mxu0
        %5559 = vmatpush.xpose.msra.mxu0 0.0
        %5560 = vmatpush.xpose.msra.mxu0 0.0
        %5561 = vmatpush.xpose.msra.mxu0 0.0
        %5562 = vmatpush.xpose.msra.mxu0 0.0
        %5563 = vmatpush.xpose.msra.mxu0 0.0
        %5564 = vmatpush.xpose.msra.mxu0 0.0
        %5565 = vmatpush.xpose.msra.mxu0 0.0
        %5566 = vmatpush.xpose.msra.mxu0 0.0
        %5567 = vmatpush.xpose.msra.mxu0 0.0
        %5568 = vmatpush.xpose.msra.mxu0 0.0
        %5569 = vmatpush.xpose.msra.mxu0 0.0
        %5570 = vmatpush.xpose.msra.mxu0 0.0
        %5571 = vmatpush.xpose.msra.mxu0 0.0
        %5572 = vmatpush.xpose.msra.mxu0 0.0
        %5573 = vmatpush.xpose.msra.mxu0 %v767
        %5574 = vmatpush.xpose.msra.mxu0 %v511
        %5575 = vmatmul.f32.gmra.mxu0 %v1140
        %v5576 = vpop.f32.mrf.mxu0
        %v5577 = vadd.f32 %v5557, %v5576
        %5578 = vdwg.mxu0
        %5579 = vmatpush.xpose.msra.mxu0 0.0
        %5580 = vmatpush.xpose.msra.mxu0 0.0
        %5581 = vmatpush.xpose.msra.mxu0 0.0
        %5582 = vmatpush.xpose.msra.mxu0 0.0
        %5583 = vmatpush.xpose.msra.mxu0 0.0
        %5584 = vmatpush.xpose.msra.mxu0 0.0
        %5585 = vmatpush.xpose.msra.mxu0 0.0
        %5586 = vmatpush.xpose.msra.mxu0 0.0
        %5587 = vmatpush.xpose.msra.mxu0 0.0
        %5588 = vmatpush.xpose.msra.mxu0 0.0
        %5589 = vmatpush.xpose.msra.mxu0 0.0
        %5590 = vmatpush.xpose.msra.mxu0 0.0
        %5591 = vmatpush.xpose.msra.mxu0 0.0
        %5592 = vmatpush.xpose.msra.mxu0 0.0
        %5593 = vmatpush.xpose.msra.mxu0 %v768
        %5594 = vmatpush.xpose.msra.mxu0 %v512
        %5595 = vmatmul.f32.gmra.mxu0 %v1141
        %v5596 = vpop.f32.mrf.mxu0
        %v5597 = vadd.f32 %v5577, %v5596
        %5598 = vdwg.mxu0
        %5599 = vmatpush.xpose.msra.mxu0 0.0
        %5600 = vmatpush.xpose.msra.mxu0 0.0
        %5601 = vmatpush.xpose.msra.mxu0 0.0
        %5602 = vmatpush.xpose.msra.mxu0 0.0
        %5603 = vmatpush.xpose.msra.mxu0 0.0
        %5604 = vmatpush.xpose.msra.mxu0 0.0
        %5605 = vmatpush.xpose.msra.mxu0 0.0
        %5606 = vmatpush.xpose.msra.mxu0 0.0
        %5607 = vmatpush.xpose.msra.mxu0 0.0
        %5608 = vmatpush.xpose.msra.mxu0 0.0
        %5609 = vmatpush.xpose.msra.mxu0 0.0
        %5610 = vmatpush.xpose.msra.mxu0 0.0
        %5611 = vmatpush.xpose.msra.mxu0 0.0
        %5612 = vmatpush.xpose.msra.mxu0 0.0
        %5613 = vmatpush.xpose.msra.mxu0 %v769
        %5614 = vmatpush.xpose.msra.mxu0 %v513
        %5615 = vmatmul.f32.gmra.mxu0 %v1142
        %v5616 = vpop.f32.mrf.mxu0
        %v5617 = vadd.f32 %v5597, %v5616
        %5618 = vdwg.mxu0
        %5619 = vmatpush.xpose.msra.mxu0 0.0
        %5620 = vmatpush.xpose.msra.mxu0 0.0
        %5621 = vmatpush.xpose.msra.mxu0 0.0
        %5622 = vmatpush.xpose.msra.mxu0 0.0
        %5623 = vmatpush.xpose.msra.mxu0 0.0
        %5624 = vmatpush.xpose.msra.mxu0 0.0
        %5625 = vmatpush.xpose.msra.mxu0 0.0
        %5626 = vmatpush.xpose.msra.mxu0 0.0
        %5627 = vmatpush.xpose.msra.mxu0 0.0
        %5628 = vmatpush.xpose.msra.mxu0 0.0
        %5629 = vmatpush.xpose.msra.mxu0 0.0
        %5630 = vmatpush.xpose.msra.mxu0 0.0
        %5631 = vmatpush.xpose.msra.mxu0 0.0
        %5632 = vmatpush.xpose.msra.mxu0 0.0
        %5633 = vmatpush.xpose.msra.mxu0 %v770
        %5634 = vmatpush.xpose.msra.mxu0 %v514
        %5635 = vmatmul.f32.gmra.mxu0 %v1145
        %v5636 = vpop.f32.mrf.mxu0
        %v5637 = vadd.f32 %v5617, %v5636
        %5638 = vdwg.mxu0
        %5639 = vmatpush.xpose.msra.mxu0 0.0
        %5640 = vmatpush.xpose.msra.mxu0 0.0
        %5641 = vmatpush.xpose.msra.mxu0 0.0
        %5642 = vmatpush.xpose.msra.mxu0 0.0
        %5643 = vmatpush.xpose.msra.mxu0 0.0
        %5644 = vmatpush.xpose.msra.mxu0 0.0
        %5645 = vmatpush.xpose.msra.mxu0 0.0
        %5646 = vmatpush.xpose.msra.mxu0 0.0
        %5647 = vmatpush.xpose.msra.mxu0 0.0
        %5648 = vmatpush.xpose.msra.mxu0 0.0
        %5649 = vmatpush.xpose.msra.mxu0 0.0
        %5650 = vmatpush.xpose.msra.mxu0 0.0
        %5651 = vmatpush.xpose.msra.mxu0 0.0
        %5652 = vmatpush.xpose.msra.mxu0 0.0
        %5653 = vmatpush.xpose.msra.mxu0 %v771
        %5654 = vmatpush.xpose.msra.mxu0 %v515
        %5655 = vmatmul.f32.gmra.mxu0 %v1146
        %v5656 = vpop.f32.mrf.mxu0
        %v5657 = vadd.f32 %v5637, %v5656
        %5658 = vdwg.mxu0
        %5659 = vmatpush.xpose.msra.mxu0 0.0
        %5660 = vmatpush.xpose.msra.mxu0 0.0
        %5661 = vmatpush.xpose.msra.mxu0 0.0
        %5662 = vmatpush.xpose.msra.mxu0 0.0
        %5663 = vmatpush.xpose.msra.mxu0 0.0
        %5664 = vmatpush.xpose.msra.mxu0 0.0
        %5665 = vmatpush.xpose.msra.mxu0 0.0
        %5666 = vmatpush.xpose.msra.mxu0 0.0
        %5667 = vmatpush.xpose.msra.mxu0 0.0
        %5668 = vmatpush.xpose.msra.mxu0 0.0
        %5669 = vmatpush.xpose.msra.mxu0 0.0
        %5670 = vmatpush.xpose.msra.mxu0 0.0
        %5671 = vmatpush.xpose.msra.mxu0 0.0
        %5672 = vmatpush.xpose.msra.mxu0 0.0
        %5673 = vmatpush.xpose.msra.mxu0 %v772
        %5674 = vmatpush.xpose.msra.mxu0 %v516
        %5675 = vmatmul.f32.gmra.mxu0 %v1147
        %v5676 = vpop.f32.mrf.mxu0
        %v5677 = vadd.f32 %v5657, %v5676
        %5678 = vdwg.mxu0
        %5679 = vmatpush.xpose.msra.mxu0 0.0
        %5680 = vmatpush.xpose.msra.mxu0 0.0
        %5681 = vmatpush.xpose.msra.mxu0 0.0
        %5682 = vmatpush.xpose.msra.mxu0 0.0
        %5683 = vmatpush.xpose.msra.mxu0 0.0
        %5684 = vmatpush.xpose.msra.mxu0 0.0
        %5685 = vmatpush.xpose.msra.mxu0 0.0
        %5686 = vmatpush.xpose.msra.mxu0 0.0
        %5687 = vmatpush.xpose.msra.mxu0 0.0
        %5688 = vmatpush.xpose.msra.mxu0 0.0
        %5689 = vmatpush.xpose.msra.mxu0 0.0
        %5690 = vmatpush.xpose.msra.mxu0 0.0
        %5691 = vmatpush.xpose.msra.mxu0 0.0
        %5692 = vmatpush.xpose.msra.mxu0 0.0
        %5693 = vmatpush.xpose.msra.mxu0 %v773
        %5694 = vmatpush.xpose.msra.mxu0 %v517
        %5695 = vmatmul.f32.gmra.mxu0 %v1148
        %v5696 = vpop.f32.mrf.mxu0
        %v5697 = vadd.f32 %v5677, %v5696
        %5698 = vdwg.mxu0
        %5699 = vmatpush.xpose.msra.mxu0 0.0
        %5700 = vmatpush.xpose.msra.mxu0 0.0
        %5701 = vmatpush.xpose.msra.mxu0 0.0
        %5702 = vmatpush.xpose.msra.mxu0 0.0
        %5703 = vmatpush.xpose.msra.mxu0 0.0
        %5704 = vmatpush.xpose.msra.mxu0 0.0
        %5705 = vmatpush.xpose.msra.mxu0 0.0
        %5706 = vmatpush.xpose.msra.mxu0 0.0
        %5707 = vmatpush.xpose.msra.mxu0 0.0
        %5708 = vmatpush.xpose.msra.mxu0 0.0
        %5709 = vmatpush.xpose.msra.mxu0 0.0
        %5710 = vmatpush.xpose.msra.mxu0 0.0
        %5711 = vmatpush.xpose.msra.mxu0 0.0
        %5712 = vmatpush.xpose.msra.mxu0 0.0
        %5713 = vmatpush.xpose.msra.mxu0 %v774
        %5714 = vmatpush.xpose.msra.mxu0 %v518
        %5715 = vmatmul.f32.gmra.mxu0 %v1149
        %v5716 = vpop.f32.mrf.mxu0
        %v5717 = vadd.f32 %v5697, %v5716
        %5718 = vdwg.mxu0
        %5719 = vmatpush.xpose.msra.mxu0 0.0
        %5720 = vmatpush.xpose.msra.mxu0 0.0
        %5721 = vmatpush.xpose.msra.mxu0 0.0
        %5722 = vmatpush.xpose.msra.mxu0 0.0
        %5723 = vmatpush.xpose.msra.mxu0 0.0
        %5724 = vmatpush.xpose.msra.mxu0 0.0
        %5725 = vmatpush.xpose.msra.mxu0 0.0
        %5726 = vmatpush.xpose.msra.mxu0 0.0
        %5727 = vmatpush.xpose.msra.mxu0 0.0
        %5728 = vmatpush.xpose.msra.mxu0 0.0
        %5729 = vmatpush.xpose.msra.mxu0 0.0
        %5730 = vmatpush.xpose.msra.mxu0 0.0
        %5731 = vmatpush.xpose.msra.mxu0 0.0
        %5732 = vmatpush.xpose.msra.mxu0 0.0
        %5733 = vmatpush.xpose.msra.mxu0 %v775
        %5734 = vmatpush.xpose.msra.mxu0 %v519
        %5735 = vmatmul.f32.gmra.mxu0 %v1150
        %v5736 = vpop.f32.mrf.mxu0
        %v5737 = vadd.f32 %v5717, %v5736
        %5738 = vdwg.mxu0
        %5739 = vmatpush.xpose.msra.mxu0 0.0
        %5740 = vmatpush.xpose.msra.mxu0 0.0
        %5741 = vmatpush.xpose.msra.mxu0 0.0
        %5742 = vmatpush.xpose.msra.mxu0 0.0
        %5743 = vmatpush.xpose.msra.mxu0 0.0
        %5744 = vmatpush.xpose.msra.mxu0 0.0
        %5745 = vmatpush.xpose.msra.mxu0 0.0
        %5746 = vmatpush.xpose.msra.mxu0 0.0
        %5747 = vmatpush.xpose.msra.mxu0 0.0
        %5748 = vmatpush.xpose.msra.mxu0 0.0
        %5749 = vmatpush.xpose.msra.mxu0 0.0
        %5750 = vmatpush.xpose.msra.mxu0 0.0
        %5751 = vmatpush.xpose.msra.mxu0 0.0
        %5752 = vmatpush.xpose.msra.mxu0 0.0
        %5753 = vmatpush.xpose.msra.mxu0 %v776
        %5754 = vmatpush.xpose.msra.mxu0 %v520
        %5755 = vmatmul.f32.gmra.mxu0 %v1151
        %v5756 = vpop.f32.mrf.mxu0
        %v5757 = vadd.f32 %v5737, %v5756
        %5758 = vdwg.mxu0
        %5759 = vmatpush.xpose.msra.mxu0 0.0
        %5760 = vmatpush.xpose.msra.mxu0 0.0
        %5761 = vmatpush.xpose.msra.mxu0 0.0
        %5762 = vmatpush.xpose.msra.mxu0 0.0
        %5763 = vmatpush.xpose.msra.mxu0 0.0
        %5764 = vmatpush.xpose.msra.mxu0 0.0
        %5765 = vmatpush.xpose.msra.mxu0 0.0
        %5766 = vmatpush.xpose.msra.mxu0 0.0
        %5767 = vmatpush.xpose.msra.mxu0 0.0
        %5768 = vmatpush.xpose.msra.mxu0 0.0
        %5769 = vmatpush.xpose.msra.mxu0 0.0
        %5770 = vmatpush.xpose.msra.mxu0 0.0
        %5771 = vmatpush.xpose.msra.mxu0 0.0
        %5772 = vmatpush.xpose.msra.mxu0 0.0
        %5773 = vmatpush.xpose.msra.mxu0 %v777
        %5774 = vmatpush.xpose.msra.mxu0 %v521
        %5775 = vmatmul.f32.gmra.mxu0 %v1152
        %v5776 = vpop.f32.mrf.mxu0
        %v5777 = vadd.f32 %v5757, %v5776
        %5778 = vdwg.mxu0
        %5779 = vmatpush.xpose.msra.mxu0 0.0
        %5780 = vmatpush.xpose.msra.mxu0 0.0
        %5781 = vmatpush.xpose.msra.mxu0 0.0
        %5782 = vmatpush.xpose.msra.mxu0 0.0
        %5783 = vmatpush.xpose.msra.mxu0 0.0
        %5784 = vmatpush.xpose.msra.mxu0 0.0
        %5785 = vmatpush.xpose.msra.mxu0 0.0
        %5786 = vmatpush.xpose.msra.mxu0 0.0
        %5787 = vmatpush.xpose.msra.mxu0 0.0
        %5788 = vmatpush.xpose.msra.mxu0 0.0
        %5789 = vmatpush.xpose.msra.mxu0 0.0
        %5790 = vmatpush.xpose.msra.mxu0 0.0
        %5791 = vmatpush.xpose.msra.mxu0 0.0
        %5792 = vmatpush.xpose.msra.mxu0 0.0
        %5793 = vmatpush.xpose.msra.mxu0 %v778
        %5794 = vmatpush.xpose.msra.mxu0 %v522
        %5795 = vmatmul.f32.gmra.mxu0 %v1155
        %v5796 = vpop.f32.mrf.mxu0
        %v5797 = vadd.f32 %v5777, %v5796
        %5798 = vdwg.mxu0
        %5799 = vmatpush.xpose.msra.mxu0 0.0
        %5800 = vmatpush.xpose.msra.mxu0 0.0
        %5801 = vmatpush.xpose.msra.mxu0 0.0
        %5802 = vmatpush.xpose.msra.mxu0 0.0
        %5803 = vmatpush.xpose.msra.mxu0 0.0
        %5804 = vmatpush.xpose.msra.mxu0 0.0
        %5805 = vmatpush.xpose.msra.mxu0 0.0
        %5806 = vmatpush.xpose.msra.mxu0 0.0
        %5807 = vmatpush.xpose.msra.mxu0 0.0
        %5808 = vmatpush.xpose.msra.mxu0 0.0
        %5809 = vmatpush.xpose.msra.mxu0 0.0
        %5810 = vmatpush.xpose.msra.mxu0 0.0
        %5811 = vmatpush.xpose.msra.mxu0 0.0
        %5812 = vmatpush.xpose.msra.mxu0 0.0
        %5813 = vmatpush.xpose.msra.mxu0 %v779
        %5814 = vmatpush.xpose.msra.mxu0 %v523
        %5815 = vmatmul.f32.gmra.mxu0 %v1156
        %v5816 = vpop.f32.mrf.mxu0
        %v5817 = vadd.f32 %v5797, %v5816
        %5818 = vdwg.mxu0
        %5819 = vmatpush.xpose.msra.mxu0 0.0
        %5820 = vmatpush.xpose.msra.mxu0 0.0
        %5821 = vmatpush.xpose.msra.mxu0 0.0
        %5822 = vmatpush.xpose.msra.mxu0 0.0
        %5823 = vmatpush.xpose.msra.mxu0 0.0
        %5824 = vmatpush.xpose.msra.mxu0 0.0
        %5825 = vmatpush.xpose.msra.mxu0 0.0
        %5826 = vmatpush.xpose.msra.mxu0 0.0
        %5827 = vmatpush.xpose.msra.mxu0 0.0
        %5828 = vmatpush.xpose.msra.mxu0 0.0
        %5829 = vmatpush.xpose.msra.mxu0 0.0
        %5830 = vmatpush.xpose.msra.mxu0 0.0
        %5831 = vmatpush.xpose.msra.mxu0 0.0
        %5832 = vmatpush.xpose.msra.mxu0 0.0
        %5833 = vmatpush.xpose.msra.mxu0 %v780
        %5834 = vmatpush.xpose.msra.mxu0 %v524
        %5835 = vmatmul.f32.gmra.mxu0 %v1157
        %v5836 = vpop.f32.mrf.mxu0
        %v5837 = vadd.f32 %v5817, %v5836
        %5838 = vdwg.mxu0
        %5839 = vmatpush.xpose.msra.mxu0 0.0
        %5840 = vmatpush.xpose.msra.mxu0 0.0
        %5841 = vmatpush.xpose.msra.mxu0 0.0
        %5842 = vmatpush.xpose.msra.mxu0 0.0
        %5843 = vmatpush.xpose.msra.mxu0 0.0
        %5844 = vmatpush.xpose.msra.mxu0 0.0
        %5845 = vmatpush.xpose.msra.mxu0 0.0
        %5846 = vmatpush.xpose.msra.mxu0 0.0
        %5847 = vmatpush.xpose.msra.mxu0 0.0
        %5848 = vmatpush.xpose.msra.mxu0 0.0
        %5849 = vmatpush.xpose.msra.mxu0 0.0
        %5850 = vmatpush.xpose.msra.mxu0 0.0
        %5851 = vmatpush.xpose.msra.mxu0 0.0
        %5852 = vmatpush.xpose.msra.mxu0 0.0
        %5853 = vmatpush.xpose.msra.mxu0 %v781
        %5854 = vmatpush.xpose.msra.mxu0 %v525
        %5855 = vmatmul.f32.gmra.mxu0 %v1158
        %v5856 = vpop.f32.mrf.mxu0
        %v5857 = vadd.f32 %v5837, %v5856
        %5858 = vdwg.mxu0
        %5859 = vmatpush.xpose.msra.mxu0 0.0
        %5860 = vmatpush.xpose.msra.mxu0 0.0
        %5861 = vmatpush.xpose.msra.mxu0 0.0
        %5862 = vmatpush.xpose.msra.mxu0 0.0
        %5863 = vmatpush.xpose.msra.mxu0 0.0
        %5864 = vmatpush.xpose.msra.mxu0 0.0
        %5865 = vmatpush.xpose.msra.mxu0 0.0
        %5866 = vmatpush.xpose.msra.mxu0 0.0
        %5867 = vmatpush.xpose.msra.mxu0 0.0
        %5868 = vmatpush.xpose.msra.mxu0 0.0
        %5869 = vmatpush.xpose.msra.mxu0 0.0
        %5870 = vmatpush.xpose.msra.mxu0 0.0
        %5871 = vmatpush.xpose.msra.mxu0 0.0
        %5872 = vmatpush.xpose.msra.mxu0 0.0
        %5873 = vmatpush.xpose.msra.mxu0 %v782
        %5874 = vmatpush.xpose.msra.mxu0 %v526
        %5875 = vmatmul.f32.gmra.mxu0 %v1159
        %v5876 = vpop.f32.mrf.mxu0
        %v5877 = vadd.f32 %v5857, %v5876
        %5878 = vdwg.mxu0
        %5879 = vmatpush.xpose.msra.mxu0 0.0
        %5880 = vmatpush.xpose.msra.mxu0 0.0
        %5881 = vmatpush.xpose.msra.mxu0 0.0
        %5882 = vmatpush.xpose.msra.mxu0 0.0
        %5883 = vmatpush.xpose.msra.mxu0 0.0
        %5884 = vmatpush.xpose.msra.mxu0 0.0
        %5885 = vmatpush.xpose.msra.mxu0 0.0
        %5886 = vmatpush.xpose.msra.mxu0 0.0
        %5887 = vmatpush.xpose.msra.mxu0 0.0
        %5888 = vmatpush.xpose.msra.mxu0 0.0
        %5889 = vmatpush.xpose.msra.mxu0 0.0
        %5890 = vmatpush.xpose.msra.mxu0 0.0
        %5891 = vmatpush.xpose.msra.mxu0 0.0
        %5892 = vmatpush.xpose.msra.mxu0 0.0
        %5893 = vmatpush.xpose.msra.mxu0 %v783
        %5894 = vmatpush.xpose.msra.mxu0 %v527
        %5895 = vmatmul.f32.gmra.mxu0 %v1160
        %v5896 = vpop.f32.mrf.mxu0
        %v5897 = vadd.f32 %v5877, %v5896
        %5898 = vdwg.mxu0
        %5899 = vmatpush.xpose.msra.mxu0 0.0
        %5900 = vmatpush.xpose.msra.mxu0 0.0
        %5901 = vmatpush.xpose.msra.mxu0 0.0
        %5902 = vmatpush.xpose.msra.mxu0 0.0
        %5903 = vmatpush.xpose.msra.mxu0 0.0
        %5904 = vmatpush.xpose.msra.mxu0 0.0
        %5905 = vmatpush.xpose.msra.mxu0 0.0
        %5906 = vmatpush.xpose.msra.mxu0 0.0
        %5907 = vmatpush.xpose.msra.mxu0 0.0
        %5908 = vmatpush.xpose.msra.mxu0 0.0
        %5909 = vmatpush.xpose.msra.mxu0 0.0
        %5910 = vmatpush.xpose.msra.mxu0 0.0
        %5911 = vmatpush.xpose.msra.mxu0 0.0
        %5912 = vmatpush.xpose.msra.mxu0 0.0
        %5913 = vmatpush.xpose.msra.mxu0 %v784
        %5914 = vmatpush.xpose.msra.mxu0 %v528
        %5915 = vmatmul.f32.gmra.mxu0 %v1161
        %v5916 = vpop.f32.mrf.mxu0
        %v5917 = vadd.f32 %v5897, %v5916
        %5918 = vdwg.mxu0
        %5919 = vmatpush.xpose.msra.mxu0 0.0
        %5920 = vmatpush.xpose.msra.mxu0 0.0
        %5921 = vmatpush.xpose.msra.mxu0 0.0
        %5922 = vmatpush.xpose.msra.mxu0 0.0
        %5923 = vmatpush.xpose.msra.mxu0 0.0
        %5924 = vmatpush.xpose.msra.mxu0 0.0
        %5925 = vmatpush.xpose.msra.mxu0 0.0
        %5926 = vmatpush.xpose.msra.mxu0 0.0
        %5927 = vmatpush.xpose.msra.mxu0 0.0
        %5928 = vmatpush.xpose.msra.mxu0 0.0
        %5929 = vmatpush.xpose.msra.mxu0 0.0
        %5930 = vmatpush.xpose.msra.mxu0 0.0
        %5931 = vmatpush.xpose.msra.mxu0 0.0
        %5932 = vmatpush.xpose.msra.mxu0 0.0
        %5933 = vmatpush.xpose.msra.mxu0 %v785
        %5934 = vmatpush.xpose.msra.mxu0 %v529
        %5935 = vmatmul.f32.gmra.mxu0 %v1162
        %v5936 = vpop.f32.mrf.mxu0
        %v5937 = vadd.f32 %v5917, %v5936
        %5938 = vdwg.mxu0
        %5939 = vmatpush.xpose.msra.mxu0 0.0
        %5940 = vmatpush.xpose.msra.mxu0 0.0
        %5941 = vmatpush.xpose.msra.mxu0 0.0
        %5942 = vmatpush.xpose.msra.mxu0 0.0
        %5943 = vmatpush.xpose.msra.mxu0 0.0
        %5944 = vmatpush.xpose.msra.mxu0 0.0
        %5945 = vmatpush.xpose.msra.mxu0 0.0
        %5946 = vmatpush.xpose.msra.mxu0 0.0
        %5947 = vmatpush.xpose.msra.mxu0 0.0
        %5948 = vmatpush.xpose.msra.mxu0 0.0
        %5949 = vmatpush.xpose.msra.mxu0 0.0
        %5950 = vmatpush.xpose.msra.mxu0 0.0
        %5951 = vmatpush.xpose.msra.mxu0 0.0
        %5952 = vmatpush.xpose.msra.mxu0 0.0
        %5953 = vmatpush.xpose.msra.mxu0 %v786
        %5954 = vmatpush.xpose.msra.mxu0 %v530
        %5955 = vmatmul.f32.gmra.mxu0 %v1165
        %v5956 = vpop.f32.mrf.mxu0
        %v5957 = vadd.f32 %v5937, %v5956
        %5958 = vdwg.mxu0
        %5959 = vmatpush.xpose.msra.mxu0 0.0
        %5960 = vmatpush.xpose.msra.mxu0 0.0
        %5961 = vmatpush.xpose.msra.mxu0 0.0
        %5962 = vmatpush.xpose.msra.mxu0 0.0
        %5963 = vmatpush.xpose.msra.mxu0 0.0
        %5964 = vmatpush.xpose.msra.mxu0 0.0
        %5965 = vmatpush.xpose.msra.mxu0 0.0
        %5966 = vmatpush.xpose.msra.mxu0 0.0
        %5967 = vmatpush.xpose.msra.mxu0 0.0
        %5968 = vmatpush.xpose.msra.mxu0 0.0
        %5969 = vmatpush.xpose.msra.mxu0 0.0
        %5970 = vmatpush.xpose.msra.mxu0 0.0
        %5971 = vmatpush.xpose.msra.mxu0 0.0
        %5972 = vmatpush.xpose.msra.mxu0 0.0
        %5973 = vmatpush.xpose.msra.mxu0 %v787
        %5974 = vmatpush.xpose.msra.mxu0 %v531
        %5975 = vmatmul.f32.gmra.mxu0 %v1166
        %v5976 = vpop.f32.mrf.mxu0
        %v5977 = vadd.f32 %v5957, %v5976
        %5978 = vdwg.mxu0
        %5979 = vmatpush.xpose.msra.mxu0 0.0
        %5980 = vmatpush.xpose.msra.mxu0 0.0
        %5981 = vmatpush.xpose.msra.mxu0 0.0
        %5982 = vmatpush.xpose.msra.mxu0 0.0
        %5983 = vmatpush.xpose.msra.mxu0 0.0
        %5984 = vmatpush.xpose.msra.mxu0 0.0
        %5985 = vmatpush.xpose.msra.mxu0 0.0
        %5986 = vmatpush.xpose.msra.mxu0 0.0
        %5987 = vmatpush.xpose.msra.mxu0 0.0
        %5988 = vmatpush.xpose.msra.mxu0 0.0
        %5989 = vmatpush.xpose.msra.mxu0 0.0
        %5990 = vmatpush.xpose.msra.mxu0 0.0
        %5991 = vmatpush.xpose.msra.mxu0 0.0
        %5992 = vmatpush.xpose.msra.mxu0 0.0
        %5993 = vmatpush.xpose.msra.mxu0 %v788
        %5994 = vmatpush.xpose.msra.mxu0 %v532
        %5995 = vmatmul.f32.gmra.mxu0 %v1167
        %v5996 = vpop.f32.mrf.mxu0
        %v5997 = vadd.f32 %v5977, %v5996
        %5998 = vdwg.mxu0
        %5999 = vmatpush.xpose.msra.mxu0 0.0
        %6000 = vmatpush.xpose.msra.mxu0 0.0
        %6001 = vmatpush.xpose.msra.mxu0 0.0
        %6002 = vmatpush.xpose.msra.mxu0 0.0
        %6003 = vmatpush.xpose.msra.mxu0 0.0
        %6004 = vmatpush.xpose.msra.mxu0 0.0
        %6005 = vmatpush.xpose.msra.mxu0 0.0
        %6006 = vmatpush.xpose.msra.mxu0 0.0
        %6007 = vmatpush.xpose.msra.mxu0 0.0
        %6008 = vmatpush.xpose.msra.mxu0 0.0
        %6009 = vmatpush.xpose.msra.mxu0 0.0
        %6010 = vmatpush.xpose.msra.mxu0 0.0
        %6011 = vmatpush.xpose.msra.mxu0 0.0
        %6012 = vmatpush.xpose.msra.mxu0 0.0
        %6013 = vmatpush.xpose.msra.mxu0 %v789
        %6014 = vmatpush.xpose.msra.mxu0 %v533
        %6015 = vmatmul.f32.gmra.mxu0 %v1168
        %v6016 = vpop.f32.mrf.mxu0
        %v6017 = vadd.f32 %v5997, %v6016
        %6018 = vdwg.mxu0
        %6019 = vmatpush.xpose.msra.mxu0 0.0
        %6020 = vmatpush.xpose.msra.mxu0 0.0
        %6021 = vmatpush.xpose.msra.mxu0 0.0
        %6022 = vmatpush.xpose.msra.mxu0 0.0
        %6023 = vmatpush.xpose.msra.mxu0 0.0
        %6024 = vmatpush.xpose.msra.mxu0 0.0
        %6025 = vmatpush.xpose.msra.mxu0 0.0
        %6026 = vmatpush.xpose.msra.mxu0 0.0
        %6027 = vmatpush.xpose.msra.mxu0 0.0
        %6028 = vmatpush.xpose.msra.mxu0 0.0
        %6029 = vmatpush.xpose.msra.mxu0 0.0
        %6030 = vmatpush.xpose.msra.mxu0 0.0
        %6031 = vmatpush.xpose.msra.mxu0 0.0
        %6032 = vmatpush.xpose.msra.mxu0 0.0
        %6033 = vmatpush.xpose.msra.mxu0 %v790
        %6034 = vmatpush.xpose.msra.mxu0 %v534
        %6035 = vmatmul.f32.gmra.mxu0 %v1169
        %v6036 = vpop.f32.mrf.mxu0
        %v6037 = vadd.f32 %v6017, %v6036
        %6038 = vdwg.mxu0
        %6039 = vmatpush.xpose.msra.mxu0 0.0
        %6040 = vmatpush.xpose.msra.mxu0 0.0
        %6041 = vmatpush.xpose.msra.mxu0 0.0
        %6042 = vmatpush.xpose.msra.mxu0 0.0
        %6043 = vmatpush.xpose.msra.mxu0 0.0
        %6044 = vmatpush.xpose.msra.mxu0 0.0
        %6045 = vmatpush.xpose.msra.mxu0 0.0
        %6046 = vmatpush.xpose.msra.mxu0 0.0
        %6047 = vmatpush.xpose.msra.mxu0 0.0
        %6048 = vmatpush.xpose.msra.mxu0 0.0
        %6049 = vmatpush.xpose.msra.mxu0 0.0
        %6050 = vmatpush.xpose.msra.mxu0 0.0
        %6051 = vmatpush.xpose.msra.mxu0 0.0
        %6052 = vmatpush.xpose.msra.mxu0 0.0
        %6053 = vmatpush.xpose.msra.mxu0 %v791
        %6054 = vmatpush.xpose.msra.mxu0 %v535
        %6055 = vmatmul.f32.gmra.mxu0 %v1170
        %v6056 = vpop.f32.mrf.mxu0
        %v6057 = vadd.f32 %v6037, %v6056
        %6058 = vdwg.mxu0
        %6059 = vmatpush.xpose.msra.mxu0 0.0
        %6060 = vmatpush.xpose.msra.mxu0 0.0
        %6061 = vmatpush.xpose.msra.mxu0 0.0
        %6062 = vmatpush.xpose.msra.mxu0 0.0
        %6063 = vmatpush.xpose.msra.mxu0 0.0
        %6064 = vmatpush.xpose.msra.mxu0 0.0
        %6065 = vmatpush.xpose.msra.mxu0 0.0
        %6066 = vmatpush.xpose.msra.mxu0 0.0
        %6067 = vmatpush.xpose.msra.mxu0 0.0
        %6068 = vmatpush.xpose.msra.mxu0 0.0
        %6069 = vmatpush.xpose.msra.mxu0 0.0
        %6070 = vmatpush.xpose.msra.mxu0 0.0
        %6071 = vmatpush.xpose.msra.mxu0 0.0
        %6072 = vmatpush.xpose.msra.mxu0 0.0
        %6073 = vmatpush.xpose.msra.mxu0 %v792
        %6074 = vmatpush.xpose.msra.mxu0 %v536
        %6075 = vmatmul.f32.gmra.mxu0 %v1171
        %v6076 = vpop.f32.mrf.mxu0
        %v6077 = vadd.f32 %v6057, %v6076
        %6078 = vdwg.mxu0
        %6079 = vmatpush.xpose.msra.mxu0 0.0
        %6080 = vmatpush.xpose.msra.mxu0 0.0
        %6081 = vmatpush.xpose.msra.mxu0 0.0
        %6082 = vmatpush.xpose.msra.mxu0 0.0
        %6083 = vmatpush.xpose.msra.mxu0 0.0
        %6084 = vmatpush.xpose.msra.mxu0 0.0
        %6085 = vmatpush.xpose.msra.mxu0 0.0
        %6086 = vmatpush.xpose.msra.mxu0 0.0
        %6087 = vmatpush.xpose.msra.mxu0 0.0
        %6088 = vmatpush.xpose.msra.mxu0 0.0
        %6089 = vmatpush.xpose.msra.mxu0 0.0
        %6090 = vmatpush.xpose.msra.mxu0 0.0
        %6091 = vmatpush.xpose.msra.mxu0 0.0
        %6092 = vmatpush.xpose.msra.mxu0 0.0
        %6093 = vmatpush.xpose.msra.mxu0 %v793
        %6094 = vmatpush.xpose.msra.mxu0 %v537
        %6095 = vmatmul.f32.gmra.mxu0 %v1172
        %v6096 = vpop.f32.mrf.mxu0
        %v6097 = vadd.f32 %v6077, %v6096
        %6098 = vdwg.mxu0
        %6099 = vmatpush.xpose.msra.mxu0 0.0
        %6100 = vmatpush.xpose.msra.mxu0 0.0
        %6101 = vmatpush.xpose.msra.mxu0 0.0
        %6102 = vmatpush.xpose.msra.mxu0 0.0
        %6103 = vmatpush.xpose.msra.mxu0 0.0
        %6104 = vmatpush.xpose.msra.mxu0 0.0
        %6105 = vmatpush.xpose.msra.mxu0 0.0
        %6106 = vmatpush.xpose.msra.mxu0 0.0
        %6107 = vmatpush.xpose.msra.mxu0 0.0
        %6108 = vmatpush.xpose.msra.mxu0 0.0
        %6109 = vmatpush.xpose.msra.mxu0 0.0
        %6110 = vmatpush.xpose.msra.mxu0 0.0
        %6111 = vmatpush.xpose.msra.mxu0 0.0
        %6112 = vmatpush.xpose.msra.mxu0 0.0
        %6113 = vmatpush.xpose.msra.mxu0 %v794
        %6114 = vmatpush.xpose.msra.mxu0 %v538
        %6115 = vmatmul.f32.gmra.mxu0 %v1175
        %v6116 = vpop.f32.mrf.mxu0
        %v6117 = vadd.f32 %v6097, %v6116
        %6118 = vdwg.mxu0
        %6119 = vmatpush.xpose.msra.mxu0 0.0
        %6120 = vmatpush.xpose.msra.mxu0 0.0
        %6121 = vmatpush.xpose.msra.mxu0 0.0
        %6122 = vmatpush.xpose.msra.mxu0 0.0
        %6123 = vmatpush.xpose.msra.mxu0 0.0
        %6124 = vmatpush.xpose.msra.mxu0 0.0
        %6125 = vmatpush.xpose.msra.mxu0 0.0
        %6126 = vmatpush.xpose.msra.mxu0 0.0
        %6127 = vmatpush.xpose.msra.mxu0 0.0
        %6128 = vmatpush.xpose.msra.mxu0 0.0
        %6129 = vmatpush.xpose.msra.mxu0 0.0
        %6130 = vmatpush.xpose.msra.mxu0 0.0
        %6131 = vmatpush.xpose.msra.mxu0 0.0
        %6132 = vmatpush.xpose.msra.mxu0 0.0
        %6133 = vmatpush.xpose.msra.mxu0 %v795
        %6134 = vmatpush.xpose.msra.mxu0 %v539
        %6135 = vmatmul.f32.gmra.mxu0 %v1176
        %v6136 = vpop.f32.mrf.mxu0
        %v6137 = vadd.f32 %v6117, %v6136
        %6138 = vdwg.mxu0
        %6139 = vmatpush.xpose.msra.mxu0 0.0
        %6140 = vmatpush.xpose.msra.mxu0 0.0
        %6141 = vmatpush.xpose.msra.mxu0 0.0
        %6142 = vmatpush.xpose.msra.mxu0 0.0
        %6143 = vmatpush.xpose.msra.mxu0 0.0
        %6144 = vmatpush.xpose.msra.mxu0 0.0
        %6145 = vmatpush.xpose.msra.mxu0 0.0
        %6146 = vmatpush.xpose.msra.mxu0 0.0
        %6147 = vmatpush.xpose.msra.mxu0 0.0
        %6148 = vmatpush.xpose.msra.mxu0 0.0
        %6149 = vmatpush.xpose.msra.mxu0 0.0
        %6150 = vmatpush.xpose.msra.mxu0 0.0
        %6151 = vmatpush.xpose.msra.mxu0 0.0
        %6152 = vmatpush.xpose.msra.mxu0 0.0
        %6153 = vmatpush.xpose.msra.mxu0 %v796
        %6154 = vmatpush.xpose.msra.mxu0 %v540
        %6155 = vmatmul.f32.gmra.mxu0 %v1177
        %v6156 = vpop.f32.mrf.mxu0
        %v6157 = vadd.f32 %v6137, %v6156
        %6158 = vdwg.mxu0
        %6159 = vmatpush.xpose.msra.mxu0 0.0
        %6160 = vmatpush.xpose.msra.mxu0 0.0
        %6161 = vmatpush.xpose.msra.mxu0 0.0
        %6162 = vmatpush.xpose.msra.mxu0 0.0
        %6163 = vmatpush.xpose.msra.mxu0 0.0
        %6164 = vmatpush.xpose.msra.mxu0 0.0
        %6165 = vmatpush.xpose.msra.mxu0 0.0
        %6166 = vmatpush.xpose.msra.mxu0 0.0
        %6167 = vmatpush.xpose.msra.mxu0 0.0
        %6168 = vmatpush.xpose.msra.mxu0 0.0
        %6169 = vmatpush.xpose.msra.mxu0 0.0
        %6170 = vmatpush.xpose.msra.mxu0 0.0
        %6171 = vmatpush.xpose.msra.mxu0 0.0
        %6172 = vmatpush.xpose.msra.mxu0 0.0
        %6173 = vmatpush.xpose.msra.mxu0 %v797
        %6174 = vmatpush.xpose.msra.mxu0 %v541
        %6175 = vmatmul.f32.gmra.mxu0 %v1178
        %v6176 = vpop.f32.mrf.mxu0
        %v6177 = vadd.f32 %v6157, %v6176
        %6178 = vdwg.mxu0
        %6179 = vmatpush.xpose.msra.mxu0 0.0
        %6180 = vmatpush.xpose.msra.mxu0 0.0
        %6181 = vmatpush.xpose.msra.mxu0 0.0
        %6182 = vmatpush.xpose.msra.mxu0 0.0
        %6183 = vmatpush.xpose.msra.mxu0 0.0
        %6184 = vmatpush.xpose.msra.mxu0 0.0
        %6185 = vmatpush.xpose.msra.mxu0 0.0
        %6186 = vmatpush.xpose.msra.mxu0 0.0
        %6187 = vmatpush.xpose.msra.mxu0 0.0
        %6188 = vmatpush.xpose.msra.mxu0 0.0
        %6189 = vmatpush.xpose.msra.mxu0 0.0
        %6190 = vmatpush.xpose.msra.mxu0 0.0
        %6191 = vmatpush.xpose.msra.mxu0 0.0
        %6192 = vmatpush.xpose.msra.mxu0 0.0
        %6193 = vmatpush.xpose.msra.mxu0 %v798
        %6194 = vmatpush.xpose.msra.mxu0 %v542
        %6195 = vmatmul.f32.gmra.mxu0 %v1179
        %v6196 = vpop.f32.mrf.mxu0
        %v6197 = vadd.f32 %v6177, %v6196
        %6198 = vdwg.mxu0
        %6199 = vmatpush.xpose.msra.mxu0 0.0
        %6200 = vmatpush.xpose.msra.mxu0 0.0
        %6201 = vmatpush.xpose.msra.mxu0 0.0
        %6202 = vmatpush.xpose.msra.mxu0 0.0
        %6203 = vmatpush.xpose.msra.mxu0 0.0
        %6204 = vmatpush.xpose.msra.mxu0 0.0
        %6205 = vmatpush.xpose.msra.mxu0 0.0
        %6206 = vmatpush.xpose.msra.mxu0 0.0
        %6207 = vmatpush.xpose.msra.mxu0 0.0
        %6208 = vmatpush.xpose.msra.mxu0 0.0
        %6209 = vmatpush.xpose.msra.mxu0 0.0
        %6210 = vmatpush.xpose.msra.mxu0 0.0
        %6211 = vmatpush.xpose.msra.mxu0 0.0
        %6212 = vmatpush.xpose.msra.mxu0 0.0
        %6213 = vmatpush.xpose.msra.mxu0 %v799
        %6214 = vmatpush.xpose.msra.mxu0 %v543
        %6215 = vmatmul.f32.gmra.mxu0 %v1180
        %v6216 = vpop.f32.mrf.mxu0
        %v6217 = vadd.f32 %v6197, %v6216
        %6218 = vdwg.mxu0
        %6219 = vmatpush.xpose.msra.mxu0 0.0
        %6220 = vmatpush.xpose.msra.mxu0 0.0
        %6221 = vmatpush.xpose.msra.mxu0 0.0
        %6222 = vmatpush.xpose.msra.mxu0 0.0
        %6223 = vmatpush.xpose.msra.mxu0 0.0
        %6224 = vmatpush.xpose.msra.mxu0 0.0
        %6225 = vmatpush.xpose.msra.mxu0 0.0
        %6226 = vmatpush.xpose.msra.mxu0 0.0
        %6227 = vmatpush.xpose.msra.mxu0 0.0
        %6228 = vmatpush.xpose.msra.mxu0 0.0
        %6229 = vmatpush.xpose.msra.mxu0 0.0
        %6230 = vmatpush.xpose.msra.mxu0 0.0
        %6231 = vmatpush.xpose.msra.mxu0 0.0
        %6232 = vmatpush.xpose.msra.mxu0 0.0
        %6233 = vmatpush.xpose.msra.mxu0 %v800
        %6234 = vmatpush.xpose.msra.mxu0 %v544
        %6235 = vmatmul.f32.gmra.mxu0 %v1181
        %v6236 = vpop.f32.mrf.mxu0
        %v6237 = vadd.f32 %v6217, %v6236
        %6238 = vdwg.mxu0
        %6239 = vmatpush.xpose.msra.mxu0 0.0
        %6240 = vmatpush.xpose.msra.mxu0 0.0
        %6241 = vmatpush.xpose.msra.mxu0 0.0
        %6242 = vmatpush.xpose.msra.mxu0 0.0
        %6243 = vmatpush.xpose.msra.mxu0 0.0
        %6244 = vmatpush.xpose.msra.mxu0 0.0
        %6245 = vmatpush.xpose.msra.mxu0 0.0
        %6246 = vmatpush.xpose.msra.mxu0 0.0
        %6247 = vmatpush.xpose.msra.mxu0 0.0
        %6248 = vmatpush.xpose.msra.mxu0 0.0
        %6249 = vmatpush.xpose.msra.mxu0 0.0
        %6250 = vmatpush.xpose.msra.mxu0 0.0
        %6251 = vmatpush.xpose.msra.mxu0 0.0
        %6252 = vmatpush.xpose.msra.mxu0 0.0
        %6253 = vmatpush.xpose.msra.mxu0 %v801
        %6254 = vmatpush.xpose.msra.mxu0 %v545
        %6255 = vmatmul.f32.gmra.mxu0 %v1182
        %v6256 = vpop.f32.mrf.mxu0
        %v6257 = vadd.f32 %v6237, %v6256
        %6258 = vdwg.mxu0
        %6259 = vmatpush.xpose.msra.mxu0 0.0
        %6260 = vmatpush.xpose.msra.mxu0 0.0
        %6261 = vmatpush.xpose.msra.mxu0 0.0
        %6262 = vmatpush.xpose.msra.mxu0 0.0
        %6263 = vmatpush.xpose.msra.mxu0 0.0
        %6264 = vmatpush.xpose.msra.mxu0 0.0
        %6265 = vmatpush.xpose.msra.mxu0 0.0
        %6266 = vmatpush.xpose.msra.mxu0 0.0
        %6267 = vmatpush.xpose.msra.mxu0 0.0
        %6268 = vmatpush.xpose.msra.mxu0 0.0
        %6269 = vmatpush.xpose.msra.mxu0 0.0
        %6270 = vmatpush.xpose.msra.mxu0 0.0
        %6271 = vmatpush.xpose.msra.mxu0 0.0
        %6272 = vmatpush.xpose.msra.mxu0 0.0
        %6273 = vmatpush.xpose.msra.mxu0 %v802
        %6274 = vmatpush.xpose.msra.mxu0 %v546
        %6275 = vmatmul.f32.gmra.mxu0 %v1185
        %v6276 = vpop.f32.mrf.mxu0
        %v6277 = vadd.f32 %v6257, %v6276
        %6278 = vdwg.mxu0
        %6279 = vmatpush.xpose.msra.mxu0 0.0
        %6280 = vmatpush.xpose.msra.mxu0 0.0
        %6281 = vmatpush.xpose.msra.mxu0 0.0
        %6282 = vmatpush.xpose.msra.mxu0 0.0
        %6283 = vmatpush.xpose.msra.mxu0 0.0
        %6284 = vmatpush.xpose.msra.mxu0 0.0
        %6285 = vmatpush.xpose.msra.mxu0 0.0
        %6286 = vmatpush.xpose.msra.mxu0 0.0
        %6287 = vmatpush.xpose.msra.mxu0 0.0
        %6288 = vmatpush.xpose.msra.mxu0 0.0
        %6289 = vmatpush.xpose.msra.mxu0 0.0
        %6290 = vmatpush.xpose.msra.mxu0 0.0
        %6291 = vmatpush.xpose.msra.mxu0 0.0
        %6292 = vmatpush.xpose.msra.mxu0 0.0
        %6293 = vmatpush.xpose.msra.mxu0 %v803
        %6294 = vmatpush.xpose.msra.mxu0 %v547
        %6295 = vmatmul.f32.gmra.mxu0 %v1186
        %v6296 = vpop.f32.mrf.mxu0
        %v6297 = vadd.f32 %v6277, %v6296
        %6298 = vdwg.mxu0
        %6299 = vmatpush.xpose.msra.mxu0 0.0
        %6300 = vmatpush.xpose.msra.mxu0 0.0
        %6301 = vmatpush.xpose.msra.mxu0 0.0
        %6302 = vmatpush.xpose.msra.mxu0 0.0
        %6303 = vmatpush.xpose.msra.mxu0 0.0
        %6304 = vmatpush.xpose.msra.mxu0 0.0
        %6305 = vmatpush.xpose.msra.mxu0 0.0
        %6306 = vmatpush.xpose.msra.mxu0 0.0
        %6307 = vmatpush.xpose.msra.mxu0 0.0
        %6308 = vmatpush.xpose.msra.mxu0 0.0
        %6309 = vmatpush.xpose.msra.mxu0 0.0
        %6310 = vmatpush.xpose.msra.mxu0 0.0
        %6311 = vmatpush.xpose.msra.mxu0 0.0
        %6312 = vmatpush.xpose.msra.mxu0 0.0
        %6313 = vmatpush.xpose.msra.mxu0 %v804
        %6314 = vmatpush.xpose.msra.mxu0 %v548
        %6315 = vmatmul.f32.gmra.mxu0 %v1187
        %v6316 = vpop.f32.mrf.mxu0
        %v6317 = vadd.f32 %v6297, %v6316
        %6318 = vdwg.mxu0
        %6319 = vmatpush.xpose.msra.mxu0 0.0
        %6320 = vmatpush.xpose.msra.mxu0 0.0
        %6321 = vmatpush.xpose.msra.mxu0 0.0
        %6322 = vmatpush.xpose.msra.mxu0 0.0
        %6323 = vmatpush.xpose.msra.mxu0 0.0
        %6324 = vmatpush.xpose.msra.mxu0 0.0
        %6325 = vmatpush.xpose.msra.mxu0 0.0
        %6326 = vmatpush.xpose.msra.mxu0 0.0
        %6327 = vmatpush.xpose.msra.mxu0 0.0
        %6328 = vmatpush.xpose.msra.mxu0 0.0
        %6329 = vmatpush.xpose.msra.mxu0 0.0
        %6330 = vmatpush.xpose.msra.mxu0 0.0
        %6331 = vmatpush.xpose.msra.mxu0 0.0
        %6332 = vmatpush.xpose.msra.mxu0 0.0
        %6333 = vmatpush.xpose.msra.mxu0 %v805
        %6334 = vmatpush.xpose.msra.mxu0 %v549
        %6335 = vmatmul.f32.gmra.mxu0 %v1188
        %v6336 = vpop.f32.mrf.mxu0
        %v6337 = vadd.f32 %v6317, %v6336
        %6338 = vdwg.mxu0
        %6339 = vmatpush.xpose.msra.mxu0 0.0
        %6340 = vmatpush.xpose.msra.mxu0 0.0
        %6341 = vmatpush.xpose.msra.mxu0 0.0
        %6342 = vmatpush.xpose.msra.mxu0 0.0
        %6343 = vmatpush.xpose.msra.mxu0 0.0
        %6344 = vmatpush.xpose.msra.mxu0 0.0
        %6345 = vmatpush.xpose.msra.mxu0 0.0
        %6346 = vmatpush.xpose.msra.mxu0 0.0
        %6347 = vmatpush.xpose.msra.mxu0 0.0
        %6348 = vmatpush.xpose.msra.mxu0 0.0
        %6349 = vmatpush.xpose.msra.mxu0 0.0
        %6350 = vmatpush.xpose.msra.mxu0 0.0
        %6351 = vmatpush.xpose.msra.mxu0 0.0
        %6352 = vmatpush.xpose.msra.mxu0 0.0
        %6353 = vmatpush.xpose.msra.mxu0 %v806
        %6354 = vmatpush.xpose.msra.mxu0 %v550
        %6355 = vmatmul.f32.gmra.mxu0 %v1189
        %v6356 = vpop.f32.mrf.mxu0
        %v6357 = vadd.f32 %v6337, %v6356
        %6358 = vdwg.mxu0
        %6359 = vmatpush.xpose.msra.mxu0 0.0
        %6360 = vmatpush.xpose.msra.mxu0 0.0
        %6361 = vmatpush.xpose.msra.mxu0 0.0
        %6362 = vmatpush.xpose.msra.mxu0 0.0
        %6363 = vmatpush.xpose.msra.mxu0 0.0
        %6364 = vmatpush.xpose.msra.mxu0 0.0
        %6365 = vmatpush.xpose.msra.mxu0 0.0
        %6366 = vmatpush.xpose.msra.mxu0 0.0
        %6367 = vmatpush.xpose.msra.mxu0 0.0
        %6368 = vmatpush.xpose.msra.mxu0 0.0
        %6369 = vmatpush.xpose.msra.mxu0 0.0
        %6370 = vmatpush.xpose.msra.mxu0 0.0
        %6371 = vmatpush.xpose.msra.mxu0 0.0
        %6372 = vmatpush.xpose.msra.mxu0 0.0
        %6373 = vmatpush.xpose.msra.mxu0 %v807
        %6374 = vmatpush.xpose.msra.mxu0 %v551
        %6375 = vmatmul.f32.gmra.mxu0 %v1190
        %v6376 = vpop.f32.mrf.mxu0
        %v6377 = vadd.f32 %v6357, %v6376
        %6378 = vdwg.mxu0
        %6379 = vmatpush.xpose.msra.mxu0 0.0
        %6380 = vmatpush.xpose.msra.mxu0 0.0
        %6381 = vmatpush.xpose.msra.mxu0 0.0
        %6382 = vmatpush.xpose.msra.mxu0 0.0
        %6383 = vmatpush.xpose.msra.mxu0 0.0
        %6384 = vmatpush.xpose.msra.mxu0 0.0
        %6385 = vmatpush.xpose.msra.mxu0 0.0
        %6386 = vmatpush.xpose.msra.mxu0 0.0
        %6387 = vmatpush.xpose.msra.mxu0 0.0
        %6388 = vmatpush.xpose.msra.mxu0 0.0
        %6389 = vmatpush.xpose.msra.mxu0 0.0
        %6390 = vmatpush.xpose.msra.mxu0 0.0
        %6391 = vmatpush.xpose.msra.mxu0 0.0
        %6392 = vmatpush.xpose.msra.mxu0 0.0
        %6393 = vmatpush.xpose.msra.mxu0 %v808
        %6394 = vmatpush.xpose.msra.mxu0 %v552
        %6395 = vmatmul.f32.gmra.mxu0 %v1191
        %v6396 = vpop.f32.mrf.mxu0
        %v6397 = vadd.f32 %v6377, %v6396
        %6398 = vdwg.mxu0
        %6399 = vmatpush.xpose.msra.mxu0 0.0
        %6400 = vmatpush.xpose.msra.mxu0 0.0
        %6401 = vmatpush.xpose.msra.mxu0 0.0
        %6402 = vmatpush.xpose.msra.mxu0 0.0
        %6403 = vmatpush.xpose.msra.mxu0 0.0
        %6404 = vmatpush.xpose.msra.mxu0 0.0
        %6405 = vmatpush.xpose.msra.mxu0 0.0
        %6406 = vmatpush.xpose.msra.mxu0 0.0
        %6407 = vmatpush.xpose.msra.mxu0 0.0
        %6408 = vmatpush.xpose.msra.mxu0 0.0
        %6409 = vmatpush.xpose.msra.mxu0 0.0
        %6410 = vmatpush.xpose.msra.mxu0 0.0
        %6411 = vmatpush.xpose.msra.mxu0 0.0
        %6412 = vmatpush.xpose.msra.mxu0 0.0
        %6413 = vmatpush.xpose.msra.mxu0 %v809
        %6414 = vmatpush.xpose.msra.mxu0 %v553
        %6415 = vmatmul.f32.gmra.mxu0 %v1192
        %v6416 = vpop.f32.mrf.mxu0
        %v6417 = vadd.f32 %v6397, %v6416
        %6418 = vdwg.mxu0
        %6419 = vmatpush.xpose.msra.mxu0 0.0
        %6420 = vmatpush.xpose.msra.mxu0 0.0
        %6421 = vmatpush.xpose.msra.mxu0 0.0
        %6422 = vmatpush.xpose.msra.mxu0 0.0
        %6423 = vmatpush.xpose.msra.mxu0 0.0
        %6424 = vmatpush.xpose.msra.mxu0 0.0
        %6425 = vmatpush.xpose.msra.mxu0 0.0
        %6426 = vmatpush.xpose.msra.mxu0 0.0
        %6427 = vmatpush.xpose.msra.mxu0 0.0
        %6428 = vmatpush.xpose.msra.mxu0 0.0
        %6429 = vmatpush.xpose.msra.mxu0 0.0
        %6430 = vmatpush.xpose.msra.mxu0 0.0
        %6431 = vmatpush.xpose.msra.mxu0 0.0
        %6432 = vmatpush.xpose.msra.mxu0 0.0
        %6433 = vmatpush.xpose.msra.mxu0 %v810
        %6434 = vmatpush.xpose.msra.mxu0 %v554
        %6435 = vmatmul.f32.gmra.mxu0 %v1195
        %v6436 = vpop.f32.mrf.mxu0
        %v6437 = vadd.f32 %v6417, %v6436
        %6438 = vdwg.mxu0
        %6439 = vmatpush.xpose.msra.mxu0 0.0
        %6440 = vmatpush.xpose.msra.mxu0 0.0
        %6441 = vmatpush.xpose.msra.mxu0 0.0
        %6442 = vmatpush.xpose.msra.mxu0 0.0
        %6443 = vmatpush.xpose.msra.mxu0 0.0
        %6444 = vmatpush.xpose.msra.mxu0 0.0
        %6445 = vmatpush.xpose.msra.mxu0 0.0
        %6446 = vmatpush.xpose.msra.mxu0 0.0
        %6447 = vmatpush.xpose.msra.mxu0 0.0
        %6448 = vmatpush.xpose.msra.mxu0 0.0
        %6449 = vmatpush.xpose.msra.mxu0 0.0
        %6450 = vmatpush.xpose.msra.mxu0 0.0
        %6451 = vmatpush.xpose.msra.mxu0 0.0
        %6452 = vmatpush.xpose.msra.mxu0 0.0
        %6453 = vmatpush.xpose.msra.mxu0 %v811
        %6454 = vmatpush.xpose.msra.mxu0 %v555
        %6455 = vmatmul.f32.gmra.mxu0 %v1196
        %v6456 = vpop.f32.mrf.mxu0
        %v6457 = vadd.f32 %v6437, %v6456
        %6458 = vdwg.mxu0
        %6459 = vmatpush.xpose.msra.mxu0 0.0
        %6460 = vmatpush.xpose.msra.mxu0 0.0
        %6461 = vmatpush.xpose.msra.mxu0 0.0
        %6462 = vmatpush.xpose.msra.mxu0 0.0
        %6463 = vmatpush.xpose.msra.mxu0 0.0
        %6464 = vmatpush.xpose.msra.mxu0 0.0
        %6465 = vmatpush.xpose.msra.mxu0 0.0
        %6466 = vmatpush.xpose.msra.mxu0 0.0
        %6467 = vmatpush.xpose.msra.mxu0 0.0
        %6468 = vmatpush.xpose.msra.mxu0 0.0
        %6469 = vmatpush.xpose.msra.mxu0 0.0
        %6470 = vmatpush.xpose.msra.mxu0 0.0
        %6471 = vmatpush.xpose.msra.mxu0 0.0
        %6472 = vmatpush.xpose.msra.mxu0 0.0
        %6473 = vmatpush.xpose.msra.mxu0 %v812
        %6474 = vmatpush.xpose.msra.mxu0 %v556
        %6475 = vmatmul.f32.gmra.mxu0 %v1197
        %v6476 = vpop.f32.mrf.mxu0
        %v6477 = vadd.f32 %v6457, %v6476
        %6478 = vdwg.mxu0
        %6479 = vmatpush.xpose.msra.mxu0 0.0
        %6480 = vmatpush.xpose.msra.mxu0 0.0
        %6481 = vmatpush.xpose.msra.mxu0 0.0
        %6482 = vmatpush.xpose.msra.mxu0 0.0
        %6483 = vmatpush.xpose.msra.mxu0 0.0
        %6484 = vmatpush.xpose.msra.mxu0 0.0
        %6485 = vmatpush.xpose.msra.mxu0 0.0
        %6486 = vmatpush.xpose.msra.mxu0 0.0
        %6487 = vmatpush.xpose.msra.mxu0 0.0
        %6488 = vmatpush.xpose.msra.mxu0 0.0
        %6489 = vmatpush.xpose.msra.mxu0 0.0
        %6490 = vmatpush.xpose.msra.mxu0 0.0
        %6491 = vmatpush.xpose.msra.mxu0 0.0
        %6492 = vmatpush.xpose.msra.mxu0 0.0
        %6493 = vmatpush.xpose.msra.mxu0 %v813
        %6494 = vmatpush.xpose.msra.mxu0 %v557
        %6495 = vmatmul.f32.gmra.mxu0 %v1198
        %v6496 = vpop.f32.mrf.mxu0
        %v6497 = vadd.f32 %v6477, %v6496
        %6498 = vdwg.mxu0
        %6499 = vmatpush.xpose.msra.mxu0 0.0
        %6500 = vmatpush.xpose.msra.mxu0 0.0
        %6501 = vmatpush.xpose.msra.mxu0 0.0
        %6502 = vmatpush.xpose.msra.mxu0 0.0
        %6503 = vmatpush.xpose.msra.mxu0 0.0
        %6504 = vmatpush.xpose.msra.mxu0 0.0
        %6505 = vmatpush.xpose.msra.mxu0 0.0
        %6506 = vmatpush.xpose.msra.mxu0 0.0
        %6507 = vmatpush.xpose.msra.mxu0 0.0
        %6508 = vmatpush.xpose.msra.mxu0 0.0
        %6509 = vmatpush.xpose.msra.mxu0 0.0
        %6510 = vmatpush.xpose.msra.mxu0 0.0
        %6511 = vmatpush.xpose.msra.mxu0 0.0
        %6512 = vmatpush.xpose.msra.mxu0 0.0
        %6513 = vmatpush.xpose.msra.mxu0 %v814
        %6514 = vmatpush.xpose.msra.mxu0 %v558
        %6515 = vmatmul.f32.gmra.mxu0 %v1199
        %v6516 = vpop.f32.mrf.mxu0
        %v6517 = vadd.f32 %v6497, %v6516
        %6518 = vdwg.mxu0
        %6519 = vmatpush.xpose.msra.mxu0 0.0
        %6520 = vmatpush.xpose.msra.mxu0 0.0
        %6521 = vmatpush.xpose.msra.mxu0 0.0
        %6522 = vmatpush.xpose.msra.mxu0 0.0
        %6523 = vmatpush.xpose.msra.mxu0 0.0
        %6524 = vmatpush.xpose.msra.mxu0 0.0
        %6525 = vmatpush.xpose.msra.mxu0 0.0
        %6526 = vmatpush.xpose.msra.mxu0 0.0
        %6527 = vmatpush.xpose.msra.mxu0 0.0
        %6528 = vmatpush.xpose.msra.mxu0 0.0
        %6529 = vmatpush.xpose.msra.mxu0 0.0
        %6530 = vmatpush.xpose.msra.mxu0 0.0
        %6531 = vmatpush.xpose.msra.mxu0 0.0
        %6532 = vmatpush.xpose.msra.mxu0 0.0
        %6533 = vmatpush.xpose.msra.mxu0 %v815
        %6534 = vmatpush.xpose.msra.mxu0 %v559
        %6535 = vmatmul.f32.gmra.mxu0 %v1200
        %v6536 = vpop.f32.mrf.mxu0
        %v6537 = vadd.f32 %v6517, %v6536
        %6538 = vdwg.mxu0
        %6539 = vmatpush.xpose.msra.mxu0 0.0
        %6540 = vmatpush.xpose.msra.mxu0 0.0
        %6541 = vmatpush.xpose.msra.mxu0 0.0
        %6542 = vmatpush.xpose.msra.mxu0 0.0
        %6543 = vmatpush.xpose.msra.mxu0 0.0
        %6544 = vmatpush.xpose.msra.mxu0 0.0
        %6545 = vmatpush.xpose.msra.mxu0 0.0
        %6546 = vmatpush.xpose.msra.mxu0 0.0
        %6547 = vmatpush.xpose.msra.mxu0 0.0
        %6548 = vmatpush.xpose.msra.mxu0 0.0
        %6549 = vmatpush.xpose.msra.mxu0 0.0
        %6550 = vmatpush.xpose.msra.mxu0 0.0
        %6551 = vmatpush.xpose.msra.mxu0 0.0
        %6552 = vmatpush.xpose.msra.mxu0 0.0
        %6553 = vmatpush.xpose.msra.mxu0 %v816
        %6554 = vmatpush.xpose.msra.mxu0 %v560
        %6555 = vmatmul.f32.gmra.mxu0 %v1201
        %v6556 = vpop.f32.mrf.mxu0
        %v6557 = vadd.f32 %v6537, %v6556
        %6558 = vdwg.mxu0
        %6559 = vmatpush.xpose.msra.mxu0 0.0
        %6560 = vmatpush.xpose.msra.mxu0 0.0
        %6561 = vmatpush.xpose.msra.mxu0 0.0
        %6562 = vmatpush.xpose.msra.mxu0 0.0
        %6563 = vmatpush.xpose.msra.mxu0 0.0
        %6564 = vmatpush.xpose.msra.mxu0 0.0
        %6565 = vmatpush.xpose.msra.mxu0 0.0
        %6566 = vmatpush.xpose.msra.mxu0 0.0
        %6567 = vmatpush.xpose.msra.mxu0 0.0
        %6568 = vmatpush.xpose.msra.mxu0 0.0
        %6569 = vmatpush.xpose.msra.mxu0 0.0
        %6570 = vmatpush.xpose.msra.mxu0 0.0
        %6571 = vmatpush.xpose.msra.mxu0 0.0
        %6572 = vmatpush.xpose.msra.mxu0 0.0
        %6573 = vmatpush.xpose.msra.mxu0 %v817
        %6574 = vmatpush.xpose.msra.mxu0 %v561
        %6575 = vmatmul.f32.gmra.mxu0 %v1202
        %v6576 = vpop.f32.mrf.mxu0
        %v6577 = vadd.f32 %v6557, %v6576
        %6578 = vdwg.mxu0
        %v6579 = vadd.f32 %v241, %v6577
        %vm6580 = vcmask 74752
        %6581 = vst.msk [vmem:[#allocation8] sm:$0x3] %vm6580, %v6579
        %p6582 = scmp.eq.s32.totalorder %s21, 5
        // Predicated region
        $region49: #{tudui_forward.1} parent=31 // pred_check
          %p6583 = pneg %p6582
        $region50: #{tudui_forward.1} parent=31 // pred_check_branch
          %6585 = sbr.rel (%p6583) target = $region52
        $region51: #{tudui_forward.1} parent=31 // pred_region
          %v6586 = vld [vmem:[#allocation8] sm:$0x3]
          %v6587 = vld [vmem:[#allocation7] sm:$0x1]
          %v6589 = vperm.slane %v6587, 0
          %v6591 = vadd.f32 %v6586, %v6589
          %6592 = vst.msk [vmem:[#allocation8] sm:$0x3] %vm6580, %v6591
        $region52: #{tudui_forward.1} parent=31 // pred_fallthru
          _
        // Predicated region
        $region53: #{tudui_forward.1} parent=31 // pred_check
          %p6593 = pneg %p107
        $region54: #{tudui_forward.1} parent=31 // pred_check_branch
          %6595 = sbr.rel (%p6593) target = $region56
        $region55: #{tudui_forward.1} parent=31 // pred_region
          %6597 = vsyncadd [#allocation4], 0
          %s6599 = sshll.u32 [#allocation8], 4
          %s6600 = int_to_ptr.vmem [resolvable:$true] %s6599
          %s6601 = sshll.u32 %s3, 4
          %s6602 = int_to_ptr.hbm [resolvable:$true] %s6601
          %6604 = dma.vmem_to_hbm [thread:$0]  %s6600, 32, %s6602, [#allocation4]
        $region56: #{tudui_forward.1} parent=31 // pred_fallthru
          _
        // Predicated region
        $region57: #{tudui_forward.1} parent=31 // pred_check
          %p6605 = pneg %p107
        $region58: #{tudui_forward.1} parent=31 // pred_check_branch
          %6607 = sbr.rel (%p6605) target = $region60
        $region59: #{tudui_forward.1} parent=31 // pred_region
          %6609 = dma.done [#allocation4], 32
        $region60: #{tudui_forward.1} parent=31 // pred_fallthru
          _
      $region32: #{tudui_forward.1} parent=5 // pred_fallthru
        _
      %p6610 = scmp.le.s32.totalorder 2, %s16
      // Predicated region
      $region61: #{tudui_forward.1} parent=5 // pred_check
        %p6611 = pneg %p6610
      $region62: #{tudui_forward.1} parent=5 // pred_check_branch
        %6613 = sbr.rel (%p6611) target = $region64
      $region63: #{tudui_forward.1} parent=5 // pred_region
        %s6614 = ssub.s32 %s16, 2
      $region64: #{tudui_forward.1} parent=5 // pred_fallthru
        _
    $region6: #{tudui_forward.1} parent=1 // loop_footer
      %s20 = sadd.s32 1, %s16
    $region7: #{tudui_forward.1} parent=1 // loop_footer_branch
      %15 = sbr.rel target = $region3
    $region8: #{tudui_forward.1} parent=1 // loop_exit
      _
    %6615 = vsyncpa [#allocation3], 1
    %s6616 = scalar_lea.sflag [#allocation3], 1
    %6617 = vsyncpa %s6616, 1
    %6618 = vsyncpa [#allocation6], 1
    %s6619 = scalar_lea.sflag [#allocation6], 1
    %6620 = vsyncpa %s6619, 1
    %6621 = vsyncpa [#allocation4], 1
    %s6622 = scalar_lea.sflag [#allocation4], 1
    %6623 = vsyncpa %s6622, 1

</llo_original>
